<compile_context>
chip_gen: v7x
topology: tpu7x:2x2x1
jax: 0.10.0
libtpu: 0.0.40
codegen_flags: <defaults>
</compile_context>

<pallas_src>
import math
from functools import partial

import numpy as np
import jax
import jax.numpy as jnp
from jax import lax
from jax.experimental import pallas as pl
from jax.experimental.pallas import tpu as pltpu


# ----------------------------------------------------------------------------
# Tiling / compiler-param helpers
# ----------------------------------------------------------------------------
def _pick_tile(n, target, align, min_steps=1):
    """Tile that divides n, is a multiple of `align` (or the full dim), prefers
    <= target, and (when possible) yields at least `min_steps` grid steps."""
    if n <= align or n % align != 0:
        return n
    divisors = [t for t in range(align, n + 1, align) if n % t == 0]
    under = [t for t in divisors if t <= target] or [min(divisors)]
    good = [t for t in under if n // t >= min_steps]
    return max(good) if good else min(under)


def _nbytes(shape, dtype):
    return math.prod(shape) * np.dtype(dtype).itemsize


def _compiler_params(dims, block_bytes):
    # Double-buffered blocks + headroom; bounded so it stays sane on v7x (64 MiB).
    limit = int(min(100 << 20, max(24 << 20, 3 * block_bytes + (2 << 20))))
    return pltpu.CompilerParams(dimension_semantics=dims, vmem_limit_bytes=limit)


_DEF_TM = 256


# ----------------------------------------------------------------------------
# Pallas kernels
# ----------------------------------------------------------------------------
def _matmul_bias_kernel(x_ref, w_ref, b_ref, o_ref):
    # x: f32/bf16 activations, w: bf16 weights, bias f32, f32 accumulate.
    x = x_ref[...].astype(jnp.bfloat16)
    y = jnp.dot(x, w_ref[...], preferred_element_type=jnp.float32) + b_ref[...]
    o_ref[...] = y.astype(o_ref.dtype)


def _qkv_split_kernel(x_ref, w_ref, b_ref, q_ref, k_ref, v_ref):
    # Fallback for d_model % 128 != 0: one wide matmul, three full-width stores
    # (each output array's last dim equals d_model, so stores stay legal).
    x = x_ref[...].astype(jnp.bfloat16)
    y = jnp.dot(x, w_ref[...], preferred_element_type=jnp.float32) + b_ref[...]
    d = q_ref.shape[-1]
    q_ref[...] = y[:, :d].astype(q_ref.dtype)
    k_ref[...] = y[:, d:2 * d].astype(k_ref.dtype)
    v_ref[...] = y[:, 2 * d:].astype(v_ref.dtype)


def _kv_split_kernel(x_ref, w_ref, b_ref, k_ref, v_ref):
    x = x_ref[...].astype(jnp.bfloat16)
    y = jnp.dot(x, w_ref[...], preferred_element_type=jnp.float32) + b_ref[...]
    d = k_ref.shape[-1]
    k_ref[...] = y[:, :d].astype(k_ref.dtype)
    v_ref[...] = y[:, d:].astype(v_ref.dtype)


def _proj_add_ln_kernel(x_ref, w_ref, b_ref, r_ref, g_ref, beta_ref, o_ref, acc_ref):
    # Fused out-projection (K tiled as a reduction axis) + bias + residual + LayerNorm.
    k = pl.program_id(1)

    @pl.when(k == 0)
    def _():
        acc_ref[...] = jnp.zeros_like(acc_ref)

    x = x_ref[...].astype(jnp.bfloat16)
    acc_ref[...] += jnp.dot(x, w_ref[...], preferred_element_type=jnp.float32)

    @pl.when(k == pl.num_programs(1) - 1)
    def _():
        h = acc_ref[...] + b_ref[...] + r_ref[...]
        mu = jnp.mean(h, axis=-1, keepdims=True)
        var = jnp.mean((h - mu) ** 2, axis=-1, keepdims=True)
        o_ref[...] = (h - mu) * lax.rsqrt(var + 1e-5) * g_ref[...] + beta_ref[...]


def _ffn_add_ln_kernel(x_ref, w1_ref, b1_ref, w2_ref, b2_ref, g_ref, beta_ref,
                       o_ref, acc_ref):
    # Fused FFN + residual + LayerNorm, hidden dim F tiled as a reduction axis.
    j = pl.program_id(1)

    @pl.when(j == 0)
    def _():
        acc_ref[...] = jnp.zeros_like(acc_ref)

    xb = x_ref[...].astype(jnp.bfloat16)
    h = jnp.dot(xb, w1_ref[...], preferred_element_type=jnp.float32) + b1_ref[...]
    h = jnp.maximum(h, 0.0).astype(jnp.bfloat16)
    acc_ref[...] += jnp.dot(h, w2_ref[...], preferred_element_type=jnp.float32)

    @pl.when(j == pl.num_programs(1) - 1)
    def _():
        # x_ref holds the same (i, 0) block across the F axis -> residual.
        y = acc_ref[...] + b2_ref[...] + x_ref[...]
        mu = jnp.mean(y, axis=-1, keepdims=True)
        var = jnp.mean((y - mu) ** 2, axis=-1, keepdims=True)
        o_ref[...] = (y - mu) * lax.rsqrt(var + 1e-5) * g_ref[...] + beta_ref[...]


def _layernorm_kernel(x_ref, g_ref, b_ref, o_ref):
    h = x_ref[...].astype(jnp.float32)
    mu = jnp.mean(h, axis=-1, keepdims=True)
    var = jnp.mean((h - mu) ** 2, axis=-1, keepdims=True)
    o_ref[...] = (h - mu) * lax.rsqrt(var + 1e-5) * g_ref[...] + b_ref[...]


def _flash_body(q_ref, k_ref, v_ref, o_ref, m_sc, l_sc, acc_sc, mask, causal, nhead):
    # Flash-style attention, all heads batched, online softmax over Lk tiles.
    qi = pl.program_id(1)
    ki = pl.program_id(2)
    tq, d_model = q_ref.shape[1], q_ref.shape[2]
    tk = k_ref.shape[1]
    dh = d_model // nhead
    scale = 1.0 / math.sqrt(dh)

    @pl.when(ki == 0)
    def _():
        m_sc[...] = jnp.full_like(m_sc, -1e30)
        l_sc[...] = jnp.zeros_like(l_sc)
        acc_sc[...] = jnp.zeros_like(acc_sc)

    def compute():
        # (tq, D) -> (H, tq, dh): one relayout per tile (no per-head loop/concat).
        q = jnp.transpose((q_ref[0] * scale).reshape(tq, nhead, dh), (1, 0, 2))
        k = jnp.transpose(k_ref[0].reshape(tk, nhead, dh), (1, 0, 2))
        v = jnp.transpose(v_ref[0].reshape(tk, nhead, dh), (1, 0, 2))
        s = jnp.einsum('hqd,hkd->hqk', q, k,
                       preferred_element_type=jnp.float32)        # (H, tq, tk)
        if mask is not None:
            s = s + mask[None, :, :]
        if causal:
            row = lax.broadcasted_iota(jnp.int32, (tq, tk), 0) + qi * tq
            col = lax.broadcasted_iota(jnp.int32, (tq, tk), 1) + ki * tk
            s = jnp.where((col <= row)[None, :, :], s, -1e30)
        m_prev = m_sc[...]
        m_new = jnp.maximum(m_prev, jnp.max(s, axis=-1, keepdims=True))
        alpha = jnp.exp(m_prev - m_new)
        p = jnp.exp(s - m_new)
        l_sc[...] = alpha * l_sc[...] + jnp.sum(p, axis=-1, keepdims=True)
        acc_sc[...] = alpha * acc_sc[...] + jnp.einsum(
            'hqk,hkd->hqd', p.astype(jnp.bfloat16), v,
            preferred_element_type=jnp.float32)
        m_sc[...] = m_new

    if causal:
        # Skip key tiles that are entirely in the future of this query tile.
        pl.when(ki * tk <= qi * tq + (tq - 1))(compute)
    else:
        compute()

    @pl.when(ki == pl.num_programs(2) - 1)
    def _():
        out = acc_sc[...] * pl.reciprocal(l_sc[...], approx=True)   # (H, tq, dh)
        out = jnp.transpose(out, (1, 0, 2)).reshape(tq, d_model)
        o_ref[0] = out.astype(o_ref.dtype)


def _flash_nomask_kernel(q_ref, k_ref, v_ref, o_ref, m_sc, l_sc, acc_sc, *,
                         nhead, causal):
    _flash_body(q_ref, k_ref, v_ref, o_ref, m_sc, l_sc, acc_sc, None, causal, nhead)


def _flash_masked_kernel(q_ref, k_ref, v_ref, mask_ref, o_ref, m_sc, l_sc, acc_sc, *,
                         nhead, causal):
    _flash_body(q_ref, k_ref, v_ref, o_ref, m_sc, l_sc, acc_sc, mask_ref[...],
                causal, nhead)


# ----------------------------------------------------------------------------
# Pallas wrappers
# ----------------------------------------------------------------------------
def linear(x2d, w, b, *, out_dtype=jnp.bfloat16, tm_target=_DEF_TM, tn_target=1024):
    """(M,K) @ (K,N) + b, row- and column-tiled; bf16 weights, f32 accumulate."""
    M, K = x2d.shape
    N = w.shape[1]
    tm = _pick_tile(M, tm_target, 8, min_steps=4)
    tn = _pick_tile(N, tn_target, 128)
    blk = (_nbytes((tm, K), x2d.dtype) + _nbytes((K, tn), w.dtype)
           + _nbytes((1, tn), jnp.float32) + _nbytes((tm, tn), out_dtype))
    return pl.pallas_call(
        _matmul_bias_kernel,
        out_shape=jax.ShapeDtypeStruct((M, N), out_dtype),
        grid=(M // tm, N // tn),
        in_specs=[
            pl.BlockSpec((tm, K), lambda i, j: (i, 0)),
            pl.BlockSpec((K, tn), lambda i, j: (0, j)),
            pl.BlockSpec((1, tn), lambda i, j: (0, j)),
        ],
        out_specs=pl.BlockSpec((tm, tn), lambda i, j: (i, j)),
        compiler_params=_compiler_params(("parallel", "parallel"), blk),
    )(x2d, w, b.reshape(1, N))


def qkv_projection_split(x2d, w_qkv, b_qkv, *, tm_target=_DEF_TM):
    """Fallback (d_model % 128 != 0): fused QKV matmul, three separate outputs."""
    M, K = x2d.shape
    D = w_qkv.shape[1] // 3
    tm = _pick_tile(M, tm_target, 8, min_steps=4)
    out = jax.ShapeDtypeStruct((M, D), jnp.bfloat16)
    blk = (_nbytes((tm, K), x2d.dtype) + _nbytes((K, 3 * D), w_qkv.dtype)
           + _nbytes((1, 3 * D), jnp.float32) + 3 * _nbytes((tm, D), jnp.bfloat16))
    return pl.pallas_call(
        _qkv_split_kernel,
        out_shape=(out, out, out),
        grid=(M // tm,),
        in_specs=[
            pl.BlockSpec((tm, K), lambda i: (i, 0)),
            pl.BlockSpec((K, 3 * D), lambda i: (0, 0)),
            pl.BlockSpec((1, 3 * D), lambda i: (0, 0)),
        ],
        out_specs=(
            pl.BlockSpec((tm, D), lambda i: (i, 0)),
            pl.BlockSpec((tm, D), lambda i: (i, 0)),
            pl.BlockSpec((tm, D), lambda i: (i, 0)),
        ),
        compiler_params=_compiler_params(("parallel",), blk),
    )(x2d, w_qkv, b_qkv.reshape(1, 3 * D))


def kv_projection_split(x2d, w_kv, b_kv, *, tm_target=_DEF_TM):
    M, K = x2d.shape
    D = w_kv.shape[1] // 2
    tm = _pick_tile(M, tm_target, 8, min_steps=4)
    out = jax.ShapeDtypeStruct((M, D), jnp.bfloat16)
    blk = (_nbytes((tm, K), x2d.dtype) + _nbytes((K, 2 * D), w_kv.dtype)
           + _nbytes((1, 2 * D), jnp.float32) + 2 * _nbytes((tm, D), jnp.bfloat16))
    return pl.pallas_call(
        _kv_split_kernel,
        out_shape=(out, out),
        grid=(M // tm,),
        in_specs=[
            pl.BlockSpec((tm, K), lambda i: (i, 0)),
            pl.BlockSpec((K, 2 * D), lambda i: (0, 0)),
            pl.BlockSpec((1, 2 * D), lambda i: (0, 0)),
        ],
        out_specs=(
            pl.BlockSpec((tm, D), lambda i: (i, 0)),
            pl.BlockSpec((tm, D), lambda i: (i, 0)),
        ),
        compiler_params=_compiler_params(("parallel",), blk),
    )(x2d, w_kv, b_kv.reshape(1, 2 * D))


def proj_add_layernorm(x2d, w, b, res2d, g, beta, *, tm_target=_DEF_TM, tk_target=512):
    """LayerNorm(res + x @ w + b), K tiled as reduction with a VMEM accumulator."""
    M, K = x2d.shape
    D = w.shape[1]
    tm = _pick_tile(M, tm_target, 8, min_steps=4)
    tk = _pick_tile(K, tk_target, 128)
    blk = (_nbytes((tm, tk), x2d.dtype) + _nbytes((tk, D), w.dtype)
           + _nbytes((tm, D), res2d.dtype) + 4 * _nbytes((1, D), jnp.float32)
           + 2 * _nbytes((tm, D), jnp.float32))
    return pl.pallas_call(
        _proj_add_ln_kernel,
        out_shape=jax.ShapeDtypeStruct((M, D), jnp.float32),
        grid=(M // tm, K // tk),
        in_specs=[
            pl.BlockSpec((tm, tk), lambda i, k: (i, k)),
            pl.BlockSpec((tk, D), lambda i, k: (k, 0)),
            pl.BlockSpec((1, D), lambda i, k: (0, 0)),
            pl.BlockSpec((tm, D), lambda i, k: (i, 0)),
            pl.BlockSpec((1, D), lambda i, k: (0, 0)),
            pl.BlockSpec((1, D), lambda i, k: (0, 0)),
        ],
        out_specs=pl.BlockSpec((tm, D), lambda i, k: (i, 0)),
        scratch_shapes=[pltpu.VMEM((tm, D), jnp.float32)],
        compiler_params=_compiler_params(("parallel", "arbitrary"), blk),
    )(x2d, w, b.reshape(1, D), res2d, g.reshape(1, D), beta.reshape(1, D))


def ffn_add_layernorm(x2d, w1, b1, w2, b2, g, beta, *,
                      tm_target=_DEF_TM, tf_target=1024):
    """LayerNorm(x + relu(x @ w1 + b1) @ w2 + b2), tiled over rows and hidden F."""
    M, D = x2d.shape
    F = w1.shape[1]
    tm = _pick_tile(M, tm_target, 8, min_steps=4)
    # TODO(synk): drop tf_target to ~512 on v7x (64 MiB VMEM) for very large d_model.
    tf = _pick_tile(F, tf_target, 128)
    blk = (_nbytes((tm, D), x2d.dtype) + _nbytes((D, tf), w1.dtype)
           + _nbytes((1, tf), jnp.float32) + _nbytes((tf, D), w2.dtype)
           + 3 * _nbytes((1, D), jnp.float32) + 2 * _nbytes((tm, D), jnp.float32))
    return pl.pallas_call(
        _ffn_add_ln_kernel,
        out_shape=jax.ShapeDtypeStruct((M, D), jnp.float32),
        grid=(M // tm, F // tf),
        in_specs=[
            pl.BlockSpec((tm, D), lambda i, j: (i, 0)),
            pl.BlockSpec((D, tf), lambda i, j: (0, j)),
            pl.BlockSpec((1, tf), lambda i, j: (0, j)),
            pl.BlockSpec((tf, D), lambda i, j: (j, 0)),
            pl.BlockSpec((1, D), lambda i, j: (0, 0)),
            pl.BlockSpec((1, D), lambda i, j: (0, 0)),
            pl.BlockSpec((1, D), lambda i, j: (0, 0)),
        ],
        out_specs=pl.BlockSpec((tm, D), lambda i, j: (i, 0)),
        scratch_shapes=[pltpu.VMEM((tm, D), jnp.float32)],
        compiler_params=_compiler_params(("parallel", "arbitrary"), blk),
    )(x2d, w1, b1.reshape(1, F), w2, b2.reshape(1, D),
      g.reshape(1, D), beta.reshape(1, D))


def layernorm(x, g, b, *, tm_target=_DEF_TM):
    B, L, D = x.shape
    M = B * L
    tm = _pick_tile(M, tm_target, 8, min_steps=4)
    blk = (_nbytes((tm, D), x.dtype) + 2 * _nbytes((1, D), jnp.float32)
           + _nbytes((tm, D), jnp.float32))
    out = pl.pallas_call(
        _layernorm_kernel,
        out_shape=jax.ShapeDtypeStruct((M, D), jnp.float32),
        grid=(M // tm,),
        in_specs=[
            pl.BlockSpec((tm, D), lambda i: (i, 0)),
            pl.BlockSpec((1, D), lambda i: (0, 0)),
            pl.BlockSpec((1, D), lambda i: (0, 0)),
        ],
        out_specs=pl.BlockSpec((tm, D), lambda i: (i, 0)),
        compiler_params=_compiler_params(("parallel",), blk),
    )(x.reshape(M, D), g.reshape(1, D), b.reshape(1, D))
    return out.reshape(B, L, D)


def flash_attention(q_arr, k_arr, v_arr, q_col, k_col, v_col, d_model, nhead,
                    mask=None, causal=False, tq_target=256, tk_target=512):
    """Flash-style MHA. q_arr/k_arr/v_arr: (B, L, n*d_model); *_col selects the
    d_model-wide column block holding Q/K/V (lets a fused QKV/KV tensor be consumed
    directly, no HBM split). Additive (Lq, Lk) mask and/or in-kernel causal mask."""
    B, Lq = q_arr.shape[0], q_arr.shape[1]
    Lk = k_arr.shape[1]
    dh = d_model // nhead
    tq = _pick_tile(Lq, tq_target, 8)
    tk = _pick_tile(Lk, tk_target, 128 if mask is not None else 8)
    grid = (B, Lq // tq, Lk // tk)

    q_spec = pl.BlockSpec((1, tq, d_model), lambda b, qi, ki: (b, qi, q_col))
    k_spec = pl.BlockSpec((1, tk, d_model), lambda b, qi, ki: (b, ki, k_col))
    v_spec = pl.BlockSpec((1, tk, d_model), lambda b, qi, ki: (b, ki, v_col))
    out_spec = pl.BlockSpec((1, tq, d_model), lambda b, qi, ki: (b, qi, 0))
    scratch = [pltpu.VMEM((nhead, tq, 1), jnp.float32),
               pltpu.VMEM((nhead, tq, 1), jnp.float32),
               pltpu.VMEM((nhead, tq, dh), jnp.float32)]
    blk = (_nbytes((1, tq, d_model), q_arr.dtype)
           + 2 * _nbytes((1, tk, d_model), k_arr.dtype)
           + _nbytes((1, tq, d_model), jnp.bfloat16)
           + 2 * _nbytes((nhead, tq, 1), jnp.float32)
           + _nbytes((nhead, tq, dh), jnp.float32)
           + 2 * _nbytes((nhead, tq, tk), jnp.float32))

    if mask is None:
        kernel = partial(_flash_nomask_kernel, nhead=nhead, causal=causal)
        in_specs = [q_spec, k_spec, v_spec]
        args = (q_arr, k_arr, v_arr)
    else:
        kernel = partial(_flash_masked_kernel, nhead=nhead, causal=causal)
        in_specs = [q_spec, k_spec, v_spec,
                    pl.BlockSpec((tq, tk), lambda b, qi, ki: (qi, ki))]
        args = (q_arr, k_arr, v_arr, mask.astype(jnp.float32))
        blk += _nbytes((tq, tk), jnp.float32)

    return pl.pallas_call(
        kernel,
        out_shape=jax.ShapeDtypeStruct((B, Lq, d_model), jnp.bfloat16),
        grid=grid,
        in_specs=in_specs,
        out_specs=out_spec,
        scratch_shapes=scratch,
        compiler_params=_compiler_params(("parallel", "parallel", "arbitrary"), blk),
    )(*args)


# ----------------------------------------------------------------------------
# Decoder layer / stack
# ----------------------------------------------------------------------------
def self_attention_block(x, p, tgt_mask, causal, ln_g, ln_b, nhead):
    B, L, D = x.shape
    x2d = x.reshape(B * L, D)
    if D % 128 == 0:
        # Fused QKV projection -> one lane-dense (B, L, 3D) tensor; attention reads
        # Q/K/V as column blocks of it directly (no HBM split stage).
        qkv = linear(x2d, p["w_qkv"], p["b_qkv"]).reshape(B, L, 3 * D)
        attn = flash_attention(qkv, qkv, qkv, 0, 1, 2, D, nhead,
                               mask=tgt_mask, causal=causal)
    else:
        q, k, v = qkv_projection_split(x2d, p["w_qkv"], p["b_qkv"])
        attn = flash_attention(q.reshape(B, L, D), k.reshape(B, L, D),
                               v.reshape(B, L, D), 0, 0, 0, D, nhead,
                               mask=tgt_mask, causal=causal)
    out = proj_add_layernorm(attn.reshape(B * L, D), p["wo"], p["bo"],
                             x2d, ln_g, ln_b)
    return out.reshape(B, L, D)


def cross_attention_block(x, memory, p, memory_mask, ln_g, ln_b, nhead):
    B, Lq, D = x.shape
    Lk = memory.shape[1]
    x2d = x.reshape(B * Lq, D)
    q = linear(x2d, p["wq"], p["bq"]).reshape(B, Lq, D)
    if D % 128 == 0:
        kv = linear(memory.reshape(B * Lk, D), p["w_kv"], p["b_kv"]
                    ).reshape(B, Lk, 2 * D)
        attn = flash_attention(q, kv, kv, 0, 0, 1, D, nhead, mask=memory_mask)
    else:
        k, v = kv_projection_split(memory.reshape(B * Lk, D), p["w_kv"], p["b_kv"])
        attn = flash_attention(q, k.reshape(B, Lk, D), v.reshape(B, Lk, D),
                               0, 0, 0, D, nhead, mask=memory_mask)
    out = proj_add_layernorm(attn.reshape(B * Lq, D), p["wo"], p["bo"],
                             x2d, ln_g, ln_b)
    return out.reshape(B, Lq, D)


def decoder_layer(x, memory, p, tgt_mask, memory_mask, nhead, tgt_is_causal):
    x = self_attention_block(x, p["self_attn"], tgt_mask, tgt_is_causal,
                             p["ln1_g"], p["ln1_b"], nhead)
    if memory is not None:
        x = cross_attention_block(x, memory, p["cross_attn"], memory_mask,
                                  p["ln2_g"], p["ln2_b"], nhead)
    B, L, D = x.shape
    ff = ffn_add_layernorm(x.reshape(B * L, D), p["w1"], p["b1"], p["w2"], p["b2"],
                           p["ln3_g"], p["ln3_b"])
    return ff.reshape(B, L, D)


def transformer_decoder(tgt, memory, params, tgt_mask=None, memory_mask=None,
                        tgt_key_padding_mask=None, memory_key_padding_mask=None,
                        nhead=4, tgt_is_causal=False):
    # TODO(synk): tgt_key_padding_mask / memory_key_padding_mask and the
    # rotary_position_embedding_helper are not supported (must be None).
    # TODO(synk): wrap the layer loop in lax.scan over stacked params if num_layers grows.
    output = tgt
    for layer_p in params["layers"]:
        output = decoder_layer(output, memory, layer_p, tgt_mask, memory_mask,
                               nhead, tgt_is_causal)
    if params["final_norm"] is not None:
        output = layernorm(output, params["final_norm"]["g"], params["final_norm"]["b"])
    return output


# ----------------------------------------------------------------------------
# Deterministic parameter construction (matmul weights pre-cast to bf16)
# ----------------------------------------------------------------------------
def init_self_attn(key, d_model):
    ks = jax.random.split(key, 4)
    s = 0.02
    wq, wk, wv = (s * jax.random.normal(k, (d_model, d_model), jnp.float32)
                  for k in ks[:3])
    return {
        "w_qkv": jnp.concatenate([wq, wk, wv], axis=1).astype(jnp.bfloat16),
        "b_qkv": jnp.zeros((3 * d_model,), jnp.float32),
        "wo": (s * jax.random.normal(ks[3], (d_model, d_model), jnp.float32)
               ).astype(jnp.bfloat16),
        "bo": jnp.zeros((d_model,), jnp.float32),
    }


def init_cross_attn(key, d_model):
    ks = jax.random.split(key, 4)
    s = 0.02
    wq = s * jax.random.normal(ks[0], (d_model, d_model), jnp.float32)
    wk = s * jax.random.normal(ks[1], (d_model, d_model), jnp.float32)
    wv = s * jax.random.normal(ks[2], (d_model, d_model), jnp.float32)
    return {
        "wq": wq.astype(jnp.bfloat16),
        "bq": jnp.zeros((d_model,), jnp.float32),
        "w_kv": jnp.concatenate([wk, wv], axis=1).astype(jnp.bfloat16),
        "b_kv": jnp.zeros((2 * d_model,), jnp.float32),
        "wo": (s * jax.random.normal(ks[3], (d_model, d_model), jnp.float32)
               ).astype(jnp.bfloat16),
        "bo": jnp.zeros((d_model,), jnp.float32),
    }


def init_layer(key, d_model, dim_ff):
    ks = jax.random.split(key, 4)
    s = 0.02
    return {
        "self_attn": init_self_attn(ks[0], d_model),
        "cross_attn": init_cross_attn(ks[1], d_model),
        "w1": (s * jax.random.normal(ks[2], (d_model, dim_ff), jnp.float32)
               ).astype(jnp.bfloat16),
        "b1": jnp.zeros((dim_ff,), jnp.float32),
        "w2": (s * jax.random.normal(ks[3], (dim_ff, d_model), jnp.float32)
               ).astype(jnp.bfloat16),
        "b2": jnp.zeros((d_model,), jnp.float32),
        "ln1_g": jnp.ones((d_model,), jnp.float32),
        "ln1_b": jnp.zeros((d_model,), jnp.float32),
        "ln2_g": jnp.ones((d_model,), jnp.float32),
        "ln2_b": jnp.zeros((d_model,), jnp.float32),
        "ln3_g": jnp.ones((d_model,), jnp.float32),
        "ln3_b": jnp.zeros((d_model,), jnp.float32),
    }


def init_decoder(key, num_layers, d_model, dim_ff, with_final_norm=True):
    keys = jax.random.split(key, num_layers)
    return {
        "layers": [init_layer(k, d_model, dim_ff) for k in keys],
        "final_norm": (
            {"g": jnp.ones((d_model,), jnp.float32),
             "b": jnp.zeros((d_model,), jnp.float32)}
            if with_final_norm else None
        ),
    }


# ----------------------------------------------------------------------------
# main
# ----------------------------------------------------------------------------
if __name__ == "__main__":
    B, Lq, Lk = 2, 8, 16
    d_model, nhead, dim_ff, num_layers = 32, 4, 64, 2

    root = jax.random.PRNGKey(0)
    k_tgt, k_mem, k_par = jax.random.split(root, 3)

    tgt = jax.random.normal(k_tgt, (B, Lq, d_model), jnp.float32)
    memory = jax.random.normal(k_mem, (B, Lk, d_model), jnp.float32)
    params = init_decoder(k_par, num_layers, d_model, dim_ff, with_final_norm=True)

    # Fast path: causal tgt mask generated inside the attention kernel (no mask DMA).
    run_causal = jax.jit(partial(transformer_decoder, nhead=nhead, tgt_is_causal=True))
    out = jax.block_until_ready(run_causal(tgt, memory, params))

    # Cross-check against the explicit PyTorch-style additive tgt_mask path.
    causal_mask = jnp.where(
        jnp.tril(jnp.ones((Lq, Lq), jnp.bool_)), 0.0, -1e9
    ).astype(jnp.float32)
    run_masked = jax.jit(partial(transformer_decoder, nhead=nhead))
    out2 = jax.block_until_ready(run_masked(tgt, memory, params, tgt_mask=causal_mask))

    assert out.shape == (B, Lq, d_model)
    assert bool(jnp.all(jnp.isfinite(out)))
    assert bool(jnp.max(jnp.abs(out - out2)) < 5e-3)
    print("KERNEL_OK")
</pallas_src>

<mosaic_0001>
module attributes {stable_mosaic.version = 11 : i64} {
  func.func @_matmul_bias_kernel(%arg0: i32, %arg1: i32, %arg2: memref<8x32xf32, #tpu.memory_space<vmem>>, %arg3: memref<32x32xbf16, #tpu.memory_space<vmem>>, %arg4: memref<1x32xf32, #tpu.memory_space<vmem>>, %arg5: memref<8x32xbf16, #tpu.memory_space<vmem>>) attributes {dimension_semantics = [#tpu.dimension_semantics<parallel>, #tpu.dimension_semantics<parallel>], iteration_bounds = array<i64: 2, 1>, scalar_prefetch = 0 : i64, scratch_operands = 0 : i64, tpu.core_type = #tpu.core_type<tc>, window_params = [{transform_indices = @transform_0, window_bounds = array<i64: 8, 32>}, {transform_indices = @transform_1, window_bounds = array<i64: 32, 32>}, {transform_indices = @transform_2, window_bounds = array<i64: 1, 32>}, {transform_indices = @transform_3, window_bounds = array<i64: 8, 32>}]} {
    %c0 = arith.constant 0 : index
    %c0_0 = arith.constant 0 : index
    %0 = vector.load %arg2[%c0, %c0_0] : memref<8x32xf32, #tpu.memory_space<vmem>>, vector<8x32xf32>
    %1 = arith.truncf %0 : vector<8x32xf32> to vector<8x32xbf16>
    %c0_1 = arith.constant 0 : index
    %c0_2 = arith.constant 0 : index
    %2 = vector.load %arg3[%c0_1, %c0_2] : memref<32x32xbf16, #tpu.memory_space<vmem>>, vector<32x32xbf16>
    %cst = arith.constant dense<0.000000e+00> : vector<8x32xf32>
    %3 = tpu.matmul %1, %2, %cst {dimension_numbers = #tpu.dot_dimension_numbers<[1], [0], [0], [1], [0, 0, 1, 1], [], []>} : vector<8x32xbf16>, vector<32x32xbf16>, vector<8x32xf32> -> vector<8x32xf32>
    %c0_3 = arith.constant 0 : index
    %c0_4 = arith.constant 0 : index
    %4 = vector.load %arg4[%c0_3, %c0_4] : memref<1x32xf32, #tpu.memory_space<vmem>>, vector<1x32xf32>
    %5 = vector.broadcast %4 : vector<1x32xf32> to vector<8x32xf32>
    %6 = arith.addf %3, %5 : vector<8x32xf32>
    %7 = arith.truncf %6 : vector<8x32xf32> to vector<8x32xbf16>
    %c0_5 = arith.constant 0 : index
    %c0_6 = arith.constant 0 : index
    %8 = vector.load %arg5[%c0_5, %c0_6] : memref<8x32xbf16, #tpu.memory_space<vmem>>, vector<8x32xbf16>
    tpu.vector_store %arg5[%c0_5, %c0_6], %7 {strides = array<i32>} : memref<8x32xbf16, #tpu.memory_space<vmem>>, vector<8x32xbf16>,
    return
  }
  func.func @transform_0(%arg0: i32, %arg1: i32) -> (i32, i32) {
    %c0_i32 = arith.constant 0 : i32
    %c0_i32_0 = arith.constant 0 : i32
    return %arg0, %c0_i32 : i32, i32
  }
  func.func @transform_1(%arg0: i32, %arg1: i32) -> (i32, i32) {
    %c0_i32 = arith.constant 0 : i32
    %c0_i32_0 = arith.constant 0 : i32
    return %c0_i32, %arg1 : i32, i32
  }
  func.func @transform_2(%arg0: i32, %arg1: i32) -> (i32, i32) {
    %c0_i32 = arith.constant 0 : i32
    %c0_i32_0 = arith.constant 0 : i32
    return %c0_i32, %arg1 : i32, i32
  }
  func.func @transform_3(%arg0: i32, %arg1: i32) -> (i32, i32) {
    %c0_i32 = arith.constant 0 : i32
    return %arg0, %arg1 : i32, i32
  }
}

module attributes {stable_mosaic.version = 11 : i64} {
  func.func @_qkv_split_kernel(%arg0: i32, %arg1: memref<8x32xf32, #tpu.memory_space<vmem>>, %arg2: memref<32x96xbf16, #tpu.memory_space<vmem>>, %arg3: memref<1x96xf32, #tpu.memory_space<vmem>>, %arg4: memref<8x32xbf16, #tpu.memory_space<vmem>>, %arg5: memref<8x32xbf16, #tpu.memory_space<vmem>>, %arg6: memref<8x32xbf16, #tpu.memory_space<vmem>>) attributes {dimension_semantics = [#tpu.dimension_semantics<parallel>], iteration_bounds = array<i64: 2>, scalar_prefetch = 0 : i64, scratch_operands = 0 : i64, tpu.core_type = #tpu.core_type<tc>, window_params = [{transform_indices = @transform_0, window_bounds = array<i64: 8, 32>}, {pipeline_mode = #tpu.pipeline_mode<synchronous>, transform_indices = @transform_1, window_bounds = array<i64: 32, 96>}, {pipeline_mode = #tpu.pipeline_mode<synchronous>, transform_indices = @transform_2, window_bounds = array<i64: 1, 96>}, {transform_indices = @transform_3, window_bounds = array<i64: 8, 32>}, {transform_indices = @transform_4, window_bounds = array<i64: 8, 32>}, {transform_indices = @transform_5, window_bounds = array<i64: 8, 32>}]} {
    %c0 = arith.constant 0 : index
    %c0_0 = arith.constant 0 : index
    %0 = vector.load %arg1[%c0, %c0_0] : memref<8x32xf32, #tpu.memory_space<vmem>>, vector<8x32xf32>
    %1 = arith.truncf %0 : vector<8x32xf32> to vector<8x32xbf16>
    %c0_1 = arith.constant 0 : index
    %c0_2 = arith.constant 0 : index
    %2 = vector.load %arg2[%c0_1, %c0_2] : memref<32x96xbf16, #tpu.memory_space<vmem>>, vector<32x96xbf16>
    %cst = arith.constant dense<0.000000e+00> : vector<8x96xf32>
    %3 = tpu.matmul %1, %2, %cst {dimension_numbers = #tpu.dot_dimension_numbers<[1], [0], [0], [1], [0, 0, 1, 1], [], []>} : vector<8x32xbf16>, vector<32x96xbf16>, vector<8x96xf32> -> vector<8x96xf32>
    %c0_3 = arith.constant 0 : index
    %c0_4 = arith.constant 0 : index
    %4 = vector.load %arg3[%c0_3, %c0_4] : memref<1x96xf32, #tpu.memory_space<vmem>>, vector<1x96xf32>
    %5 = vector.broadcast %4 : vector<1x96xf32> to vector<8x96xf32>
    %6 = arith.addf %3, %5 : vector<8x96xf32>
    %7 = vector.extract_strided_slice %6 {offsets = [0, 0], sizes = [8, 32], strides = [1, 1]} : vector<8x96xf32> to vector<8x32xf32>
    %8 = arith.truncf %7 : vector<8x32xf32> to vector<8x32xbf16>
    %c0_5 = arith.constant 0 : index
    %c0_6 = arith.constant 0 : index
    %9 = vector.load %arg4[%c0_5, %c0_6] : memref<8x32xbf16, #tpu.memory_space<vmem>>, vector<8x32xbf16>
    tpu.vector_store %arg4[%c0_5, %c0_6], %8 {strides = array<i32>} : memref<8x32xbf16, #tpu.memory_space<vmem>>, vector<8x32xbf16>,
    %10 = vector.extract_strided_slice %6 {offsets = [0, 32], sizes = [8, 32], strides = [1, 1]} : vector<8x96xf32> to vector<8x32xf32>
    %11 = arith.truncf %10 : vector<8x32xf32> to vector<8x32xbf16>
    %c0_7 = arith.constant 0 : index
    %c0_8 = arith.constant 0 : index
    %12 = vector.load %arg5[%c0_7, %c0_8] : memref<8x32xbf16, #tpu.memory_space<vmem>>, vector<8x32xbf16>
    tpu.vector_store %arg5[%c0_7, %c0_8], %11 {strides = array<i32>} : memref<8x32xbf16, #tpu.memory_space<vmem>>, vector<8x32xbf16>,
    %13 = vector.extract_strided_slice %6 {offsets = [0, 64], sizes = [8, 32], strides = [1, 1]} : vector<8x96xf32> to vector<8x32xf32>
    %14 = arith.truncf %13 : vector<8x32xf32> to vector<8x32xbf16>
    %c0_9 = arith.constant 0 : index
    %c0_10 = arith.constant 0 : index
    %15 = vector.load %arg6[%c0_9, %c0_10] : memref<8x32xbf16, #tpu.memory_space<vmem>>, vector<8x32xbf16>
    tpu.vector_store %arg6[%c0_9, %c0_10], %14 {strides = array<i32>} : memref<8x32xbf16, #tpu.memory_space<vmem>>, vector<8x32xbf16>,
    return
  }
  func.func @transform_0(%arg0: i32) -> (i32, i32) {
    %c0_i32 = arith.constant 0 : i32
    %c0_i32_0 = arith.constant 0 : i32
    return %arg0, %c0_i32 : i32, i32
  }
  func.func @transform_1(%arg0: i32) -> (i32, i32) {
    %c0_i32 = arith.constant 0 : i32
    %c0_i32_0 = arith.constant 0 : i32
    %c0_i32_1 = arith.constant 0 : i32
    return %c0_i32, %c0_i32_0 : i32, i32
  }
  func.func @transform_2(%arg0: i32) -> (i32, i32) {
    %c0_i32 = arith.constant 0 : i32
    %c0_i32_0 = arith.constant 0 : i32
    %c0_i32_1 = arith.constant 0 : i32
    return %c0_i32, %c0_i32_0 : i32, i32
  }
  func.func @transform_3(%arg0: i32) -> (i32, i32) {
    %c0_i32 = arith.constant 0 : i32
    %c0_i32_0 = arith.constant 0 : i32
    return %arg0, %c0_i32 : i32, i32
  }
  func.func @transform_4(%arg0: i32) -> (i32, i32) {
    %c0_i32 = arith.constant 0 : i32
    %c0_i32_0 = arith.constant 0 : i32
    return %arg0, %c0_i32 : i32, i32
  }
  func.func @transform_5(%arg0: i32) -> (i32, i32) {
    %c0_i32 = arith.constant 0 : i32
    %c0_i32_0 = arith.constant 0 : i32
    return %arg0, %c0_i32 : i32, i32
  }
}

module attributes {stable_mosaic.version = 11 : i64} {
  func.func @_proj_add_ln_kernel(%arg0: i32, %arg1: i32, %arg2: memref<8x32xbf16, #tpu.memory_space<vmem>>, %arg3: memref<32x32xbf16, #tpu.memory_space<vmem>>, %arg4: memref<1x32xf32, #tpu.memory_space<vmem>>, %arg5: memref<8x32xf32, #tpu.memory_space<vmem>>, %arg6: memref<1x32xf32, #tpu.memory_space<vmem>>, %arg7: memref<1x32xf32, #tpu.memory_space<vmem>>, %arg8: memref<8x32xf32, #tpu.memory_space<vmem>>, %arg9: memref<8x32xf32, #tpu.memory_space<vmem>>) attributes {dimension_semantics = [#tpu.dimension_semantics<parallel>, #tpu.dimension_semantics<arbitrary>], iteration_bounds = array<i64: 2, 1>, scalar_prefetch = 0 : i64, scratch_operands = 1 : i64, tpu.core_type = #tpu.core_type<tc>, window_params = [{transform_indices = @transform_0, window_bounds = array<i64: 8, 32>}, {transform_indices = @transform_1, window_bounds = array<i64: 32, 32>}, {pipeline_mode = #tpu.pipeline_mode<synchronous>, transform_indices = @transform_2, window_bounds = array<i64: 1, 32>}, {transform_indices = @transform_3, window_bounds = array<i64: 8, 32>}, {pipeline_mode = #tpu.pipeline_mode<synchronous>, transform_indices = @transform_4, window_bounds = array<i64: 1, 32>}, {pipeline_mode = #tpu.pipeline_mode<synchronous>, transform_indices = @transform_5, window_bounds = array<i64: 1, 32>}, {transform_indices = @transform_6, window_bounds = array<i64: 8, 32>}]} {
    %c0_i32 = arith.constant 0 : i32
    %0 = arith.cmpi eq, %arg1, %c0_i32 : i32
    %1 = arith.extui %0 : i1 to i32
    %c0_i32_0 = arith.constant 0 : i32
    %2 = arith.cmpi ne, %1, %c0_i32_0 : i32
    scf.if %2 {
      %cst_10 = arith.constant 0.000000e+00 : f32
      %12 = vector.broadcast %cst_10 : f32 to vector<8x32xf32>
      %c0_11 = arith.constant 0 : index
      %c0_12 = arith.constant 0 : index
      %13 = vector.load %arg9[%c0_11, %c0_12] : memref<8x32xf32, #tpu.memory_space<vmem>>, vector<8x32xf32>
      tpu.vector_store %arg9[%c0_11, %c0_12], %12 {strides = array<i32>} : memref<8x32xf32, #tpu.memory_space<vmem>>, vector<8x32xf32>,
    } else {
    }
    %c0 = arith.constant 0 : index
    %c0_1 = arith.constant 0 : index
    %3 = vector.load %arg2[%c0, %c0_1] : memref<8x32xbf16, #tpu.memory_space<vmem>>, vector<8x32xbf16>
    %c0_2 = arith.constant 0 : index
    %c0_3 = arith.constant 0 : index
    %4 = vector.load %arg9[%c0_2, %c0_3] : memref<8x32xf32, #tpu.memory_space<vmem>>, vector<8x32xf32>
    %c0_4 = arith.constant 0 : index
    %c0_5 = arith.constant 0 : index
    %5 = vector.load %arg3[%c0_4, %c0_5] : memref<32x32xbf16, #tpu.memory_space<vmem>>, vector<32x32xbf16>
    %cst = arith.constant dense<0.000000e+00> : vector<8x32xf32>
    %6 = tpu.matmul %3, %5, %cst {dimension_numbers = #tpu.dot_dimension_numbers<[1], [0], [0], [1], [0, 0, 1, 1], [], []>} : vector<8x32xbf16>, vector<32x32xbf16>, vector<8x32xf32> -> vector<8x32xf32>
    %7 = arith.addf %4, %6 : vector<8x32xf32>
    %c0_6 = arith.constant 0 : index
    %c0_7 = arith.constant 0 : index
    %8 = vector.load %arg9[%c0_6, %c0_7] : memref<8x32xf32, #tpu.memory_space<vmem>>, vector<8x32xf32>
    tpu.vector_store %arg9[%c0_6, %c0_7], %7 {strides = array<i32>} : memref<8x32xf32, #tpu.memory_space<vmem>>, vector<8x32xf32>,
    %c0_i32_8 = arith.constant 0 : i32
    %9 = arith.cmpi eq, %arg1, %c0_i32_8 : i32
    %10 = arith.extui %9 : i1 to i32
    %c0_i32_9 = arith.constant 0 : i32
    %11 = arith.cmpi ne, %10, %c0_i32_9 : i32
    scf.if %11 {
      %c0_10 = arith.constant 0 : index
      %c0_11 = arith.constant 0 : index
      %12 = vector.load %arg9[%c0_10, %c0_11] : memref<8x32xf32, #tpu.memory_space<vmem>>, vector<8x32xf32>
      %c0_12 = arith.constant 0 : index
      %c0_13 = arith.constant 0 : index
      %13 = vector.load %arg4[%c0_12, %c0_13] : memref<1x32xf32, #tpu.memory_space<vmem>>, vector<1x32xf32>
      %14 = vector.broadcast %13 : vector<1x32xf32> to vector<8x32xf32>
      %15 = arith.addf %12, %14 : vector<8x32xf32>
      %c0_14 = arith.constant 0 : index
      %c0_15 = arith.constant 0 : index
      %16 = vector.load %arg5[%c0_14, %c0_15] : memref<8x32xf32, #tpu.memory_space<vmem>>, vector<8x32xf32>
      %17 = arith.addf %15, %16 : vector<8x32xf32>
      %cst_16 = arith.constant dense<0.000000e+00> : vector<8xf32>
      %18 = vector.multi_reduction <add>, %17, %cst_16 [1] : vector<8x32xf32> to vector<8xf32>
      %19 = vector.shape_cast %18 : vector<8xf32> to vector<8x1xf32>
      %cst_17 = arith.constant 3.200000e+01 : f32
      %20 = vector.broadcast %cst_17 : f32 to vector<8x1xf32>
      %21 = arith.divf %19, %20 : vector<8x1xf32>
      %22 = vector.broadcast %21 : vector<8x1xf32> to vector<8x32xf32>
      %23 = arith.subf %17, %22 : vector<8x32xf32>
      %24 = arith.mulf %23, %23 : vector<8x32xf32>
      %cst_18 = arith.constant dense<0.000000e+00> : vector<8xf32>
      %25 = vector.multi_reduction <add>, %24, %cst_18 [1] : vector<8x32xf32> to vector<8xf32>
      %26 = vector.shape_cast %25 : vector<8xf32> to vector<8x1xf32>
      %cst_19 = arith.constant 3.200000e+01 : f32
      %27 = vector.broadcast %cst_19 : f32 to vector<8x1xf32>
      %28 = arith.divf %26, %27 : vector<8x1xf32>
      %29 = vector.broadcast %21 : vector<8x1xf32> to vector<8x32xf32>
      %30 = arith.subf %17, %29 : vector<8x32xf32>
      %cst_20 = arith.constant 9.99999974E-6 : f32
      %31 = vector.broadcast %cst_20 : f32 to vector<8x1xf32>
      %32 = arith.addf %28, %31 : vector<8x1xf32>
      %33 = math.rsqrt %32 : vector<8x1xf32>
      %34 = vector.broadcast %33 : vector<8x1xf32> to vector<8x32xf32>
      %35 = arith.mulf %30, %34 : vector<8x32xf32>
      %c0_21 = arith.constant 0 : index
      %c0_22 = arith.constant 0 : index
      %36 = vector.load %arg6[%c0_21, %c0_22] : memref<1x32xf32, #tpu.memory_space<vmem>>, vector<1x32xf32>
      %37 = vector.broadcast %36 : vector<1x32xf32> to vector<8x32xf32>
      %38 = arith.mulf %35, %37 : vector<8x32xf32>
      %c0_23 = arith.constant 0 : index
      %c0_24 = arith.constant 0 : index
      %39 = vector.load %arg7[%c0_23, %c0_24] : memref<1x32xf32, #tpu.memory_space<vmem>>, vector<1x32xf32>
      %40 = vector.broadcast %39 : vector<1x32xf32> to vector<8x32xf32>
      %41 = arith.addf %38, %40 : vector<8x32xf32>
      %c0_25 = arith.constant 0 : index
      %c0_26 = arith.constant 0 : index
      %42 = vector.load %arg8[%c0_25, %c0_26] : memref<8x32xf32, #tpu.memory_space<vmem>>, vector<8x32xf32>
      tpu.vector_store %arg8[%c0_25, %c0_26], %41 {strides = array<i32>} : memref<8x32xf32, #tpu.memory_space<vmem>>, vector<8x32xf32>,
    } else {
    }
    return
  }
  func.func @transform_0(%arg0: i32, %arg1: i32) -> (i32, i32) {
    %c0_i32 = arith.constant 0 : i32
    return %arg0, %arg1 : i32, i32
  }
  func.func @transform_1(%arg0: i32, %arg1: i32) -> (i32, i32) {
    %c0_i32 = arith.constant 0 : i32
    %c0_i32_0 = arith.constant 0 : i32
    return %arg1, %c0_i32 : i32, i32
  }
  func.func @transform_2(%arg0: i32, %arg1: i32) -> (i32, i32) {
    %c0_i32 = arith.constant 0 : i32
    %c0_i32_0 = arith.constant 0 : i32
    %c0_i32_1 = arith.constant 0 : i32
    return %c0_i32, %c0_i32_0 : i32, i32
  }
  func.func @transform_3(%arg0: i32, %arg1: i32) -> (i32, i32) {
    %c0_i32 = arith.constant 0 : i32
    %c0_i32_0 = arith.constant 0 : i32
    return %arg0, %c0_i32 : i32, i32
  }
  func.func @transform_4(%arg0: i32, %arg1: i32) -> (i32, i32) {
    %c0_i32 = arith.constant 0 : i32
    %c0_i32_0 = arith.constant 0 : i32
    %c0_i32_1 = arith.constant 0 : i32
    return %c0_i32, %c0_i32_0 : i32, i32
  }
  func.func @transform_5(%arg0: i32, %arg1: i32) -> (i32, i32) {
    %c0_i32 = arith.constant 0 : i32
    %c0_i32_0 = arith.constant 0 : i32
    %c0_i32_1 = arith.constant 0 : i32
    return %c0_i32, %c0_i32_0 : i32, i32
  }
  func.func @transform_6(%arg0: i32, %arg1: i32) -> (i32, i32) {
    %c0_i32 = arith.constant 0 : i32
    %c0_i32_0 = arith.constant 0 : i32
    return %arg0, %c0_i32 : i32, i32
  }
}

module attributes {stable_mosaic.version = 11 : i64} {
  func.func @_flash_nomask_kernel(%arg0: i32, %arg1: i32, %arg2: i32, %arg3: memref<1x8x32xbf16, #tpu.memory_space<vmem>>, %arg4: memref<1x8x32xbf16, #tpu.memory_space<vmem>>, %arg5: memref<1x8x32xbf16, #tpu.memory_space<vmem>>, %arg6: memref<1x8x32xbf16, #tpu.memory_space<vmem>>, %arg7: memref<4x8x1xf32, #tpu.memory_space<vmem>>, %arg8: memref<4x8x1xf32, #tpu.memory_space<vmem>>, %arg9: memref<4x8x8xf32, #tpu.memory_space<vmem>>) attributes {dimension_semantics = [#tpu.dimension_semantics<parallel>, #tpu.dimension_semantics<parallel>, #tpu.dimension_semantics<arbitrary>], iteration_bounds = array<i64: 2, 1, 1>, scalar_prefetch = 0 : i64, scratch_operands = 3 : i64, tpu.core_type = #tpu.core_type<tc>, window_params = [{transform_indices = @transform_0, window_bounds = array<i64: 1, 8, 32>}, {transform_indices = @transform_1, window_bounds = array<i64: 1, 8, 32>}, {transform_indices = @transform_2, window_bounds = array<i64: 1, 8, 32>}, {transform_indices = @transform_3, window_bounds = array<i64: 1, 8, 32>}]} {
    %c0_i32 = arith.constant 0 : i32
    %0 = arith.cmpi eq, %arg2, %c0_i32 : i32
    %1 = arith.extui %0 : i1 to i32
    %c0_i32_0 = arith.constant 0 : i32
    %2 = arith.cmpi ne, %1, %c0_i32_0 : i32
    scf.if %2 {
      %cst = arith.constant -1.000000e+30 : f32
      %12 = vector.broadcast %cst : f32 to vector<4x8x1xf32>
      %c0 = arith.constant 0 : index
      %c0_5 = arith.constant 0 : index
      %c0_6 = arith.constant 0 : index
      %13 = vector.load %arg7[%c0, %c0_5, %c0_6] : memref<4x8x1xf32, #tpu.memory_space<vmem>>, vector<4x8x1xf32>
      tpu.vector_store %arg7[%c0, %c0_5, %c0_6], %12 {strides = array<i32>} : memref<4x8x1xf32, #tpu.memory_space<vmem>>, vector<4x8x1xf32>,
      %cst_7 = arith.constant 0.000000e+00 : f32
      %14 = vector.broadcast %cst_7 : f32 to vector<4x8x1xf32>
      %c0_8 = arith.constant 0 : index
      %c0_9 = arith.constant 0 : index
      %c0_10 = arith.constant 0 : index
      %15 = vector.load %arg8[%c0_8, %c0_9, %c0_10] : memref<4x8x1xf32, #tpu.memory_space<vmem>>, vector<4x8x1xf32>
      tpu.vector_store %arg8[%c0_8, %c0_9, %c0_10], %14 {strides = array<i32>} : memref<4x8x1xf32, #tpu.memory_space<vmem>>, vector<4x8x1xf32>,
      %cst_11 = arith.constant 0.000000e+00 : f32
      %16 = vector.broadcast %cst_11 : f32 to vector<4x8x8xf32>
      %c0_12 = arith.constant 0 : index
      %c0_13 = arith.constant 0 : index
      %c0_14 = arith.constant 0 : index
      %17 = vector.load %arg9[%c0_12, %c0_13, %c0_14] : memref<4x8x8xf32, #tpu.memory_space<vmem>>, vector<4x8x8xf32>
      tpu.vector_store %arg9[%c0_12, %c0_13, %c0_14], %16 {strides = array<i32>} : memref<4x8x8xf32, #tpu.memory_space<vmem>>, vector<4x8x8xf32>,
    } else {
    }
    %c8_i32 = arith.constant 8 : i32
    %3 = arith.muli %arg2, %c8_i32 : i32
    %c8_i32_1 = arith.constant 8 : i32
    %4 = arith.muli %arg1, %c8_i32_1 : i32
    %c7_i32 = arith.constant 7 : i32
    %5 = arith.addi %4, %c7_i32 : i32
    %6 = arith.cmpi sle, %3, %5 : i32
    %7 = arith.extui %6 : i1 to i32
    %c0_i32_2 = arith.constant 0 : i32
    %8 = arith.cmpi ne, %7, %c0_i32_2 : i32
    scf.if %8 {
      %c0 = arith.constant 0 : index
      %c0_5 = arith.constant 0 : index
      %c0_6 = arith.constant 0 : index
      %12 = vector.load %arg3[%c0, %c0_5, %c0_6] : memref<1x8x32xbf16, #tpu.memory_space<vmem>>, vector<1x8x32xbf16>
      %13 = vector.shape_cast %12 : vector<1x8x32xbf16> to vector<8x32xbf16>
      %cst = arith.constant 3.535160e-01 : bf16
      %14 = vector.broadcast %cst : bf16 to vector<8x32xbf16>
      %15 = arith.mulf %13, %14 : vector<8x32xbf16>
      %16 = vector.shape_cast %15 : vector<8x32xbf16> to vector<8x4x8xbf16>
      %17 = tpu.transpose %16, [1, 0, 2] : vector<8x4x8xbf16> -> vector<4x8x8xbf16>
      %c0_7 = arith.constant 0 : index
      %c0_8 = arith.constant 0 : index
      %c0_9 = arith.constant 0 : index
      %18 = vector.load %arg4[%c0_7, %c0_8, %c0_9] : memref<1x8x32xbf16, #tpu.memory_space<vmem>>, vector<1x8x32xbf16>
      %19 = vector.shape_cast %18 : vector<1x8x32xbf16> to vector<8x32xbf16>
      %20 = vector.shape_cast %19 : vector<8x32xbf16> to vector<8x4x8xbf16>
      %21 = tpu.transpose %20, [1, 0, 2] : vector<8x4x8xbf16> -> vector<4x8x8xbf16>
      %c0_10 = arith.constant 0 : index
      %c0_11 = arith.constant 0 : index
      %c0_12 = arith.constant 0 : index
      %22 = vector.load %arg5[%c0_10, %c0_11, %c0_12] : memref<1x8x32xbf16, #tpu.memory_space<vmem>>, vector<1x8x32xbf16>
      %23 = vector.shape_cast %22 : vector<1x8x32xbf16> to vector<8x32xbf16>
      %24 = vector.shape_cast %23 : vector<8x32xbf16> to vector<8x4x8xbf16>
      %25 = tpu.transpose %24, [1, 0, 2] : vector<8x4x8xbf16> -> vector<4x8x8xbf16>
      "tpu.trace_start"() <{level = 10 : i32, message = "hqd,hkd->hqk"}> : () -> ()
      %cst_13 = arith.constant dense<0.000000e+00> : vector<4x8x8xf32>
      %26 = tpu.matmul %17, %21, %cst_13 {dimension_numbers = #tpu.dot_dimension_numbers<[2], [2], [1], [1], [0, 0, 0, 1, 1, 1], [0], [0]>} : vector<4x8x8xbf16>, vector<4x8x8xbf16>, vector<4x8x8xf32> -> vector<4x8x8xf32>
      "tpu.trace_stop"() : () -> ()
      %27 = tpu.iota {dimensions = array<i32: 0>} : vector<8x8xi32>
      %c8_i32_14 = arith.constant 8 : i32
      %28 = arith.muli %arg1, %c8_i32_14 : i32
      %29 = vector.broadcast %28 : i32 to vector<8x8xi32>
      %30 = arith.addi %27, %29 : vector<8x8xi32>
      %31 = tpu.iota {dimensions = array<i32: 1>} : vector<8x8xi32>
      %c8_i32_15 = arith.constant 8 : i32
      %32 = arith.muli %arg2, %c8_i32_15 : i32
      %33 = vector.broadcast %32 : i32 to vector<8x8xi32>
      %34 = arith.addi %31, %33 : vector<8x8xi32>
      %35 = arith.cmpi sle, %34, %30 : vector<8x8xi32>
      %36 = vector.shape_cast %35 : vector<8x8xi1> to vector<1x8x8xi1>
      %cst_16 = arith.constant -1.000000e+30 : f32
      %37 = vector.shape_cast %36 : vector<1x8x8xi1> to vector<1x8x8xi1>
      %38 = vector.broadcast %37 : vector<1x8x8xi1> to vector<4x8x8xi1>
      %39 = vector.broadcast %cst_16 : f32 to vector<4x8x8xf32>
      %40 = arith.select %38, %26, %39 : vector<4x8x8xi1>, vector<4x8x8xf32>
      %c0_17 = arith.constant 0 : index
      %c0_18 = arith.constant 0 : index
      %c0_19 = arith.constant 0 : index
      %41 = vector.load %arg7[%c0_17, %c0_18, %c0_19] : memref<4x8x1xf32, #tpu.memory_space<vmem>>, vector<4x8x1xf32>
      %cst_20 = arith.constant dense<0xFF800000> : vector<4x8xf32>
      %42 = vector.multi_reduction <maximumf>, %40, %cst_20 [2] : vector<4x8x8xf32> to vector<4x8xf32>
      %43 = vector.shape_cast %42 : vector<4x8xf32> to vector<4x8x1xf32>
      %44 = arith.maximumf %41, %43 : vector<4x8x1xf32>
      %45 = arith.subf %41, %44 : vector<4x8x1xf32>
      %46 = math.exp %45 : vector<4x8x1xf32>
      %47 = vector.broadcast %44 : vector<4x8x1xf32> to vector<4x8x8xf32>
      %48 = arith.subf %40, %47 : vector<4x8x8xf32>
      %49 = math.exp %48 : vector<4x8x8xf32>
      %c0_21 = arith.constant 0 : index
      %c0_22 = arith.constant 0 : index
      %c0_23 = arith.constant 0 : index
      %50 = vector.load %arg8[%c0_21, %c0_22, %c0_23] : memref<4x8x1xf32, #tpu.memory_space<vmem>>, vector<4x8x1xf32>
      %51 = arith.mulf %46, %50 : vector<4x8x1xf32>
      %cst_24 = arith.constant dense<0.000000e+00> : vector<4x8xf32>
      %52 = vector.multi_reduction <add>, %49, %cst_24 [2] : vector<4x8x8xf32> to vector<4x8xf32>
      %53 = vector.shape_cast %52 : vector<4x8xf32> to vector<4x8x1xf32>
      %54 = arith.addf %51, %53 : vector<4x8x1xf32>
      %c0_25 = arith.constant 0 : index
      %c0_26 = arith.constant 0 : index
      %c0_27 = arith.constant 0 : index
      %55 = vector.load %arg8[%c0_25, %c0_26, %c0_27] : memref<4x8x1xf32, #tpu.memory_space<vmem>>, vector<4x8x1xf32>
      tpu.vector_store %arg8[%c0_25, %c0_26, %c0_27], %54 {strides = array<i32>} : memref<4x8x1xf32, #tpu.memory_space<vmem>>, vector<4x8x1xf32>,
      %c0_28 = arith.constant 0 : index
      %c0_29 = arith.constant 0 : index
      %c0_30 = arith.constant 0 : index
      %56 = vector.load %arg9[%c0_28, %c0_29, %c0_30] : memref<4x8x8xf32, #tpu.memory_space<vmem>>, vector<4x8x8xf32>
      %57 = vector.broadcast %46 : vector<4x8x1xf32> to vector<4x8x8xf32>
      %58 = arith.mulf %57, %56 : vector<4x8x8xf32>
      %59 = arith.truncf %49 : vector<4x8x8xf32> to vector<4x8x8xbf16>
      "tpu.trace_start"() <{level = 10 : i32, message = "hqk,hkd->hqd"}> : () -> ()
      %cst_31 = arith.constant dense<0.000000e+00> : vector<4x8x8xf32>
      %60 = tpu.matmul %59, %25, %cst_31 {dimension_numbers = #tpu.dot_dimension_numbers<[2], [1], [1], [2], [0, 0, 0, 1, 1, 2], [0], [0]>} : vector<4x8x8xbf16>, vector<4x8x8xbf16>, vector<4x8x8xf32> -> vector<4x8x8xf32>
      "tpu.trace_stop"() : () -> ()
      %61 = arith.addf %58, %60 : vector<4x8x8xf32>
      %c0_32 = arith.constant 0 : index
      %c0_33 = arith.constant 0 : index
      %c0_34 = arith.constant 0 : index
      %62 = vector.load %arg9[%c0_32, %c0_33, %c0_34] : memref<4x8x8xf32, #tpu.memory_space<vmem>>, vector<4x8x8xf32>
      tpu.vector_store %arg9[%c0_32, %c0_33, %c0_34], %61 {strides = array<i32>} : memref<4x8x8xf32, #tpu.memory_space<vmem>>, vector<4x8x8xf32>,
      %c0_35 = arith.constant 0 : index
      %c0_36 = arith.constant 0 : index
      %c0_37 = arith.constant 0 : index
      %63 = vector.load %arg7[%c0_35, %c0_36, %c0_37] : memref<4x8x1xf32, #tpu.memory_space<vmem>>, vector<4x8x1xf32>
      tpu.vector_store %arg7[%c0_35, %c0_36, %c0_37], %44 {strides = array<i32>} : memref<4x8x1xf32, #tpu.memory_space<vmem>>, vector<4x8x1xf32>,
    } else {
    }
    %c0_i32_3 = arith.constant 0 : i32
    %9 = arith.cmpi eq, %arg2, %c0_i32_3 : i32
    %10 = arith.extui %9 : i1 to i32
    %c0_i32_4 = arith.constant 0 : i32
    %11 = arith.cmpi ne, %10, %c0_i32_4 : i32
    scf.if %11 {
      %c0 = arith.constant 0 : index
      %c0_5 = arith.constant 0 : index
      %c0_6 = arith.constant 0 : index
      %12 = vector.load %arg9[%c0, %c0_5, %c0_6] : memref<4x8x8xf32, #tpu.memory_space<vmem>>, vector<4x8x8xf32>
      %c0_7 = arith.constant 0 : index
      %c0_8 = arith.constant 0 : index
      %c0_9 = arith.constant 0 : index
      %13 = vector.load %arg8[%c0_7, %c0_8, %c0_9] : memref<4x8x1xf32, #tpu.memory_space<vmem>>, vector<4x8x1xf32>
      %14 = tpu.reciprocal %13 {approx = true} : vector<4x8x1xf32> -> vector<4x8x1xf32>
      %15 = vector.broadcast %14 : vector<4x8x1xf32> to vector<4x8x8xf32>
      %16 = arith.mulf %12, %15 : vector<4x8x8xf32>
      %17 = tpu.transpose %16, [1, 0, 2] : vector<4x8x8xf32> -> vector<8x4x8xf32>
      %18 = vector.shape_cast %17 : vector<8x4x8xf32> to vector<8x32xf32>
      %19 = arith.truncf %18 : vector<8x32xf32> to vector<8x32xbf16>
      %c0_10 = arith.constant 0 : index
      %c0_11 = arith.constant 0 : index
      %c0_12 = arith.constant 0 : index
      %20 = vector.load %arg6[%c0_10, %c0_11, %c0_12] : memref<1x8x32xbf16, #tpu.memory_space<vmem>>, vector<1x8x32xbf16>
      %21 = vector.shape_cast %20 : vector<1x8x32xbf16> to vector<8x32xbf16>
      %22 = vector.shape_cast %19 : vector<8x32xbf16> to vector<1x8x32xbf16>
      tpu.vector_store %arg6[%c0_10, %c0_11, %c0_12], %22 {strides = array<i32>} : memref<1x8x32xbf16, #tpu.memory_space<vmem>>, vector<1x8x32xbf16>,
    } else {
    }
    return
  }
  func.func @transform_0(%arg0: i32, %arg1: i32, %arg2: i32) -> (i32, i32, i32) {
    %c0_i32 = arith.constant 0 : i32
    %c0_i32_0 = arith.constant 0 : i32
    return %arg0, %arg1, %c0_i32 : i32, i32, i32
  }
  func.func @transform_1(%arg0: i32, %arg1: i32, %arg2: i32) -> (i32, i32, i32) {
    %c0_i32 = arith.constant 0 : i32
    %c0_i32_0 = arith.constant 0 : i32
    return %arg0, %arg2, %c0_i32 : i32, i32, i32
  }
  func.func @transform_2(%arg0: i32, %arg1: i32, %arg2: i32) -> (i32, i32, i32) {
    %c0_i32 = arith.constant 0 : i32
    %c0_i32_0 = arith.constant 0 : i32
    return %arg0, %arg2, %c0_i32 : i32, i32, i32
  }
  func.func @transform_3(%arg0: i32, %arg1: i32, %arg2: i32) -> (i32, i32, i32) {
    %c0_i32 = arith.constant 0 : i32
    %c0_i32_0 = arith.constant 0 : i32
    return %arg0, %arg1, %c0_i32 : i32, i32, i32
  }
}

module attributes {stable_mosaic.version = 11 : i64} {
  func.func @_kv_split_kernel(%arg0: i32, %arg1: memref<8x32xf32, #tpu.memory_space<vmem>>, %arg2: memref<32x64xbf16, #tpu.memory_space<vmem>>, %arg3: memref<1x64xf32, #tpu.memory_space<vmem>>, %arg4: memref<8x32xbf16, #tpu.memory_space<vmem>>, %arg5: memref<8x32xbf16, #tpu.memory_space<vmem>>) attributes {dimension_semantics = [#tpu.dimension_semantics<parallel>], iteration_bounds = array<i64: 4>, scalar_prefetch = 0 : i64, scratch_operands = 0 : i64, tpu.core_type = #tpu.core_type<tc>, window_params = [{transform_indices = @transform_0, window_bounds = array<i64: 8, 32>}, {pipeline_mode = #tpu.pipeline_mode<synchronous>, transform_indices = @transform_1, window_bounds = array<i64: 32, 64>}, {pipeline_mode = #tpu.pipeline_mode<synchronous>, transform_indices = @transform_2, window_bounds = array<i64: 1, 64>}, {transform_indices = @transform_3, window_bounds = array<i64: 8, 32>}, {transform_indices = @transform_4, window_bounds = array<i64: 8, 32>}]} {
    %c0 = arith.constant 0 : index
    %c0_0 = arith.constant 0 : index
    %0 = vector.load %arg1[%c0, %c0_0] : memref<8x32xf32, #tpu.memory_space<vmem>>, vector<8x32xf32>
    %1 = arith.truncf %0 : vector<8x32xf32> to vector<8x32xbf16>
    %c0_1 = arith.constant 0 : index
    %c0_2 = arith.constant 0 : index
    %2 = vector.load %arg2[%c0_1, %c0_2] : memref<32x64xbf16, #tpu.memory_space<vmem>>, vector<32x64xbf16>
    %cst = arith.constant dense<0.000000e+00> : vector<8x64xf32>
    %3 = tpu.matmul %1, %2, %cst {dimension_numbers = #tpu.dot_dimension_numbers<[1], [0], [0], [1], [0, 0, 1, 1], [], []>} : vector<8x32xbf16>, vector<32x64xbf16>, vector<8x64xf32> -> vector<8x64xf32>
    %c0_3 = arith.constant 0 : index
    %c0_4 = arith.constant 0 : index
    %4 = vector.load %arg3[%c0_3, %c0_4] : memref<1x64xf32, #tpu.memory_space<vmem>>, vector<1x64xf32>
    %5 = vector.broadcast %4 : vector<1x64xf32> to vector<8x64xf32>
    %6 = arith.addf %3, %5 : vector<8x64xf32>
    %7 = vector.extract_strided_slice %6 {offsets = [0, 0], sizes = [8, 32], strides = [1, 1]} : vector<8x64xf32> to vector<8x32xf32>
    %8 = arith.truncf %7 : vector<8x32xf32> to vector<8x32xbf16>
    %c0_5 = arith.constant 0 : index
    %c0_6 = arith.constant 0 : index
    %9 = vector.load %arg4[%c0_5, %c0_6] : memref<8x32xbf16, #tpu.memory_space<vmem>>, vector<8x32xbf16>
    tpu.vector_store %arg4[%c0_5, %c0_6], %8 {strides = array<i32>} : memref<8x32xbf16, #tpu.memory_space<vmem>>, vector<8x32xbf16>,
    %10 = vector.extract_strided_slice %6 {offsets = [0, 32], sizes = [8, 32], strides = [1, 1]} : vector<8x64xf32> to vector<8x32xf32>
    %11 = arith.truncf %10 : vector<8x32xf32> to vector<8x32xbf16>
    %c0_7 = arith.constant 0 : index
    %c0_8 = arith.constant 0 : index
    %12 = vector.load %arg5[%c0_7, %c0_8] : memref<8x32xbf16, #tpu.memory_space<vmem>>, vector<8x32xbf16>
    tpu.vector_store %arg5[%c0_7, %c0_8], %11 {strides = array<i32>} : memref<8x32xbf16, #tpu.memory_space<vmem>>, vector<8x32xbf16>,
    return
  }
  func.func @transform_0(%arg0: i32) -> (i32, i32) {
    %c0_i32 = arith.constant 0 : i32
    %c0_i32_0 = arith.constant 0 : i32
    return %arg0, %c0_i32 : i32, i32
  }
  func.func @transform_1(%arg0: i32) -> (i32, i32) {
    %c0_i32 = arith.constant 0 : i32
    %c0_i32_0 = arith.constant 0 : i32
    %c0_i32_1 = arith.constant 0 : i32
    return %c0_i32, %c0_i32_0 : i32, i32
  }
  func.func @transform_2(%arg0: i32) -> (i32, i32) {
    %c0_i32 = arith.constant 0 : i32
    %c0_i32_0 = arith.constant 0 : i32
    %c0_i32_1 = arith.constant 0 : i32
    return %c0_i32, %c0_i32_0 : i32, i32
  }
  func.func @transform_3(%arg0: i32) -> (i32, i32) {
    %c0_i32 = arith.constant 0 : i32
    %c0_i32_0 = arith.constant 0 : i32
    return %arg0, %c0_i32 : i32, i32
  }
  func.func @transform_4(%arg0: i32) -> (i32, i32) {
    %c0_i32 = arith.constant 0 : i32
    %c0_i32_0 = arith.constant 0 : i32
    return %arg0, %c0_i32 : i32, i32
  }
}

module attributes {stable_mosaic.version = 11 : i64} {
  func.func @_flash_nomask_kernel(%arg0: i32, %arg1: i32, %arg2: i32, %arg3: memref<1x8x32xbf16, #tpu.memory_space<vmem>>, %arg4: memref<1x16x32xbf16, #tpu.memory_space<vmem>>, %arg5: memref<1x16x32xbf16, #tpu.memory_space<vmem>>, %arg6: memref<1x8x32xbf16, #tpu.memory_space<vmem>>, %arg7: memref<4x8x1xf32, #tpu.memory_space<vmem>>, %arg8: memref<4x8x1xf32, #tpu.memory_space<vmem>>, %arg9: memref<4x8x8xf32, #tpu.memory_space<vmem>>) attributes {dimension_semantics = [#tpu.dimension_semantics<parallel>, #tpu.dimension_semantics<parallel>, #tpu.dimension_semantics<arbitrary>], iteration_bounds = array<i64: 2, 1, 1>, scalar_prefetch = 0 : i64, scratch_operands = 3 : i64, tpu.core_type = #tpu.core_type<tc>, window_params = [{transform_indices = @transform_0, window_bounds = array<i64: 1, 8, 32>}, {transform_indices = @transform_1, window_bounds = array<i64: 1, 16, 32>}, {transform_indices = @transform_2, window_bounds = array<i64: 1, 16, 32>}, {transform_indices = @transform_3, window_bounds = array<i64: 1, 8, 32>}]} {
    %c0_i32 = arith.constant 0 : i32
    %0 = arith.cmpi eq, %arg2, %c0_i32 : i32
    %1 = arith.extui %0 : i1 to i32
    %c0_i32_0 = arith.constant 0 : i32
    %2 = arith.cmpi ne, %1, %c0_i32_0 : i32
    scf.if %2 {
      %cst_33 = arith.constant -1.000000e+30 : f32
      %44 = vector.broadcast %cst_33 : f32 to vector<4x8x1xf32>
      %c0_34 = arith.constant 0 : index
      %c0_35 = arith.constant 0 : index
      %c0_36 = arith.constant 0 : index
      %45 = vector.load %arg7[%c0_34, %c0_35, %c0_36] : memref<4x8x1xf32, #tpu.memory_space<vmem>>, vector<4x8x1xf32>
      tpu.vector_store %arg7[%c0_34, %c0_35, %c0_36], %44 {strides = array<i32>} : memref<4x8x1xf32, #tpu.memory_space<vmem>>, vector<4x8x1xf32>,
      %cst_37 = arith.constant 0.000000e+00 : f32
      %46 = vector.broadcast %cst_37 : f32 to vector<4x8x1xf32>
      %c0_38 = arith.constant 0 : index
      %c0_39 = arith.constant 0 : index
      %c0_40 = arith.constant 0 : index
      %47 = vector.load %arg8[%c0_38, %c0_39, %c0_40] : memref<4x8x1xf32, #tpu.memory_space<vmem>>, vector<4x8x1xf32>
      tpu.vector_store %arg8[%c0_38, %c0_39, %c0_40], %46 {strides = array<i32>} : memref<4x8x1xf32, #tpu.memory_space<vmem>>, vector<4x8x1xf32>,
      %cst_41 = arith.constant 0.000000e+00 : f32
      %48 = vector.broadcast %cst_41 : f32 to vector<4x8x8xf32>
      %c0_42 = arith.constant 0 : index
      %c0_43 = arith.constant 0 : index
      %c0_44 = arith.constant 0 : index
      %49 = vector.load %arg9[%c0_42, %c0_43, %c0_44] : memref<4x8x8xf32, #tpu.memory_space<vmem>>, vector<4x8x8xf32>
      tpu.vector_store %arg9[%c0_42, %c0_43, %c0_44], %48 {strides = array<i32>} : memref<4x8x8xf32, #tpu.memory_space<vmem>>, vector<4x8x8xf32>,
    } else {
    }
    %c0 = arith.constant 0 : index
    %c0_1 = arith.constant 0 : index
    %c0_2 = arith.constant 0 : index
    %3 = vector.load %arg3[%c0, %c0_1, %c0_2] : memref<1x8x32xbf16, #tpu.memory_space<vmem>>, vector<1x8x32xbf16>
    %4 = vector.shape_cast %3 : vector<1x8x32xbf16> to vector<8x32xbf16>
    %cst = arith.constant 3.535160e-01 : bf16
    %5 = vector.broadcast %cst : bf16 to vector<8x32xbf16>
    %6 = arith.mulf %4, %5 : vector<8x32xbf16>
    %7 = vector.shape_cast %6 : vector<8x32xbf16> to vector<8x4x8xbf16>
    %8 = tpu.transpose %7, [1, 0, 2] : vector<8x4x8xbf16> -> vector<4x8x8xbf16>
    %c0_3 = arith.constant 0 : index
    %c0_4 = arith.constant 0 : index
    %c0_5 = arith.constant 0 : index
    %9 = vector.load %arg4[%c0_3, %c0_4, %c0_5] : memref<1x16x32xbf16, #tpu.memory_space<vmem>>, vector<1x16x32xbf16>
    %10 = vector.shape_cast %9 : vector<1x16x32xbf16> to vector<16x32xbf16>
    %11 = vector.shape_cast %10 : vector<16x32xbf16> to vector<16x4x8xbf16>
    %12 = tpu.transpose %11, [1, 0, 2] : vector<16x4x8xbf16> -> vector<4x16x8xbf16>
    %c0_6 = arith.constant 0 : index
    %c0_7 = arith.constant 0 : index
    %c0_8 = arith.constant 0 : index
    %13 = vector.load %arg5[%c0_6, %c0_7, %c0_8] : memref<1x16x32xbf16, #tpu.memory_space<vmem>>, vector<1x16x32xbf16>
    %14 = vector.shape_cast %13 : vector<1x16x32xbf16> to vector<16x32xbf16>
    %15 = vector.shape_cast %14 : vector<16x32xbf16> to vector<16x4x8xbf16>
    %16 = tpu.transpose %15, [1, 0, 2] : vector<16x4x8xbf16> -> vector<4x16x8xbf16>
    "tpu.trace_start"() <{level = 10 : i32, message = "hqd,hkd->hqk"}> : () -> ()
    %cst_9 = arith.constant dense<0.000000e+00> : vector<4x8x16xf32>
    %17 = tpu.matmul %8, %12, %cst_9 {dimension_numbers = #tpu.dot_dimension_numbers<[2], [2], [1], [1], [0, 0, 0, 1, 1, 1], [0], [0]>} : vector<4x8x8xbf16>, vector<4x16x8xbf16>, vector<4x8x16xf32> -> vector<4x8x16xf32>
    "tpu.trace_stop"() : () -> ()
    %c0_10 = arith.constant 0 : index
    %c0_11 = arith.constant 0 : index
    %c0_12 = arith.constant 0 : index
    %18 = vector.load %arg7[%c0_10, %c0_11, %c0_12] : memref<4x8x1xf32, #tpu.memory_space<vmem>>, vector<4x8x1xf32>
    %cst_13 = arith.constant dense<0xFF800000> : vector<4x8xf32>
    %19 = vector.multi_reduction <maximumf>, %17, %cst_13 [2] : vector<4x8x16xf32> to vector<4x8xf32>
    %20 = vector.shape_cast %19 : vector<4x8xf32> to vector<4x8x1xf32>
    %21 = arith.maximumf %18, %20 : vector<4x8x1xf32>
    %22 = arith.subf %18, %21 : vector<4x8x1xf32>
    %23 = math.exp %22 : vector<4x8x1xf32>
    %24 = vector.broadcast %21 : vector<4x8x1xf32> to vector<4x8x16xf32>
    %25 = arith.subf %17, %24 : vector<4x8x16xf32>
    %26 = math.exp %25 : vector<4x8x16xf32>
    %c0_14 = arith.constant 0 : index
    %c0_15 = arith.constant 0 : index
    %c0_16 = arith.constant 0 : index
    %27 = vector.load %arg8[%c0_14, %c0_15, %c0_16] : memref<4x8x1xf32, #tpu.memory_space<vmem>>, vector<4x8x1xf32>
    %28 = arith.mulf %23, %27 : vector<4x8x1xf32>
    %cst_17 = arith.constant dense<0.000000e+00> : vector<4x8xf32>
    %29 = vector.multi_reduction <add>, %26, %cst_17 [2] : vector<4x8x16xf32> to vector<4x8xf32>
    %30 = vector.shape_cast %29 : vector<4x8xf32> to vector<4x8x1xf32>
    %31 = arith.addf %28, %30 : vector<4x8x1xf32>
    %c0_18 = arith.constant 0 : index
    %c0_19 = arith.constant 0 : index
    %c0_20 = arith.constant 0 : index
    %32 = vector.load %arg8[%c0_18, %c0_19, %c0_20] : memref<4x8x1xf32, #tpu.memory_space<vmem>>, vector<4x8x1xf32>
    tpu.vector_store %arg8[%c0_18, %c0_19, %c0_20], %31 {strides = array<i32>} : memref<4x8x1xf32, #tpu.memory_space<vmem>>, vector<4x8x1xf32>,
    %c0_21 = arith.constant 0 : index
    %c0_22 = arith.constant 0 : index
    %c0_23 = arith.constant 0 : index
    %33 = vector.load %arg9[%c0_21, %c0_22, %c0_23] : memref<4x8x8xf32, #tpu.memory_space<vmem>>, vector<4x8x8xf32>
    %34 = vector.broadcast %23 : vector<4x8x1xf32> to vector<4x8x8xf32>
    %35 = arith.mulf %34, %33 : vector<4x8x8xf32>
    %36 = arith.truncf %26 : vector<4x8x16xf32> to vector<4x8x16xbf16>
    "tpu.trace_start"() <{level = 10 : i32, message = "hqk,hkd->hqd"}> : () -> ()
    %cst_24 = arith.constant dense<0.000000e+00> : vector<4x8x8xf32>
    %37 = tpu.matmul %36, %16, %cst_24 {dimension_numbers = #tpu.dot_dimension_numbers<[2], [1], [1], [2], [0, 0, 0, 1, 1, 2], [0], [0]>} : vector<4x8x16xbf16>, vector<4x16x8xbf16>, vector<4x8x8xf32> -> vector<4x8x8xf32>
    "tpu.trace_stop"() : () -> ()
    %38 = arith.addf %35, %37 : vector<4x8x8xf32>
    %c0_25 = arith.constant 0 : index
    %c0_26 = arith.constant 0 : index
    %c0_27 = arith.constant 0 : index
    %39 = vector.load %arg9[%c0_25, %c0_26, %c0_27] : memref<4x8x8xf32, #tpu.memory_space<vmem>>, vector<4x8x8xf32>
    tpu.vector_store %arg9[%c0_25, %c0_26, %c0_27], %38 {strides = array<i32>} : memref<4x8x8xf32, #tpu.memory_space<vmem>>, vector<4x8x8xf32>,
    %c0_28 = arith.constant 0 : index
    %c0_29 = arith.constant 0 : index
    %c0_30 = arith.constant 0 : index
    %40 = vector.load %arg7[%c0_28, %c0_29, %c0_30] : memref<4x8x1xf32, #tpu.memory_space<vmem>>, vector<4x8x1xf32>
    tpu.vector_store %arg7[%c0_28, %c0_29, %c0_30], %21 {strides = array<i32>} : memref<4x8x1xf32, #tpu.memory_space<vmem>>, vector<4x8x1xf32>,
    %c0_i32_31 = arith.constant 0 : i32
    %41 = arith.cmpi eq, %arg2, %c0_i32_31 : i32
    %42 = arith.extui %41 : i1 to i32
    %c0_i32_32 = arith.constant 0 : i32
    %43 = arith.cmpi ne, %42, %c0_i32_32 : i32
    scf.if %43 {
      %c0_33 = arith.constant 0 : index
      %c0_34 = arith.constant 0 : index
      %c0_35 = arith.constant 0 : index
      %44 = vector.load %arg9[%c0_33, %c0_34, %c0_35] : memref<4x8x8xf32, #tpu.memory_space<vmem>>, vector<4x8x8xf32>
      %c0_36 = arith.constant 0 : index
      %c0_37 = arith.constant 0 : index
      %c0_38 = arith.constant 0 : index
      %45 = vector.load %arg8[%c0_36, %c0_37, %c0_38] : memref<4x8x1xf32, #tpu.memory_space<vmem>>, vector<4x8x1xf32>
      %46 = tpu.reciprocal %45 {approx = true} : vector<4x8x1xf32> -> vector<4x8x1xf32>
      %47 = vector.broadcast %46 : vector<4x8x1xf32> to vector<4x8x8xf32>
      %48 = arith.mulf %44, %47 : vector<4x8x8xf32>
      %49 = tpu.transpose %48, [1, 0, 2] : vector<4x8x8xf32> -> vector<8x4x8xf32>
      %50 = vector.shape_cast %49 : vector<8x4x8xf32> to vector<8x32xf32>
      %51 = arith.truncf %50 : vector<8x32xf32> to vector<8x32xbf16>
      %c0_39 = arith.constant 0 : index
      %c0_40 = arith.constant 0 : index
      %c0_41 = arith.constant 0 : index
      %52 = vector.load %arg6[%c0_39, %c0_40, %c0_41] : memref<1x8x32xbf16, #tpu.memory_space<vmem>>, vector<1x8x32xbf16>
      %53 = vector.shape_cast %52 : vector<1x8x32xbf16> to vector<8x32xbf16>
      %54 = vector.shape_cast %51 : vector<8x32xbf16> to vector<1x8x32xbf16>
      tpu.vector_store %arg6[%c0_39, %c0_40, %c0_41], %54 {strides = array<i32>} : memref<1x8x32xbf16, #tpu.memory_space<vmem>>, vector<1x8x32xbf16>,
    } else {
    }
    return
  }
  func.func @transform_0(%arg0: i32, %arg1: i32, %arg2: i32) -> (i32, i32, i32) {
    %c0_i32 = arith.constant 0 : i32
    %c0_i32_0 = arith.constant 0 : i32
    return %arg0, %arg1, %c0_i32 : i32, i32, i32
  }
  func.func @transform_1(%arg0: i32, %arg1: i32, %arg2: i32) -> (i32, i32, i32) {
    %c0_i32 = arith.constant 0 : i32
    %c0_i32_0 = arith.constant 0 : i32
    return %arg0, %arg2, %c0_i32 : i32, i32, i32
  }
  func.func @transform_2(%arg0: i32, %arg1: i32, %arg2: i32) -> (i32, i32, i32) {
    %c0_i32 = arith.constant 0 : i32
    %c0_i32_0 = arith.constant 0 : i32
    return %arg0, %arg2, %c0_i32 : i32, i32, i32
  }
  func.func @transform_3(%arg0: i32, %arg1: i32, %arg2: i32) -> (i32, i32, i32) {
    %c0_i32 = arith.constant 0 : i32
    %c0_i32_0 = arith.constant 0 : i32
    return %arg0, %arg1, %c0_i32 : i32, i32, i32
  }
}

module attributes {stable_mosaic.version = 11 : i64} {
  func.func @_ffn_add_ln_kernel(%arg0: i32, %arg1: i32, %arg2: memref<8x32xf32, #tpu.memory_space<vmem>>, %arg3: memref<32x64xbf16, #tpu.memory_space<vmem>>, %arg4: memref<1x64xf32, #tpu.memory_space<vmem>>, %arg5: memref<64x32xbf16, #tpu.memory_space<vmem>>, %arg6: memref<1x32xf32, #tpu.memory_space<vmem>>, %arg7: memref<1x32xf32, #tpu.memory_space<vmem>>, %arg8: memref<1x32xf32, #tpu.memory_space<vmem>>, %arg9: memref<8x32xf32, #tpu.memory_space<vmem>>, %arg10: memref<8x32xf32, #tpu.memory_space<vmem>>) attributes {dimension_semantics = [#tpu.dimension_semantics<parallel>, #tpu.dimension_semantics<arbitrary>], iteration_bounds = array<i64: 2, 1>, scalar_prefetch = 0 : i64, scratch_operands = 1 : i64, tpu.core_type = #tpu.core_type<tc>, window_params = [{transform_indices = @transform_0, window_bounds = array<i64: 8, 32>}, {transform_indices = @transform_1, window_bounds = array<i64: 32, 64>}, {transform_indices = @transform_2, window_bounds = array<i64: 1, 64>}, {transform_indices = @transform_3, window_bounds = array<i64: 64, 32>}, {pipeline_mode = #tpu.pipeline_mode<synchronous>, transform_indices = @transform_4, window_bounds = array<i64: 1, 32>}, {pipeline_mode = #tpu.pipeline_mode<synchronous>, transform_indices = @transform_5, window_bounds = array<i64: 1, 32>}, {pipeline_mode = #tpu.pipeline_mode<synchronous>, transform_indices = @transform_6, window_bounds = array<i64: 1, 32>}, {transform_indices = @transform_7, window_bounds = array<i64: 8, 32>}]} {
    %c0_i32 = arith.constant 0 : i32
    %0 = arith.cmpi eq, %arg1, %c0_i32 : i32
    %1 = arith.extui %0 : i1 to i32
    %c0_i32_0 = arith.constant 0 : i32
    %2 = arith.cmpi ne, %1, %c0_i32_0 : i32
    scf.if %2 {
      %cst_16 = arith.constant 0.000000e+00 : f32
      %21 = vector.broadcast %cst_16 : f32 to vector<8x32xf32>
      %c0_17 = arith.constant 0 : index
      %c0_18 = arith.constant 0 : index
      %22 = vector.load %arg10[%c0_17, %c0_18] : memref<8x32xf32, #tpu.memory_space<vmem>>, vector<8x32xf32>
      tpu.vector_store %arg10[%c0_17, %c0_18], %21 {strides = array<i32>} : memref<8x32xf32, #tpu.memory_space<vmem>>, vector<8x32xf32>,
    } else {
    }
    %c0 = arith.constant 0 : index
    %c0_1 = arith.constant 0 : index
    %3 = vector.load %arg2[%c0, %c0_1] : memref<8x32xf32, #tpu.memory_space<vmem>>, vector<8x32xf32>
    %4 = arith.truncf %3 : vector<8x32xf32> to vector<8x32xbf16>
    %c0_2 = arith.constant 0 : index
    %c0_3 = arith.constant 0 : index
    %5 = vector.load %arg3[%c0_2, %c0_3] : memref<32x64xbf16, #tpu.memory_space<vmem>>, vector<32x64xbf16>
    %cst = arith.constant dense<0.000000e+00> : vector<8x64xf32>
    %6 = tpu.matmul %4, %5, %cst {dimension_numbers = #tpu.dot_dimension_numbers<[1], [0], [0], [1], [0, 0, 1, 1], [], []>} : vector<8x32xbf16>, vector<32x64xbf16>, vector<8x64xf32> -> vector<8x64xf32>
    %c0_4 = arith.constant 0 : index
    %c0_5 = arith.constant 0 : index
    %7 = vector.load %arg4[%c0_4, %c0_5] : memref<1x64xf32, #tpu.memory_space<vmem>>, vector<1x64xf32>
    %8 = vector.broadcast %7 : vector<1x64xf32> to vector<8x64xf32>
    %9 = arith.addf %6, %8 : vector<8x64xf32>
    %cst_6 = arith.constant 0.000000e+00 : f32
    %10 = vector.broadcast %cst_6 : f32 to vector<8x64xf32>
    %11 = arith.maximumf %9, %10 : vector<8x64xf32>
    %12 = arith.truncf %11 : vector<8x64xf32> to vector<8x64xbf16>
    %c0_7 = arith.constant 0 : index
    %c0_8 = arith.constant 0 : index
    %13 = vector.load %arg10[%c0_7, %c0_8] : memref<8x32xf32, #tpu.memory_space<vmem>>, vector<8x32xf32>
    %c0_9 = arith.constant 0 : index
    %c0_10 = arith.constant 0 : index
    %14 = vector.load %arg5[%c0_9, %c0_10] : memref<64x32xbf16, #tpu.memory_space<vmem>>, vector<64x32xbf16>
    %cst_11 = arith.constant dense<0.000000e+00> : vector<8x32xf32>
    %15 = tpu.matmul %12, %14, %cst_11 {dimension_numbers = #tpu.dot_dimension_numbers<[1], [0], [0], [1], [0, 0, 1, 1], [], []>} : vector<8x64xbf16>, vector<64x32xbf16>, vector<8x32xf32> -> vector<8x32xf32>
    %16 = arith.addf %13, %15 : vector<8x32xf32>
    %c0_12 = arith.constant 0 : index
    %c0_13 = arith.constant 0 : index
    %17 = vector.load %arg10[%c0_12, %c0_13] : memref<8x32xf32, #tpu.memory_space<vmem>>, vector<8x32xf32>
    tpu.vector_store %arg10[%c0_12, %c0_13], %16 {strides = array<i32>} : memref<8x32xf32, #tpu.memory_space<vmem>>, vector<8x32xf32>,
    %c0_i32_14 = arith.constant 0 : i32
    %18 = arith.cmpi eq, %arg1, %c0_i32_14 : i32
    %19 = arith.extui %18 : i1 to i32
    %c0_i32_15 = arith.constant 0 : i32
    %20 = arith.cmpi ne, %19, %c0_i32_15 : i32
    scf.if %20 {
      %c0_16 = arith.constant 0 : index
      %c0_17 = arith.constant 0 : index
      %21 = vector.load %arg10[%c0_16, %c0_17] : memref<8x32xf32, #tpu.memory_space<vmem>>, vector<8x32xf32>
      %c0_18 = arith.constant 0 : index
      %c0_19 = arith.constant 0 : index
      %22 = vector.load %arg6[%c0_18, %c0_19] : memref<1x32xf32, #tpu.memory_space<vmem>>, vector<1x32xf32>
      %23 = vector.broadcast %22 : vector<1x32xf32> to vector<8x32xf32>
      %24 = arith.addf %21, %23 : vector<8x32xf32>
      %c0_20 = arith.constant 0 : index
      %c0_21 = arith.constant 0 : index
      %25 = vector.load %arg2[%c0_20, %c0_21] : memref<8x32xf32, #tpu.memory_space<vmem>>, vector<8x32xf32>
      %26 = arith.addf %24, %25 : vector<8x32xf32>
      %cst_22 = arith.constant dense<0.000000e+00> : vector<8xf32>
      %27 = vector.multi_reduction <add>, %26, %cst_22 [1] : vector<8x32xf32> to vector<8xf32>
      %28 = vector.shape_cast %27 : vector<8xf32> to vector<8x1xf32>
      %cst_23 = arith.constant 3.200000e+01 : f32
      %29 = vector.broadcast %cst_23 : f32 to vector<8x1xf32>
      %30 = arith.divf %28, %29 : vector<8x1xf32>
      %31 = vector.broadcast %30 : vector<8x1xf32> to vector<8x32xf32>
      %32 = arith.subf %26, %31 : vector<8x32xf32>
      %33 = arith.mulf %32, %32 : vector<8x32xf32>
      %cst_24 = arith.constant dense<0.000000e+00> : vector<8xf32>
      %34 = vector.multi_reduction <add>, %33, %cst_24 [1] : vector<8x32xf32> to vector<8xf32>
      %35 = vector.shape_cast %34 : vector<8xf32> to vector<8x1xf32>
      %cst_25 = arith.constant 3.200000e+01 : f32
      %36 = vector.broadcast %cst_25 : f32 to vector<8x1xf32>
      %37 = arith.divf %35, %36 : vector<8x1xf32>
      %38 = vector.broadcast %30 : vector<8x1xf32> to vector<8x32xf32>
      %39 = arith.subf %26, %38 : vector<8x32xf32>
      %cst_26 = arith.constant 9.99999974E-6 : f32
      %40 = vector.broadcast %cst_26 : f32 to vector<8x1xf32>
      %41 = arith.addf %37, %40 : vector<8x1xf32>
      %42 = math.rsqrt %41 : vector<8x1xf32>
      %43 = vector.broadcast %42 : vector<8x1xf32> to vector<8x32xf32>
      %44 = arith.mulf %39, %43 : vector<8x32xf32>
      %c0_27 = arith.constant 0 : index
      %c0_28 = arith.constant 0 : index
      %45 = vector.load %arg7[%c0_27, %c0_28] : memref<1x32xf32, #tpu.memory_space<vmem>>, vector<1x32xf32>
      %46 = vector.broadcast %45 : vector<1x32xf32> to vector<8x32xf32>
      %47 = arith.mulf %44, %46 : vector<8x32xf32>
      %c0_29 = arith.constant 0 : index
      %c0_30 = arith.constant 0 : index
      %48 = vector.load %arg8[%c0_29, %c0_30] : memref<1x32xf32, #tpu.memory_space<vmem>>, vector<1x32xf32>
      %49 = vector.broadcast %48 : vector<1x32xf32> to vector<8x32xf32>
      %50 = arith.addf %47, %49 : vector<8x32xf32>
      %c0_31 = arith.constant 0 : index
      %c0_32 = arith.constant 0 : index
      %51 = vector.load %arg9[%c0_31, %c0_32] : memref<8x32xf32, #tpu.memory_space<vmem>>, vector<8x32xf32>
      tpu.vector_store %arg9[%c0_31, %c0_32], %50 {strides = array<i32>} : memref<8x32xf32, #tpu.memory_space<vmem>>, vector<8x32xf32>,
    } else {
    }
    return
  }
  func.func @transform_0(%arg0: i32, %arg1: i32) -> (i32, i32) {
    %c0_i32 = arith.constant 0 : i32
    %c0_i32_0 = arith.constant 0 : i32
    return %arg0, %c0_i32 : i32, i32
  }
  func.func @transform_1(%arg0: i32, %arg1: i32) -> (i32, i32) {
    %c0_i32 = arith.constant 0 : i32
    %c0_i32_0 = arith.constant 0 : i32
    return %c0_i32, %arg1 : i32, i32
  }
  func.func @transform_2(%arg0: i32, %arg1: i32) -> (i32, i32) {
    %c0_i32 = arith.constant 0 : i32
    %c0_i32_0 = arith.constant 0 : i32
    return %c0_i32, %arg1 : i32, i32
  }
  func.func @transform_3(%arg0: i32, %arg1: i32) -> (i32, i32) {
    %c0_i32 = arith.constant 0 : i32
    %c0_i32_0 = arith.constant 0 : i32
    return %arg1, %c0_i32 : i32, i32
  }
  func.func @transform_4(%arg0: i32, %arg1: i32) -> (i32, i32) {
    %c0_i32 = arith.constant 0 : i32
    %c0_i32_0 = arith.constant 0 : i32
    %c0_i32_1 = arith.constant 0 : i32
    return %c0_i32, %c0_i32_0 : i32, i32
  }
  func.func @transform_5(%arg0: i32, %arg1: i32) -> (i32, i32) {
    %c0_i32 = arith.constant 0 : i32
    %c0_i32_0 = arith.constant 0 : i32
    %c0_i32_1 = arith.constant 0 : i32
    return %c0_i32, %c0_i32_0 : i32, i32
  }
  func.func @transform_6(%arg0: i32, %arg1: i32) -> (i32, i32) {
    %c0_i32 = arith.constant 0 : i32
    %c0_i32_0 = arith.constant 0 : i32
    %c0_i32_1 = arith.constant 0 : i32
    return %c0_i32, %c0_i32_0 : i32, i32
  }
  func.func @transform_7(%arg0: i32, %arg1: i32) -> (i32, i32) {
    %c0_i32 = arith.constant 0 : i32
    %c0_i32_0 = arith.constant 0 : i32
    return %arg0, %c0_i32 : i32, i32
  }
}

module attributes {stable_mosaic.version = 11 : i64} {
  func.func @_layernorm_kernel(%arg0: i32, %arg1: memref<8x32xf32, #tpu.memory_space<vmem>>, %arg2: memref<1x32xf32, #tpu.memory_space<vmem>>, %arg3: memref<1x32xf32, #tpu.memory_space<vmem>>, %arg4: memref<8x32xf32, #tpu.memory_space<vmem>>) attributes {dimension_semantics = [#tpu.dimension_semantics<parallel>], iteration_bounds = array<i64: 2>, scalar_prefetch = 0 : i64, scratch_operands = 0 : i64, tpu.core_type = #tpu.core_type<tc>, window_params = [{transform_indices = @transform_0, window_bounds = array<i64: 8, 32>}, {pipeline_mode = #tpu.pipeline_mode<synchronous>, transform_indices = @transform_1, window_bounds = array<i64: 1, 32>}, {pipeline_mode = #tpu.pipeline_mode<synchronous>, transform_indices = @transform_2, window_bounds = array<i64: 1, 32>}, {transform_indices = @transform_3, window_bounds = array<i64: 8, 32>}]} {
    %c0 = arith.constant 0 : index
    %c0_0 = arith.constant 0 : index
    %0 = vector.load %arg1[%c0, %c0_0] : memref<8x32xf32, #tpu.memory_space<vmem>>, vector<8x32xf32>
    %cst = arith.constant dense<0.000000e+00> : vector<8xf32>
    %1 = vector.multi_reduction <add>, %0, %cst [1] : vector<8x32xf32> to vector<8xf32>
    %2 = vector.shape_cast %1 : vector<8xf32> to vector<8x1xf32>
    %cst_1 = arith.constant 3.200000e+01 : f32
    %3 = vector.broadcast %cst_1 : f32 to vector<8x1xf32>
    %4 = arith.divf %2, %3 : vector<8x1xf32>
    %5 = vector.broadcast %4 : vector<8x1xf32> to vector<8x32xf32>
    %6 = arith.subf %0, %5 : vector<8x32xf32>
    %7 = arith.mulf %6, %6 : vector<8x32xf32>
    %cst_2 = arith.constant dense<0.000000e+00> : vector<8xf32>
    %8 = vector.multi_reduction <add>, %7, %cst_2 [1] : vector<8x32xf32> to vector<8xf32>
    %9 = vector.shape_cast %8 : vector<8xf32> to vector<8x1xf32>
    %cst_3 = arith.constant 3.200000e+01 : f32
    %10 = vector.broadcast %cst_3 : f32 to vector<8x1xf32>
    %11 = arith.divf %9, %10 : vector<8x1xf32>
    %12 = vector.broadcast %4 : vector<8x1xf32> to vector<8x32xf32>
    %13 = arith.subf %0, %12 : vector<8x32xf32>
    %cst_4 = arith.constant 9.99999974E-6 : f32
    %14 = vector.broadcast %cst_4 : f32 to vector<8x1xf32>
    %15 = arith.addf %11, %14 : vector<8x1xf32>
    %16 = math.rsqrt %15 : vector<8x1xf32>
    %17 = vector.broadcast %16 : vector<8x1xf32> to vector<8x32xf32>
    %18 = arith.mulf %13, %17 : vector<8x32xf32>
    %c0_5 = arith.constant 0 : index
    %c0_6 = arith.constant 0 : index
    %19 = vector.load %arg2[%c0_5, %c0_6] : memref<1x32xf32, #tpu.memory_space<vmem>>, vector<1x32xf32>
    %20 = vector.broadcast %19 : vector<1x32xf32> to vector<8x32xf32>
    %21 = arith.mulf %18, %20 : vector<8x32xf32>
    %c0_7 = arith.constant 0 : index
    %c0_8 = arith.constant 0 : index
    %22 = vector.load %arg3[%c0_7, %c0_8] : memref<1x32xf32, #tpu.memory_space<vmem>>, vector<1x32xf32>
    %23 = vector.broadcast %22 : vector<1x32xf32> to vector<8x32xf32>
    %24 = arith.addf %21, %23 : vector<8x32xf32>
    %c0_9 = arith.constant 0 : index
    %c0_10 = arith.constant 0 : index
    %25 = vector.load %arg4[%c0_9, %c0_10] : memref<8x32xf32, #tpu.memory_space<vmem>>, vector<8x32xf32>
    tpu.vector_store %arg4[%c0_9, %c0_10], %24 {strides = array<i32>} : memref<8x32xf32, #tpu.memory_space<vmem>>, vector<8x32xf32>,
    return
  }
  func.func @transform_0(%arg0: i32) -> (i32, i32) {
    %c0_i32 = arith.constant 0 : i32
    %c0_i32_0 = arith.constant 0 : i32
    return %arg0, %c0_i32 : i32, i32
  }
  func.func @transform_1(%arg0: i32) -> (i32, i32) {
    %c0_i32 = arith.constant 0 : i32
    %c0_i32_0 = arith.constant 0 : i32
    %c0_i32_1 = arith.constant 0 : i32
    return %c0_i32, %c0_i32_0 : i32, i32
  }
  func.func @transform_2(%arg0: i32) -> (i32, i32) {
    %c0_i32 = arith.constant 0 : i32
    %c0_i32_0 = arith.constant 0 : i32
    %c0_i32_1 = arith.constant 0 : i32
    return %c0_i32, %c0_i32_0 : i32, i32
  }
  func.func @transform_3(%arg0: i32) -> (i32, i32) {
    %c0_i32 = arith.constant 0 : i32
    %c0_i32_0 = arith.constant 0 : i32
    return %arg0, %c0_i32 : i32, i32
  }
}

</mosaic_0001>

<llo_original>
// kernel: transformer_decoder.19
$region0: #{transformer_decoder.19}
  #allocation0 [shape = 'u32[]', space=smem, size = 0x4, offset = 0x4, fixed_abs, tag = 'smem constant byte address 0x4 - core index']
  #allocation1 [shape = 'u32[144,128]{1,0:T(1,128)}', space=vmem, size = 0x12000, scoped, tag = 'internal scratch']
  #allocation2 [shape = 'f32[8,32]{1,0:T(8,128)}', space=vmem, size = 0x1000, scoped, tag = 'scratch operand']
  %s0 = inlined_call_operand.vmem [shape: bf16[16,32], index: 0, kind: input, shape index: {}]
  %s1 = inlined_call_operand.vmem [shape: bf16[32,32], index: 1, kind: input, shape index: {}]
  %s2 = inlined_call_operand.vmem [shape: f32[1,32], index: 2, kind: input, shape index: {}]
  %s3 = inlined_call_operand.vmem [shape: f32[16,32], index: 3, kind: input, shape index: {}]
  %s4 = inlined_call_operand.vmem [shape: f32[1,32], index: 4, kind: input, shape index: {}]
  %s5 = inlined_call_operand.vmem [shape: f32[1,32], index: 5, kind: input, shape index: {}]
  %s6 = inlined_call_operand.vmem [shape: f32[16,32], index: 6, kind: output, shape index: {}]
  %s7 = sld [smem:[#allocation0]]
  $region65: #{transformer_decoder.19} parent=0
    _
  %s9 = ssub.s32 1, %s7
  %s10 = scalar_select 0, %s9, %s7
  loop: start=0, step=1, limit=4
  $region2: #{transformer_decoder.19} parent=0 // loop_pre_header
    _
  $region3: #{transformer_decoder.19} parent=0 // loop_header
    %s12 = sphi 0, %s16
    %p13 = scmp.ge.s32.totalorder %s12, 4
    %s19 = sphi 0, %s31
    %s20 = sphi 0, %s27
    %s21 = sphi 0, %s19
    %s22 = sphi 0, %s20
    %s23 = sphi 0, %s21
    %s24 = sphi 0, %s22
    %s36 = sphi 0, %s38
    %s39 = sphi 0, %s36
    %s40 = sphi 0, %s39
    %s56 = sphi 0, %s40
    %s62 = sphi 0, %s64
    %s65 = sphi 0, %s62
    %s66 = sphi 0, %s65
    %s82 = sphi 0, %s66
    %s86 = sphi 0, %s86
    %s88 = sphi 0, %s86
    %s89 = sphi 0, %s88
    %s103 = sphi 0, %s89
    %s109 = sphi 0, %s111
    %s112 = sphi 0, %s109
    %s113 = sphi 0, %s112
    %s129 = sphi 0, %s113
    %s133 = sphi 0, %s133
    %s135 = sphi 0, %s133
    %s136 = sphi 0, %s135
    %s150 = sphi 0, %s136
    %s154 = sphi 0, %s154
    %s156 = sphi 0, %s154
    %s157 = sphi 0, %s156
    %s171 = sphi 0, %s157
    %s177 = sphi 0, %s179
    %s180 = sphi 0, %s177
    %s181 = sphi 0, %s180
    %s197 = sphi 0, %s181
  $region4: #{transformer_decoder.19} parent=0 // loop_header_branch
    %15 = sbr.rel (%p13) target = $region8
  $region5: #{transformer_decoder.19} parent=0 // loop_body
    %s17 = ssub.s32 %s12, 1
    %s18 = ssub.s32 %s12, 2
    %s25 = sadd.s32 1, %s20
    %p26 = scmp.ge.s32.totalorder %s25, 1
    %s27 = scalar_select %p26, 0, %s25
    %s28 = sadd.s32 1, %s19
    %s29 = scalar_select %p26, %s28, %s19
    %p30 = scmp.ge.s32.totalorder %s29, 2
    %s31 = scalar_select %p30, 0, %s29
    %s32 = ssub.s32 %s19, %s31
    %s33 = ssub.s32 %s20, %s27
    %s34 = sor.u32 %s32, %s33
    %p35 = scmp.eq.s32.totalorder %s34, 0
    %s37 = sadd.s32 %s36, 1
    %s38 = scalar_select %p35, %s36, %s37
    %p41 = pneg %p35
    %p42 = scmp.eq.s32.totalorder %s12, 1
    %p43 = por %p41, %p42
    %p44 = scmp.ne.s32.totalorder %s36, %s39
    %p45 = scmp.eq.s32.totalorder %s12, 0
    %p46 = por %p44, %p45
    %p47 = scmp.ne.s32.totalorder %s36, %s39
    %p48 = scmp.eq.s32.totalorder %s17, 1
    %p49 = por %p47, %p48
    %p50 = scmp.ne.s32.totalorder %s39, %s40
    %p51 = scmp.eq.s32.totalorder %s17, 0
    %p52 = por %p50, %p51
    %p53 = scmp.ne.s32.totalorder %s39, %s40
    %p54 = scmp.eq.s32.totalorder %s18, 1
    %p55 = por %p53, %p54
    %p57 = scmp.ne.s32.totalorder %s40, %s56
    %p58 = scmp.eq.s32.totalorder %s18, 0
    %p59 = por %p57, %p58
    %s60 = ssub.s32 %s20, %s27
    %p61 = scmp.eq.s32.totalorder %s60, 0
    %s63 = sadd.s32 %s62, 1
    %s64 = scalar_select %p61, %s62, %s63
    %p67 = pneg %p61
    %p68 = scmp.eq.s32.totalorder %s12, 1
    %p69 = por %p67, %p68
    %p70 = scmp.ne.s32.totalorder %s62, %s65
    %p71 = scmp.eq.s32.totalorder %s12, 0
    %p72 = por %p70, %p71
    %p73 = scmp.ne.s32.totalorder %s62, %s65
    %p74 = scmp.eq.s32.totalorder %s17, 1
    %p75 = por %p73, %p74
    %p76 = scmp.ne.s32.totalorder %s65, %s66
    %p77 = scmp.eq.s32.totalorder %s17, 0
    %p78 = por %p76, %p77
    %p79 = scmp.ne.s32.totalorder %s65, %s66
    %p80 = scmp.eq.s32.totalorder %s18, 1
    %p81 = por %p79, %p80
    %p83 = scmp.ne.s32.totalorder %s66, %s82
    %p84 = scmp.eq.s32.totalorder %s18, 0
    %p85 = por %p83, %p84
    %s87 = sadd.s32 %s86, 1
    %p90 = scmp.eq.s32.totalorder %s12, 1
    %p91 = scmp.ne.s32.totalorder %s86, %s88
    %p92 = scmp.eq.s32.totalorder %s12, 0
    %p93 = por %p91, %p92
    %p94 = scmp.ne.s32.totalorder %s86, %s88
    %p95 = scmp.eq.s32.totalorder %s17, 1
    %p96 = por %p94, %p95
    %p97 = scmp.ne.s32.totalorder %s88, %s89
    %p98 = scmp.eq.s32.totalorder %s17, 0
    %p99 = por %p97, %p98
    %p100 = scmp.ne.s32.totalorder %s88, %s89
    %p101 = scmp.eq.s32.totalorder %s18, 1
    %p102 = por %p100, %p101
    %p104 = scmp.ne.s32.totalorder %s89, %s103
    %p105 = scmp.eq.s32.totalorder %s18, 0
    %p106 = por %p104, %p105
    %s107 = ssub.s32 %s19, %s31
    %p108 = scmp.eq.s32.totalorder %s107, 0
    %s110 = sadd.s32 %s109, 1
    %s111 = scalar_select %p108, %s109, %s110
    %p114 = pneg %p108
    %p115 = scmp.eq.s32.totalorder %s12, 1
    %p116 = por %p114, %p115
    %p117 = scmp.ne.s32.totalorder %s109, %s112
    %p118 = scmp.eq.s32.totalorder %s12, 0
    %p119 = por %p117, %p118
    %p120 = scmp.ne.s32.totalorder %s109, %s112
    %p121 = scmp.eq.s32.totalorder %s17, 1
    %p122 = por %p120, %p121
    %p123 = scmp.ne.s32.totalorder %s112, %s113
    %p124 = scmp.eq.s32.totalorder %s17, 0
    %p125 = por %p123, %p124
    %p126 = scmp.ne.s32.totalorder %s112, %s113
    %p127 = scmp.eq.s32.totalorder %s18, 1
    %p128 = por %p126, %p127
    %p130 = scmp.ne.s32.totalorder %s113, %s129
    %p131 = scmp.eq.s32.totalorder %s18, 0
    %p132 = por %p130, %p131
    %s134 = sadd.s32 %s133, 1
    %p137 = scmp.eq.s32.totalorder %s12, 1
    %p138 = scmp.ne.s32.totalorder %s133, %s135
    %p139 = scmp.eq.s32.totalorder %s12, 0
    %p140 = por %p138, %p139
    %p141 = scmp.ne.s32.totalorder %s133, %s135
    %p142 = scmp.eq.s32.totalorder %s17, 1
    %p143 = por %p141, %p142
    %p144 = scmp.ne.s32.totalorder %s135, %s136
    %p145 = scmp.eq.s32.totalorder %s17, 0
    %p146 = por %p144, %p145
    %p147 = scmp.ne.s32.totalorder %s135, %s136
    %p148 = scmp.eq.s32.totalorder %s18, 1
    %p149 = por %p147, %p148
    %p151 = scmp.ne.s32.totalorder %s136, %s150
    %p152 = scmp.eq.s32.totalorder %s18, 0
    %p153 = por %p151, %p152
    %s155 = sadd.s32 %s154, 1
    %p158 = scmp.eq.s32.totalorder %s12, 1
    %p159 = scmp.ne.s32.totalorder %s154, %s156
    %p160 = scmp.eq.s32.totalorder %s12, 0
    %p161 = por %p159, %p160
    %p162 = scmp.ne.s32.totalorder %s154, %s156
    %p163 = scmp.eq.s32.totalorder %s17, 1
    %p164 = por %p162, %p163
    %p165 = scmp.ne.s32.totalorder %s156, %s157
    %p166 = scmp.eq.s32.totalorder %s17, 0
    %p167 = por %p165, %p166
    %p168 = scmp.ne.s32.totalorder %s156, %s157
    %p169 = scmp.eq.s32.totalorder %s18, 1
    %p170 = por %p168, %p169
    %p172 = scmp.ne.s32.totalorder %s157, %s171
    %p173 = scmp.eq.s32.totalorder %s18, 0
    %p174 = por %p172, %p173
    %s175 = ssub.s32 %s19, %s31
    %p176 = scmp.eq.s32.totalorder %s175, 0
    %s178 = sadd.s32 %s177, 1
    %s179 = scalar_select %p176, %s177, %s178
    %p182 = pneg %p176
    %p183 = scmp.eq.s32.totalorder %s12, 1
    %p184 = por %p182, %p183
    %p185 = scmp.ne.s32.totalorder %s177, %s180
    %p186 = scmp.eq.s32.totalorder %s12, 0
    %p187 = por %p185, %p186
    %p188 = scmp.ne.s32.totalorder %s177, %s180
    %p189 = scmp.eq.s32.totalorder %s17, 1
    %p190 = por %p188, %p189
    %p191 = scmp.ne.s32.totalorder %s180, %s181
    %p192 = scmp.eq.s32.totalorder %s17, 0
    %p193 = por %p191, %p192
    %p194 = scmp.ne.s32.totalorder %s180, %s181
    %p195 = scmp.eq.s32.totalorder %s18, 1
    %p196 = por %p194, %p195
    %p198 = scmp.ne.s32.totalorder %s181, %s197
    %p199 = scmp.eq.s32.totalorder %s18, 0
    %p200 = por %p198, %p199
    %p201 = scmp.le.s32.totalorder 1, %s12
    %p202 = scmp.lt.s32.totalorder %s12, 3
    %p203 = pnand %p201, %p202
    %p204 = pneg %p203
    // Predicated region
    $region9: #{transformer_decoder.19} parent=5 // pred_check
      _
    $region10: #{transformer_decoder.19} parent=5 // pred_check_branch
      %206 = sbr.rel (%p203) target = $region12
    $region11: #{transformer_decoder.19} parent=5 // pred_region
      %s207 = ssub.s32 %s12, 1
      // Predicated region
      $region13: #{transformer_decoder.19} parent=11 // pred_check
        %p208 = pneg %p78
      $region14: #{transformer_decoder.19} parent=11 // pred_check_branch
        %210 = sbr.rel (%p208) target = $region16
      $region15: #{transformer_decoder.19} parent=11 // pred_region
        %s211 = smul.u32 4, %s22
        %p212 = scmp.lt.s32.totalorder %s211, 3
        %s213 = scalar_select %p212, %s211, 3
        %s214 = smul.addr %s213, 4
        %s215 = scalar_lea.vmem %s1, %s214
        %s216 = smul.u32 4, %s22
      $region16: #{transformer_decoder.19} parent=11 // pred_fallthru
        _
      // Predicated region
      $region17: #{transformer_decoder.19} parent=11 // pred_check
        %p217 = pneg %p99
      $region18: #{transformer_decoder.19} parent=11 // pred_check_branch
        %219 = sbr.rel (%p217) target = $region20
      $region19: #{transformer_decoder.19} parent=11 // pred_region
        _
      $region20: #{transformer_decoder.19} parent=11 // pred_fallthru
        _
      // Predicated region
      $region21: #{transformer_decoder.19} parent=11 // pred_check
        %p220 = pneg %p146
      $region22: #{transformer_decoder.19} parent=11 // pred_check_branch
        %222 = sbr.rel (%p220) target = $region24
      $region23: #{transformer_decoder.19} parent=11 // pred_region
        _
      $region24: #{transformer_decoder.19} parent=11 // pred_fallthru
        _
      // Predicated region
      $region25: #{transformer_decoder.19} parent=11 // pred_check
        %p223 = pneg %p167
      $region26: #{transformer_decoder.19} parent=11 // pred_check_branch
        %225 = sbr.rel (%p223) target = $region28
      $region27: #{transformer_decoder.19} parent=11 // pred_region
        _
      $region28: #{transformer_decoder.19} parent=11 // pred_fallthru
        _
    $region12: #{transformer_decoder.19} parent=5 // pred_fallthru
      _
    %p226 = scmp.lt.s32.totalorder %s12, 2
    // Predicated region
    $region29: #{transformer_decoder.19} parent=5 // pred_check
      %p227 = pneg %p226
    $region30: #{transformer_decoder.19} parent=5 // pred_check_branch
      %229 = sbr.rel (%p227) target = $region32
    $region31: #{transformer_decoder.19} parent=5 // pred_region
      // Predicated region
      $region33: #{transformer_decoder.19} parent=31 // pred_check
        %p230 = pneg %p46
      $region34: #{transformer_decoder.19} parent=31 // pred_check_branch
        %232 = sbr.rel (%p230) target = $region36
      $region35: #{transformer_decoder.19} parent=31 // pred_region
        %p233 = scmp.lt.s32.totalorder %s19, 1
        %s234 = scalar_select %p233, %s19, 1
        %p235 = scmp.lt.s32.totalorder %s20, 0
        %s236 = scalar_select %p235, %s20, 0
        %s237 = sadd.s32 %s236, %s234
        %s238 = smul.addr %s237, 4
        %s239 = scalar_lea.vmem %s0, %s238
      $region36: #{transformer_decoder.19} parent=31 // pred_fallthru
        _
      // Predicated region
      $region37: #{transformer_decoder.19} parent=31 // pred_check
        %p240 = pneg %p119
      $region38: #{transformer_decoder.19} parent=31 // pred_check_branch
        %242 = sbr.rel (%p240) target = $region40
      $region39: #{transformer_decoder.19} parent=31 // pred_region
        %p243 = scmp.lt.s32.totalorder %s19, 1
        %s244 = scalar_select %p243, %s19, 1
        %s245 = smul.addr %s244, 8
        %s246 = scalar_lea.vmem %s3, %s245
      $region40: #{transformer_decoder.19} parent=31 // pred_fallthru
        _
    $region32: #{transformer_decoder.19} parent=5 // pred_fallthru
      _
    %p247 = scmp.le.s32.totalorder 1, %s12
    %p248 = scmp.lt.s32.totalorder %s12, 3
    %p249 = pnand %p247, %p248
    %p250 = pneg %p249
    // Predicated region
    $region41: #{transformer_decoder.19} parent=5 // pred_check
      _
    $region42: #{transformer_decoder.19} parent=5 // pred_check_branch
      %252 = sbr.rel (%p249) target = $region44
    $region43: #{transformer_decoder.19} parent=5 // pred_region
      %s253 = ssub.s32 %s12, 1
      %p254 = scmp.lt.s32.totalorder %s21, 1
      %s255 = scalar_select %p254, %s21, 1
      %p256 = scmp.lt.s32.totalorder %s22, 0
      %s257 = scalar_select %p256, %s22, 0
      %s258 = sadd.s32 %s257, %s255
      %s259 = smul.addr %s258, 4
      %s260 = scalar_lea.vmem %s0, %s259
      %p261 = pneg %p52
      %p262 = pneg %p49
      %s263 = smul.u32 4, %s22
      %p264 = scmp.lt.s32.totalorder %s263, 3
      %s265 = scalar_select %p264, %s263, 3
      %s266 = smul.addr %s265, 4
      %s267 = scalar_lea.vmem %s1, %s266
      %p268 = pneg %p78
      %p269 = pneg %p75
      %p270 = pneg %p99
      %p271 = pneg %p96
      %p272 = scmp.lt.s32.totalorder %s21, 1
      %s273 = scalar_select %p272, %s21, 1
      %s274 = smul.addr %s273, 8
      %s275 = scalar_lea.vmem %s3, %s274
      %p276 = pneg %p125
      %p277 = pneg %p122
      %p278 = pneg %p146
      %p279 = pneg %p143
      %p280 = pneg %p167
      %p281 = pneg %p164
      %p282 = pneg %p193
      %p283 = pneg %p190
      %p284 = scmp.lt.s32.totalorder %s21, 1
      %s285 = scalar_select %p284, %s21, 1
      %s286 = smul.addr %s285, 8
      %s287 = scalar_lea.vmem %s6, %s286
      %p288 = scmp.lt.s32.totalorder %s21, 1
      %s289 = scalar_select %p288, %s21, 1
      %p290 = scmp.lt.s32.totalorder %s22, 0
      %s291 = scalar_select %p290, %s22, 0
      %s292 = sadd.s32 %s291, %s289
      %s293 = smul.addr %s292, 4
      %s294 = scalar_lea.vmem %s0, %s293
      %s295 = smul.u32 4, %s22
      %p296 = scmp.lt.s32.totalorder %s295, 3
      %s297 = scalar_select %p296, %s295, 3
      %s298 = smul.addr %s297, 4
      %s299 = scalar_lea.vmem %s1, %s298
      %s300 = smul.u32 4, %s22
      %p301 = scmp.lt.s32.totalorder %s21, 1
      %s302 = scalar_select %p301, %s21, 1
      %s303 = smul.addr %s302, 8
      %s304 = scalar_lea.vmem %s3, %s303
      %p305 = scmp.lt.s32.totalorder %s21, 1
      %s306 = scalar_select %p305, %s21, 1
      %s307 = smul.addr %s306, 8
      %s308 = scalar_lea.vmem %s6, %s307
      %p310 = scmp.eq.s32.totalorder %s22, 0
      // Predicated region
      $region45: #{transformer_decoder.19} parent=43 // pred_check
        %p311 = pneg %p310
      $region46: #{transformer_decoder.19} parent=43 // pred_check_branch
        %313 = sbr.rel (%p311) target = $region48
      $region47: #{transformer_decoder.19} parent=43 // pred_region
        %vm314 = vcmask 261120
        %315 = vst.msk [vmem:[#allocation2] sm:$0xff] %vm314, 0.0
      $region48: #{transformer_decoder.19} parent=43 // pred_fallthru
        _
      %v316 = vld [vmem:[%s294] sm:$0xf]
      %v317 = vld [vmem:[#allocation2] sm:$0xff]
      %v318 = vld [vmem:[%s299] sm:$0xf]
      %v319 = vld [vmem:[%s299 + $0x4] sm:$0xf]
      %v320 = vld [vmem:[%s299 + $0x8] sm:$0xf]
      %v321 = vld [vmem:[%s299 + $0xc] sm:$0xf]
      %v326 = vunpack.c.l.b16 %v318
      %v327 = vunpack.c.l.b16 %v319
      %v328 = vunpack.c.l.b16 %v320
      %v329 = vunpack.c.l.b16 %v321
      %v330 = vpack.c.b16 %v327, %v326
      %v331 = vpack.c.b16 %v329, %v328
      %vm334 = vcmask 261120
      %v336 = vsel %vm334, %v316, 0
      %338 = vmatprep.subr.bf16.mxu0 0
      %339 = vmatpush1.bf16.msra.mxu0 %v330
      %340 = vmatprep.subr.bf16.mxu0 0
      %341 = vmatpush1.bf16.msra.mxu0 %v331
      %342 = vmatprep.subr.bf16.mxu0 0
      %343 = vmatpush1.bf16.msra.mxu0 0
      %344 = vmatprep.subr.bf16.mxu0 0
      %345 = vmatpush1.bf16.msra.mxu0 0
      %346 = vmatprep.subr.bf16.mxu0 0
      %347 = vmatpush1.bf16.msra.mxu0 0
      %348 = vmatprep.subr.bf16.mxu0 0
      %349 = vmatpush1.bf16.msra.mxu0 0
      %350 = vmatprep.subr.bf16.mxu0 0
      %351 = vmatpush1.bf16.msra.mxu0 0
      %352 = vmatprep.subr.bf16.mxu0 0
      %353 = vmatpush1.bf16.msra.mxu0 0
      %354 = vmatprep.subr.bf16.mxu0 0
      %355 = vmatpush1.bf16.msra.mxu0 0
      %356 = vmatprep.subr.bf16.mxu0 0
      %357 = vmatpush1.bf16.msra.mxu0 0
      %358 = vmatprep.subr.bf16.mxu0 0
      %359 = vmatpush1.bf16.msra.mxu0 0
      %360 = vmatprep.subr.bf16.mxu0 0
      %361 = vmatpush1.bf16.msra.mxu0 0
      %362 = vmatprep.subr.bf16.mxu0 0
      %363 = vmatpush1.bf16.msra.mxu0 0
      %364 = vmatprep.subr.bf16.mxu0 0
      %365 = vmatpush1.bf16.msra.mxu0 0
      %366 = vmatprep.subr.bf16.mxu0 0
      %367 = vmatpush1.bf16.msra.mxu0 0
      %368 = vmatprep.subr.bf16.mxu0 0
      %369 = vmatpush1.bf16.msra.mxu0 0
      %370 = vmatprep.mubr.bf16.mxu0 0
      %371 = vmatmul.mubr.bf16.gmra.mrb[0].mxu0 %v336
      %v372 = vpop.f32.mrb[0].mxu0
      %v373 = vadd.f32 0.0, %v372
      %v374 = vpop.f32.mrb[0].mxu0
      %v375 = vpop.f32.mrb[0].mxu0
      %v376 = vpop.f32.mrb[0].mxu0
      %377 = vdwg.mxu0
      %v378 = vadd.f32 %v317, %v373
      %379 = vst.msk [vmem:[#allocation2] sm:$0xff] %vm334, %v378
      // Predicated region
      $region49: #{transformer_decoder.19} parent=43 // pred_check
        %p380 = pneg %p310
      $region50: #{transformer_decoder.19} parent=43 // pred_check_branch
        %382 = sbr.rel (%p380) target = $region52
      $region51: #{transformer_decoder.19} parent=43 // pred_region
        %v383 = vld [vmem:[#allocation2] sm:$0xff]
        %v384 = vld [vmem:[%s2] sm:$0x1]
        %v386 = vlaneseq
        %v387 = vshrl.u32 %v386, 7
        %v388 = vsub.s32 0, %v387
        %v389 = vrot.slane %v384, %v388
        %v391 = vadd.f32 %v383, %v389
        %v392 = vld [vmem:[%s304] sm:$0xff]
        %v393 = vadd.f32 %v391, %v392
        %v394 = vsel %vm334, %v393, 0.0
        %395 = vadd.xlane.f32.xlu0 %v394
        %v396 = vpop.xlane.xlu0 %395
        %v397 = vrcp.pop 32.0
        %v398 = vmul.f32 %v396, %v397
        %v399 = vsub.f32 %v393, %v398
        %v400 = vmul.f32 %v399, %v399
        %v401 = vsel %vm334, %v400, 0.0
        %402 = vadd.xlane.f32.xlu0 %v401
        %v403 = vpop.xlane.xlu0 %402
        %v404 = vmul.f32 %v403, %v397
        %v405 = vadd.f32 %v404, 1e-05
        %v406 = vrsqrt.pop %v405
        %v407 = vmul.f32 %v399, %v406
        %v408 = vld [vmem:[%s4] sm:$0x1]
        %v410 = vlaneseq
        %v411 = vshrl.u32 %v410, 7
        %v412 = vsub.s32 0, %v411
        %v413 = vrot.slane %v408, %v412
        %v415 = vmul.f32 %v407, %v413
        %v416 = vld [vmem:[%s5] sm:$0x1]
        %v418 = vlaneseq
        %v419 = vshrl.u32 %v418, 7
        %v420 = vsub.s32 0, %v419
        %v421 = vrot.slane %v416, %v420
        %v423 = vadd.f32 %v415, %v421
        %424 = vst.msk [vmem:[%s308] sm:$0xff] %vm334, %v423
      $region52: #{transformer_decoder.19} parent=43 // pred_fallthru
        _
      %p425 = scmp.lt.s32.totalorder %s21, 1
      %s426 = scalar_select %p425, %s21, 1
      %s427 = smul.addr %s426, 8
      %s428 = scalar_lea.vmem %s6, %s427
      // Predicated region
      $region53: #{transformer_decoder.19} parent=43 // pred_check
        %p429 = pneg %p190
      $region54: #{transformer_decoder.19} parent=43 // pred_check_branch
        %431 = sbr.rel (%p429) target = $region56
      $region55: #{transformer_decoder.19} parent=43 // pred_region
        _
      $region56: #{transformer_decoder.19} parent=43 // pred_fallthru
        _
    $region44: #{transformer_decoder.19} parent=5 // pred_fallthru
      _
    %p432 = scmp.le.s32.totalorder 2, %s12
    // Predicated region
    $region57: #{transformer_decoder.19} parent=5 // pred_check
      %p433 = pneg %p432
    $region58: #{transformer_decoder.19} parent=5 // pred_check_branch
      %435 = sbr.rel (%p433) target = $region60
    $region59: #{transformer_decoder.19} parent=5 // pred_region
      %s436 = ssub.s32 %s12, 2
      // Predicated region
      $region61: #{transformer_decoder.19} parent=59 // pred_check
        %p437 = pneg %p196
      $region62: #{transformer_decoder.19} parent=59 // pred_check_branch
        %439 = sbr.rel (%p437) target = $region64
      $region63: #{transformer_decoder.19} parent=59 // pred_region
        %p440 = scmp.lt.s32.totalorder %s23, 1
        %s441 = scalar_select %p440, %s23, 1
        %s442 = smul.addr %s441, 8
        %s443 = scalar_lea.vmem %s6, %s442
      $region64: #{transformer_decoder.19} parent=59 // pred_fallthru
        _
    $region60: #{transformer_decoder.19} parent=5 // pred_fallthru
      _
  $region6: #{transformer_decoder.19} parent=0 // loop_footer
    %s16 = sadd.s32 1, %s12
  $region7: #{transformer_decoder.19} parent=0 // loop_footer_branch
    %11 = sbr.rel target = $region3
  $region8: #{transformer_decoder.19} parent=0 // loop_exit
    _

// kernel: transformer_decoder.17
$region0: #{transformer_decoder.17}
  #allocation0 [shape = 'u32[]', space=smem, size = 0x4, offset = 0x4, fixed_abs, tag = 'smem constant byte address 0x4 - core index']
  #allocation1 [shape = 'u32[144,128]{1,0:T(1,128)}', space=vmem, size = 0x12000, scoped, tag = 'internal scratch']
  %s0 = inlined_call_operand.vmem [shape: f32[16,32], index: 0, kind: input, shape index: {}]
  %s1 = inlined_call_operand.vmem [shape: bf16[32,96], index: 1, kind: input, shape index: {}]
  %s2 = inlined_call_operand.vmem [shape: f32[1,96], index: 2, kind: input, shape index: {}]
  %s3 = inlined_call_operand.vmem [shape: bf16[16,32], index: 3, kind: output, shape index: {0}]
  %s4 = inlined_call_operand.vmem [shape: bf16[16,32], index: 4, kind: output, shape index: {1}]
  %s5 = inlined_call_operand.vmem [shape: bf16[16,32], index: 5, kind: output, shape index: {2}]
  %6 = xla_tuple %s3, %s4, %s5
  %s7 = sld [smem:[#allocation0]]
  $region61: #{transformer_decoder.17} parent=0
    _
  %s9 = ssub.s32 1, %s7
  %s10 = scalar_select 0, %s9, %s7
  loop: start=0, step=1, limit=4
  $region2: #{transformer_decoder.17} parent=0 // loop_pre_header
    _
  $region3: #{transformer_decoder.17} parent=0 // loop_header
    %s12 = sphi 0, %s16
    %p13 = scmp.ge.s32.totalorder %s12, 4
    %s22 = sphi 0, %s24
    %s25 = sphi 0, %s22
    %s26 = sphi 0, %s25
    %s42 = sphi 0, %s26
    %s46 = sphi 0, %s46
    %s48 = sphi 0, %s46
    %s49 = sphi 0, %s48
    %s63 = sphi 0, %s49
    %s67 = sphi 0, %s67
    %s69 = sphi 0, %s67
    %s70 = sphi 0, %s69
    %s84 = sphi 0, %s70
    %s90 = sphi 0, %s92
    %s93 = sphi 0, %s90
    %s94 = sphi 0, %s93
    %s110 = sphi 0, %s94
    %s116 = sphi 0, %s118
    %s119 = sphi 0, %s116
    %s120 = sphi 0, %s119
    %s136 = sphi 0, %s120
    %s142 = sphi 0, %s144
    %s145 = sphi 0, %s142
    %s146 = sphi 0, %s145
    %s162 = sphi 0, %s146
  $region4: #{transformer_decoder.17} parent=0 // loop_header_branch
    %15 = sbr.rel (%p13) target = $region8
  $region5: #{transformer_decoder.17} parent=0 // loop_body
    %s17 = ssub.s32 %s12, 1
    %s18 = ssub.s32 %s12, 2
    %s19 = sadd.s32 %s12, 1
    %s20 = ssub.s32 %s12, %s19
    %p21 = scmp.eq.s32.totalorder %s20, 0
    %s23 = sadd.s32 %s22, 1
    %s24 = scalar_select %p21, %s22, %s23
    %p27 = pneg %p21
    %p28 = scmp.eq.s32.totalorder %s12, 1
    %p29 = por %p27, %p28
    %p30 = scmp.ne.s32.totalorder %s22, %s25
    %p31 = scmp.eq.s32.totalorder %s12, 0
    %p32 = por %p30, %p31
    %p33 = scmp.ne.s32.totalorder %s22, %s25
    %p34 = scmp.eq.s32.totalorder %s17, 1
    %p35 = por %p33, %p34
    %p36 = scmp.ne.s32.totalorder %s25, %s26
    %p37 = scmp.eq.s32.totalorder %s17, 0
    %p38 = por %p36, %p37
    %p39 = scmp.ne.s32.totalorder %s25, %s26
    %p40 = scmp.eq.s32.totalorder %s18, 1
    %p41 = por %p39, %p40
    %p43 = scmp.ne.s32.totalorder %s26, %s42
    %p44 = scmp.eq.s32.totalorder %s18, 0
    %p45 = por %p43, %p44
    %s47 = sadd.s32 %s46, 1
    %p50 = scmp.eq.s32.totalorder %s12, 1
    %p51 = scmp.ne.s32.totalorder %s46, %s48
    %p52 = scmp.eq.s32.totalorder %s12, 0
    %p53 = por %p51, %p52
    %p54 = scmp.ne.s32.totalorder %s46, %s48
    %p55 = scmp.eq.s32.totalorder %s17, 1
    %p56 = por %p54, %p55
    %p57 = scmp.ne.s32.totalorder %s48, %s49
    %p58 = scmp.eq.s32.totalorder %s17, 0
    %p59 = por %p57, %p58
    %p60 = scmp.ne.s32.totalorder %s48, %s49
    %p61 = scmp.eq.s32.totalorder %s18, 1
    %p62 = por %p60, %p61
    %p64 = scmp.ne.s32.totalorder %s49, %s63
    %p65 = scmp.eq.s32.totalorder %s18, 0
    %p66 = por %p64, %p65
    %s68 = sadd.s32 %s67, 1
    %p71 = scmp.eq.s32.totalorder %s12, 1
    %p72 = scmp.ne.s32.totalorder %s67, %s69
    %p73 = scmp.eq.s32.totalorder %s12, 0
    %p74 = por %p72, %p73
    %p75 = scmp.ne.s32.totalorder %s67, %s69
    %p76 = scmp.eq.s32.totalorder %s17, 1
    %p77 = por %p75, %p76
    %p78 = scmp.ne.s32.totalorder %s69, %s70
    %p79 = scmp.eq.s32.totalorder %s17, 0
    %p80 = por %p78, %p79
    %p81 = scmp.ne.s32.totalorder %s69, %s70
    %p82 = scmp.eq.s32.totalorder %s18, 1
    %p83 = por %p81, %p82
    %p85 = scmp.ne.s32.totalorder %s70, %s84
    %p86 = scmp.eq.s32.totalorder %s18, 0
    %p87 = por %p85, %p86
    %s88 = ssub.s32 %s12, %s19
    %p89 = scmp.eq.s32.totalorder %s88, 0
    %s91 = sadd.s32 %s90, 1
    %s92 = scalar_select %p89, %s90, %s91
    %p95 = pneg %p89
    %p96 = scmp.eq.s32.totalorder %s12, 1
    %p97 = por %p95, %p96
    %p98 = scmp.ne.s32.totalorder %s90, %s93
    %p99 = scmp.eq.s32.totalorder %s12, 0
    %p100 = por %p98, %p99
    %p101 = scmp.ne.s32.totalorder %s90, %s93
    %p102 = scmp.eq.s32.totalorder %s17, 1
    %p103 = por %p101, %p102
    %p104 = scmp.ne.s32.totalorder %s93, %s94
    %p105 = scmp.eq.s32.totalorder %s17, 0
    %p106 = por %p104, %p105
    %p107 = scmp.ne.s32.totalorder %s93, %s94
    %p108 = scmp.eq.s32.totalorder %s18, 1
    %p109 = por %p107, %p108
    %p111 = scmp.ne.s32.totalorder %s94, %s110
    %p112 = scmp.eq.s32.totalorder %s18, 0
    %p113 = por %p111, %p112
    %s114 = ssub.s32 %s12, %s19
    %p115 = scmp.eq.s32.totalorder %s114, 0
    %s117 = sadd.s32 %s116, 1
    %s118 = scalar_select %p115, %s116, %s117
    %p121 = pneg %p115
    %p122 = scmp.eq.s32.totalorder %s12, 1
    %p123 = por %p121, %p122
    %p124 = scmp.ne.s32.totalorder %s116, %s119
    %p125 = scmp.eq.s32.totalorder %s12, 0
    %p126 = por %p124, %p125
    %p127 = scmp.ne.s32.totalorder %s116, %s119
    %p128 = scmp.eq.s32.totalorder %s17, 1
    %p129 = por %p127, %p128
    %p130 = scmp.ne.s32.totalorder %s119, %s120
    %p131 = scmp.eq.s32.totalorder %s17, 0
    %p132 = por %p130, %p131
    %p133 = scmp.ne.s32.totalorder %s119, %s120
    %p134 = scmp.eq.s32.totalorder %s18, 1
    %p135 = por %p133, %p134
    %p137 = scmp.ne.s32.totalorder %s120, %s136
    %p138 = scmp.eq.s32.totalorder %s18, 0
    %p139 = por %p137, %p138
    %s140 = ssub.s32 %s12, %s19
    %p141 = scmp.eq.s32.totalorder %s140, 0
    %s143 = sadd.s32 %s142, 1
    %s144 = scalar_select %p141, %s142, %s143
    %p147 = pneg %p141
    %p148 = scmp.eq.s32.totalorder %s12, 1
    %p149 = por %p147, %p148
    %p150 = scmp.ne.s32.totalorder %s142, %s145
    %p151 = scmp.eq.s32.totalorder %s12, 0
    %p152 = por %p150, %p151
    %p153 = scmp.ne.s32.totalorder %s142, %s145
    %p154 = scmp.eq.s32.totalorder %s17, 1
    %p155 = por %p153, %p154
    %p156 = scmp.ne.s32.totalorder %s145, %s146
    %p157 = scmp.eq.s32.totalorder %s17, 0
    %p158 = por %p156, %p157
    %p159 = scmp.ne.s32.totalorder %s145, %s146
    %p160 = scmp.eq.s32.totalorder %s18, 1
    %p161 = por %p159, %p160
    %p163 = scmp.ne.s32.totalorder %s146, %s162
    %p164 = scmp.eq.s32.totalorder %s18, 0
    %p165 = por %p163, %p164
    %p166 = scmp.le.s32.totalorder 1, %s12
    %p167 = scmp.lt.s32.totalorder %s12, 3
    %p168 = pnand %p166, %p167
    %p169 = pneg %p168
    // Predicated region
    $region9: #{transformer_decoder.17} parent=5 // pred_check
      _
    $region10: #{transformer_decoder.17} parent=5 // pred_check_branch
      %171 = sbr.rel (%p168) target = $region12
    $region11: #{transformer_decoder.17} parent=5 // pred_region
      %s172 = ssub.s32 %s12, 1
      // Predicated region
      $region13: #{transformer_decoder.17} parent=11 // pred_check
        %p173 = pneg %p59
      $region14: #{transformer_decoder.17} parent=11 // pred_check_branch
        %175 = sbr.rel (%p173) target = $region16
      $region15: #{transformer_decoder.17} parent=11 // pred_region
        _
      $region16: #{transformer_decoder.17} parent=11 // pred_fallthru
        _
      // Predicated region
      $region17: #{transformer_decoder.17} parent=11 // pred_check
        %p176 = pneg %p80
      $region18: #{transformer_decoder.17} parent=11 // pred_check_branch
        %178 = sbr.rel (%p176) target = $region20
      $region19: #{transformer_decoder.17} parent=11 // pred_region
        _
      $region20: #{transformer_decoder.17} parent=11 // pred_fallthru
        _
    $region12: #{transformer_decoder.17} parent=5 // pred_fallthru
      _
    %p179 = scmp.lt.s32.totalorder %s12, 2
    // Predicated region
    $region21: #{transformer_decoder.17} parent=5 // pred_check
      %p180 = pneg %p179
    $region22: #{transformer_decoder.17} parent=5 // pred_check_branch
      %182 = sbr.rel (%p180) target = $region24
    $region23: #{transformer_decoder.17} parent=5 // pred_region
      // Predicated region
      $region25: #{transformer_decoder.17} parent=23 // pred_check
        %p183 = pneg %p32
      $region26: #{transformer_decoder.17} parent=23 // pred_check_branch
        %185 = sbr.rel (%p183) target = $region28
      $region27: #{transformer_decoder.17} parent=23 // pred_region
        %p186 = scmp.lt.s32.totalorder %s12, 1
        %s187 = scalar_select %p186, %s12, 1
        %s188 = smul.addr %s187, 8
        %s189 = scalar_lea.vmem %s0, %s188
      $region28: #{transformer_decoder.17} parent=23 // pred_fallthru
        _
    $region24: #{transformer_decoder.17} parent=5 // pred_fallthru
      _
    %p190 = scmp.le.s32.totalorder 1, %s12
    %p191 = scmp.lt.s32.totalorder %s12, 3
    %p192 = pnand %p190, %p191
    %p193 = pneg %p192
    // Predicated region
    $region29: #{transformer_decoder.17} parent=5 // pred_check
      _
    $region30: #{transformer_decoder.17} parent=5 // pred_check_branch
      %195 = sbr.rel (%p192) target = $region32
    $region31: #{transformer_decoder.17} parent=5 // pred_region
      %s196 = ssub.s32 %s12, 1
      %p197 = scmp.lt.s32.totalorder %s17, 1
      %s198 = scalar_select %p197, %s17, 1
      %s199 = smul.addr %s198, 8
      %s200 = scalar_lea.vmem %s0, %s199
      %p201 = pneg %p38
      %p202 = pneg %p35
      %p203 = pneg %p59
      %p204 = pneg %p56
      %p205 = pneg %p80
      %p206 = pneg %p77
      %p207 = pneg %p106
      %p208 = pneg %p103
      %p209 = scmp.lt.s32.totalorder %s17, 1
      %s210 = scalar_select %p209, %s17, 1
      %s211 = smul.addr %s210, 4
      %s212 = scalar_lea.vmem %s3, %s211
      %p213 = pneg %p132
      %p214 = pneg %p129
      %p215 = scmp.lt.s32.totalorder %s17, 1
      %s216 = scalar_select %p215, %s17, 1
      %s217 = smul.addr %s216, 4
      %s218 = scalar_lea.vmem %s4, %s217
      %p219 = pneg %p158
      %p220 = pneg %p155
      %p221 = scmp.lt.s32.totalorder %s17, 1
      %s222 = scalar_select %p221, %s17, 1
      %s223 = smul.addr %s222, 4
      %s224 = scalar_lea.vmem %s5, %s223
      %p225 = scmp.lt.s32.totalorder %s17, 1
      %s226 = scalar_select %p225, %s17, 1
      %s227 = smul.addr %s226, 8
      %s228 = scalar_lea.vmem %s0, %s227
      %p229 = scmp.lt.s32.totalorder %s17, 1
      %s230 = scalar_select %p229, %s17, 1
      %s231 = smul.addr %s230, 4
      %s232 = scalar_lea.vmem %s3, %s231
      %p233 = scmp.lt.s32.totalorder %s17, 1
      %s234 = scalar_select %p233, %s17, 1
      %s235 = smul.addr %s234, 4
      %s236 = scalar_lea.vmem %s4, %s235
      %p237 = scmp.lt.s32.totalorder %s17, 1
      %s238 = scalar_select %p237, %s17, 1
      %s239 = smul.addr %s238, 4
      %s240 = scalar_lea.vmem %s5, %s239
      %v242 = vld [vmem:[%s228] sm:$0xff]
      %v243 = vpack.c.bf16 %v242, %v242
      %v244 = vld [vmem:[%s1] sm:$0xf]
      %v245 = vld [vmem:[%s1 + $0x4] sm:$0xf]
      %v246 = vld [vmem:[%s1 + $0x8] sm:$0xf]
      %v247 = vld [vmem:[%s1 + $0xc] sm:$0xf]
      %v248 = vld [vmem:[%s2] sm:$0x1]
      %v250 = vlaneseq
      %v251 = vshrl.u32 %v250, 7
      %v252 = vsub.s32 0, %v251
      %v253 = vrot.slane %v248, %v252
      %v259 = vunpack.c.l.b16 %v244
      %v260 = vunpack.c.l.b16 %v245
      %v261 = vunpack.c.l.b16 %v246
      %v262 = vunpack.c.l.b16 %v247
      %v263 = vpack.c.b16 %v260, %v259
      %v264 = vpack.c.b16 %v262, %v261
      %vm267 = vcmask 261120
      %v269 = vsel %vm267, %v243, 0
      %271 = vmatprep.subr.bf16.mxu0 0
      %272 = vmatpush1.bf16.msra.mxu0 %v263
      %273 = vmatprep.subr.bf16.mxu0 0
      %274 = vmatpush1.bf16.msra.mxu0 %v264
      %275 = vmatprep.subr.bf16.mxu0 0
      %276 = vmatpush1.bf16.msra.mxu0 0
      %277 = vmatprep.subr.bf16.mxu0 0
      %278 = vmatpush1.bf16.msra.mxu0 0
      %279 = vmatprep.subr.bf16.mxu0 0
      %280 = vmatpush1.bf16.msra.mxu0 0
      %281 = vmatprep.subr.bf16.mxu0 0
      %282 = vmatpush1.bf16.msra.mxu0 0
      %283 = vmatprep.subr.bf16.mxu0 0
      %284 = vmatpush1.bf16.msra.mxu0 0
      %285 = vmatprep.subr.bf16.mxu0 0
      %286 = vmatpush1.bf16.msra.mxu0 0
      %287 = vmatprep.subr.bf16.mxu0 0
      %288 = vmatpush1.bf16.msra.mxu0 0
      %289 = vmatprep.subr.bf16.mxu0 0
      %290 = vmatpush1.bf16.msra.mxu0 0
      %291 = vmatprep.subr.bf16.mxu0 0
      %292 = vmatpush1.bf16.msra.mxu0 0
      %293 = vmatprep.subr.bf16.mxu0 0
      %294 = vmatpush1.bf16.msra.mxu0 0
      %295 = vmatprep.subr.bf16.mxu0 0
      %296 = vmatpush1.bf16.msra.mxu0 0
      %297 = vmatprep.subr.bf16.mxu0 0
      %298 = vmatpush1.bf16.msra.mxu0 0
      %299 = vmatprep.subr.bf16.mxu0 0
      %300 = vmatpush1.bf16.msra.mxu0 0
      %301 = vmatprep.subr.bf16.mxu0 0
      %302 = vmatpush1.bf16.msra.mxu0 0
      %303 = vmatprep.mubr.bf16.mxu0 0
      %304 = vmatmul.mubr.bf16.gmra.mrb[0].mxu0 %v269
      %v305 = vpop.f32.mrb[0].mxu0
      %v306 = vadd.f32 %v253, %v305
      %v307 = vpop.f32.mrb[0].mxu0
      %v308 = vpop.f32.mrb[0].mxu0
      %v309 = vpop.f32.mrb[0].mxu0
      %310 = vdwg.mxu0
      %v311 = vpack.c.bf16 %v306, %v306
      %vm312 = vcmask 257024
      %313 = vst.msk [vmem:[%s232] sm:$0xf] %vm312, %v311
      %v315 = vunpack.c.l.b16 %v311
      %v316 = vpack.c.b16 %v315, %v315
      %317 = vrot.lane.b32.xlu0 %v316, 96
      %v318 = vpop.permute.xlu0 %317
      %320 = vst.msk [vmem:[%s236] sm:$0xf] %vm312, %v318
      %321 = vrot.lane.b32.xlu0 %v316, 64
      %v322 = vpop.permute.xlu0 %321
      %324 = vst.msk [vmem:[%s240] sm:$0xf] %vm312, %v322
      %p325 = scmp.lt.s32.totalorder %s17, 1
      %s326 = scalar_select %p325, %s17, 1
      %s327 = smul.addr %s326, 4
      %s328 = scalar_lea.vmem %s3, %s327
      %p329 = scmp.lt.s32.totalorder %s17, 1
      %s330 = scalar_select %p329, %s17, 1
      %s331 = smul.addr %s330, 4
      %s332 = scalar_lea.vmem %s4, %s331
      %p333 = scmp.lt.s32.totalorder %s17, 1
      %s334 = scalar_select %p333, %s17, 1
      %s335 = smul.addr %s334, 4
      %s336 = scalar_lea.vmem %s5, %s335
      // Predicated region
      $region33: #{transformer_decoder.17} parent=31 // pred_check
        %p337 = pneg %p103
      $region34: #{transformer_decoder.17} parent=31 // pred_check_branch
        %339 = sbr.rel (%p337) target = $region36
      $region35: #{transformer_decoder.17} parent=31 // pred_region
        _
      $region36: #{transformer_decoder.17} parent=31 // pred_fallthru
        _
      // Predicated region
      $region37: #{transformer_decoder.17} parent=31 // pred_check
        %p340 = pneg %p129
      $region38: #{transformer_decoder.17} parent=31 // pred_check_branch
        %342 = sbr.rel (%p340) target = $region40
      $region39: #{transformer_decoder.17} parent=31 // pred_region
        _
      $region40: #{transformer_decoder.17} parent=31 // pred_fallthru
        _
      // Predicated region
      $region41: #{transformer_decoder.17} parent=31 // pred_check
        %p343 = pneg %p155
      $region42: #{transformer_decoder.17} parent=31 // pred_check_branch
        %345 = sbr.rel (%p343) target = $region44
      $region43: #{transformer_decoder.17} parent=31 // pred_region
        _
      $region44: #{transformer_decoder.17} parent=31 // pred_fallthru
        _
    $region32: #{transformer_decoder.17} parent=5 // pred_fallthru
      _
    %p346 = scmp.le.s32.totalorder 2, %s12
    // Predicated region
    $region45: #{transformer_decoder.17} parent=5 // pred_check
      %p347 = pneg %p346
    $region46: #{transformer_decoder.17} parent=5 // pred_check_branch
      %349 = sbr.rel (%p347) target = $region48
    $region47: #{transformer_decoder.17} parent=5 // pred_region
      %s350 = ssub.s32 %s12, 2
      // Predicated region
      $region49: #{transformer_decoder.17} parent=47 // pred_check
        %p351 = pneg %p109
      $region50: #{transformer_decoder.17} parent=47 // pred_check_branch
        %353 = sbr.rel (%p351) target = $region52
      $region51: #{transformer_decoder.17} parent=47 // pred_region
        %p354 = scmp.lt.s32.totalorder %s18, 1
        %s355 = scalar_select %p354, %s18, 1
        %s356 = smul.addr %s355, 4
        %s357 = scalar_lea.vmem %s3, %s356
      $region52: #{transformer_decoder.17} parent=47 // pred_fallthru
        _
      // Predicated region
      $region53: #{transformer_decoder.17} parent=47 // pred_check
        %p358 = pneg %p135
      $region54: #{transformer_decoder.17} parent=47 // pred_check_branch
        %360 = sbr.rel (%p358) target = $region56
      $region55: #{transformer_decoder.17} parent=47 // pred_region
        %p361 = scmp.lt.s32.totalorder %s18, 1
        %s362 = scalar_select %p361, %s18, 1
        %s363 = smul.addr %s362, 4
        %s364 = scalar_lea.vmem %s4, %s363
      $region56: #{transformer_decoder.17} parent=47 // pred_fallthru
        _
      // Predicated region
      $region57: #{transformer_decoder.17} parent=47 // pred_check
        %p365 = pneg %p161
      $region58: #{transformer_decoder.17} parent=47 // pred_check_branch
        %367 = sbr.rel (%p365) target = $region60
      $region59: #{transformer_decoder.17} parent=47 // pred_region
        %p368 = scmp.lt.s32.totalorder %s18, 1
        %s369 = scalar_select %p368, %s18, 1
        %s370 = smul.addr %s369, 4
        %s371 = scalar_lea.vmem %s5, %s370
      $region60: #{transformer_decoder.17} parent=47 // pred_fallthru
        _
    $region48: #{transformer_decoder.17} parent=5 // pred_fallthru
      _
  $region6: #{transformer_decoder.17} parent=0 // loop_footer
    %s16 = sadd.s32 1, %s12
  $region7: #{transformer_decoder.17} parent=0 // loop_footer_branch
    %11 = sbr.rel target = $region3
  $region8: #{transformer_decoder.17} parent=0 // loop_exit
    _

// kernel: transformer_decoder.20
$region0: #{transformer_decoder.20}
  #allocation0 [shape = 'u32[]', space=smem, size = 0x4, offset = 0x4, fixed_abs, tag = 'smem constant byte address 0x4 - core index']
  #allocation1 [shape = 'u32[144,128]{1,0:T(1,128)}', space=vmem, size = 0x12000, scoped, tag = 'internal scratch']
  %s0 = inlined_call_operand.vmem [shape: f32[16,32], index: 0, kind: input, shape index: {}]
  %s1 = inlined_call_operand.vmem [shape: bf16[32,32], index: 1, kind: input, shape index: {}]
  %s2 = inlined_call_operand.vmem [shape: f32[1,32], index: 2, kind: input, shape index: {}]
  %s3 = inlined_call_operand.vmem [shape: bf16[16,32], index: 3, kind: output, shape index: {}]
  %s4 = sld [smem:[#allocation0]]
  $region45: #{transformer_decoder.20} parent=0
    _
  %s6 = ssub.s32 1, %s4
  %s7 = scalar_select 0, %s6, %s4
  loop: start=0, step=1, limit=4
  $region2: #{transformer_decoder.20} parent=0 // loop_pre_header
    _
  $region3: #{transformer_decoder.20} parent=0 // loop_header
    %s9 = sphi 0, %s13
    %p10 = scmp.ge.s32.totalorder %s9, 4
    %s16 = sphi 0, %s28
    %s17 = sphi 0, %s24
    %s18 = sphi 0, %s16
    %s19 = sphi 0, %s17
    %s20 = sphi 0, %s18
    %s21 = sphi 0, %s19
    %s31 = sphi 0, %s33
    %s34 = sphi 0, %s31
    %s35 = sphi 0, %s34
    %s51 = sphi 0, %s35
    %s57 = sphi 0, %s59
    %s60 = sphi 0, %s57
    %s61 = sphi 0, %s60
    %s77 = sphi 0, %s61
    %s83 = sphi 0, %s85
    %s86 = sphi 0, %s83
    %s87 = sphi 0, %s86
    %s103 = sphi 0, %s87
    %s111 = sphi 0, %s113
    %s114 = sphi 0, %s111
    %s115 = sphi 0, %s114
    %s131 = sphi 0, %s115
  $region4: #{transformer_decoder.20} parent=0 // loop_header_branch
    %12 = sbr.rel (%p10) target = $region8
  $region5: #{transformer_decoder.20} parent=0 // loop_body
    %s14 = ssub.s32 %s9, 1
    %s15 = ssub.s32 %s9, 2
    %s22 = sadd.s32 1, %s17
    %p23 = scmp.ge.s32.totalorder %s22, 1
    %s24 = scalar_select %p23, 0, %s22
    %s25 = sadd.s32 1, %s16
    %s26 = scalar_select %p23, %s25, %s16
    %p27 = scmp.ge.s32.totalorder %s26, 2
    %s28 = scalar_select %p27, 0, %s26
    %s29 = ssub.s32 %s16, %s28
    %p30 = scmp.eq.s32.totalorder %s29, 0
    %s32 = sadd.s32 %s31, 1
    %s33 = scalar_select %p30, %s31, %s32
    %p36 = pneg %p30
    %p37 = scmp.eq.s32.totalorder %s9, 1
    %p38 = por %p36, %p37
    %p39 = scmp.ne.s32.totalorder %s31, %s34
    %p40 = scmp.eq.s32.totalorder %s9, 0
    %p41 = por %p39, %p40
    %p42 = scmp.ne.s32.totalorder %s31, %s34
    %p43 = scmp.eq.s32.totalorder %s14, 1
    %p44 = por %p42, %p43
    %p45 = scmp.ne.s32.totalorder %s34, %s35
    %p46 = scmp.eq.s32.totalorder %s14, 0
    %p47 = por %p45, %p46
    %p48 = scmp.ne.s32.totalorder %s34, %s35
    %p49 = scmp.eq.s32.totalorder %s15, 1
    %p50 = por %p48, %p49
    %p52 = scmp.ne.s32.totalorder %s35, %s51
    %p53 = scmp.eq.s32.totalorder %s15, 0
    %p54 = por %p52, %p53
    %s55 = ssub.s32 %s17, %s24
    %p56 = scmp.eq.s32.totalorder %s55, 0
    %s58 = sadd.s32 %s57, 1
    %s59 = scalar_select %p56, %s57, %s58
    %p62 = pneg %p56
    %p63 = scmp.eq.s32.totalorder %s9, 1
    %p64 = por %p62, %p63
    %p65 = scmp.ne.s32.totalorder %s57, %s60
    %p66 = scmp.eq.s32.totalorder %s9, 0
    %p67 = por %p65, %p66
    %p68 = scmp.ne.s32.totalorder %s57, %s60
    %p69 = scmp.eq.s32.totalorder %s14, 1
    %p70 = por %p68, %p69
    %p71 = scmp.ne.s32.totalorder %s60, %s61
    %p72 = scmp.eq.s32.totalorder %s14, 0
    %p73 = por %p71, %p72
    %p74 = scmp.ne.s32.totalorder %s60, %s61
    %p75 = scmp.eq.s32.totalorder %s15, 1
    %p76 = por %p74, %p75
    %p78 = scmp.ne.s32.totalorder %s61, %s77
    %p79 = scmp.eq.s32.totalorder %s15, 0
    %p80 = por %p78, %p79
    %s81 = ssub.s32 %s17, %s24
    %p82 = scmp.eq.s32.totalorder %s81, 0
    %s84 = sadd.s32 %s83, 1
    %s85 = scalar_select %p82, %s83, %s84
    %p88 = pneg %p82
    %p89 = scmp.eq.s32.totalorder %s9, 1
    %p90 = por %p88, %p89
    %p91 = scmp.ne.s32.totalorder %s83, %s86
    %p92 = scmp.eq.s32.totalorder %s9, 0
    %p93 = por %p91, %p92
    %p94 = scmp.ne.s32.totalorder %s83, %s86
    %p95 = scmp.eq.s32.totalorder %s14, 1
    %p96 = por %p94, %p95
    %p97 = scmp.ne.s32.totalorder %s86, %s87
    %p98 = scmp.eq.s32.totalorder %s14, 0
    %p99 = por %p97, %p98
    %p100 = scmp.ne.s32.totalorder %s86, %s87
    %p101 = scmp.eq.s32.totalorder %s15, 1
    %p102 = por %p100, %p101
    %p104 = scmp.ne.s32.totalorder %s87, %s103
    %p105 = scmp.eq.s32.totalorder %s15, 0
    %p106 = por %p104, %p105
    %s107 = ssub.s32 %s16, %s28
    %s108 = ssub.s32 %s17, %s24
    %s109 = sor.u32 %s107, %s108
    %p110 = scmp.eq.s32.totalorder %s109, 0
    %s112 = sadd.s32 %s111, 1
    %s113 = scalar_select %p110, %s111, %s112
    %p116 = pneg %p110
    %p117 = scmp.eq.s32.totalorder %s9, 1
    %p118 = por %p116, %p117
    %p119 = scmp.ne.s32.totalorder %s111, %s114
    %p120 = scmp.eq.s32.totalorder %s9, 0
    %p121 = por %p119, %p120
    %p122 = scmp.ne.s32.totalorder %s111, %s114
    %p123 = scmp.eq.s32.totalorder %s14, 1
    %p124 = por %p122, %p123
    %p125 = scmp.ne.s32.totalorder %s114, %s115
    %p126 = scmp.eq.s32.totalorder %s14, 0
    %p127 = por %p125, %p126
    %p128 = scmp.ne.s32.totalorder %s114, %s115
    %p129 = scmp.eq.s32.totalorder %s15, 1
    %p130 = por %p128, %p129
    %p132 = scmp.ne.s32.totalorder %s115, %s131
    %p133 = scmp.eq.s32.totalorder %s15, 0
    %p134 = por %p132, %p133
    %p135 = scmp.le.s32.totalorder 1, %s9
    %p136 = scmp.lt.s32.totalorder %s9, 3
    %p137 = pnand %p135, %p136
    %p138 = pneg %p137
    // Predicated region
    $region9: #{transformer_decoder.20} parent=5 // pred_check
      _
    $region10: #{transformer_decoder.20} parent=5 // pred_check_branch
      %140 = sbr.rel (%p137) target = $region12
    $region11: #{transformer_decoder.20} parent=5 // pred_region
      %s141 = ssub.s32 %s9, 1
      // Predicated region
      $region13: #{transformer_decoder.20} parent=11 // pred_check
        %p142 = pneg %p73
      $region14: #{transformer_decoder.20} parent=11 // pred_check_branch
        %144 = sbr.rel (%p142) target = $region16
      $region15: #{transformer_decoder.20} parent=11 // pred_region
        %p145 = scmp.lt.s32.totalorder %s19, 0
        %s146 = scalar_select %p145, %s19, 0
        %s147 = smul.addr %s146, 4
        %s148 = scalar_lea.vmem %s1, %s147
      $region16: #{transformer_decoder.20} parent=11 // pred_fallthru
        _
      // Predicated region
      $region17: #{transformer_decoder.20} parent=11 // pred_check
        %p149 = pneg %p99
      $region18: #{transformer_decoder.20} parent=11 // pred_check_branch
        %151 = sbr.rel (%p149) target = $region20
      $region19: #{transformer_decoder.20} parent=11 // pred_region
        %p152 = scmp.lt.s32.totalorder %s19, 0
        %s153 = scalar_select %p152, %s19, 0
        %s154 = scalar_lea.vmem %s2, %s153
      $region20: #{transformer_decoder.20} parent=11 // pred_fallthru
        _
    $region12: #{transformer_decoder.20} parent=5 // pred_fallthru
      _
    %p155 = scmp.lt.s32.totalorder %s9, 2
    // Predicated region
    $region21: #{transformer_decoder.20} parent=5 // pred_check
      %p156 = pneg %p155
    $region22: #{transformer_decoder.20} parent=5 // pred_check_branch
      %158 = sbr.rel (%p156) target = $region24
    $region23: #{transformer_decoder.20} parent=5 // pred_region
      // Predicated region
      $region25: #{transformer_decoder.20} parent=23 // pred_check
        %p159 = pneg %p41
      $region26: #{transformer_decoder.20} parent=23 // pred_check_branch
        %161 = sbr.rel (%p159) target = $region28
      $region27: #{transformer_decoder.20} parent=23 // pred_region
        %p162 = scmp.lt.s32.totalorder %s16, 1
        %s163 = scalar_select %p162, %s16, 1
        %s164 = smul.addr %s163, 8
        %s165 = scalar_lea.vmem %s0, %s164
      $region28: #{transformer_decoder.20} parent=23 // pred_fallthru
        _
    $region24: #{transformer_decoder.20} parent=5 // pred_fallthru
      _
    %p166 = scmp.le.s32.totalorder 1, %s9
    %p167 = scmp.lt.s32.totalorder %s9, 3
    %p168 = pnand %p166, %p167
    %p169 = pneg %p168
    // Predicated region
    $region29: #{transformer_decoder.20} parent=5 // pred_check
      _
    $region30: #{transformer_decoder.20} parent=5 // pred_check_branch
      %171 = sbr.rel (%p168) target = $region32
    $region31: #{transformer_decoder.20} parent=5 // pred_region
      %s172 = ssub.s32 %s9, 1
      %p173 = scmp.lt.s32.totalorder %s18, 1
      %s174 = scalar_select %p173, %s18, 1
      %s175 = smul.addr %s174, 8
      %s176 = scalar_lea.vmem %s0, %s175
      %p177 = pneg %p47
      %p178 = pneg %p44
      %p179 = scmp.lt.s32.totalorder %s19, 0
      %s180 = scalar_select %p179, %s19, 0
      %s181 = smul.addr %s180, 4
      %s182 = scalar_lea.vmem %s1, %s181
      %p183 = pneg %p73
      %p184 = pneg %p70
      %p185 = scmp.lt.s32.totalorder %s19, 0
      %s186 = scalar_select %p185, %s19, 0
      %s187 = scalar_lea.vmem %s2, %s186
      %p188 = pneg %p99
      %p189 = pneg %p96
      %p190 = pneg %p127
      %p191 = pneg %p124
      %p192 = scmp.lt.s32.totalorder %s18, 1
      %s193 = scalar_select %p192, %s18, 1
      %p194 = scmp.lt.s32.totalorder %s19, 0
      %s195 = scalar_select %p194, %s19, 0
      %s196 = sadd.s32 %s195, %s193
      %s197 = smul.addr %s196, 4
      %s198 = scalar_lea.vmem %s3, %s197
      %p199 = scmp.lt.s32.totalorder %s18, 1
      %s200 = scalar_select %p199, %s18, 1
      %s201 = smul.addr %s200, 8
      %s202 = scalar_lea.vmem %s0, %s201
      %p203 = scmp.lt.s32.totalorder %s19, 0
      %s204 = scalar_select %p203, %s19, 0
      %s205 = smul.addr %s204, 4
      %s206 = scalar_lea.vmem %s1, %s205
      %p207 = scmp.lt.s32.totalorder %s19, 0
      %s208 = scalar_select %p207, %s19, 0
      %s209 = scalar_lea.vmem %s2, %s208
      %p210 = scmp.lt.s32.totalorder %s18, 1
      %s211 = scalar_select %p210, %s18, 1
      %p212 = scmp.lt.s32.totalorder %s19, 0
      %s213 = scalar_select %p212, %s19, 0
      %s214 = sadd.s32 %s213, %s211
      %s215 = smul.addr %s214, 4
      %s216 = scalar_lea.vmem %s3, %s215
      %v218 = vld [vmem:[%s202] sm:$0xff]
      %v219 = vpack.c.bf16 %v218, %v218
      %v220 = vld [vmem:[%s206] sm:$0xf]
      %v221 = vld [vmem:[%s206 + $0x4] sm:$0xf]
      %v222 = vld [vmem:[%s206 + $0x8] sm:$0xf]
      %v223 = vld [vmem:[%s206 + $0xc] sm:$0xf]
      %v224 = vld [vmem:[%s209] sm:$0x1]
      %v226 = vlaneseq
      %v227 = vshrl.u32 %v226, 7
      %v228 = vsub.s32 0, %v227
      %v229 = vrot.slane %v224, %v228
      %v235 = vunpack.c.l.b16 %v220
      %v236 = vunpack.c.l.b16 %v221
      %v237 = vunpack.c.l.b16 %v222
      %v238 = vunpack.c.l.b16 %v223
      %v239 = vpack.c.b16 %v236, %v235
      %v240 = vpack.c.b16 %v238, %v237
      %vm243 = vcmask 261120
      %v245 = vsel %vm243, %v219, 0
      %247 = vmatprep.subr.bf16.mxu0 0
      %248 = vmatpush1.bf16.msra.mxu0 %v239
      %249 = vmatprep.subr.bf16.mxu0 0
      %250 = vmatpush1.bf16.msra.mxu0 %v240
      %251 = vmatprep.subr.bf16.mxu0 0
      %252 = vmatpush1.bf16.msra.mxu0 0
      %253 = vmatprep.subr.bf16.mxu0 0
      %254 = vmatpush1.bf16.msra.mxu0 0
      %255 = vmatprep.subr.bf16.mxu0 0
      %256 = vmatpush1.bf16.msra.mxu0 0
      %257 = vmatprep.subr.bf16.mxu0 0
      %258 = vmatpush1.bf16.msra.mxu0 0
      %259 = vmatprep.subr.bf16.mxu0 0
      %260 = vmatpush1.bf16.msra.mxu0 0
      %261 = vmatprep.subr.bf16.mxu0 0
      %262 = vmatpush1.bf16.msra.mxu0 0
      %263 = vmatprep.subr.bf16.mxu0 0
      %264 = vmatpush1.bf16.msra.mxu0 0
      %265 = vmatprep.subr.bf16.mxu0 0
      %266 = vmatpush1.bf16.msra.mxu0 0
      %267 = vmatprep.subr.bf16.mxu0 0
      %268 = vmatpush1.bf16.msra.mxu0 0
      %269 = vmatprep.subr.bf16.mxu0 0
      %270 = vmatpush1.bf16.msra.mxu0 0
      %271 = vmatprep.subr.bf16.mxu0 0
      %272 = vmatpush1.bf16.msra.mxu0 0
      %273 = vmatprep.subr.bf16.mxu0 0
      %274 = vmatpush1.bf16.msra.mxu0 0
      %275 = vmatprep.subr.bf16.mxu0 0
      %276 = vmatpush1.bf16.msra.mxu0 0
      %277 = vmatprep.subr.bf16.mxu0 0
      %278 = vmatpush1.bf16.msra.mxu0 0
      %279 = vmatprep.mubr.bf16.mxu0 0
      %280 = vmatmul.mubr.bf16.gmra.mrb[0].mxu0 %v245
      %v281 = vpop.f32.mrb[0].mxu0
      %v282 = vadd.f32 %v229, %v281
      %v283 = vpop.f32.mrb[0].mxu0
      %v284 = vpop.f32.mrb[0].mxu0
      %v285 = vpop.f32.mrb[0].mxu0
      %286 = vdwg.mxu0
      %v287 = vpack.c.bf16 %v282, %v282
      %vm288 = vcmask 257024
      %289 = vst.msk [vmem:[%s216] sm:$0xf] %vm288, %v287
      %p290 = scmp.lt.s32.totalorder %s18, 1
      %s291 = scalar_select %p290, %s18, 1
      %p292 = scmp.lt.s32.totalorder %s19, 0
      %s293 = scalar_select %p292, %s19, 0
      %s294 = sadd.s32 %s293, %s291
      %s295 = smul.addr %s294, 4
      %s296 = scalar_lea.vmem %s3, %s295
      // Predicated region
      $region33: #{transformer_decoder.20} parent=31 // pred_check
        %p297 = pneg %p124
      $region34: #{transformer_decoder.20} parent=31 // pred_check_branch
        %299 = sbr.rel (%p297) target = $region36
      $region35: #{transformer_decoder.20} parent=31 // pred_region
        _
      $region36: #{transformer_decoder.20} parent=31 // pred_fallthru
        _
    $region32: #{transformer_decoder.20} parent=5 // pred_fallthru
      _
    %p300 = scmp.le.s32.totalorder 2, %s9
    // Predicated region
    $region37: #{transformer_decoder.20} parent=5 // pred_check
      %p301 = pneg %p300
    $region38: #{transformer_decoder.20} parent=5 // pred_check_branch
      %303 = sbr.rel (%p301) target = $region40
    $region39: #{transformer_decoder.20} parent=5 // pred_region
      %s304 = ssub.s32 %s9, 2
      // Predicated region
      $region41: #{transformer_decoder.20} parent=39 // pred_check
        %p305 = pneg %p130
      $region42: #{transformer_decoder.20} parent=39 // pred_check_branch
        %307 = sbr.rel (%p305) target = $region44
      $region43: #{transformer_decoder.20} parent=39 // pred_region
        %p308 = scmp.lt.s32.totalorder %s20, 1
        %s309 = scalar_select %p308, %s20, 1
        %p310 = scmp.lt.s32.totalorder %s21, 0
        %s311 = scalar_select %p310, %s21, 0
        %s312 = sadd.s32 %s311, %s309
        %s313 = smul.addr %s312, 4
        %s314 = scalar_lea.vmem %s3, %s313
      $region44: #{transformer_decoder.20} parent=39 // pred_fallthru
        _
    $region40: #{transformer_decoder.20} parent=5 // pred_fallthru
      _
  $region6: #{transformer_decoder.20} parent=0 // loop_footer
    %s13 = sadd.s32 1, %s9
  $region7: #{transformer_decoder.20} parent=0 // loop_footer_branch
    %8 = sbr.rel target = $region3
  $region8: #{transformer_decoder.20} parent=0 // loop_exit
    _

// kernel: transformer_decoder.18
$region0: #{transformer_decoder.18}
  #allocation0 [shape = 'u32[]', space=smem, size = 0x4, offset = 0x4, fixed_abs, tag = 'smem constant byte address 0x4 - core index']
  #allocation1 [shape = 'u32[144,128]{1,0:T(1,128)}', space=vmem, size = 0x12000, scoped, tag = 'internal scratch']
  #allocation2 [shape = 'f32[4,8,1]{2,1,0:T(8,128)}', space=vmem, size = 0x4000, scoped, tag = 'scratch operand']
  #allocation3 [shape = 'f32[4,8,1]{2,1,0:T(8,128)}', space=vmem, size = 0x4000, scoped, tag = 'scratch operand']
  #allocation4 [shape = 'f32[4,8,8]{2,1,0:T(8,128)}', space=vmem, size = 0x4000, scoped, tag = 'scratch operand']
  %s0 = inlined_call_operand.vmem [shape: bf16[2,8,32], index: 0, kind: input, shape index: {}]
  %s1 = inlined_call_operand.vmem [shape: bf16[2,8,32], index: 1, kind: input, shape index: {}]
  %s2 = inlined_call_operand.vmem [shape: bf16[2,8,32], index: 2, kind: input, shape index: {}]
  %s3 = inlined_call_operand.vmem [shape: bf16[2,8,32], index: 3, kind: output, shape index: {}]
  %s4 = sld [smem:[#allocation0]]
  $region57: #{transformer_decoder.18} parent=0
    _
  %s6 = ssub.s32 1, %s4
  %s7 = scalar_select 0, %s6, %s4
  loop: start=0, step=1, limit=4
  $region2: #{transformer_decoder.18} parent=0 // loop_pre_header
    _
  $region3: #{transformer_decoder.18} parent=0 // loop_header
    %s9 = sphi 0, %s13
    %p10 = scmp.ge.s32.totalorder %s9, 4
    %s16 = sphi 0, %s35
    %s17 = sphi 0, %s31
    %s18 = sphi 0, %s27
    %s19 = sphi 0, %s16
    %s20 = sphi 0, %s17
    %s21 = sphi 0, %s18
    %s22 = sphi 0, %s19
    %s23 = sphi 0, %s20
    %s24 = sphi 0, %s21
    %s40 = sphi 0, %s42
    %s43 = sphi 0, %s40
    %s44 = sphi 0, %s43
    %s60 = sphi 0, %s44
    %s68 = sphi 0, %s70
    %s71 = sphi 0, %s68
    %s72 = sphi 0, %s71
    %s88 = sphi 0, %s72
    %s96 = sphi 0, %s98
    %s99 = sphi 0, %s96
    %s100 = sphi 0, %s99
    %s116 = sphi 0, %s100
    %s124 = sphi 0, %s126
    %s127 = sphi 0, %s124
    %s128 = sphi 0, %s127
    %s144 = sphi 0, %s128
  $region4: #{transformer_decoder.18} parent=0 // loop_header_branch
    %12 = sbr.rel (%p10) target = $region8
  $region5: #{transformer_decoder.18} parent=0 // loop_body
    %s14 = ssub.s32 %s9, 1
    %s15 = ssub.s32 %s9, 2
    %s25 = sadd.s32 1, %s18
    %p26 = scmp.ge.s32.totalorder %s25, 1
    %s27 = scalar_select %p26, 0, %s25
    %s28 = sadd.s32 1, %s17
    %s29 = scalar_select %p26, %s28, %s17
    %p30 = scmp.ge.s32.totalorder %s29, 1
    %s31 = scalar_select %p30, 0, %s29
    %s32 = sadd.s32 1, %s16
    %s33 = scalar_select %p30, %s32, %s16
    %p34 = scmp.ge.s32.totalorder %s33, 2
    %s35 = scalar_select %p34, 0, %s33
    %s36 = ssub.s32 %s16, %s35
    %s37 = ssub.s32 %s17, %s31
    %s38 = sor.u32 %s36, %s37
    %p39 = scmp.eq.s32.totalorder %s38, 0
    %s41 = sadd.s32 %s40, 1
    %s42 = scalar_select %p39, %s40, %s41
    %p45 = pneg %p39
    %p46 = scmp.eq.s32.totalorder %s9, 1
    %p47 = por %p45, %p46
    %p48 = scmp.ne.s32.totalorder %s40, %s43
    %p49 = scmp.eq.s32.totalorder %s9, 0
    %p50 = por %p48, %p49
    %p51 = scmp.ne.s32.totalorder %s40, %s43
    %p52 = scmp.eq.s32.totalorder %s14, 1
    %p53 = por %p51, %p52
    %p54 = scmp.ne.s32.totalorder %s43, %s44
    %p55 = scmp.eq.s32.totalorder %s14, 0
    %p56 = por %p54, %p55
    %p57 = scmp.ne.s32.totalorder %s43, %s44
    %p58 = scmp.eq.s32.totalorder %s15, 1
    %p59 = por %p57, %p58
    %p61 = scmp.ne.s32.totalorder %s44, %s60
    %p62 = scmp.eq.s32.totalorder %s15, 0
    %p63 = por %p61, %p62
    %s64 = ssub.s32 %s16, %s35
    %s65 = ssub.s32 %s18, %s27
    %s66 = sor.u32 %s64, %s65
    %p67 = scmp.eq.s32.totalorder %s66, 0
    %s69 = sadd.s32 %s68, 1
    %s70 = scalar_select %p67, %s68, %s69
    %p73 = pneg %p67
    %p74 = scmp.eq.s32.totalorder %s9, 1
    %p75 = por %p73, %p74
    %p76 = scmp.ne.s32.totalorder %s68, %s71
    %p77 = scmp.eq.s32.totalorder %s9, 0
    %p78 = por %p76, %p77
    %p79 = scmp.ne.s32.totalorder %s68, %s71
    %p80 = scmp.eq.s32.totalorder %s14, 1
    %p81 = por %p79, %p80
    %p82 = scmp.ne.s32.totalorder %s71, %s72
    %p83 = scmp.eq.s32.totalorder %s14, 0
    %p84 = por %p82, %p83
    %p85 = scmp.ne.s32.totalorder %s71, %s72
    %p86 = scmp.eq.s32.totalorder %s15, 1
    %p87 = por %p85, %p86
    %p89 = scmp.ne.s32.totalorder %s72, %s88
    %p90 = scmp.eq.s32.totalorder %s15, 0
    %p91 = por %p89, %p90
    %s92 = ssub.s32 %s16, %s35
    %s93 = ssub.s32 %s18, %s27
    %s94 = sor.u32 %s92, %s93
    %p95 = scmp.eq.s32.totalorder %s94, 0
    %s97 = sadd.s32 %s96, 1
    %s98 = scalar_select %p95, %s96, %s97
    %p101 = pneg %p95
    %p102 = scmp.eq.s32.totalorder %s9, 1
    %p103 = por %p101, %p102
    %p104 = scmp.ne.s32.totalorder %s96, %s99
    %p105 = scmp.eq.s32.totalorder %s9, 0
    %p106 = por %p104, %p105
    %p107 = scmp.ne.s32.totalorder %s96, %s99
    %p108 = scmp.eq.s32.totalorder %s14, 1
    %p109 = por %p107, %p108
    %p110 = scmp.ne.s32.totalorder %s99, %s100
    %p111 = scmp.eq.s32.totalorder %s14, 0
    %p112 = por %p110, %p111
    %p113 = scmp.ne.s32.totalorder %s99, %s100
    %p114 = scmp.eq.s32.totalorder %s15, 1
    %p115 = por %p113, %p114
    %p117 = scmp.ne.s32.totalorder %s100, %s116
    %p118 = scmp.eq.s32.totalorder %s15, 0
    %p119 = por %p117, %p118
    %s120 = ssub.s32 %s16, %s35
    %s121 = ssub.s32 %s17, %s31
    %s122 = sor.u32 %s120, %s121
    %p123 = scmp.eq.s32.totalorder %s122, 0
    %s125 = sadd.s32 %s124, 1
    %s126 = scalar_select %p123, %s124, %s125
    %p129 = pneg %p123
    %p130 = scmp.eq.s32.totalorder %s9, 1
    %p131 = por %p129, %p130
    %p132 = scmp.ne.s32.totalorder %s124, %s127
    %p133 = scmp.eq.s32.totalorder %s9, 0
    %p134 = por %p132, %p133
    %p135 = scmp.ne.s32.totalorder %s124, %s127
    %p136 = scmp.eq.s32.totalorder %s14, 1
    %p137 = por %p135, %p136
    %p138 = scmp.ne.s32.totalorder %s127, %s128
    %p139 = scmp.eq.s32.totalorder %s14, 0
    %p140 = por %p138, %p139
    %p141 = scmp.ne.s32.totalorder %s127, %s128
    %p142 = scmp.eq.s32.totalorder %s15, 1
    %p143 = por %p141, %p142
    %p145 = scmp.ne.s32.totalorder %s128, %s144
    %p146 = scmp.eq.s32.totalorder %s15, 0
    %p147 = por %p145, %p146
    %p148 = scmp.le.s32.totalorder 1, %s9
    %p149 = scmp.lt.s32.totalorder %s9, 3
    %p150 = pnand %p148, %p149
    %p151 = pneg %p150
    // Predicated region
    $region9: #{transformer_decoder.18} parent=5 // pred_check
      _
    $region10: #{transformer_decoder.18} parent=5 // pred_check_branch
      %153 = sbr.rel (%p150) target = $region12
    $region11: #{transformer_decoder.18} parent=5 // pred_region
      %s154 = ssub.s32 %s9, 1
    $region12: #{transformer_decoder.18} parent=5 // pred_fallthru
      _
    %p155 = scmp.lt.s32.totalorder %s9, 2
    // Predicated region
    $region13: #{transformer_decoder.18} parent=5 // pred_check
      %p156 = pneg %p155
    $region14: #{transformer_decoder.18} parent=5 // pred_check_branch
      %158 = sbr.rel (%p156) target = $region16
    $region15: #{transformer_decoder.18} parent=5 // pred_region
      // Predicated region
      $region17: #{transformer_decoder.18} parent=15 // pred_check
        %p159 = pneg %p50
      $region18: #{transformer_decoder.18} parent=15 // pred_check_branch
        %161 = sbr.rel (%p159) target = $region20
      $region19: #{transformer_decoder.18} parent=15 // pred_region
        %p162 = scmp.lt.s32.totalorder %s16, 1
        %s163 = scalar_select %p162, %s16, 1
        %p164 = scmp.lt.s32.totalorder %s17, 0
        %s165 = scalar_select %p164, %s17, 0
        %s166 = sadd.s32 %s165, %s163
        %s167 = smul.addr %s166, 4
        %s168 = scalar_lea.vmem %s0, %s167
      $region20: #{transformer_decoder.18} parent=15 // pred_fallthru
        _
      // Predicated region
      $region21: #{transformer_decoder.18} parent=15 // pred_check
        %p169 = pneg %p78
      $region22: #{transformer_decoder.18} parent=15 // pred_check_branch
        %171 = sbr.rel (%p169) target = $region24
      $region23: #{transformer_decoder.18} parent=15 // pred_region
        %p172 = scmp.lt.s32.totalorder %s16, 1
        %s173 = scalar_select %p172, %s16, 1
        %p174 = scmp.lt.s32.totalorder %s18, 0
        %s175 = scalar_select %p174, %s18, 0
        %s176 = sadd.s32 %s175, %s173
        %s177 = smul.addr %s176, 4
        %s178 = scalar_lea.vmem %s1, %s177
      $region24: #{transformer_decoder.18} parent=15 // pred_fallthru
        _
      // Predicated region
      $region25: #{transformer_decoder.18} parent=15 // pred_check
        %p179 = pneg %p106
      $region26: #{transformer_decoder.18} parent=15 // pred_check_branch
        %181 = sbr.rel (%p179) target = $region28
      $region27: #{transformer_decoder.18} parent=15 // pred_region
        %p182 = scmp.lt.s32.totalorder %s16, 1
        %s183 = scalar_select %p182, %s16, 1
        %p184 = scmp.lt.s32.totalorder %s18, 0
        %s185 = scalar_select %p184, %s18, 0
        %s186 = sadd.s32 %s185, %s183
        %s187 = smul.addr %s186, 4
        %s188 = scalar_lea.vmem %s2, %s187
      $region28: #{transformer_decoder.18} parent=15 // pred_fallthru
        _
    $region16: #{transformer_decoder.18} parent=5 // pred_fallthru
      _
    %p189 = scmp.le.s32.totalorder 1, %s9
    %p190 = scmp.lt.s32.totalorder %s9, 3
    %p191 = pnand %p189, %p190
    %p192 = pneg %p191
    // Predicated region
    $region29: #{transformer_decoder.18} parent=5 // pred_check
      _
    $region30: #{transformer_decoder.18} parent=5 // pred_check_branch
      %194 = sbr.rel (%p191) target = $region32
    $region31: #{transformer_decoder.18} parent=5 // pred_region
      %s195 = ssub.s32 %s9, 1
      %p196 = scmp.lt.s32.totalorder %s19, 1
      %s197 = scalar_select %p196, %s19, 1
      %p198 = scmp.lt.s32.totalorder %s20, 0
      %s199 = scalar_select %p198, %s20, 0
      %s200 = sadd.s32 %s199, %s197
      %s201 = smul.addr %s200, 4
      %s202 = scalar_lea.vmem %s0, %s201
      %p203 = pneg %p56
      %p204 = pneg %p53
      %p205 = scmp.lt.s32.totalorder %s19, 1
      %s206 = scalar_select %p205, %s19, 1
      %p207 = scmp.lt.s32.totalorder %s21, 0
      %s208 = scalar_select %p207, %s21, 0
      %s209 = sadd.s32 %s208, %s206
      %s210 = smul.addr %s209, 4
      %s211 = scalar_lea.vmem %s1, %s210
      %p212 = pneg %p84
      %p213 = pneg %p81
      %p214 = scmp.lt.s32.totalorder %s19, 1
      %s215 = scalar_select %p214, %s19, 1
      %p216 = scmp.lt.s32.totalorder %s21, 0
      %s217 = scalar_select %p216, %s21, 0
      %s218 = sadd.s32 %s217, %s215
      %s219 = smul.addr %s218, 4
      %s220 = scalar_lea.vmem %s2, %s219
      %p221 = pneg %p112
      %p222 = pneg %p109
      %p223 = pneg %p140
      %p224 = pneg %p137
      %p225 = scmp.lt.s32.totalorder %s19, 1
      %s226 = scalar_select %p225, %s19, 1
      %p227 = scmp.lt.s32.totalorder %s20, 0
      %s228 = scalar_select %p227, %s20, 0
      %s229 = sadd.s32 %s228, %s226
      %s230 = smul.addr %s229, 4
      %s231 = scalar_lea.vmem %s3, %s230
      %p232 = scmp.lt.s32.totalorder %s19, 1
      %s233 = scalar_select %p232, %s19, 1
      %p234 = scmp.lt.s32.totalorder %s20, 0
      %s235 = scalar_select %p234, %s20, 0
      %s236 = sadd.s32 %s235, %s233
      %s237 = smul.addr %s236, 4
      %s238 = scalar_lea.vmem %s0, %s237
      %p239 = scmp.lt.s32.totalorder %s19, 1
      %s240 = scalar_select %p239, %s19, 1
      %p241 = scmp.lt.s32.totalorder %s21, 0
      %s242 = scalar_select %p241, %s21, 0
      %s243 = sadd.s32 %s242, %s240
      %s244 = smul.addr %s243, 4
      %s245 = scalar_lea.vmem %s1, %s244
      %p246 = scmp.lt.s32.totalorder %s19, 1
      %s247 = scalar_select %p246, %s19, 1
      %p248 = scmp.lt.s32.totalorder %s21, 0
      %s249 = scalar_select %p248, %s21, 0
      %s250 = sadd.s32 %s249, %s247
      %s251 = smul.addr %s250, 4
      %s252 = scalar_lea.vmem %s2, %s251
      %p253 = scmp.lt.s32.totalorder %s19, 1
      %s254 = scalar_select %p253, %s19, 1
      %p255 = scmp.lt.s32.totalorder %s20, 0
      %s256 = scalar_select %p255, %s20, 0
      %s257 = sadd.s32 %s256, %s254
      %s258 = smul.addr %s257, 4
      %s259 = scalar_lea.vmem %s3, %s258
      %p262 = scmp.eq.s32.totalorder %s21, 0
      // Predicated region
      $region33: #{transformer_decoder.18} parent=31 // pred_check
        %p263 = pneg %p262
      $region34: #{transformer_decoder.18} parent=31 // pred_check_branch
        %265 = sbr.rel (%p263) target = $region36
      $region35: #{transformer_decoder.18} parent=31 // pred_region
        %vm266 = vcmask 7168
        %267 = vst.msk [vmem:[#allocation2] sm:$0xff] %vm266, -1e+30
        %268 = vst.msk [vmem:[#allocation2 + $0x8] sm:$0xff] %vm266, -1e+30
        %269 = vst.msk [vmem:[#allocation2 + $0x10] sm:$0xff] %vm266, -1e+30
        %270 = vst.msk [vmem:[#allocation2 + $0x18] sm:$0xff] %vm266, -1e+30
        %271 = vst.msk [vmem:[#allocation3] sm:$0xff] %vm266, 0.0
        %272 = vst.msk [vmem:[#allocation3 + $0x8] sm:$0xff] %vm266, 0.0
        %273 = vst.msk [vmem:[#allocation3 + $0x10] sm:$0xff] %vm266, 0.0
        %274 = vst.msk [vmem:[#allocation3 + $0x18] sm:$0xff] %vm266, 0.0
        %vm275 = vcmask 64512
        %276 = vst.msk [vmem:[#allocation4] sm:$0xff] %vm275, 0.0
        %277 = vst.msk [vmem:[#allocation4 + $0x8] sm:$0xff] %vm275, 0.0
        %278 = vst.msk [vmem:[#allocation4 + $0x10] sm:$0xff] %vm275, 0.0
        %279 = vst.msk [vmem:[#allocation4 + $0x18] sm:$0xff] %vm275, 0.0
      $region36: #{transformer_decoder.18} parent=31 // pred_fallthru
        _
      %s280 = smul.u32 %s21, 8
      %s281 = smul.u32 %s20, 8
      %s282 = sadd.s32 %s281, 7
      %p283 = scmp.le.s32.totalorder %s280, %s282
      // Predicated region
      $region37: #{transformer_decoder.18} parent=31 // pred_check
        %p284 = pneg %p283
      $region38: #{transformer_decoder.18} parent=31 // pred_check_branch
        %286 = sbr.rel (%p284) target = $region40
      $region39: #{transformer_decoder.18} parent=31 // pred_region
        %v287 = vld [vmem:[%s238] sm:$0xf]
        %v288 = vmul.bf16 %v287, 1052065461
        %290 = vrot.lane.b32.xlu0 %v288, 120
        %v291 = vpop.permute.xlu0 %290
        %292 = vrot.lane.b32.xlu0 %v288, 112
        %v293 = vpop.permute.xlu0 %292
        %294 = vrot.lane.b32.xlu0 %v288, 104
        %v295 = vpop.permute.xlu0 %294
        %v298 = vpack.i.b16 %v291, %v288
        %v299 = vshrl.u32 %v288, 16
        %v300 = vshrl.u32 %v291, 16
        %v301 = vpack.i.b16 %v300, %v299
        %v304 = vpack.i.b16 %v295, %v293
        %v305 = vshrl.u32 %v293, 16
        %v306 = vshrl.u32 %v295, 16
        %v307 = vpack.i.b16 %v306, %v305
        %v310 = vunpack.c.l.s4 1983009808
        %v311 = vunpack.c.0.s8 %v310
        %v312 = vlaneseq
        %v313 = vshrl.u32 %v312, 7
        %v314 = vsub.s32 %v311, %v313
        %v315 = vrot.slane %v298, %v314
        %v318 = vunpack.c.l.s4 1983009808
        %v319 = vunpack.c.0.s8 %v318
        %v320 = vlaneseq
        %v321 = vshrl.u32 %v320, 7
        %v322 = vsub.s32 %v319, %v321
        %v323 = vrot.slane %v304, %v322
        %v324 = vcombine.low %v315, %v323
        %v325 = vcombine.high %v315, %v323
        %v327 = vunpack.c.l.s4 1934713408
        %v328 = vunpack.c.0.s8 %v327
        %v329 = vlaneseq
        %v330 = vshrl.u32 %v329, 7
        %v331 = vsub.s32 %v328, %v330
        %v332 = vrot.slane %v324, %v331
        %v334 = vunpack.c.l.s4 1934713408
        %v335 = vunpack.c.0.s8 %v334
        %v336 = vlaneseq
        %v337 = vshrl.u32 %v336, 7
        %v338 = vsub.s32 %v335, %v337
        %v339 = vrot.slane %v325, %v338
        %v340 = vcombine.high %v332, 0
        %v341 = vcombine.high %v339, 0
        %v344 = vunpack.c.l.s4 1983009808
        %v345 = vunpack.c.0.s8 %v344
        %v346 = vlaneseq
        %v347 = vshrl.u32 %v346, 7
        %v348 = vsub.s32 %v345, %v347
        %v349 = vrot.slane %v301, %v348
        %v352 = vunpack.c.l.s4 1983009808
        %v353 = vunpack.c.0.s8 %v352
        %v354 = vlaneseq
        %v355 = vshrl.u32 %v354, 7
        %v356 = vsub.s32 %v353, %v355
        %v357 = vrot.slane %v307, %v356
        %v358 = vcombine.low %v349, %v357
        %v359 = vcombine.high %v349, %v357
        %v361 = vunpack.c.l.s4 1934713408
        %v362 = vunpack.c.0.s8 %v361
        %v363 = vlaneseq
        %v364 = vshrl.u32 %v363, 7
        %v365 = vsub.s32 %v362, %v364
        %v366 = vrot.slane %v358, %v365
        %v368 = vunpack.c.l.s4 1934713408
        %v369 = vunpack.c.0.s8 %v368
        %v370 = vlaneseq
        %v371 = vshrl.u32 %v370, 7
        %v372 = vsub.s32 %v369, %v371
        %v373 = vrot.slane %v359, %v372
        %v374 = vcombine.high %v366, 0
        %v375 = vcombine.high %v373, 0
        %v376 = vcombine.low %v332, %v339
        %v378 = vunpack.c.l.s4 1983009808
        %v379 = vunpack.c.0.s8 %v378
        %v380 = vlaneseq
        %v381 = vshrl.u32 %v380, 7
        %v382 = vsub.s32 %v379, %v381
        %v383 = vrot.slane %v376, %v382
        %v384 = vcombine.low %v340, %v341
        %v386 = vunpack.c.l.s4 1983009808
        %v387 = vunpack.c.0.s8 %v386
        %v388 = vlaneseq
        %v389 = vshrl.u32 %v388, 7
        %v390 = vsub.s32 %v387, %v389
        %v391 = vrot.slane %v384, %v390
        %v392 = vcombine.low %v383, %v391
        %v394 = vunpack.c.l.s4 1934713408
        %v395 = vunpack.c.0.s8 %v394
        %v396 = vlaneseq
        %v397 = vshrl.u32 %v396, 7
        %v398 = vsub.s32 %v395, %v397
        %v399 = vrot.slane %v392, %v398
        %v400 = vcombine.high %v399, 0
        %v401 = vcombine.low %v366, %v373
        %v403 = vunpack.c.l.s4 1983009808
        %v404 = vunpack.c.0.s8 %v403
        %v405 = vlaneseq
        %v406 = vshrl.u32 %v405, 7
        %v407 = vsub.s32 %v404, %v406
        %v408 = vrot.slane %v401, %v407
        %v409 = vcombine.low %v374, %v375
        %v411 = vunpack.c.l.s4 1983009808
        %v412 = vunpack.c.0.s8 %v411
        %v413 = vlaneseq
        %v414 = vshrl.u32 %v413, 7
        %v415 = vsub.s32 %v412, %v414
        %v416 = vrot.slane %v409, %v415
        %v417 = vcombine.low %v408, %v416
        %v419 = vunpack.c.l.s4 1934713408
        %v420 = vunpack.c.0.s8 %v419
        %v421 = vlaneseq
        %v422 = vshrl.u32 %v421, 7
        %v423 = vsub.s32 %v420, %v422
        %v424 = vrot.slane %v417, %v423
        %v425 = vcombine.high %v424, 0
        %v428 = vpack.i.b16 %v424, %v399
        %v429 = vshrl.u32 %v399, 16
        %v430 = vshrl.u32 %v424, 16
        %v431 = vpack.i.b16 %v430, %v429
        %v434 = vpack.i.b16 %v425, %v400
        %v435 = vshrl.u32 %v400, 16
        %v436 = vshrl.u32 %v425, 16
        %v437 = vpack.i.b16 %v436, %v435
        %v438 = vld [vmem:[%s245] sm:$0xf]
        %440 = vrot.lane.b32.xlu0 %v438, 120
        %v441 = vpop.permute.xlu0 %440
        %442 = vrot.lane.b32.xlu0 %v438, 112
        %v443 = vpop.permute.xlu0 %442
        %444 = vrot.lane.b32.xlu0 %v438, 104
        %v445 = vpop.permute.xlu0 %444
        %v448 = vpack.i.b16 %v441, %v438
        %v449 = vshrl.u32 %v438, 16
        %v450 = vshrl.u32 %v441, 16
        %v451 = vpack.i.b16 %v450, %v449
        %v454 = vpack.i.b16 %v445, %v443
        %v455 = vshrl.u32 %v443, 16
        %v456 = vshrl.u32 %v445, 16
        %v457 = vpack.i.b16 %v456, %v455
        %v460 = vunpack.c.l.s4 1983009808
        %v461 = vunpack.c.0.s8 %v460
        %v462 = vlaneseq
        %v463 = vshrl.u32 %v462, 7
        %v464 = vsub.s32 %v461, %v463
        %v465 = vrot.slane %v448, %v464
        %v468 = vunpack.c.l.s4 1983009808
        %v469 = vunpack.c.0.s8 %v468
        %v470 = vlaneseq
        %v471 = vshrl.u32 %v470, 7
        %v472 = vsub.s32 %v469, %v471
        %v473 = vrot.slane %v454, %v472
        %v474 = vcombine.low %v465, %v473
        %v475 = vcombine.high %v465, %v473
        %v477 = vunpack.c.l.s4 1934713408
        %v478 = vunpack.c.0.s8 %v477
        %v479 = vlaneseq
        %v480 = vshrl.u32 %v479, 7
        %v481 = vsub.s32 %v478, %v480
        %v482 = vrot.slane %v474, %v481
        %v484 = vunpack.c.l.s4 1934713408
        %v485 = vunpack.c.0.s8 %v484
        %v486 = vlaneseq
        %v487 = vshrl.u32 %v486, 7
        %v488 = vsub.s32 %v485, %v487
        %v489 = vrot.slane %v475, %v488
        %v490 = vcombine.high %v482, 0
        %v491 = vcombine.high %v489, 0
        %v494 = vunpack.c.l.s4 1983009808
        %v495 = vunpack.c.0.s8 %v494
        %v496 = vlaneseq
        %v497 = vshrl.u32 %v496, 7
        %v498 = vsub.s32 %v495, %v497
        %v499 = vrot.slane %v451, %v498
        %v502 = vunpack.c.l.s4 1983009808
        %v503 = vunpack.c.0.s8 %v502
        %v504 = vlaneseq
        %v505 = vshrl.u32 %v504, 7
        %v506 = vsub.s32 %v503, %v505
        %v507 = vrot.slane %v457, %v506
        %v508 = vcombine.low %v499, %v507
        %v509 = vcombine.high %v499, %v507
        %v511 = vunpack.c.l.s4 1934713408
        %v512 = vunpack.c.0.s8 %v511
        %v513 = vlaneseq
        %v514 = vshrl.u32 %v513, 7
        %v515 = vsub.s32 %v512, %v514
        %v516 = vrot.slane %v508, %v515
        %v518 = vunpack.c.l.s4 1934713408
        %v519 = vunpack.c.0.s8 %v518
        %v520 = vlaneseq
        %v521 = vshrl.u32 %v520, 7
        %v522 = vsub.s32 %v519, %v521
        %v523 = vrot.slane %v509, %v522
        %v524 = vcombine.high %v516, 0
        %v525 = vcombine.high %v523, 0
        %v526 = vcombine.low %v482, %v489
        %v528 = vunpack.c.l.s4 1983009808
        %v529 = vunpack.c.0.s8 %v528
        %v530 = vlaneseq
        %v531 = vshrl.u32 %v530, 7
        %v532 = vsub.s32 %v529, %v531
        %v533 = vrot.slane %v526, %v532
        %v534 = vcombine.low %v490, %v491
        %v536 = vunpack.c.l.s4 1983009808
        %v537 = vunpack.c.0.s8 %v536
        %v538 = vlaneseq
        %v539 = vshrl.u32 %v538, 7
        %v540 = vsub.s32 %v537, %v539
        %v541 = vrot.slane %v534, %v540
        %v542 = vcombine.low %v533, %v541
        %v544 = vunpack.c.l.s4 1934713408
        %v545 = vunpack.c.0.s8 %v544
        %v546 = vlaneseq
        %v547 = vshrl.u32 %v546, 7
        %v548 = vsub.s32 %v545, %v547
        %v549 = vrot.slane %v542, %v548
        %v550 = vcombine.high %v549, 0
        %v551 = vcombine.low %v516, %v523
        %v553 = vunpack.c.l.s4 1983009808
        %v554 = vunpack.c.0.s8 %v553
        %v555 = vlaneseq
        %v556 = vshrl.u32 %v555, 7
        %v557 = vsub.s32 %v554, %v556
        %v558 = vrot.slane %v551, %v557
        %v559 = vcombine.low %v524, %v525
        %v561 = vunpack.c.l.s4 1983009808
        %v562 = vunpack.c.0.s8 %v561
        %v563 = vlaneseq
        %v564 = vshrl.u32 %v563, 7
        %v565 = vsub.s32 %v562, %v564
        %v566 = vrot.slane %v559, %v565
        %v567 = vcombine.low %v558, %v566
        %v569 = vunpack.c.l.s4 1934713408
        %v570 = vunpack.c.0.s8 %v569
        %v571 = vlaneseq
        %v572 = vshrl.u32 %v571, 7
        %v573 = vsub.s32 %v570, %v572
        %v574 = vrot.slane %v567, %v573
        %v575 = vcombine.high %v574, 0
        %v578 = vpack.i.b16 %v574, %v549
        %v579 = vshrl.u32 %v549, 16
        %v580 = vshrl.u32 %v574, 16
        %v581 = vpack.i.b16 %v580, %v579
        %v584 = vpack.i.b16 %v575, %v550
        %v585 = vshrl.u32 %v550, 16
        %v586 = vshrl.u32 %v575, 16
        %v587 = vpack.i.b16 %v586, %v585
        %v588 = vld [vmem:[%s252] sm:$0xf]
        %590 = vrot.lane.b32.xlu0 %v588, 120
        %v591 = vpop.permute.xlu0 %590
        %592 = vrot.lane.b32.xlu0 %v588, 112
        %v593 = vpop.permute.xlu0 %592
        %594 = vrot.lane.b32.xlu0 %v588, 104
        %v595 = vpop.permute.xlu0 %594
        %v598 = vpack.i.b16 %v591, %v588
        %v599 = vshrl.u32 %v588, 16
        %v600 = vshrl.u32 %v591, 16
        %v601 = vpack.i.b16 %v600, %v599
        %v604 = vpack.i.b16 %v595, %v593
        %v605 = vshrl.u32 %v593, 16
        %v606 = vshrl.u32 %v595, 16
        %v607 = vpack.i.b16 %v606, %v605
        %v610 = vunpack.c.l.s4 1983009808
        %v611 = vunpack.c.0.s8 %v610
        %v612 = vlaneseq
        %v613 = vshrl.u32 %v612, 7
        %v614 = vsub.s32 %v611, %v613
        %v615 = vrot.slane %v598, %v614
        %v618 = vunpack.c.l.s4 1983009808
        %v619 = vunpack.c.0.s8 %v618
        %v620 = vlaneseq
        %v621 = vshrl.u32 %v620, 7
        %v622 = vsub.s32 %v619, %v621
        %v623 = vrot.slane %v604, %v622
        %v624 = vcombine.low %v615, %v623
        %v625 = vcombine.high %v615, %v623
        %v627 = vunpack.c.l.s4 1934713408
        %v628 = vunpack.c.0.s8 %v627
        %v629 = vlaneseq
        %v630 = vshrl.u32 %v629, 7
        %v631 = vsub.s32 %v628, %v630
        %v632 = vrot.slane %v624, %v631
        %v634 = vunpack.c.l.s4 1934713408
        %v635 = vunpack.c.0.s8 %v634
        %v636 = vlaneseq
        %v637 = vshrl.u32 %v636, 7
        %v638 = vsub.s32 %v635, %v637
        %v639 = vrot.slane %v625, %v638
        %v640 = vcombine.high %v632, 0
        %v641 = vcombine.high %v639, 0
        %v644 = vunpack.c.l.s4 1983009808
        %v645 = vunpack.c.0.s8 %v644
        %v646 = vlaneseq
        %v647 = vshrl.u32 %v646, 7
        %v648 = vsub.s32 %v645, %v647
        %v649 = vrot.slane %v601, %v648
        %v652 = vunpack.c.l.s4 1983009808
        %v653 = vunpack.c.0.s8 %v652
        %v654 = vlaneseq
        %v655 = vshrl.u32 %v654, 7
        %v656 = vsub.s32 %v653, %v655
        %v657 = vrot.slane %v607, %v656
        %v658 = vcombine.low %v649, %v657
        %v659 = vcombine.high %v649, %v657
        %v661 = vunpack.c.l.s4 1934713408
        %v662 = vunpack.c.0.s8 %v661
        %v663 = vlaneseq
        %v664 = vshrl.u32 %v663, 7
        %v665 = vsub.s32 %v662, %v664
        %v666 = vrot.slane %v658, %v665
        %v668 = vunpack.c.l.s4 1934713408
        %v669 = vunpack.c.0.s8 %v668
        %v670 = vlaneseq
        %v671 = vshrl.u32 %v670, 7
        %v672 = vsub.s32 %v669, %v671
        %v673 = vrot.slane %v659, %v672
        %v674 = vcombine.high %v666, 0
        %v675 = vcombine.high %v673, 0
        %v676 = vcombine.low %v632, %v639
        %v678 = vunpack.c.l.s4 1983009808
        %v679 = vunpack.c.0.s8 %v678
        %v680 = vlaneseq
        %v681 = vshrl.u32 %v680, 7
        %v682 = vsub.s32 %v679, %v681
        %v683 = vrot.slane %v676, %v682
        %v684 = vcombine.low %v640, %v641
        %v686 = vunpack.c.l.s4 1983009808
        %v687 = vunpack.c.0.s8 %v686
        %v688 = vlaneseq
        %v689 = vshrl.u32 %v688, 7
        %v690 = vsub.s32 %v687, %v689
        %v691 = vrot.slane %v684, %v690
        %v692 = vcombine.low %v683, %v691
        %v694 = vunpack.c.l.s4 1934713408
        %v695 = vunpack.c.0.s8 %v694
        %v696 = vlaneseq
        %v697 = vshrl.u32 %v696, 7
        %v698 = vsub.s32 %v695, %v697
        %v699 = vrot.slane %v692, %v698
        %v700 = vcombine.high %v699, 0
        %v701 = vcombine.low %v666, %v673
        %v703 = vunpack.c.l.s4 1983009808
        %v704 = vunpack.c.0.s8 %v703
        %v705 = vlaneseq
        %v706 = vshrl.u32 %v705, 7
        %v707 = vsub.s32 %v704, %v706
        %v708 = vrot.slane %v701, %v707
        %v709 = vcombine.low %v674, %v675
        %v711 = vunpack.c.l.s4 1983009808
        %v712 = vunpack.c.0.s8 %v711
        %v713 = vlaneseq
        %v714 = vshrl.u32 %v713, 7
        %v715 = vsub.s32 %v712, %v714
        %v716 = vrot.slane %v709, %v715
        %v717 = vcombine.low %v708, %v716
        %v719 = vunpack.c.l.s4 1934713408
        %v720 = vunpack.c.0.s8 %v719
        %v721 = vlaneseq
        %v722 = vshrl.u32 %v721, 7
        %v723 = vsub.s32 %v720, %v722
        %v724 = vrot.slane %v717, %v723
        %v725 = vcombine.high %v724, 0
        %v728 = vpack.i.b16 %v724, %v699
        %v729 = vshrl.u32 %v699, 16
        %v730 = vshrl.u32 %v724, 16
        %v731 = vpack.i.b16 %v730, %v729
        %v734 = vpack.i.b16 %v725, %v700
        %v735 = vshrl.u32 %v700, 16
        %v736 = vshrl.u32 %v725, 16
        %v737 = vpack.i.b16 %v736, %v735
        %vm738 = vcmask 64512
        %v740 = vsel %vm738, %v428, 0
        %v743 = vsel %vm738, %v578, 0
        %745 = vmatprep.subr.bf16.mxu0 0
        %746 = vmatpush1.bf16.xpose.msra.mxu0 %v743
        %747 = vmatprep.subr.bf16.mxu0 0
        %748 = vmatpush1.bf16.xpose.msra.mxu0 0
        %749 = vmatprep.subr.bf16.mxu0 0
        %750 = vmatpush1.bf16.xpose.msra.mxu0 0
        %751 = vmatprep.subr.bf16.mxu0 0
        %752 = vmatpush1.bf16.xpose.msra.mxu0 0
        %753 = vmatprep.subr.bf16.mxu0 0
        %754 = vmatpush1.bf16.xpose.msra.mxu0 0
        %755 = vmatprep.subr.bf16.mxu0 0
        %756 = vmatpush1.bf16.xpose.msra.mxu0 0
        %757 = vmatprep.subr.bf16.mxu0 0
        %758 = vmatpush1.bf16.xpose.msra.mxu0 0
        %759 = vmatprep.subr.bf16.mxu0 0
        %760 = vmatpush1.bf16.xpose.msra.mxu0 0
        %761 = vmatprep.subr.bf16.mxu0 0
        %762 = vmatpush1.bf16.xpose.msra.mxu0 0
        %763 = vmatprep.subr.bf16.mxu0 0
        %764 = vmatpush1.bf16.xpose.msra.mxu0 0
        %765 = vmatprep.subr.bf16.mxu0 0
        %766 = vmatpush1.bf16.xpose.msra.mxu0 0
        %767 = vmatprep.subr.bf16.mxu0 0
        %768 = vmatpush1.bf16.xpose.msra.mxu0 0
        %769 = vmatprep.subr.bf16.mxu0 0
        %770 = vmatpush1.bf16.xpose.msra.mxu0 0
        %771 = vmatprep.subr.bf16.mxu0 0
        %772 = vmatpush1.bf16.xpose.msra.mxu0 0
        %773 = vmatprep.subr.bf16.mxu0 0
        %774 = vmatpush1.bf16.xpose.msra.mxu0 0
        %775 = vmatprep.subr.bf16.mxu0 0
        %776 = vmatpush1.bf16.xpose.msra.mxu0 0
        %777 = vmatprep.mubr.bf16.mxu0 0
        %778 = vmatmul.mubr.bf16.gmra.mrb[0].mxu0 %v740
        %v779 = vpop.f32.mrb[0].mxu0
        %v780 = vadd.f32 0.0, %v779
        %v781 = vpop.f32.mrb[0].mxu0
        %v782 = vpop.f32.mrb[0].mxu0
        %v783 = vpop.f32.mrb[0].mxu0
        %784 = vdwg.mxu0
        %v786 = vsel %vm738, %v431, 0
        %v789 = vsel %vm738, %v581, 0
        %791 = vmatprep.subr.bf16.mxu0 0
        %792 = vmatpush1.bf16.xpose.msra.mxu0 %v789
        %793 = vmatprep.subr.bf16.mxu0 0
        %794 = vmatpush1.bf16.xpose.msra.mxu0 0
        %795 = vmatprep.subr.bf16.mxu0 0
        %796 = vmatpush1.bf16.xpose.msra.mxu0 0
        %797 = vmatprep.subr.bf16.mxu0 0
        %798 = vmatpush1.bf16.xpose.msra.mxu0 0
        %799 = vmatprep.subr.bf16.mxu0 0
        %800 = vmatpush1.bf16.xpose.msra.mxu0 0
        %801 = vmatprep.subr.bf16.mxu0 0
        %802 = vmatpush1.bf16.xpose.msra.mxu0 0
        %803 = vmatprep.subr.bf16.mxu0 0
        %804 = vmatpush1.bf16.xpose.msra.mxu0 0
        %805 = vmatprep.subr.bf16.mxu0 0
        %806 = vmatpush1.bf16.xpose.msra.mxu0 0
        %807 = vmatprep.subr.bf16.mxu0 0
        %808 = vmatpush1.bf16.xpose.msra.mxu0 0
        %809 = vmatprep.subr.bf16.mxu0 0
        %810 = vmatpush1.bf16.xpose.msra.mxu0 0
        %811 = vmatprep.subr.bf16.mxu0 0
        %812 = vmatpush1.bf16.xpose.msra.mxu0 0
        %813 = vmatprep.subr.bf16.mxu0 0
        %814 = vmatpush1.bf16.xpose.msra.mxu0 0
        %815 = vmatprep.subr.bf16.mxu0 0
        %816 = vmatpush1.bf16.xpose.msra.mxu0 0
        %817 = vmatprep.subr.bf16.mxu0 0
        %818 = vmatpush1.bf16.xpose.msra.mxu0 0
        %819 = vmatprep.subr.bf16.mxu0 0
        %820 = vmatpush1.bf16.xpose.msra.mxu0 0
        %821 = vmatprep.subr.bf16.mxu0 0
        %822 = vmatpush1.bf16.xpose.msra.mxu0 0
        %823 = vmatprep.mubr.bf16.mxu0 0
        %824 = vmatmul.mubr.bf16.gmra.mrb[0].mxu0 %v786
        %v825 = vpop.f32.mrb[0].mxu0
        %v826 = vadd.f32 0.0, %v825
        %v827 = vpop.f32.mrb[0].mxu0
        %v828 = vpop.f32.mrb[0].mxu0
        %v829 = vpop.f32.mrb[0].mxu0
        %830 = vdwg.mxu0
        %v832 = vsel %vm738, %v434, 0
        %v835 = vsel %vm738, %v584, 0
        %837 = vmatprep.subr.bf16.mxu0 0
        %838 = vmatpush1.bf16.xpose.msra.mxu0 %v835
        %839 = vmatprep.subr.bf16.mxu0 0
        %840 = vmatpush1.bf16.xpose.msra.mxu0 0
        %841 = vmatprep.subr.bf16.mxu0 0
        %842 = vmatpush1.bf16.xpose.msra.mxu0 0
        %843 = vmatprep.subr.bf16.mxu0 0
        %844 = vmatpush1.bf16.xpose.msra.mxu0 0
        %845 = vmatprep.subr.bf16.mxu0 0
        %846 = vmatpush1.bf16.xpose.msra.mxu0 0
        %847 = vmatprep.subr.bf16.mxu0 0
        %848 = vmatpush1.bf16.xpose.msra.mxu0 0
        %849 = vmatprep.subr.bf16.mxu0 0
        %850 = vmatpush1.bf16.xpose.msra.mxu0 0
        %851 = vmatprep.subr.bf16.mxu0 0
        %852 = vmatpush1.bf16.xpose.msra.mxu0 0
        %853 = vmatprep.subr.bf16.mxu0 0
        %854 = vmatpush1.bf16.xpose.msra.mxu0 0
        %855 = vmatprep.subr.bf16.mxu0 0
        %856 = vmatpush1.bf16.xpose.msra.mxu0 0
        %857 = vmatprep.subr.bf16.mxu0 0
        %858 = vmatpush1.bf16.xpose.msra.mxu0 0
        %859 = vmatprep.subr.bf16.mxu0 0
        %860 = vmatpush1.bf16.xpose.msra.mxu0 0
        %861 = vmatprep.subr.bf16.mxu0 0
        %862 = vmatpush1.bf16.xpose.msra.mxu0 0
        %863 = vmatprep.subr.bf16.mxu0 0
        %864 = vmatpush1.bf16.xpose.msra.mxu0 0
        %865 = vmatprep.subr.bf16.mxu0 0
        %866 = vmatpush1.bf16.xpose.msra.mxu0 0
        %867 = vmatprep.subr.bf16.mxu0 0
        %868 = vmatpush1.bf16.xpose.msra.mxu0 0
        %869 = vmatprep.mubr.bf16.mxu0 0
        %870 = vmatmul.mubr.bf16.gmra.mrb[0].mxu0 %v832
        %v871 = vpop.f32.mrb[0].mxu0
        %v872 = vadd.f32 0.0, %v871
        %v873 = vpop.f32.mrb[0].mxu0
        %v874 = vpop.f32.mrb[0].mxu0
        %v875 = vpop.f32.mrb[0].mxu0
        %876 = vdwg.mxu0
        %v878 = vsel %vm738, %v437, 0
        %v881 = vsel %vm738, %v587, 0
        %883 = vmatprep.subr.bf16.mxu0 0
        %884 = vmatpush1.bf16.xpose.msra.mxu0 %v881
        %885 = vmatprep.subr.bf16.mxu0 0
        %886 = vmatpush1.bf16.xpose.msra.mxu0 0
        %887 = vmatprep.subr.bf16.mxu0 0
        %888 = vmatpush1.bf16.xpose.msra.mxu0 0
        %889 = vmatprep.subr.bf16.mxu0 0
        %890 = vmatpush1.bf16.xpose.msra.mxu0 0
        %891 = vmatprep.subr.bf16.mxu0 0
        %892 = vmatpush1.bf16.xpose.msra.mxu0 0
        %893 = vmatprep.subr.bf16.mxu0 0
        %894 = vmatpush1.bf16.xpose.msra.mxu0 0
        %895 = vmatprep.subr.bf16.mxu0 0
        %896 = vmatpush1.bf16.xpose.msra.mxu0 0
        %897 = vmatprep.subr.bf16.mxu0 0
        %898 = vmatpush1.bf16.xpose.msra.mxu0 0
        %899 = vmatprep.subr.bf16.mxu0 0
        %900 = vmatpush1.bf16.xpose.msra.mxu0 0
        %901 = vmatprep.subr.bf16.mxu0 0
        %902 = vmatpush1.bf16.xpose.msra.mxu0 0
        %903 = vmatprep.subr.bf16.mxu0 0
        %904 = vmatpush1.bf16.xpose.msra.mxu0 0
        %905 = vmatprep.subr.bf16.mxu0 0
        %906 = vmatpush1.bf16.xpose.msra.mxu0 0
        %907 = vmatprep.subr.bf16.mxu0 0
        %908 = vmatpush1.bf16.xpose.msra.mxu0 0
        %909 = vmatprep.subr.bf16.mxu0 0
        %910 = vmatpush1.bf16.xpose.msra.mxu0 0
        %911 = vmatprep.subr.bf16.mxu0 0
        %912 = vmatpush1.bf16.xpose.msra.mxu0 0
        %913 = vmatprep.subr.bf16.mxu0 0
        %914 = vmatpush1.bf16.xpose.msra.mxu0 0
        %915 = vmatprep.mubr.bf16.mxu0 0
        %916 = vmatmul.mubr.bf16.gmra.mrb[0].mxu0 %v878
        %v917 = vpop.f32.mrb[0].mxu0
        %v918 = vadd.f32 0.0, %v917
        %v919 = vpop.f32.mrb[0].mxu0
        %v920 = vpop.f32.mrb[0].mxu0
        %v921 = vpop.f32.mrb[0].mxu0
        %922 = vdwg.mxu0
        %v923 = vlaneseq
        %v924 = vshrl.u32 %v923, 7
        %v925 = vstv %s281
        %v926 = vadd.s32 %v924, %v925
        %v927 = vlaneseq
        %v928 = vand.u32 %v927, 127
        %v929 = vstv %s280
        %v930 = vadd.s32 %v928, %v929
        %vm931 = vcmp.le.s32.totalorder %v930, %v926
        %v932 = vsel %vm931, 1, 0
        %vm933 = vcmp.eq.s32.totalorder %v932, 1
        %v934 = vsel %vm933, %v780, -1e+30
        %v935 = vsel %vm933, %v826, -1e+30
        %v936 = vsel %vm933, %v872, -1e+30
        %v937 = vsel %vm933, %v918, -1e+30
        %v938 = vld [vmem:[#allocation2] sm:$0xff]
        %v939 = vld [vmem:[#allocation2 + $0x8] sm:$0xff]
        %v940 = vld [vmem:[#allocation2 + $0x10] sm:$0xff]
        %v941 = vld [vmem:[#allocation2 + $0x18] sm:$0xff]
        %v942 = vsel %vm738, %v934, -inf
        %943 = vmax.xlane.f32.xlu0 %v942
        %v944 = vpop.xlane.xlu0 %943
        %v945 = vsel %vm738, %v935, -inf
        %946 = vmax.xlane.f32.xlu0 %v945
        %v947 = vpop.xlane.xlu0 %946
        %v948 = vsel %vm738, %v936, -inf
        %949 = vmax.xlane.f32.xlu0 %v948
        %v950 = vpop.xlane.xlu0 %949
        %v951 = vsel %vm738, %v937, -inf
        %952 = vmax.xlane.f32.xlu0 %v951
        %v953 = vpop.xlane.xlu0 %952
        %v954 = vmax.f32 %v938, %v944
        %v955 = vmax.f32 %v939, %v947
        %v956 = vmax.f32 %v940, %v950
        %v957 = vmax.f32 %v941, %v953
        %v958 = vsub.f32 %v938, %v954
        %v959 = vsub.f32 %v939, %v955
        %v960 = vsub.f32 %v940, %v956
        %v961 = vsub.f32 %v941, %v957
        %v962 = vmul.f32 %v958, 1.442695
        %v963 = vpow.pop %v962
        %v964 = vmul.f32 %v959, 1.442695
        %v965 = vpow.pop %v964
        %v966 = vmul.f32 %v960, 1.442695
        %v967 = vpow.pop %v966
        %v968 = vmul.f32 %v961, 1.442695
        %v969 = vpow.pop %v968
        %971 = vset.pattern.permute.xlu0 0
        %972 = vperm.xlu0 %971, %v954
        %v973 = vpop.permute.xlu0 %972
        %976 = vset.pattern.permute.xlu0 0
        %977 = vperm.xlu0 %976, %v955
        %v978 = vpop.permute.xlu0 %977
        %981 = vset.pattern.permute.xlu0 0
        %982 = vperm.xlu0 %981, %v956
        %v983 = vpop.permute.xlu0 %982
        %986 = vset.pattern.permute.xlu0 0
        %987 = vperm.xlu0 %986, %v957
        %v988 = vpop.permute.xlu0 %987
        %v990 = vsub.f32 %v934, %v973
        %v991 = vsub.f32 %v935, %v978
        %v992 = vsub.f32 %v936, %v983
        %v993 = vsub.f32 %v937, %v988
        %v994 = vmul.f32 %v990, 1.442695
        %v995 = vpow.pop %v994
        %v996 = vmul.f32 %v991, 1.442695
        %v997 = vpow.pop %v996
        %v998 = vmul.f32 %v992, 1.442695
        %v999 = vpow.pop %v998
        %v1000 = vmul.f32 %v993, 1.442695
        %v1001 = vpow.pop %v1000
        %v1002 = vld [vmem:[#allocation3] sm:$0xff]
        %v1003 = vld [vmem:[#allocation3 + $0x8] sm:$0xff]
        %v1004 = vld [vmem:[#allocation3 + $0x10] sm:$0xff]
        %v1005 = vld [vmem:[#allocation3 + $0x18] sm:$0xff]
        %v1006 = vmul.f32 %v963, %v1002
        %v1007 = vmul.f32 %v965, %v1003
        %v1008 = vmul.f32 %v967, %v1004
        %v1009 = vmul.f32 %v969, %v1005
        %v1010 = vsel %vm738, %v995, 0.0
        %1011 = vadd.xlane.f32.xlu0 %v1010
        %v1012 = vpop.xlane.xlu0 %1011
        %v1013 = vsel %vm738, %v997, 0.0
        %1014 = vadd.xlane.f32.xlu0 %v1013
        %v1015 = vpop.xlane.xlu0 %1014
        %v1016 = vsel %vm738, %v999, 0.0
        %1017 = vadd.xlane.f32.xlu0 %v1016
        %v1018 = vpop.xlane.xlu0 %1017
        %v1019 = vsel %vm738, %v1001, 0.0
        %1020 = vadd.xlane.f32.xlu0 %v1019
        %v1021 = vpop.xlane.xlu0 %1020
        %v1022 = vadd.f32 %v1006, %v1012
        %v1023 = vadd.f32 %v1007, %v1015
        %v1024 = vadd.f32 %v1008, %v1018
        %v1025 = vadd.f32 %v1009, %v1021
        %vm1026 = vcmask 7168
        %1027 = vst.msk [vmem:[#allocation3] sm:$0xff] %vm1026, %v1022
        %1028 = vst.msk [vmem:[#allocation3 + $0x8] sm:$0xff] %vm1026, %v1023
        %1029 = vst.msk [vmem:[#allocation3 + $0x10] sm:$0xff] %vm1026, %v1024
        %1030 = vst.msk [vmem:[#allocation3 + $0x18] sm:$0xff] %vm1026, %v1025
        %v1031 = vld [vmem:[#allocation4] sm:$0xff]
        %v1032 = vld [vmem:[#allocation4 + $0x8] sm:$0xff]
        %v1033 = vld [vmem:[#allocation4 + $0x10] sm:$0xff]
        %v1034 = vld [vmem:[#allocation4 + $0x18] sm:$0xff]
        %1036 = vset.pattern.permute.xlu0 0
        %1037 = vperm.xlu0 %1036, %v963
        %v1038 = vpop.permute.xlu0 %1037
        %1041 = vset.pattern.permute.xlu0 0
        %1042 = vperm.xlu0 %1041, %v965
        %v1043 = vpop.permute.xlu0 %1042
        %1046 = vset.pattern.permute.xlu0 0
        %1047 = vperm.xlu0 %1046, %v967
        %v1048 = vpop.permute.xlu0 %1047
        %1051 = vset.pattern.permute.xlu0 0
        %1052 = vperm.xlu0 %1051, %v969
        %v1053 = vpop.permute.xlu0 %1052
        %v1055 = vmul.f32 %v1038, %v1031
        %v1056 = vmul.f32 %v1043, %v1032
        %v1057 = vmul.f32 %v1048, %v1033
        %v1058 = vmul.f32 %v1053, %v1034
        %v1059 = vpack.c.bf16 %v995, %v995
        %v1060 = vpack.c.bf16 %v997, %v997
        %v1061 = vpack.c.bf16 %v999, %v999
        %v1062 = vpack.c.bf16 %v1001, %v1001
        %v1064 = vsel %vm738, %v1059, 0
        %vm1066 = vcmask 1043456
        %v1068 = vsel %vm1066, %v728, 0
        %1070 = vmatprep.subr.bf16.mxu0 0
        %1071 = vmatpush1.bf16.msra.mxu0 %v1068
        %1072 = vmatprep.subr.bf16.mxu0 0
        %1073 = vmatpush1.bf16.msra.mxu0 0
        %1074 = vmatprep.subr.bf16.mxu0 0
        %1075 = vmatpush1.bf16.msra.mxu0 0
        %1076 = vmatprep.subr.bf16.mxu0 0
        %1077 = vmatpush1.bf16.msra.mxu0 0
        %1078 = vmatprep.subr.bf16.mxu0 0
        %1079 = vmatpush1.bf16.msra.mxu0 0
        %1080 = vmatprep.subr.bf16.mxu0 0
        %1081 = vmatpush1.bf16.msra.mxu0 0
        %1082 = vmatprep.subr.bf16.mxu0 0
        %1083 = vmatpush1.bf16.msra.mxu0 0
        %1084 = vmatprep.subr.bf16.mxu0 0
        %1085 = vmatpush1.bf16.msra.mxu0 0
        %1086 = vmatprep.subr.bf16.mxu0 0
        %1087 = vmatpush1.bf16.msra.mxu0 0
        %1088 = vmatprep.subr.bf16.mxu0 0
        %1089 = vmatpush1.bf16.msra.mxu0 0
        %1090 = vmatprep.subr.bf16.mxu0 0
        %1091 = vmatpush1.bf16.msra.mxu0 0
        %1092 = vmatprep.subr.bf16.mxu0 0
        %1093 = vmatpush1.bf16.msra.mxu0 0
        %1094 = vmatprep.subr.bf16.mxu0 0
        %1095 = vmatpush1.bf16.msra.mxu0 0
        %1096 = vmatprep.subr.bf16.mxu0 0
        %1097 = vmatpush1.bf16.msra.mxu0 0
        %1098 = vmatprep.subr.bf16.mxu0 0
        %1099 = vmatpush1.bf16.msra.mxu0 0
        %1100 = vmatprep.subr.bf16.mxu0 0
        %1101 = vmatpush1.bf16.msra.mxu0 0
        %1102 = vmatprep.mubr.bf16.mxu0 0
        %1103 = vmatmul.mubr.bf16.gmra.mrb[0].mxu0 %v1064
        %v1104 = vpop.f32.mrb[0].mxu0
        %v1105 = vadd.f32 0.0, %v1104
        %v1106 = vpop.f32.mrb[0].mxu0
        %v1107 = vpop.f32.mrb[0].mxu0
        %v1108 = vpop.f32.mrb[0].mxu0
        %1109 = vdwg.mxu0
        %v1111 = vsel %vm738, %v1060, 0
        %v1114 = vsel %vm1066, %v731, 0
        %1116 = vmatprep.subr.bf16.mxu0 0
        %1117 = vmatpush1.bf16.msra.mxu0 %v1114
        %1118 = vmatprep.subr.bf16.mxu0 0
        %1119 = vmatpush1.bf16.msra.mxu0 0
        %1120 = vmatprep.subr.bf16.mxu0 0
        %1121 = vmatpush1.bf16.msra.mxu0 0
        %1122 = vmatprep.subr.bf16.mxu0 0
        %1123 = vmatpush1.bf16.msra.mxu0 0
        %1124 = vmatprep.subr.bf16.mxu0 0
        %1125 = vmatpush1.bf16.msra.mxu0 0
        %1126 = vmatprep.subr.bf16.mxu0 0
        %1127 = vmatpush1.bf16.msra.mxu0 0
        %1128 = vmatprep.subr.bf16.mxu0 0
        %1129 = vmatpush1.bf16.msra.mxu0 0
        %1130 = vmatprep.subr.bf16.mxu0 0
        %1131 = vmatpush1.bf16.msra.mxu0 0
        %1132 = vmatprep.subr.bf16.mxu0 0
        %1133 = vmatpush1.bf16.msra.mxu0 0
        %1134 = vmatprep.subr.bf16.mxu0 0
        %1135 = vmatpush1.bf16.msra.mxu0 0
        %1136 = vmatprep.subr.bf16.mxu0 0
        %1137 = vmatpush1.bf16.msra.mxu0 0
        %1138 = vmatprep.subr.bf16.mxu0 0
        %1139 = vmatpush1.bf16.msra.mxu0 0
        %1140 = vmatprep.subr.bf16.mxu0 0
        %1141 = vmatpush1.bf16.msra.mxu0 0
        %1142 = vmatprep.subr.bf16.mxu0 0
        %1143 = vmatpush1.bf16.msra.mxu0 0
        %1144 = vmatprep.subr.bf16.mxu0 0
        %1145 = vmatpush1.bf16.msra.mxu0 0
        %1146 = vmatprep.subr.bf16.mxu0 0
        %1147 = vmatpush1.bf16.msra.mxu0 0
        %1148 = vmatprep.mubr.bf16.mxu0 0
        %1149 = vmatmul.mubr.bf16.gmra.mrb[0].mxu0 %v1111
        %v1150 = vpop.f32.mrb[0].mxu0
        %v1151 = vadd.f32 0.0, %v1150
        %v1152 = vpop.f32.mrb[0].mxu0
        %v1153 = vpop.f32.mrb[0].mxu0
        %v1154 = vpop.f32.mrb[0].mxu0
        %1155 = vdwg.mxu0
        %v1157 = vsel %vm738, %v1061, 0
        %v1160 = vsel %vm1066, %v734, 0
        %1162 = vmatprep.subr.bf16.mxu0 0
        %1163 = vmatpush1.bf16.msra.mxu0 %v1160
        %1164 = vmatprep.subr.bf16.mxu0 0
        %1165 = vmatpush1.bf16.msra.mxu0 0
        %1166 = vmatprep.subr.bf16.mxu0 0
        %1167 = vmatpush1.bf16.msra.mxu0 0
        %1168 = vmatprep.subr.bf16.mxu0 0
        %1169 = vmatpush1.bf16.msra.mxu0 0
        %1170 = vmatprep.subr.bf16.mxu0 0
        %1171 = vmatpush1.bf16.msra.mxu0 0
        %1172 = vmatprep.subr.bf16.mxu0 0
        %1173 = vmatpush1.bf16.msra.mxu0 0
        %1174 = vmatprep.subr.bf16.mxu0 0
        %1175 = vmatpush1.bf16.msra.mxu0 0
        %1176 = vmatprep.subr.bf16.mxu0 0
        %1177 = vmatpush1.bf16.msra.mxu0 0
        %1178 = vmatprep.subr.bf16.mxu0 0
        %1179 = vmatpush1.bf16.msra.mxu0 0
        %1180 = vmatprep.subr.bf16.mxu0 0
        %1181 = vmatpush1.bf16.msra.mxu0 0
        %1182 = vmatprep.subr.bf16.mxu0 0
        %1183 = vmatpush1.bf16.msra.mxu0 0
        %1184 = vmatprep.subr.bf16.mxu0 0
        %1185 = vmatpush1.bf16.msra.mxu0 0
        %1186 = vmatprep.subr.bf16.mxu0 0
        %1187 = vmatpush1.bf16.msra.mxu0 0
        %1188 = vmatprep.subr.bf16.mxu0 0
        %1189 = vmatpush1.bf16.msra.mxu0 0
        %1190 = vmatprep.subr.bf16.mxu0 0
        %1191 = vmatpush1.bf16.msra.mxu0 0
        %1192 = vmatprep.subr.bf16.mxu0 0
        %1193 = vmatpush1.bf16.msra.mxu0 0
        %1194 = vmatprep.mubr.bf16.mxu0 0
        %1195 = vmatmul.mubr.bf16.gmra.mrb[0].mxu0 %v1157
        %v1196 = vpop.f32.mrb[0].mxu0
        %v1197 = vadd.f32 0.0, %v1196
        %v1198 = vpop.f32.mrb[0].mxu0
        %v1199 = vpop.f32.mrb[0].mxu0
        %v1200 = vpop.f32.mrb[0].mxu0
        %1201 = vdwg.mxu0
        %v1203 = vsel %vm738, %v1062, 0
        %v1206 = vsel %vm1066, %v737, 0
        %1208 = vmatprep.subr.bf16.mxu0 0
        %1209 = vmatpush1.bf16.msra.mxu0 %v1206
        %1210 = vmatprep.subr.bf16.mxu0 0
        %1211 = vmatpush1.bf16.msra.mxu0 0
        %1212 = vmatprep.subr.bf16.mxu0 0
        %1213 = vmatpush1.bf16.msra.mxu0 0
        %1214 = vmatprep.subr.bf16.mxu0 0
        %1215 = vmatpush1.bf16.msra.mxu0 0
        %1216 = vmatprep.subr.bf16.mxu0 0
        %1217 = vmatpush1.bf16.msra.mxu0 0
        %1218 = vmatprep.subr.bf16.mxu0 0
        %1219 = vmatpush1.bf16.msra.mxu0 0
        %1220 = vmatprep.subr.bf16.mxu0 0
        %1221 = vmatpush1.bf16.msra.mxu0 0
        %1222 = vmatprep.subr.bf16.mxu0 0
        %1223 = vmatpush1.bf16.msra.mxu0 0
        %1224 = vmatprep.subr.bf16.mxu0 0
        %1225 = vmatpush1.bf16.msra.mxu0 0
        %1226 = vmatprep.subr.bf16.mxu0 0
        %1227 = vmatpush1.bf16.msra.mxu0 0
        %1228 = vmatprep.subr.bf16.mxu0 0
        %1229 = vmatpush1.bf16.msra.mxu0 0
        %1230 = vmatprep.subr.bf16.mxu0 0
        %1231 = vmatpush1.bf16.msra.mxu0 0
        %1232 = vmatprep.subr.bf16.mxu0 0
        %1233 = vmatpush1.bf16.msra.mxu0 0
        %1234 = vmatprep.subr.bf16.mxu0 0
        %1235 = vmatpush1.bf16.msra.mxu0 0
        %1236 = vmatprep.subr.bf16.mxu0 0
        %1237 = vmatpush1.bf16.msra.mxu0 0
        %1238 = vmatprep.subr.bf16.mxu0 0
        %1239 = vmatpush1.bf16.msra.mxu0 0
        %1240 = vmatprep.mubr.bf16.mxu0 0
        %1241 = vmatmul.mubr.bf16.gmra.mrb[0].mxu0 %v1203
        %v1242 = vpop.f32.mrb[0].mxu0
        %v1243 = vadd.f32 0.0, %v1242
        %v1244 = vpop.f32.mrb[0].mxu0
        %v1245 = vpop.f32.mrb[0].mxu0
        %v1246 = vpop.f32.mrb[0].mxu0
        %1247 = vdwg.mxu0
        %v1248 = vadd.f32 %v1055, %v1105
        %v1249 = vadd.f32 %v1056, %v1151
        %v1250 = vadd.f32 %v1057, %v1197
        %v1251 = vadd.f32 %v1058, %v1243
        %1252 = vst.msk [vmem:[#allocation4] sm:$0xff] %vm738, %v1248
        %1253 = vst.msk [vmem:[#allocation4 + $0x8] sm:$0xff] %vm738, %v1249
        %1254 = vst.msk [vmem:[#allocation4 + $0x10] sm:$0xff] %vm738, %v1250
        %1255 = vst.msk [vmem:[#allocation4 + $0x18] sm:$0xff] %vm738, %v1251
        %1256 = vst.msk [vmem:[#allocation2] sm:$0xff] %vm1026, %v954
        %1257 = vst.msk [vmem:[#allocation2 + $0x8] sm:$0xff] %vm1026, %v955
        %1258 = vst.msk [vmem:[#allocation2 + $0x10] sm:$0xff] %vm1026, %v956
        %1259 = vst.msk [vmem:[#allocation2 + $0x18] sm:$0xff] %vm1026, %v957
      $region40: #{transformer_decoder.18} parent=31 // pred_fallthru
        _
      // Predicated region
      $region41: #{transformer_decoder.18} parent=31 // pred_check
        %p1260 = pneg %p262
      $region42: #{transformer_decoder.18} parent=31 // pred_check_branch
        %1262 = sbr.rel (%p1260) target = $region44
      $region43: #{transformer_decoder.18} parent=31 // pred_region
        %v1263 = vld [vmem:[#allocation4] sm:$0xff]
        %v1264 = vld [vmem:[#allocation4 + $0x8] sm:$0xff]
        %v1265 = vld [vmem:[#allocation4 + $0x10] sm:$0xff]
        %v1266 = vld [vmem:[#allocation4 + $0x18] sm:$0xff]
        %v1267 = vld [vmem:[#allocation3] sm:$0xff]
        %v1268 = vld [vmem:[#allocation3 + $0x8] sm:$0xff]
        %v1269 = vld [vmem:[#allocation3 + $0x10] sm:$0xff]
        %v1270 = vld [vmem:[#allocation3 + $0x18] sm:$0xff]
        %v1271 = vrcp.pop %v1267
        %v1272 = vrcp.pop %v1268
        %v1273 = vrcp.pop %v1269
        %v1274 = vrcp.pop %v1270
        %1276 = vset.pattern.permute.xlu0 0
        %1277 = vperm.xlu0 %1276, %v1271
        %v1278 = vpop.permute.xlu0 %1277
        %1281 = vset.pattern.permute.xlu0 0
        %1282 = vperm.xlu0 %1281, %v1272
        %v1283 = vpop.permute.xlu0 %1282
        %1286 = vset.pattern.permute.xlu0 0
        %1287 = vperm.xlu0 %1286, %v1273
        %v1288 = vpop.permute.xlu0 %1287
        %1291 = vset.pattern.permute.xlu0 0
        %1292 = vperm.xlu0 %1291, %v1274
        %v1293 = vpop.permute.xlu0 %1292
        %v1295 = vmul.f32 %v1263, %v1278
        %v1296 = vmul.f32 %v1264, %v1283
        %v1297 = vmul.f32 %v1265, %v1288
        %v1298 = vmul.f32 %v1266, %v1293
        %v1299 = vcombine.low %v1295, %v1297
        %v1300 = vcombine.high %v1295, %v1297
        %v1302 = vunpack.c.l.s4 1983009808
        %v1303 = vunpack.c.0.s8 %v1302
        %v1304 = vlaneseq
        %v1305 = vshrl.u32 %v1304, 7
        %v1306 = vsub.s32 %v1303, %v1305
        %v1307 = vrot.slane %v1299, %v1306
        %v1309 = vunpack.c.l.s4 1983009808
        %v1310 = vunpack.c.0.s8 %v1309
        %v1311 = vlaneseq
        %v1312 = vshrl.u32 %v1311, 7
        %v1313 = vsub.s32 %v1310, %v1312
        %v1314 = vrot.slane %v1300, %v1313
        %v1315 = vcombine.low %v1296, %v1298
        %v1316 = vcombine.high %v1296, %v1298
        %v1318 = vunpack.c.l.s4 1983009808
        %v1319 = vunpack.c.0.s8 %v1318
        %v1320 = vlaneseq
        %v1321 = vshrl.u32 %v1320, 7
        %v1322 = vsub.s32 %v1319, %v1321
        %v1323 = vrot.slane %v1315, %v1322
        %v1325 = vunpack.c.l.s4 1983009808
        %v1326 = vunpack.c.0.s8 %v1325
        %v1327 = vlaneseq
        %v1328 = vshrl.u32 %v1327, 7
        %v1329 = vsub.s32 %v1326, %v1328
        %v1330 = vrot.slane %v1316, %v1329
        %v1331 = vcombine.low %v1307, %v1323
        %v1332 = vcombine.high %v1307, %v1323
        %v1334 = vunpack.c.l.s4 1934713408
        %v1335 = vunpack.c.0.s8 %v1334
        %v1336 = vlaneseq
        %v1337 = vshrl.u32 %v1336, 7
        %v1338 = vsub.s32 %v1335, %v1337
        %v1339 = vrot.slane %v1331, %v1338
        %v1341 = vunpack.c.l.s4 1934713408
        %v1342 = vunpack.c.0.s8 %v1341
        %v1343 = vlaneseq
        %v1344 = vshrl.u32 %v1343, 7
        %v1345 = vsub.s32 %v1342, %v1344
        %v1346 = vrot.slane %v1332, %v1345
        %v1347 = vcombine.low %v1314, %v1330
        %v1348 = vcombine.high %v1314, %v1330
        %v1350 = vunpack.c.l.s4 1934713408
        %v1351 = vunpack.c.0.s8 %v1350
        %v1352 = vlaneseq
        %v1353 = vshrl.u32 %v1352, 7
        %v1354 = vsub.s32 %v1351, %v1353
        %v1355 = vrot.slane %v1347, %v1354
        %v1357 = vunpack.c.l.s4 1934713408
        %v1358 = vunpack.c.0.s8 %v1357
        %v1359 = vlaneseq
        %v1360 = vshrl.u32 %v1359, 7
        %v1361 = vsub.s32 %v1358, %v1360
        %v1362 = vrot.slane %v1348, %v1361
        %v1363 = vcombine.high %v1339, 0.0
        %v1364 = vcombine.high %v1346, 0.0
        %v1365 = vcombine.high %v1355, 0.0
        %v1366 = vcombine.high %v1362, 0.0
        %v1367 = vcombine.low %v1339, %v1346
        %v1369 = vunpack.c.l.s4 1983009808
        %v1370 = vunpack.c.0.s8 %v1369
        %v1371 = vlaneseq
        %v1372 = vshrl.u32 %v1371, 7
        %v1373 = vsub.s32 %v1370, %v1372
        %v1374 = vrot.slane %v1367, %v1373
        %v1375 = vcombine.low %v1363, %v1364
        %v1377 = vunpack.c.l.s4 1983009808
        %v1378 = vunpack.c.0.s8 %v1377
        %v1379 = vlaneseq
        %v1380 = vshrl.u32 %v1379, 7
        %v1381 = vsub.s32 %v1378, %v1380
        %v1382 = vrot.slane %v1375, %v1381
        %v1383 = vcombine.low %v1355, %v1362
        %v1385 = vunpack.c.l.s4 1983009808
        %v1386 = vunpack.c.0.s8 %v1385
        %v1387 = vlaneseq
        %v1388 = vshrl.u32 %v1387, 7
        %v1389 = vsub.s32 %v1386, %v1388
        %v1390 = vrot.slane %v1383, %v1389
        %v1391 = vcombine.low %v1365, %v1366
        %v1393 = vunpack.c.l.s4 1983009808
        %v1394 = vunpack.c.0.s8 %v1393
        %v1395 = vlaneseq
        %v1396 = vshrl.u32 %v1395, 7
        %v1397 = vsub.s32 %v1394, %v1396
        %v1398 = vrot.slane %v1391, %v1397
        %v1399 = vcombine.low %v1374, %v1382
        %v1400 = vcombine.high %v1374, %v1382
        %v1402 = vunpack.c.l.s4 1934713408
        %v1403 = vunpack.c.0.s8 %v1402
        %v1404 = vlaneseq
        %v1405 = vshrl.u32 %v1404, 7
        %v1406 = vsub.s32 %v1403, %v1405
        %v1407 = vrot.slane %v1399, %v1406
        %v1409 = vunpack.c.l.s4 1934713408
        %v1410 = vunpack.c.0.s8 %v1409
        %v1411 = vlaneseq
        %v1412 = vshrl.u32 %v1411, 7
        %v1413 = vsub.s32 %v1410, %v1412
        %v1414 = vrot.slane %v1400, %v1413
        %v1415 = vcombine.low %v1390, %v1398
        %v1416 = vcombine.high %v1390, %v1398
        %v1418 = vunpack.c.l.s4 1934713408
        %v1419 = vunpack.c.0.s8 %v1418
        %v1420 = vlaneseq
        %v1421 = vshrl.u32 %v1420, 7
        %v1422 = vsub.s32 %v1419, %v1421
        %v1423 = vrot.slane %v1415, %v1422
        %v1425 = vunpack.c.l.s4 1934713408
        %v1426 = vunpack.c.0.s8 %v1425
        %v1427 = vlaneseq
        %v1428 = vshrl.u32 %v1427, 7
        %v1429 = vsub.s32 %v1426, %v1428
        %v1430 = vrot.slane %v1416, %v1429
        %v1431 = vcombine.low %v1407, %v1423
        %v1432 = vcombine.high %v1407, %v1423
        %v1433 = vcombine.low %v1414, %v1430
        %v1434 = vcombine.high %v1414, %v1430
        %1436 = vrot.lane.b32.xlu0 %v1432, 8
        %v1437 = vpop.permute.xlu0 %1436
        %1440 = vrot.lane.b32.xlu0 %v1433, 16
        %v1441 = vpop.permute.xlu0 %1440
        %1444 = vrot.lane.b32.xlu0 %v1434, 24
        %v1445 = vpop.permute.xlu0 %1444
        %vm1447 = vcmask 64512
        %v1448 = vsel %vm1447, %v1431, %v1437
        %vm1449 = vcmask 130048
        %v1450 = vsel %vm1449, %v1448, %v1441
        %vm1451 = vcmask 195584
        %v1452 = vsel %vm1451, %v1450, %v1445
        %v1453 = vpack.c.bf16 %v1452, %v1452
        %vm1454 = vcmask 257024
        %1455 = vst.msk [vmem:[%s259] sm:$0xf] %vm1454, %v1453
      $region44: #{transformer_decoder.18} parent=31 // pred_fallthru
        _
      %p1456 = scmp.lt.s32.totalorder %s19, 1
      %s1457 = scalar_select %p1456, %s19, 1
      %p1458 = scmp.lt.s32.totalorder %s20, 0
      %s1459 = scalar_select %p1458, %s20, 0
      %s1460 = sadd.s32 %s1459, %s1457
      %s1461 = smul.addr %s1460, 4
      %s1462 = scalar_lea.vmem %s3, %s1461
      // Predicated region
      $region45: #{transformer_decoder.18} parent=31 // pred_check
        %p1463 = pneg %p137
      $region46: #{transformer_decoder.18} parent=31 // pred_check_branch
        %1465 = sbr.rel (%p1463) target = $region48
      $region47: #{transformer_decoder.18} parent=31 // pred_region
        _
      $region48: #{transformer_decoder.18} parent=31 // pred_fallthru
        _
    $region32: #{transformer_decoder.18} parent=5 // pred_fallthru
      _
    %p1466 = scmp.le.s32.totalorder 2, %s9
    // Predicated region
    $region49: #{transformer_decoder.18} parent=5 // pred_check
      %p1467 = pneg %p1466
    $region50: #{transformer_decoder.18} parent=5 // pred_check_branch
      %1469 = sbr.rel (%p1467) target = $region52
    $region51: #{transformer_decoder.18} parent=5 // pred_region
      %s1470 = ssub.s32 %s9, 2
      // Predicated region
      $region53: #{transformer_decoder.18} parent=51 // pred_check
        %p1471 = pneg %p143
      $region54: #{transformer_decoder.18} parent=51 // pred_check_branch
        %1473 = sbr.rel (%p1471) target = $region56
      $region55: #{transformer_decoder.18} parent=51 // pred_region
        %p1474 = scmp.lt.s32.totalorder %s22, 1
        %s1475 = scalar_select %p1474, %s22, 1
        %p1476 = scmp.lt.s32.totalorder %s23, 0
        %s1477 = scalar_select %p1476, %s23, 0
        %s1478 = sadd.s32 %s1477, %s1475
        %s1479 = smul.addr %s1478, 4
        %s1480 = scalar_lea.vmem %s3, %s1479
      $region56: #{transformer_decoder.18} parent=51 // pred_fallthru
        _
    $region52: #{transformer_decoder.18} parent=5 // pred_fallthru
      _
  $region6: #{transformer_decoder.18} parent=0 // loop_footer
    %s13 = sadd.s32 1, %s9
  $region7: #{transformer_decoder.18} parent=0 // loop_footer_branch
    %8 = sbr.rel target = $region3
  $region8: #{transformer_decoder.18} parent=0 // loop_exit
    _

// kernel: transformer_decoder.21
$region0: #{transformer_decoder.21}
  #allocation0 [shape = 'u32[]', space=smem, size = 0x4, offset = 0x4, fixed_abs, tag = 'smem constant byte address 0x4 - core index']
  #allocation1 [shape = 'u32[144,128]{1,0:T(1,128)}', space=vmem, size = 0x12000, scoped, tag = 'internal scratch']
  %s0 = inlined_call_operand.vmem [shape: f32[32,32], index: 0, kind: input, shape index: {}]
  %s1 = inlined_call_operand.vmem [shape: bf16[32,64], index: 1, kind: input, shape index: {}]
  %s2 = inlined_call_operand.vmem [shape: f32[1,64], index: 2, kind: input, shape index: {}]
  %s3 = inlined_call_operand.vmem [shape: bf16[32,32], index: 3, kind: output, shape index: {0}]
  %s4 = inlined_call_operand.vmem [shape: bf16[32,32], index: 4, kind: output, shape index: {1}]
  %5 = xla_tuple %s3, %s4
  %s6 = sld [smem:[#allocation0]]
  $region53: #{transformer_decoder.21} parent=0
    _
  %s8 = ssub.s32 1, %s6
  %s9 = scalar_select 0, %s8, %s6
  loop: start=0, step=1, limit=6
  $region2: #{transformer_decoder.21} parent=0 // loop_pre_header
    _
  $region3: #{transformer_decoder.21} parent=0 // loop_header
    %s11 = sphi 0, %s15
    %p12 = scmp.ge.s32.totalorder %s11, 6
    %s21 = sphi 0, %s23
    %s24 = sphi 0, %s21
    %s25 = sphi 0, %s24
    %s41 = sphi 0, %s25
    %s45 = sphi 0, %s45
    %s47 = sphi 0, %s45
    %s48 = sphi 0, %s47
    %s62 = sphi 0, %s48
    %s66 = sphi 0, %s66
    %s68 = sphi 0, %s66
    %s69 = sphi 0, %s68
    %s83 = sphi 0, %s69
    %s89 = sphi 0, %s91
    %s92 = sphi 0, %s89
    %s93 = sphi 0, %s92
    %s109 = sphi 0, %s93
    %s115 = sphi 0, %s117
    %s118 = sphi 0, %s115
    %s119 = sphi 0, %s118
    %s135 = sphi 0, %s119
  $region4: #{transformer_decoder.21} parent=0 // loop_header_branch
    %14 = sbr.rel (%p12) target = $region8
  $region5: #{transformer_decoder.21} parent=0 // loop_body
    %s16 = ssub.s32 %s11, 1
    %s17 = ssub.s32 %s11, 2
    %s18 = sadd.s32 %s11, 1
    %s19 = ssub.s32 %s11, %s18
    %p20 = scmp.eq.s32.totalorder %s19, 0
    %s22 = sadd.s32 %s21, 1
    %s23 = scalar_select %p20, %s21, %s22
    %p26 = pneg %p20
    %p27 = scmp.eq.s32.totalorder %s11, 3
    %p28 = por %p26, %p27
    %p29 = scmp.ne.s32.totalorder %s21, %s24
    %p30 = scmp.eq.s32.totalorder %s11, 0
    %p31 = por %p29, %p30
    %p32 = scmp.ne.s32.totalorder %s21, %s24
    %p33 = scmp.eq.s32.totalorder %s16, 3
    %p34 = por %p32, %p33
    %p35 = scmp.ne.s32.totalorder %s24, %s25
    %p36 = scmp.eq.s32.totalorder %s16, 0
    %p37 = por %p35, %p36
    %p38 = scmp.ne.s32.totalorder %s24, %s25
    %p39 = scmp.eq.s32.totalorder %s17, 3
    %p40 = por %p38, %p39
    %p42 = scmp.ne.s32.totalorder %s25, %s41
    %p43 = scmp.eq.s32.totalorder %s17, 0
    %p44 = por %p42, %p43
    %s46 = sadd.s32 %s45, 1
    %p49 = scmp.eq.s32.totalorder %s11, 3
    %p50 = scmp.ne.s32.totalorder %s45, %s47
    %p51 = scmp.eq.s32.totalorder %s11, 0
    %p52 = por %p50, %p51
    %p53 = scmp.ne.s32.totalorder %s45, %s47
    %p54 = scmp.eq.s32.totalorder %s16, 3
    %p55 = por %p53, %p54
    %p56 = scmp.ne.s32.totalorder %s47, %s48
    %p57 = scmp.eq.s32.totalorder %s16, 0
    %p58 = por %p56, %p57
    %p59 = scmp.ne.s32.totalorder %s47, %s48
    %p60 = scmp.eq.s32.totalorder %s17, 3
    %p61 = por %p59, %p60
    %p63 = scmp.ne.s32.totalorder %s48, %s62
    %p64 = scmp.eq.s32.totalorder %s17, 0
    %p65 = por %p63, %p64
    %s67 = sadd.s32 %s66, 1
    %p70 = scmp.eq.s32.totalorder %s11, 3
    %p71 = scmp.ne.s32.totalorder %s66, %s68
    %p72 = scmp.eq.s32.totalorder %s11, 0
    %p73 = por %p71, %p72
    %p74 = scmp.ne.s32.totalorder %s66, %s68
    %p75 = scmp.eq.s32.totalorder %s16, 3
    %p76 = por %p74, %p75
    %p77 = scmp.ne.s32.totalorder %s68, %s69
    %p78 = scmp.eq.s32.totalorder %s16, 0
    %p79 = por %p77, %p78
    %p80 = scmp.ne.s32.totalorder %s68, %s69
    %p81 = scmp.eq.s32.totalorder %s17, 3
    %p82 = por %p80, %p81
    %p84 = scmp.ne.s32.totalorder %s69, %s83
    %p85 = scmp.eq.s32.totalorder %s17, 0
    %p86 = por %p84, %p85
    %s87 = ssub.s32 %s11, %s18
    %p88 = scmp.eq.s32.totalorder %s87, 0
    %s90 = sadd.s32 %s89, 1
    %s91 = scalar_select %p88, %s89, %s90
    %p94 = pneg %p88
    %p95 = scmp.eq.s32.totalorder %s11, 3
    %p96 = por %p94, %p95
    %p97 = scmp.ne.s32.totalorder %s89, %s92
    %p98 = scmp.eq.s32.totalorder %s11, 0
    %p99 = por %p97, %p98
    %p100 = scmp.ne.s32.totalorder %s89, %s92
    %p101 = scmp.eq.s32.totalorder %s16, 3
    %p102 = por %p100, %p101
    %p103 = scmp.ne.s32.totalorder %s92, %s93
    %p104 = scmp.eq.s32.totalorder %s16, 0
    %p105 = por %p103, %p104
    %p106 = scmp.ne.s32.totalorder %s92, %s93
    %p107 = scmp.eq.s32.totalorder %s17, 3
    %p108 = por %p106, %p107
    %p110 = scmp.ne.s32.totalorder %s93, %s109
    %p111 = scmp.eq.s32.totalorder %s17, 0
    %p112 = por %p110, %p111
    %s113 = ssub.s32 %s11, %s18
    %p114 = scmp.eq.s32.totalorder %s113, 0
    %s116 = sadd.s32 %s115, 1
    %s117 = scalar_select %p114, %s115, %s116
    %p120 = pneg %p114
    %p121 = scmp.eq.s32.totalorder %s11, 3
    %p122 = por %p120, %p121
    %p123 = scmp.ne.s32.totalorder %s115, %s118
    %p124 = scmp.eq.s32.totalorder %s11, 0
    %p125 = por %p123, %p124
    %p126 = scmp.ne.s32.totalorder %s115, %s118
    %p127 = scmp.eq.s32.totalorder %s16, 3
    %p128 = por %p126, %p127
    %p129 = scmp.ne.s32.totalorder %s118, %s119
    %p130 = scmp.eq.s32.totalorder %s16, 0
    %p131 = por %p129, %p130
    %p132 = scmp.ne.s32.totalorder %s118, %s119
    %p133 = scmp.eq.s32.totalorder %s17, 3
    %p134 = por %p132, %p133
    %p136 = scmp.ne.s32.totalorder %s119, %s135
    %p137 = scmp.eq.s32.totalorder %s17, 0
    %p138 = por %p136, %p137
    %p139 = scmp.le.s32.totalorder 1, %s11
    %p140 = scmp.lt.s32.totalorder %s11, 5
    %p141 = pnand %p139, %p140
    %p142 = pneg %p141
    // Predicated region
    $region9: #{transformer_decoder.21} parent=5 // pred_check
      _
    $region10: #{transformer_decoder.21} parent=5 // pred_check_branch
      %144 = sbr.rel (%p141) target = $region12
    $region11: #{transformer_decoder.21} parent=5 // pred_region
      %s145 = ssub.s32 %s11, 1
      // Predicated region
      $region13: #{transformer_decoder.21} parent=11 // pred_check
        %p146 = pneg %p58
      $region14: #{transformer_decoder.21} parent=11 // pred_check_branch
        %148 = sbr.rel (%p146) target = $region16
      $region15: #{transformer_decoder.21} parent=11 // pred_region
        _
      $region16: #{transformer_decoder.21} parent=11 // pred_fallthru
        _
      // Predicated region
      $region17: #{transformer_decoder.21} parent=11 // pred_check
        %p149 = pneg %p79
      $region18: #{transformer_decoder.21} parent=11 // pred_check_branch
        %151 = sbr.rel (%p149) target = $region20
      $region19: #{transformer_decoder.21} parent=11 // pred_region
        _
      $region20: #{transformer_decoder.21} parent=11 // pred_fallthru
        _
    $region12: #{transformer_decoder.21} parent=5 // pred_fallthru
      _
    %p152 = scmp.lt.s32.totalorder %s11, 4
    // Predicated region
    $region21: #{transformer_decoder.21} parent=5 // pred_check
      %p153 = pneg %p152
    $region22: #{transformer_decoder.21} parent=5 // pred_check_branch
      %155 = sbr.rel (%p153) target = $region24
    $region23: #{transformer_decoder.21} parent=5 // pred_region
      // Predicated region
      $region25: #{transformer_decoder.21} parent=23 // pred_check
        %p156 = pneg %p31
      $region26: #{transformer_decoder.21} parent=23 // pred_check_branch
        %158 = sbr.rel (%p156) target = $region28
      $region27: #{transformer_decoder.21} parent=23 // pred_region
        %p159 = scmp.lt.s32.totalorder %s11, 3
        %s160 = scalar_select %p159, %s11, 3
        %s161 = smul.addr %s160, 8
        %s162 = scalar_lea.vmem %s0, %s161
      $region28: #{transformer_decoder.21} parent=23 // pred_fallthru
        _
    $region24: #{transformer_decoder.21} parent=5 // pred_fallthru
      _
    %p163 = scmp.le.s32.totalorder 1, %s11
    %p164 = scmp.lt.s32.totalorder %s11, 5
    %p165 = pnand %p163, %p164
    %p166 = pneg %p165
    // Predicated region
    $region29: #{transformer_decoder.21} parent=5 // pred_check
      _
    $region30: #{transformer_decoder.21} parent=5 // pred_check_branch
      %168 = sbr.rel (%p165) target = $region32
    $region31: #{transformer_decoder.21} parent=5 // pred_region
      %s169 = ssub.s32 %s11, 1
      %p170 = scmp.lt.s32.totalorder %s16, 3
      %s171 = scalar_select %p170, %s16, 3
      %s172 = smul.addr %s171, 8
      %s173 = scalar_lea.vmem %s0, %s172
      %p174 = pneg %p37
      %p175 = pneg %p34
      %p176 = pneg %p58
      %p177 = pneg %p55
      %p178 = pneg %p79
      %p179 = pneg %p76
      %p180 = pneg %p105
      %p181 = pneg %p102
      %p182 = scmp.lt.s32.totalorder %s16, 3
      %s183 = scalar_select %p182, %s16, 3
      %s184 = smul.addr %s183, 4
      %s185 = scalar_lea.vmem %s3, %s184
      %p186 = pneg %p131
      %p187 = pneg %p128
      %p188 = scmp.lt.s32.totalorder %s16, 3
      %s189 = scalar_select %p188, %s16, 3
      %s190 = smul.addr %s189, 4
      %s191 = scalar_lea.vmem %s4, %s190
      %p192 = scmp.lt.s32.totalorder %s16, 3
      %s193 = scalar_select %p192, %s16, 3
      %s194 = smul.addr %s193, 8
      %s195 = scalar_lea.vmem %s0, %s194
      %p196 = scmp.lt.s32.totalorder %s16, 3
      %s197 = scalar_select %p196, %s16, 3
      %s198 = smul.addr %s197, 4
      %s199 = scalar_lea.vmem %s3, %s198
      %p200 = scmp.lt.s32.totalorder %s16, 3
      %s201 = scalar_select %p200, %s16, 3
      %s202 = smul.addr %s201, 4
      %s203 = scalar_lea.vmem %s4, %s202
      %v205 = vld [vmem:[%s195] sm:$0xff]
      %v206 = vpack.c.bf16 %v205, %v205
      %v207 = vld [vmem:[%s1] sm:$0xf]
      %v208 = vld [vmem:[%s1 + $0x4] sm:$0xf]
      %v209 = vld [vmem:[%s1 + $0x8] sm:$0xf]
      %v210 = vld [vmem:[%s1 + $0xc] sm:$0xf]
      %v211 = vld [vmem:[%s2] sm:$0x1]
      %v213 = vlaneseq
      %v214 = vshrl.u32 %v213, 7
      %v215 = vsub.s32 0, %v214
      %v216 = vrot.slane %v211, %v215
      %v222 = vunpack.c.l.b16 %v207
      %v223 = vunpack.c.l.b16 %v208
      %v224 = vunpack.c.l.b16 %v209
      %v225 = vunpack.c.l.b16 %v210
      %v226 = vpack.c.b16 %v223, %v222
      %v227 = vpack.c.b16 %v225, %v224
      %vm230 = vcmask 261120
      %v232 = vsel %vm230, %v206, 0
      %234 = vmatprep.subr.bf16.mxu0 0
      %235 = vmatpush1.bf16.msra.mxu0 %v226
      %236 = vmatprep.subr.bf16.mxu0 0
      %237 = vmatpush1.bf16.msra.mxu0 %v227
      %238 = vmatprep.subr.bf16.mxu0 0
      %239 = vmatpush1.bf16.msra.mxu0 0
      %240 = vmatprep.subr.bf16.mxu0 0
      %241 = vmatpush1.bf16.msra.mxu0 0
      %242 = vmatprep.subr.bf16.mxu0 0
      %243 = vmatpush1.bf16.msra.mxu0 0
      %244 = vmatprep.subr.bf16.mxu0 0
      %245 = vmatpush1.bf16.msra.mxu0 0
      %246 = vmatprep.subr.bf16.mxu0 0
      %247 = vmatpush1.bf16.msra.mxu0 0
      %248 = vmatprep.subr.bf16.mxu0 0
      %249 = vmatpush1.bf16.msra.mxu0 0
      %250 = vmatprep.subr.bf16.mxu0 0
      %251 = vmatpush1.bf16.msra.mxu0 0
      %252 = vmatprep.subr.bf16.mxu0 0
      %253 = vmatpush1.bf16.msra.mxu0 0
      %254 = vmatprep.subr.bf16.mxu0 0
      %255 = vmatpush1.bf16.msra.mxu0 0
      %256 = vmatprep.subr.bf16.mxu0 0
      %257 = vmatpush1.bf16.msra.mxu0 0
      %258 = vmatprep.subr.bf16.mxu0 0
      %259 = vmatpush1.bf16.msra.mxu0 0
      %260 = vmatprep.subr.bf16.mxu0 0
      %261 = vmatpush1.bf16.msra.mxu0 0
      %262 = vmatprep.subr.bf16.mxu0 0
      %263 = vmatpush1.bf16.msra.mxu0 0
      %264 = vmatprep.subr.bf16.mxu0 0
      %265 = vmatpush1.bf16.msra.mxu0 0
      %266 = vmatprep.mubr.bf16.mxu0 0
      %267 = vmatmul.mubr.bf16.gmra.mrb[0].mxu0 %v232
      %v268 = vpop.f32.mrb[0].mxu0
      %v269 = vadd.f32 %v216, %v268
      %v270 = vpop.f32.mrb[0].mxu0
      %v271 = vpop.f32.mrb[0].mxu0
      %v272 = vpop.f32.mrb[0].mxu0
      %273 = vdwg.mxu0
      %v274 = vpack.c.bf16 %v269, %v269
      %vm275 = vcmask 257024
      %276 = vst.msk [vmem:[%s199] sm:$0xf] %vm275, %v274
      %v278 = vunpack.c.l.b16 %v274
      %v279 = vpack.c.b16 %v278, %v278
      %280 = vrot.lane.b32.xlu0 %v279, 96
      %v281 = vpop.permute.xlu0 %280
      %283 = vst.msk [vmem:[%s203] sm:$0xf] %vm275, %v281
      %p284 = scmp.lt.s32.totalorder %s16, 3
      %s285 = scalar_select %p284, %s16, 3
      %s286 = smul.addr %s285, 4
      %s287 = scalar_lea.vmem %s3, %s286
      %p288 = scmp.lt.s32.totalorder %s16, 3
      %s289 = scalar_select %p288, %s16, 3
      %s290 = smul.addr %s289, 4
      %s291 = scalar_lea.vmem %s4, %s290
      // Predicated region
      $region33: #{transformer_decoder.21} parent=31 // pred_check
        %p292 = pneg %p102
      $region34: #{transformer_decoder.21} parent=31 // pred_check_branch
        %294 = sbr.rel (%p292) target = $region36
      $region35: #{transformer_decoder.21} parent=31 // pred_region
        _
      $region36: #{transformer_decoder.21} parent=31 // pred_fallthru
        _
      // Predicated region
      $region37: #{transformer_decoder.21} parent=31 // pred_check
        %p295 = pneg %p128
      $region38: #{transformer_decoder.21} parent=31 // pred_check_branch
        %297 = sbr.rel (%p295) target = $region40
      $region39: #{transformer_decoder.21} parent=31 // pred_region
        _
      $region40: #{transformer_decoder.21} parent=31 // pred_fallthru
        _
    $region32: #{transformer_decoder.21} parent=5 // pred_fallthru
      _
    %p298 = scmp.le.s32.totalorder 2, %s11
    // Predicated region
    $region41: #{transformer_decoder.21} parent=5 // pred_check
      %p299 = pneg %p298
    $region42: #{transformer_decoder.21} parent=5 // pred_check_branch
      %301 = sbr.rel (%p299) target = $region44
    $region43: #{transformer_decoder.21} parent=5 // pred_region
      %s302 = ssub.s32 %s11, 2
      // Predicated region
      $region45: #{transformer_decoder.21} parent=43 // pred_check
        %p303 = pneg %p108
      $region46: #{transformer_decoder.21} parent=43 // pred_check_branch
        %305 = sbr.rel (%p303) target = $region48
      $region47: #{transformer_decoder.21} parent=43 // pred_region
        %p306 = scmp.lt.s32.totalorder %s17, 3
        %s307 = scalar_select %p306, %s17, 3
        %s308 = smul.addr %s307, 4
        %s309 = scalar_lea.vmem %s3, %s308
      $region48: #{transformer_decoder.21} parent=43 // pred_fallthru
        _
      // Predicated region
      $region49: #{transformer_decoder.21} parent=43 // pred_check
        %p310 = pneg %p134
      $region50: #{transformer_decoder.21} parent=43 // pred_check_branch
        %312 = sbr.rel (%p310) target = $region52
      $region51: #{transformer_decoder.21} parent=43 // pred_region
        %p313 = scmp.lt.s32.totalorder %s17, 3
        %s314 = scalar_select %p313, %s17, 3
        %s315 = smul.addr %s314, 4
        %s316 = scalar_lea.vmem %s4, %s315
      $region52: #{transformer_decoder.21} parent=43 // pred_fallthru
        _
    $region44: #{transformer_decoder.21} parent=5 // pred_fallthru
      _
  $region6: #{transformer_decoder.21} parent=0 // loop_footer
    %s15 = sadd.s32 1, %s11
  $region7: #{transformer_decoder.21} parent=0 // loop_footer_branch
    %10 = sbr.rel target = $region3
  $region8: #{transformer_decoder.21} parent=0 // loop_exit
    _

// kernel: transformer_decoder.24
$region0: #{transformer_decoder.24}
  #allocation0 [shape = 'u32[]', space=smem, size = 0x4, offset = 0x4, fixed_abs, tag = 'smem constant byte address 0x4 - core index']
  #allocation1 [shape = 'u32[144,128]{1,0:T(1,128)}', space=vmem, size = 0x12000, scoped, tag = 'internal scratch']
  #allocation2 [shape = 'f32[8,32]{1,0:T(8,128)}', space=vmem, size = 0x1000, scoped, tag = 'scratch operand']
  %s0 = inlined_call_operand.vmem [shape: f32[16,32], index: 0, kind: input, shape index: {}]
  %s1 = inlined_call_operand.vmem [shape: bf16[32,64], index: 1, kind: input, shape index: {}]
  %s2 = inlined_call_operand.vmem [shape: f32[1,64], index: 2, kind: input, shape index: {}]
  %s3 = inlined_call_operand.vmem [shape: bf16[64,32], index: 3, kind: input, shape index: {}]
  %s4 = inlined_call_operand.vmem [shape: f32[1,32], index: 4, kind: input, shape index: {}]
  %s5 = inlined_call_operand.vmem [shape: f32[1,32], index: 5, kind: input, shape index: {}]
  %s6 = inlined_call_operand.vmem [shape: f32[1,32], index: 6, kind: input, shape index: {}]
  %s7 = inlined_call_operand.vmem [shape: f32[16,32], index: 7, kind: output, shape index: {}]
  %s8 = sld [smem:[#allocation0]]
  $region69: #{transformer_decoder.24} parent=0
    _
  %s10 = ssub.s32 1, %s8
  %s11 = scalar_select 0, %s10, %s8
  loop: start=0, step=1, limit=4
  $region2: #{transformer_decoder.24} parent=0 // loop_pre_header
    _
  $region3: #{transformer_decoder.24} parent=0 // loop_header
    %s13 = sphi 0, %s17
    %p14 = scmp.ge.s32.totalorder %s13, 4
    %s20 = sphi 0, %s32
    %s21 = sphi 0, %s28
    %s22 = sphi 0, %s20
    %s23 = sphi 0, %s21
    %s24 = sphi 0, %s22
    %s25 = sphi 0, %s23
    %s35 = sphi 0, %s37
    %s38 = sphi 0, %s35
    %s39 = sphi 0, %s38
    %s55 = sphi 0, %s39
    %s61 = sphi 0, %s63
    %s64 = sphi 0, %s61
    %s65 = sphi 0, %s64
    %s81 = sphi 0, %s65
    %s87 = sphi 0, %s89
    %s90 = sphi 0, %s87
    %s91 = sphi 0, %s90
    %s107 = sphi 0, %s91
    %s113 = sphi 0, %s115
    %s116 = sphi 0, %s113
    %s117 = sphi 0, %s116
    %s133 = sphi 0, %s117
    %s137 = sphi 0, %s137
    %s139 = sphi 0, %s137
    %s140 = sphi 0, %s139
    %s154 = sphi 0, %s140
    %s158 = sphi 0, %s158
    %s160 = sphi 0, %s158
    %s161 = sphi 0, %s160
    %s175 = sphi 0, %s161
    %s179 = sphi 0, %s179
    %s181 = sphi 0, %s179
    %s182 = sphi 0, %s181
    %s196 = sphi 0, %s182
    %s202 = sphi 0, %s204
    %s205 = sphi 0, %s202
    %s206 = sphi 0, %s205
    %s222 = sphi 0, %s206
  $region4: #{transformer_decoder.24} parent=0 // loop_header_branch
    %16 = sbr.rel (%p14) target = $region8
  $region5: #{transformer_decoder.24} parent=0 // loop_body
    %s18 = ssub.s32 %s13, 1
    %s19 = ssub.s32 %s13, 2
    %s26 = sadd.s32 1, %s21
    %p27 = scmp.ge.s32.totalorder %s26, 1
    %s28 = scalar_select %p27, 0, %s26
    %s29 = sadd.s32 1, %s20
    %s30 = scalar_select %p27, %s29, %s20
    %p31 = scmp.ge.s32.totalorder %s30, 2
    %s32 = scalar_select %p31, 0, %s30
    %s33 = ssub.s32 %s20, %s32
    %p34 = scmp.eq.s32.totalorder %s33, 0
    %s36 = sadd.s32 %s35, 1
    %s37 = scalar_select %p34, %s35, %s36
    %p40 = pneg %p34
    %p41 = scmp.eq.s32.totalorder %s13, 1
    %p42 = por %p40, %p41
    %p43 = scmp.ne.s32.totalorder %s35, %s38
    %p44 = scmp.eq.s32.totalorder %s13, 0
    %p45 = por %p43, %p44
    %p46 = scmp.ne.s32.totalorder %s35, %s38
    %p47 = scmp.eq.s32.totalorder %s18, 1
    %p48 = por %p46, %p47
    %p49 = scmp.ne.s32.totalorder %s38, %s39
    %p50 = scmp.eq.s32.totalorder %s18, 0
    %p51 = por %p49, %p50
    %p52 = scmp.ne.s32.totalorder %s38, %s39
    %p53 = scmp.eq.s32.totalorder %s19, 1
    %p54 = por %p52, %p53
    %p56 = scmp.ne.s32.totalorder %s39, %s55
    %p57 = scmp.eq.s32.totalorder %s19, 0
    %p58 = por %p56, %p57
    %s59 = ssub.s32 %s21, %s28
    %p60 = scmp.eq.s32.totalorder %s59, 0
    %s62 = sadd.s32 %s61, 1
    %s63 = scalar_select %p60, %s61, %s62
    %p66 = pneg %p60
    %p67 = scmp.eq.s32.totalorder %s13, 1
    %p68 = por %p66, %p67
    %p69 = scmp.ne.s32.totalorder %s61, %s64
    %p70 = scmp.eq.s32.totalorder %s13, 0
    %p71 = por %p69, %p70
    %p72 = scmp.ne.s32.totalorder %s61, %s64
    %p73 = scmp.eq.s32.totalorder %s18, 1
    %p74 = por %p72, %p73
    %p75 = scmp.ne.s32.totalorder %s64, %s65
    %p76 = scmp.eq.s32.totalorder %s18, 0
    %p77 = por %p75, %p76
    %p78 = scmp.ne.s32.totalorder %s64, %s65
    %p79 = scmp.eq.s32.totalorder %s19, 1
    %p80 = por %p78, %p79
    %p82 = scmp.ne.s32.totalorder %s65, %s81
    %p83 = scmp.eq.s32.totalorder %s19, 0
    %p84 = por %p82, %p83
    %s85 = ssub.s32 %s21, %s28
    %p86 = scmp.eq.s32.totalorder %s85, 0
    %s88 = sadd.s32 %s87, 1
    %s89 = scalar_select %p86, %s87, %s88
    %p92 = pneg %p86
    %p93 = scmp.eq.s32.totalorder %s13, 1
    %p94 = por %p92, %p93
    %p95 = scmp.ne.s32.totalorder %s87, %s90
    %p96 = scmp.eq.s32.totalorder %s13, 0
    %p97 = por %p95, %p96
    %p98 = scmp.ne.s32.totalorder %s87, %s90
    %p99 = scmp.eq.s32.totalorder %s18, 1
    %p100 = por %p98, %p99
    %p101 = scmp.ne.s32.totalorder %s90, %s91
    %p102 = scmp.eq.s32.totalorder %s18, 0
    %p103 = por %p101, %p102
    %p104 = scmp.ne.s32.totalorder %s90, %s91
    %p105 = scmp.eq.s32.totalorder %s19, 1
    %p106 = por %p104, %p105
    %p108 = scmp.ne.s32.totalorder %s91, %s107
    %p109 = scmp.eq.s32.totalorder %s19, 0
    %p110 = por %p108, %p109
    %s111 = ssub.s32 %s21, %s28
    %p112 = scmp.eq.s32.totalorder %s111, 0
    %s114 = sadd.s32 %s113, 1
    %s115 = scalar_select %p112, %s113, %s114
    %p118 = pneg %p112
    %p119 = scmp.eq.s32.totalorder %s13, 1
    %p120 = por %p118, %p119
    %p121 = scmp.ne.s32.totalorder %s113, %s116
    %p122 = scmp.eq.s32.totalorder %s13, 0
    %p123 = por %p121, %p122
    %p124 = scmp.ne.s32.totalorder %s113, %s116
    %p125 = scmp.eq.s32.totalorder %s18, 1
    %p126 = por %p124, %p125
    %p127 = scmp.ne.s32.totalorder %s116, %s117
    %p128 = scmp.eq.s32.totalorder %s18, 0
    %p129 = por %p127, %p128
    %p130 = scmp.ne.s32.totalorder %s116, %s117
    %p131 = scmp.eq.s32.totalorder %s19, 1
    %p132 = por %p130, %p131
    %p134 = scmp.ne.s32.totalorder %s117, %s133
    %p135 = scmp.eq.s32.totalorder %s19, 0
    %p136 = por %p134, %p135
    %s138 = sadd.s32 %s137, 1
    %p141 = scmp.eq.s32.totalorder %s13, 1
    %p142 = scmp.ne.s32.totalorder %s137, %s139
    %p143 = scmp.eq.s32.totalorder %s13, 0
    %p144 = por %p142, %p143
    %p145 = scmp.ne.s32.totalorder %s137, %s139
    %p146 = scmp.eq.s32.totalorder %s18, 1
    %p147 = por %p145, %p146
    %p148 = scmp.ne.s32.totalorder %s139, %s140
    %p149 = scmp.eq.s32.totalorder %s18, 0
    %p150 = por %p148, %p149
    %p151 = scmp.ne.s32.totalorder %s139, %s140
    %p152 = scmp.eq.s32.totalorder %s19, 1
    %p153 = por %p151, %p152
    %p155 = scmp.ne.s32.totalorder %s140, %s154
    %p156 = scmp.eq.s32.totalorder %s19, 0
    %p157 = por %p155, %p156
    %s159 = sadd.s32 %s158, 1
    %p162 = scmp.eq.s32.totalorder %s13, 1
    %p163 = scmp.ne.s32.totalorder %s158, %s160
    %p164 = scmp.eq.s32.totalorder %s13, 0
    %p165 = por %p163, %p164
    %p166 = scmp.ne.s32.totalorder %s158, %s160
    %p167 = scmp.eq.s32.totalorder %s18, 1
    %p168 = por %p166, %p167
    %p169 = scmp.ne.s32.totalorder %s160, %s161
    %p170 = scmp.eq.s32.totalorder %s18, 0
    %p171 = por %p169, %p170
    %p172 = scmp.ne.s32.totalorder %s160, %s161
    %p173 = scmp.eq.s32.totalorder %s19, 1
    %p174 = por %p172, %p173
    %p176 = scmp.ne.s32.totalorder %s161, %s175
    %p177 = scmp.eq.s32.totalorder %s19, 0
    %p178 = por %p176, %p177
    %s180 = sadd.s32 %s179, 1
    %p183 = scmp.eq.s32.totalorder %s13, 1
    %p184 = scmp.ne.s32.totalorder %s179, %s181
    %p185 = scmp.eq.s32.totalorder %s13, 0
    %p186 = por %p184, %p185
    %p187 = scmp.ne.s32.totalorder %s179, %s181
    %p188 = scmp.eq.s32.totalorder %s18, 1
    %p189 = por %p187, %p188
    %p190 = scmp.ne.s32.totalorder %s181, %s182
    %p191 = scmp.eq.s32.totalorder %s18, 0
    %p192 = por %p190, %p191
    %p193 = scmp.ne.s32.totalorder %s181, %s182
    %p194 = scmp.eq.s32.totalorder %s19, 1
    %p195 = por %p193, %p194
    %p197 = scmp.ne.s32.totalorder %s182, %s196
    %p198 = scmp.eq.s32.totalorder %s19, 0
    %p199 = por %p197, %p198
    %s200 = ssub.s32 %s20, %s32
    %p201 = scmp.eq.s32.totalorder %s200, 0
    %s203 = sadd.s32 %s202, 1
    %s204 = scalar_select %p201, %s202, %s203
    %p207 = pneg %p201
    %p208 = scmp.eq.s32.totalorder %s13, 1
    %p209 = por %p207, %p208
    %p210 = scmp.ne.s32.totalorder %s202, %s205
    %p211 = scmp.eq.s32.totalorder %s13, 0
    %p212 = por %p210, %p211
    %p213 = scmp.ne.s32.totalorder %s202, %s205
    %p214 = scmp.eq.s32.totalorder %s18, 1
    %p215 = por %p213, %p214
    %p216 = scmp.ne.s32.totalorder %s205, %s206
    %p217 = scmp.eq.s32.totalorder %s18, 0
    %p218 = por %p216, %p217
    %p219 = scmp.ne.s32.totalorder %s205, %s206
    %p220 = scmp.eq.s32.totalorder %s19, 1
    %p221 = por %p219, %p220
    %p223 = scmp.ne.s32.totalorder %s206, %s222
    %p224 = scmp.eq.s32.totalorder %s19, 0
    %p225 = por %p223, %p224
    %p226 = scmp.le.s32.totalorder 1, %s13
    %p227 = scmp.lt.s32.totalorder %s13, 3
    %p228 = pnand %p226, %p227
    %p229 = pneg %p228
    // Predicated region
    $region9: #{transformer_decoder.24} parent=5 // pred_check
      _
    $region10: #{transformer_decoder.24} parent=5 // pred_check_branch
      %231 = sbr.rel (%p228) target = $region12
    $region11: #{transformer_decoder.24} parent=5 // pred_region
      %s232 = ssub.s32 %s13, 1
      // Predicated region
      $region13: #{transformer_decoder.24} parent=11 // pred_check
        %p233 = pneg %p77
      $region14: #{transformer_decoder.24} parent=11 // pred_check_branch
        %235 = sbr.rel (%p233) target = $region16
      $region15: #{transformer_decoder.24} parent=11 // pred_region
        %p236 = scmp.lt.s32.totalorder %s23, 0
        %s237 = scalar_select %p236, %s23, 0
        %s238 = smul.addr %s237, 4
        %s239 = scalar_lea.vmem %s1, %s238
      $region16: #{transformer_decoder.24} parent=11 // pred_fallthru
        _
      // Predicated region
      $region17: #{transformer_decoder.24} parent=11 // pred_check
        %p240 = pneg %p103
      $region18: #{transformer_decoder.24} parent=11 // pred_check_branch
        %242 = sbr.rel (%p240) target = $region20
      $region19: #{transformer_decoder.24} parent=11 // pred_region
        %p243 = scmp.lt.s32.totalorder %s23, 0
        %s244 = scalar_select %p243, %s23, 0
        %s245 = scalar_lea.vmem %s2, %s244
      $region20: #{transformer_decoder.24} parent=11 // pred_fallthru
        _
      // Predicated region
      $region21: #{transformer_decoder.24} parent=11 // pred_check
        %p246 = pneg %p129
      $region22: #{transformer_decoder.24} parent=11 // pred_check_branch
        %248 = sbr.rel (%p246) target = $region24
      $region23: #{transformer_decoder.24} parent=11 // pred_region
        %s249 = smul.u32 8, %s23
        %p250 = scmp.lt.s32.totalorder %s249, 7
        %s251 = scalar_select %p250, %s249, 7
        %s252 = smul.addr %s251, 4
        %s253 = scalar_lea.vmem %s3, %s252
        %s254 = smul.u32 8, %s23
      $region24: #{transformer_decoder.24} parent=11 // pred_fallthru
        _
      // Predicated region
      $region25: #{transformer_decoder.24} parent=11 // pred_check
        %p255 = pneg %p150
      $region26: #{transformer_decoder.24} parent=11 // pred_check_branch
        %257 = sbr.rel (%p255) target = $region28
      $region27: #{transformer_decoder.24} parent=11 // pred_region
        _
      $region28: #{transformer_decoder.24} parent=11 // pred_fallthru
        _
      // Predicated region
      $region29: #{transformer_decoder.24} parent=11 // pred_check
        %p258 = pneg %p171
      $region30: #{transformer_decoder.24} parent=11 // pred_check_branch
        %260 = sbr.rel (%p258) target = $region32
      $region31: #{transformer_decoder.24} parent=11 // pred_region
        _
      $region32: #{transformer_decoder.24} parent=11 // pred_fallthru
        _
      // Predicated region
      $region33: #{transformer_decoder.24} parent=11 // pred_check
        %p261 = pneg %p192
      $region34: #{transformer_decoder.24} parent=11 // pred_check_branch
        %263 = sbr.rel (%p261) target = $region36
      $region35: #{transformer_decoder.24} parent=11 // pred_region
        _
      $region36: #{transformer_decoder.24} parent=11 // pred_fallthru
        _
    $region12: #{transformer_decoder.24} parent=5 // pred_fallthru
      _
    %p264 = scmp.lt.s32.totalorder %s13, 2
    // Predicated region
    $region37: #{transformer_decoder.24} parent=5 // pred_check
      %p265 = pneg %p264
    $region38: #{transformer_decoder.24} parent=5 // pred_check_branch
      %267 = sbr.rel (%p265) target = $region40
    $region39: #{transformer_decoder.24} parent=5 // pred_region
      // Predicated region
      $region41: #{transformer_decoder.24} parent=39 // pred_check
        %p268 = pneg %p45
      $region42: #{transformer_decoder.24} parent=39 // pred_check_branch
        %270 = sbr.rel (%p268) target = $region44
      $region43: #{transformer_decoder.24} parent=39 // pred_region
        %p271 = scmp.lt.s32.totalorder %s20, 1
        %s272 = scalar_select %p271, %s20, 1
        %s273 = smul.addr %s272, 8
        %s274 = scalar_lea.vmem %s0, %s273
      $region44: #{transformer_decoder.24} parent=39 // pred_fallthru
        _
    $region40: #{transformer_decoder.24} parent=5 // pred_fallthru
      _
    %p275 = scmp.le.s32.totalorder 1, %s13
    %p276 = scmp.lt.s32.totalorder %s13, 3
    %p277 = pnand %p275, %p276
    %p278 = pneg %p277
    // Predicated region
    $region45: #{transformer_decoder.24} parent=5 // pred_check
      _
    $region46: #{transformer_decoder.24} parent=5 // pred_check_branch
      %280 = sbr.rel (%p277) target = $region48
    $region47: #{transformer_decoder.24} parent=5 // pred_region
      %s281 = ssub.s32 %s13, 1
      %p282 = scmp.lt.s32.totalorder %s22, 1
      %s283 = scalar_select %p282, %s22, 1
      %s284 = smul.addr %s283, 8
      %s285 = scalar_lea.vmem %s0, %s284
      %p286 = pneg %p51
      %p287 = pneg %p48
      %p288 = scmp.lt.s32.totalorder %s23, 0
      %s289 = scalar_select %p288, %s23, 0
      %s290 = smul.addr %s289, 4
      %s291 = scalar_lea.vmem %s1, %s290
      %p292 = pneg %p77
      %p293 = pneg %p74
      %p294 = scmp.lt.s32.totalorder %s23, 0
      %s295 = scalar_select %p294, %s23, 0
      %s296 = scalar_lea.vmem %s2, %s295
      %p297 = pneg %p103
      %p298 = pneg %p100
      %s299 = smul.u32 8, %s23
      %p300 = scmp.lt.s32.totalorder %s299, 7
      %s301 = scalar_select %p300, %s299, 7
      %s302 = smul.addr %s301, 4
      %s303 = scalar_lea.vmem %s3, %s302
      %p304 = pneg %p129
      %p305 = pneg %p126
      %p306 = pneg %p150
      %p307 = pneg %p147
      %p308 = pneg %p171
      %p309 = pneg %p168
      %p310 = pneg %p192
      %p311 = pneg %p189
      %p312 = pneg %p218
      %p313 = pneg %p215
      %p314 = scmp.lt.s32.totalorder %s22, 1
      %s315 = scalar_select %p314, %s22, 1
      %s316 = smul.addr %s315, 8
      %s317 = scalar_lea.vmem %s7, %s316
      %p318 = scmp.lt.s32.totalorder %s22, 1
      %s319 = scalar_select %p318, %s22, 1
      %s320 = smul.addr %s319, 8
      %s321 = scalar_lea.vmem %s0, %s320
      %p322 = scmp.lt.s32.totalorder %s23, 0
      %s323 = scalar_select %p322, %s23, 0
      %s324 = smul.addr %s323, 4
      %s325 = scalar_lea.vmem %s1, %s324
      %p326 = scmp.lt.s32.totalorder %s23, 0
      %s327 = scalar_select %p326, %s23, 0
      %s328 = scalar_lea.vmem %s2, %s327
      %s329 = smul.u32 8, %s23
      %p330 = scmp.lt.s32.totalorder %s329, 7
      %s331 = scalar_select %p330, %s329, 7
      %s332 = smul.addr %s331, 4
      %s333 = scalar_lea.vmem %s3, %s332
      %s334 = smul.u32 8, %s23
      %p335 = scmp.lt.s32.totalorder %s22, 1
      %s336 = scalar_select %p335, %s22, 1
      %s337 = smul.addr %s336, 8
      %s338 = scalar_lea.vmem %s7, %s337
      %p340 = scmp.eq.s32.totalorder %s23, 0
      // Predicated region
      $region49: #{transformer_decoder.24} parent=47 // pred_check
        %p341 = pneg %p340
      $region50: #{transformer_decoder.24} parent=47 // pred_check_branch
        %343 = sbr.rel (%p341) target = $region52
      $region51: #{transformer_decoder.24} parent=47 // pred_region
        %vm344 = vcmask 261120
        %345 = vst.msk [vmem:[#allocation2] sm:$0xff] %vm344, 0.0
      $region52: #{transformer_decoder.24} parent=47 // pred_fallthru
        _
      %v346 = vld [vmem:[%s321] sm:$0xff]
      %v347 = vpack.c.bf16 %v346, %v346
      %v348 = vld [vmem:[%s325] sm:$0xf]
      %v349 = vld [vmem:[%s325 + $0x4] sm:$0xf]
      %v350 = vld [vmem:[%s325 + $0x8] sm:$0xf]
      %v351 = vld [vmem:[%s325 + $0xc] sm:$0xf]
      %v352 = vld [vmem:[%s328] sm:$0x1]
      %v354 = vlaneseq
      %v355 = vshrl.u32 %v354, 7
      %v356 = vsub.s32 0, %v355
      %v357 = vrot.slane %v352, %v356
      %v363 = vunpack.c.l.b16 %v348
      %v364 = vunpack.c.l.b16 %v349
      %v365 = vunpack.c.l.b16 %v350
      %v366 = vunpack.c.l.b16 %v351
      %v367 = vpack.c.b16 %v364, %v363
      %v368 = vpack.c.b16 %v366, %v365
      %vm371 = vcmask 261120
      %v373 = vsel %vm371, %v347, 0
      %375 = vmatprep.subr.bf16.mxu0 0
      %376 = vmatpush1.bf16.msra.mxu0 %v367
      %377 = vmatprep.subr.bf16.mxu0 0
      %378 = vmatpush1.bf16.msra.mxu0 %v368
      %379 = vmatprep.subr.bf16.mxu0 0
      %380 = vmatpush1.bf16.msra.mxu0 0
      %381 = vmatprep.subr.bf16.mxu0 0
      %382 = vmatpush1.bf16.msra.mxu0 0
      %383 = vmatprep.subr.bf16.mxu0 0
      %384 = vmatpush1.bf16.msra.mxu0 0
      %385 = vmatprep.subr.bf16.mxu0 0
      %386 = vmatpush1.bf16.msra.mxu0 0
      %387 = vmatprep.subr.bf16.mxu0 0
      %388 = vmatpush1.bf16.msra.mxu0 0
      %389 = vmatprep.subr.bf16.mxu0 0
      %390 = vmatpush1.bf16.msra.mxu0 0
      %391 = vmatprep.subr.bf16.mxu0 0
      %392 = vmatpush1.bf16.msra.mxu0 0
      %393 = vmatprep.subr.bf16.mxu0 0
      %394 = vmatpush1.bf16.msra.mxu0 0
      %395 = vmatprep.subr.bf16.mxu0 0
      %396 = vmatpush1.bf16.msra.mxu0 0
      %397 = vmatprep.subr.bf16.mxu0 0
      %398 = vmatpush1.bf16.msra.mxu0 0
      %399 = vmatprep.subr.bf16.mxu0 0
      %400 = vmatpush1.bf16.msra.mxu0 0
      %401 = vmatprep.subr.bf16.mxu0 0
      %402 = vmatpush1.bf16.msra.mxu0 0
      %403 = vmatprep.subr.bf16.mxu0 0
      %404 = vmatpush1.bf16.msra.mxu0 0
      %405 = vmatprep.subr.bf16.mxu0 0
      %406 = vmatpush1.bf16.msra.mxu0 0
      %407 = vmatprep.mubr.bf16.mxu0 0
      %408 = vmatmul.mubr.bf16.gmra.mrb[0].mxu0 %v373
      %v409 = vpop.f32.mrb[0].mxu0
      %v410 = vadd.f32 %v357, %v409
      %v411 = vpop.f32.mrb[0].mxu0
      %v412 = vpop.f32.mrb[0].mxu0
      %v413 = vpop.f32.mrb[0].mxu0
      %414 = vdwg.mxu0
      %v415 = vmax.f32 %v410, 0.0
      %v416 = vpack.c.bf16 %v415, %v415
      %v417 = vld [vmem:[#allocation2] sm:$0xff]
      %v418 = vld [vmem:[%s333] sm:$0xf]
      %v419 = vld [vmem:[%s333 + $0x4] sm:$0xf]
      %v420 = vld [vmem:[%s333 + $0x8] sm:$0xf]
      %v421 = vld [vmem:[%s333 + $0xc] sm:$0xf]
      %v422 = vld [vmem:[%s333 + $0x10] sm:$0xf]
      %v423 = vld [vmem:[%s333 + $0x14] sm:$0xf]
      %v424 = vld [vmem:[%s333 + $0x18] sm:$0xf]
      %v425 = vld [vmem:[%s333 + $0x1c] sm:$0xf]
      %v434 = vunpack.c.l.b16 %v418
      %v435 = vunpack.c.l.b16 %v419
      %v436 = vunpack.c.l.b16 %v420
      %v437 = vunpack.c.l.b16 %v421
      %v438 = vunpack.c.l.b16 %v422
      %v439 = vunpack.c.l.b16 %v423
      %v440 = vunpack.c.l.b16 %v424
      %v441 = vunpack.c.l.b16 %v425
      %v442 = vpack.c.b16 %v435, %v434
      %v443 = vpack.c.b16 %v437, %v436
      %v444 = vpack.c.b16 %v439, %v438
      %v445 = vpack.c.b16 %v441, %v440
      %vm450 = vcmask 523264
      %v452 = vsel %vm450, %v416, 0
      %454 = vmatprep.subr.bf16.mxu0 0
      %455 = vmatpush1.bf16.msra.mxu0 %v442
      %456 = vmatprep.subr.bf16.mxu0 0
      %457 = vmatpush1.bf16.msra.mxu0 %v443
      %458 = vmatprep.subr.bf16.mxu0 0
      %459 = vmatpush1.bf16.msra.mxu0 %v444
      %460 = vmatprep.subr.bf16.mxu0 0
      %461 = vmatpush1.bf16.msra.mxu0 %v445
      %462 = vmatprep.subr.bf16.mxu0 0
      %463 = vmatpush1.bf16.msra.mxu0 0
      %464 = vmatprep.subr.bf16.mxu0 0
      %465 = vmatpush1.bf16.msra.mxu0 0
      %466 = vmatprep.subr.bf16.mxu0 0
      %467 = vmatpush1.bf16.msra.mxu0 0
      %468 = vmatprep.subr.bf16.mxu0 0
      %469 = vmatpush1.bf16.msra.mxu0 0
      %470 = vmatprep.subr.bf16.mxu0 0
      %471 = vmatpush1.bf16.msra.mxu0 0
      %472 = vmatprep.subr.bf16.mxu0 0
      %473 = vmatpush1.bf16.msra.mxu0 0
      %474 = vmatprep.subr.bf16.mxu0 0
      %475 = vmatpush1.bf16.msra.mxu0 0
      %476 = vmatprep.subr.bf16.mxu0 0
      %477 = vmatpush1.bf16.msra.mxu0 0
      %478 = vmatprep.subr.bf16.mxu0 0
      %479 = vmatpush1.bf16.msra.mxu0 0
      %480 = vmatprep.subr.bf16.mxu0 0
      %481 = vmatpush1.bf16.msra.mxu0 0
      %482 = vmatprep.subr.bf16.mxu0 0
      %483 = vmatpush1.bf16.msra.mxu0 0
      %484 = vmatprep.subr.bf16.mxu0 0
      %485 = vmatpush1.bf16.msra.mxu0 0
      %486 = vmatprep.mubr.bf16.mxu0 0
      %487 = vmatmul.mubr.bf16.gmra.mrb[0].mxu0 %v452
      %v488 = vpop.f32.mrb[0].mxu0
      %v489 = vadd.f32 0.0, %v488
      %v490 = vpop.f32.mrb[0].mxu0
      %v491 = vpop.f32.mrb[0].mxu0
      %v492 = vpop.f32.mrb[0].mxu0
      %493 = vdwg.mxu0
      %v494 = vadd.f32 %v417, %v489
      %495 = vst.msk [vmem:[#allocation2] sm:$0xff] %vm371, %v494
      // Predicated region
      $region53: #{transformer_decoder.24} parent=47 // pred_check
        %p496 = pneg %p340
      $region54: #{transformer_decoder.24} parent=47 // pred_check_branch
        %498 = sbr.rel (%p496) target = $region56
      $region55: #{transformer_decoder.24} parent=47 // pred_region
        %v499 = vld [vmem:[#allocation2] sm:$0xff]
        %v500 = vld [vmem:[%s4] sm:$0x1]
        %v502 = vlaneseq
        %v503 = vshrl.u32 %v502, 7
        %v504 = vsub.s32 0, %v503
        %v505 = vrot.slane %v500, %v504
        %v507 = vadd.f32 %v499, %v505
        %v508 = vld [vmem:[%s321] sm:$0xff]
        %v509 = vadd.f32 %v507, %v508
        %v510 = vsel %vm371, %v509, 0.0
        %511 = vadd.xlane.f32.xlu0 %v510
        %v512 = vpop.xlane.xlu0 %511
        %v513 = vrcp.pop 32.0
        %v514 = vmul.f32 %v512, %v513
        %v515 = vsub.f32 %v509, %v514
        %v516 = vmul.f32 %v515, %v515
        %v517 = vsel %vm371, %v516, 0.0
        %518 = vadd.xlane.f32.xlu0 %v517
        %v519 = vpop.xlane.xlu0 %518
        %v520 = vmul.f32 %v519, %v513
        %v521 = vadd.f32 %v520, 1e-05
        %v522 = vrsqrt.pop %v521
        %v523 = vmul.f32 %v515, %v522
        %v524 = vld [vmem:[%s5] sm:$0x1]
        %v526 = vlaneseq
        %v527 = vshrl.u32 %v526, 7
        %v528 = vsub.s32 0, %v527
        %v529 = vrot.slane %v524, %v528
        %v531 = vmul.f32 %v523, %v529
        %v532 = vld [vmem:[%s6] sm:$0x1]
        %v534 = vlaneseq
        %v535 = vshrl.u32 %v534, 7
        %v536 = vsub.s32 0, %v535
        %v537 = vrot.slane %v532, %v536
        %v539 = vadd.f32 %v531, %v537
        %540 = vst.msk [vmem:[%s338] sm:$0xff] %vm371, %v539
      $region56: #{transformer_decoder.24} parent=47 // pred_fallthru
        _
      %p541 = scmp.lt.s32.totalorder %s22, 1
      %s542 = scalar_select %p541, %s22, 1
      %s543 = smul.addr %s542, 8
      %s544 = scalar_lea.vmem %s7, %s543
      // Predicated region
      $region57: #{transformer_decoder.24} parent=47 // pred_check
        %p545 = pneg %p215
      $region58: #{transformer_decoder.24} parent=47 // pred_check_branch
        %547 = sbr.rel (%p545) target = $region60
      $region59: #{transformer_decoder.24} parent=47 // pred_region
        _
      $region60: #{transformer_decoder.24} parent=47 // pred_fallthru
        _
    $region48: #{transformer_decoder.24} parent=5 // pred_fallthru
      _
    %p548 = scmp.le.s32.totalorder 2, %s13
    // Predicated region
    $region61: #{transformer_decoder.24} parent=5 // pred_check
      %p549 = pneg %p548
    $region62: #{transformer_decoder.24} parent=5 // pred_check_branch
      %551 = sbr.rel (%p549) target = $region64
    $region63: #{transformer_decoder.24} parent=5 // pred_region
      %s552 = ssub.s32 %s13, 2
      // Predicated region
      $region65: #{transformer_decoder.24} parent=63 // pred_check
        %p553 = pneg %p221
      $region66: #{transformer_decoder.24} parent=63 // pred_check_branch
        %555 = sbr.rel (%p553) target = $region68
      $region67: #{transformer_decoder.24} parent=63 // pred_region
        %p556 = scmp.lt.s32.totalorder %s24, 1
        %s557 = scalar_select %p556, %s24, 1
        %s558 = smul.addr %s557, 8
        %s559 = scalar_lea.vmem %s7, %s558
      $region68: #{transformer_decoder.24} parent=63 // pred_fallthru
        _
    $region64: #{transformer_decoder.24} parent=5 // pred_fallthru
      _
  $region6: #{transformer_decoder.24} parent=0 // loop_footer
    %s17 = sadd.s32 1, %s13
  $region7: #{transformer_decoder.24} parent=0 // loop_footer_branch
    %12 = sbr.rel target = $region3
  $region8: #{transformer_decoder.24} parent=0 // loop_exit
    _

// kernel: transformer_decoder.33
$region0: #{transformer_decoder.33}
  #allocation0 [shape = 'u32[]', space=smem, size = 0x4, offset = 0x4, fixed_abs, tag = 'smem constant byte address 0x4 - core index']
  #allocation1 [shape = 'u32[144,128]{1,0:T(1,128)}', space=vmem, size = 0x12000, scoped, tag = 'internal scratch']
  %s0 = inlined_call_operand.vmem [shape: f32[16,32], index: 0, kind: input, shape index: {}]
  %s1 = inlined_call_operand.vmem [shape: f32[1,32], index: 1, kind: input, shape index: {}]
  %s2 = inlined_call_operand.vmem [shape: f32[1,32], index: 2, kind: input, shape index: {}]
  %s3 = inlined_call_operand.hbm [shape: f32[16,32], index: 3, kind: output, shape index: {}]
  %s4 = sld [smem:[#allocation0]]
  $region45: #{transformer_decoder.33} parent=0
    _
  %s6 = ssub.s32 1, %s4
  %s7 = scalar_select 0, %s6, %s4
  $region1: #{transformer_decoder.33} parent=0
    #allocation2 [shape = 'u8[8192]{0}', space=vmem, size = 0x2000, scoped, tag = 'output window, operand 0']
    #allocation3 [shape = 's32[2]{0}', space=sflag, size = 0x8, scoped, tag = 'scoped memory for transformer_decoder.33']
    %8 = vsyncpa [#allocation3], 0
    %s9 = scalar_lea.sflag [#allocation3], 1
    %10 = vsyncpa %s9, 0
    loop: start=0, step=1, limit=4
    $region2: #{transformer_decoder.33} parent=1 // loop_pre_header
      _
    $region3: #{transformer_decoder.33} parent=1 // loop_header
      %s12 = sphi 0, %s16
      %p13 = scmp.ge.s32.totalorder %s12, 4
      %s22 = sphi 0, %s24
      %s25 = sphi 0, %s22
      %s26 = sphi 0, %s25
      %s42 = sphi 0, %s26
      %s46 = sphi 0, %s46
      %s48 = sphi 0, %s46
      %s49 = sphi 0, %s48
      %s63 = sphi 0, %s49
      %s67 = sphi 0, %s67
      %s69 = sphi 0, %s67
      %s70 = sphi 0, %s69
      %s84 = sphi 0, %s70
      %s90 = sphi 0, %s92
      %s93 = sphi 0, %s90
      %s94 = sphi 0, %s93
      %s110 = sphi 0, %s94
    $region4: #{transformer_decoder.33} parent=1 // loop_header_branch
      %15 = sbr.rel (%p13) target = $region8
    $region5: #{transformer_decoder.33} parent=1 // loop_body
      %s17 = ssub.s32 %s12, 1
      %s18 = ssub.s32 %s12, 2
      %s19 = sadd.s32 %s12, 1
      %s20 = ssub.s32 %s12, %s19
      %p21 = scmp.eq.s32.totalorder %s20, 0
      %s23 = sadd.s32 %s22, 1
      %s24 = scalar_select %p21, %s22, %s23
      %p27 = pneg %p21
      %p28 = scmp.eq.s32.totalorder %s12, 1
      %p29 = por %p27, %p28
      %p30 = scmp.ne.s32.totalorder %s22, %s25
      %p31 = scmp.eq.s32.totalorder %s12, 0
      %p32 = por %p30, %p31
      %p33 = scmp.ne.s32.totalorder %s22, %s25
      %p34 = scmp.eq.s32.totalorder %s17, 1
      %p35 = por %p33, %p34
      %p36 = scmp.ne.s32.totalorder %s25, %s26
      %p37 = scmp.eq.s32.totalorder %s17, 0
      %p38 = por %p36, %p37
      %p39 = scmp.ne.s32.totalorder %s25, %s26
      %p40 = scmp.eq.s32.totalorder %s18, 1
      %p41 = por %p39, %p40
      %p43 = scmp.ne.s32.totalorder %s26, %s42
      %p44 = scmp.eq.s32.totalorder %s18, 0
      %p45 = por %p43, %p44
      %s47 = sadd.s32 %s46, 1
      %p50 = scmp.eq.s32.totalorder %s12, 1
      %p51 = scmp.ne.s32.totalorder %s46, %s48
      %p52 = scmp.eq.s32.totalorder %s12, 0
      %p53 = por %p51, %p52
      %p54 = scmp.ne.s32.totalorder %s46, %s48
      %p55 = scmp.eq.s32.totalorder %s17, 1
      %p56 = por %p54, %p55
      %p57 = scmp.ne.s32.totalorder %s48, %s49
      %p58 = scmp.eq.s32.totalorder %s17, 0
      %p59 = por %p57, %p58
      %p60 = scmp.ne.s32.totalorder %s48, %s49
      %p61 = scmp.eq.s32.totalorder %s18, 1
      %p62 = por %p60, %p61
      %p64 = scmp.ne.s32.totalorder %s49, %s63
      %p65 = scmp.eq.s32.totalorder %s18, 0
      %p66 = por %p64, %p65
      %s68 = sadd.s32 %s67, 1
      %p71 = scmp.eq.s32.totalorder %s12, 1
      %p72 = scmp.ne.s32.totalorder %s67, %s69
      %p73 = scmp.eq.s32.totalorder %s12, 0
      %p74 = por %p72, %p73
      %p75 = scmp.ne.s32.totalorder %s67, %s69
      %p76 = scmp.eq.s32.totalorder %s17, 1
      %p77 = por %p75, %p76
      %p78 = scmp.ne.s32.totalorder %s69, %s70
      %p79 = scmp.eq.s32.totalorder %s17, 0
      %p80 = por %p78, %p79
      %p81 = scmp.ne.s32.totalorder %s69, %s70
      %p82 = scmp.eq.s32.totalorder %s18, 1
      %p83 = por %p81, %p82
      %p85 = scmp.ne.s32.totalorder %s70, %s84
      %p86 = scmp.eq.s32.totalorder %s18, 0
      %p87 = por %p85, %p86
      %s88 = ssub.s32 %s12, %s19
      %p89 = scmp.eq.s32.totalorder %s88, 0
      %s91 = sadd.s32 %s90, 1
      %s92 = scalar_select %p89, %s90, %s91
      %p95 = pneg %p89
      %p96 = scmp.eq.s32.totalorder %s12, 1
      %p97 = por %p95, %p96
      %p98 = scmp.ne.s32.totalorder %s90, %s93
      %p99 = scmp.eq.s32.totalorder %s12, 0
      %p100 = por %p98, %p99
      %p101 = scmp.ne.s32.totalorder %s90, %s93
      %p102 = scmp.eq.s32.totalorder %s17, 1
      %p103 = por %p101, %p102
      %p104 = scmp.ne.s32.totalorder %s93, %s94
      %p105 = scmp.eq.s32.totalorder %s17, 0
      %p106 = por %p104, %p105
      %p107 = scmp.ne.s32.totalorder %s93, %s94
      %p108 = scmp.eq.s32.totalorder %s18, 1
      %p109 = por %p107, %p108
      %p111 = scmp.ne.s32.totalorder %s94, %s110
      %p112 = scmp.eq.s32.totalorder %s18, 0
      %p113 = por %p111, %p112
      %p114 = scmp.le.s32.totalorder 1, %s12
      %p115 = scmp.lt.s32.totalorder %s12, 3
      %p116 = pnand %p114, %p115
      %p117 = pneg %p116
      // Predicated region
      $region9: #{transformer_decoder.33} parent=5 // pred_check
        _
      $region10: #{transformer_decoder.33} parent=5 // pred_check_branch
        %119 = sbr.rel (%p116) target = $region12
      $region11: #{transformer_decoder.33} parent=5 // pred_region
        %s120 = ssub.s32 %s12, 1
        // Predicated region
        $region13: #{transformer_decoder.33} parent=11 // pred_check
          %p121 = pneg %p59
        $region14: #{transformer_decoder.33} parent=11 // pred_check_branch
          %123 = sbr.rel (%p121) target = $region16
        $region15: #{transformer_decoder.33} parent=11 // pred_region
          _
        $region16: #{transformer_decoder.33} parent=11 // pred_fallthru
          _
        // Predicated region
        $region17: #{transformer_decoder.33} parent=11 // pred_check
          %p124 = pneg %p80
        $region18: #{transformer_decoder.33} parent=11 // pred_check_branch
          %126 = sbr.rel (%p124) target = $region20
        $region19: #{transformer_decoder.33} parent=11 // pred_region
          _
        $region20: #{transformer_decoder.33} parent=11 // pred_fallthru
          _
      $region12: #{transformer_decoder.33} parent=5 // pred_fallthru
        _
      %p127 = scmp.lt.s32.totalorder %s12, 2
      // Predicated region
      $region21: #{transformer_decoder.33} parent=5 // pred_check
        %p128 = pneg %p127
      $region22: #{transformer_decoder.33} parent=5 // pred_check_branch
        %130 = sbr.rel (%p128) target = $region24
      $region23: #{transformer_decoder.33} parent=5 // pred_region
        // Predicated region
        $region25: #{transformer_decoder.33} parent=23 // pred_check
          %p131 = pneg %p32
        $region26: #{transformer_decoder.33} parent=23 // pred_check_branch
          %133 = sbr.rel (%p131) target = $region28
        $region27: #{transformer_decoder.33} parent=23 // pred_region
          %p134 = scmp.lt.s32.totalorder %s12, 1
          %s135 = scalar_select %p134, %s12, 1
          %s136 = smul.addr %s135, 8
          %s137 = scalar_lea.vmem %s0, %s136
        $region28: #{transformer_decoder.33} parent=23 // pred_fallthru
          _
      $region24: #{transformer_decoder.33} parent=5 // pred_fallthru
        _
      %p138 = scmp.le.s32.totalorder 1, %s12
      %p139 = scmp.lt.s32.totalorder %s12, 3
      %p140 = pnand %p138, %p139
      %p141 = pneg %p140
      // Predicated region
      $region29: #{transformer_decoder.33} parent=5 // pred_check
        _
      $region30: #{transformer_decoder.33} parent=5 // pred_check_branch
        %143 = sbr.rel (%p140) target = $region32
      $region31: #{transformer_decoder.33} parent=5 // pred_region
        %s144 = ssub.s32 %s12, 1
        %p145 = scmp.lt.s32.totalorder %s17, 1
        %s146 = scalar_select %p145, %s17, 1
        %s147 = smul.addr %s146, 8
        %s148 = scalar_lea.vmem %s0, %s147
        %p149 = pneg %p38
        %p150 = pneg %p35
        %p151 = pneg %p59
        %p152 = pneg %p56
        %p153 = pneg %p80
        %p154 = pneg %p77
        %p155 = pneg %p106
        %p156 = pneg %p103
        %s157 = sand.u32 %s93, 1
        %s158 = scalar_lea.sflag [#allocation3], %s157
        %s159 = sand.u32 %s93, 1
        %s160 = smul.addr %s159, 8
        %s161 = scalar_lea.vmem [#allocation2], %s160
        %p162 = scmp.lt.s32.totalorder %s17, 1
        %s163 = scalar_select %p162, %s17, 1
        %s164 = smul.addr %s163, 8
        %s165 = scalar_lea.vmem %s0, %s164
        %v166 = vld [vmem:[%s165] sm:$0xff]
        %vm167 = vcmask 261120
        %v168 = vsel %vm167, %v166, 0.0
        %169 = vadd.xlane.f32.xlu0 %v168
        %v170 = vpop.xlane.xlu0 %169
        %v171 = vrcp.pop 32.0
        %v172 = vmul.f32 %v170, %v171
        %v173 = vsub.f32 %v166, %v172
        %v174 = vmul.f32 %v173, %v173
        %v175 = vsel %vm167, %v174, 0.0
        %176 = vadd.xlane.f32.xlu0 %v175
        %v177 = vpop.xlane.xlu0 %176
        %v178 = vmul.f32 %v177, %v171
        %v179 = vadd.f32 %v178, 1e-05
        %v180 = vrsqrt.pop %v179
        %v181 = vmul.f32 %v173, %v180
        %v182 = vld [vmem:[%s1] sm:$0x1]
        %v184 = vlaneseq
        %v185 = vshrl.u32 %v184, 7
        %v186 = vsub.s32 0, %v185
        %v187 = vrot.slane %v182, %v186
        %v189 = vmul.f32 %v181, %v187
        %v190 = vld [vmem:[%s2] sm:$0x1]
        %v192 = vlaneseq
        %v193 = vshrl.u32 %v192, 7
        %v194 = vsub.s32 0, %v193
        %v195 = vrot.slane %v190, %v194
        %v197 = vadd.f32 %v189, %v195
        %198 = vst.msk [vmem:[%s161] sm:$0xff] %vm167, %v197
        %s199 = sand.u32 %s93, 1
        %s200 = scalar_lea.sflag [#allocation3], %s199
        %s201 = sand.u32 %s93, 1
        %s202 = smul.addr %s201, 8
        %s203 = scalar_lea.vmem [#allocation2], %s202
        // Predicated region
        $region33: #{transformer_decoder.33} parent=31 // pred_check
          %p204 = pneg %p103
        $region34: #{transformer_decoder.33} parent=31 // pred_check_branch
          %206 = sbr.rel (%p204) target = $region36
        $region35: #{transformer_decoder.33} parent=31 // pred_region
          %s208 = ssub.s32 128, 128
          %209 = vsyncadd %s200, %s208
          %s210 = smul.addr %s17, 128
          %s211 = scalar_lea.hbm %s3, %s210
          %s213 = sshll.u32 %s203, 4
          %s214 = int_to_ptr.vmem [resolvable:$true] %s213
          %216 = dma.vmem_to_hbm [thread:$0]  %s214, 128, %s211, %s200
        $region36: #{transformer_decoder.33} parent=31 // pred_fallthru
          _
      $region32: #{transformer_decoder.33} parent=5 // pred_fallthru
        _
      %p217 = scmp.le.s32.totalorder 2, %s12
      // Predicated region
      $region37: #{transformer_decoder.33} parent=5 // pred_check
        %p218 = pneg %p217
      $region38: #{transformer_decoder.33} parent=5 // pred_check_branch
        %220 = sbr.rel (%p218) target = $region40
      $region39: #{transformer_decoder.33} parent=5 // pred_region
        %s221 = ssub.s32 %s12, 2
        // Predicated region
        $region41: #{transformer_decoder.33} parent=39 // pred_check
          %p222 = pneg %p109
        $region42: #{transformer_decoder.33} parent=39 // pred_check_branch
          %224 = sbr.rel (%p222) target = $region44
        $region43: #{transformer_decoder.33} parent=39 // pred_region
          %s225 = sand.u32 %s94, 1
          %s226 = scalar_lea.sflag [#allocation3], %s225
          %s227 = sand.u32 %s94, 1
          %s228 = smul.addr %s227, 8
          %s229 = scalar_lea.vmem [#allocation2], %s228
          %230 = dma.done %s226, 128
        $region44: #{transformer_decoder.33} parent=39 // pred_fallthru
          _
      $region40: #{transformer_decoder.33} parent=5 // pred_fallthru
        _
    $region6: #{transformer_decoder.33} parent=1 // loop_footer
      %s16 = sadd.s32 1, %s12
    $region7: #{transformer_decoder.33} parent=1 // loop_footer_branch
      %11 = sbr.rel target = $region3
    $region8: #{transformer_decoder.33} parent=1 // loop_exit
      _
    %231 = vsyncpa [#allocation3], 1
    %s232 = scalar_lea.sflag [#allocation3], 1
    %233 = vsyncpa %s232, 1

// kernel: transformer_decoder.22
$region0: #{transformer_decoder.22}
  #allocation0 [shape = 'u32[]', space=smem, size = 0x4, offset = 0x4, fixed_abs, tag = 'smem constant byte address 0x4 - core index']
  #allocation1 [shape = 'u32[144,128]{1,0:T(1,128)}', space=vmem, size = 0x12000, scoped, tag = 'internal scratch']
  #allocation2 [shape = 'f32[4,8,1]{2,1,0:T(8,128)}', space=vmem, size = 0x4000, scoped, tag = 'scratch operand']
  #allocation3 [shape = 'f32[4,8,1]{2,1,0:T(8,128)}', space=vmem, size = 0x4000, scoped, tag = 'scratch operand']
  #allocation4 [shape = 'f32[4,8,8]{2,1,0:T(8,128)}', space=vmem, size = 0x4000, scoped, tag = 'scratch operand']
  %s0 = inlined_call_operand.vmem [shape: bf16[2,8,32], index: 0, kind: input, shape index: {}]
  %s1 = inlined_call_operand.vmem [shape: bf16[2,16,32], index: 1, kind: input, shape index: {}]
  %s2 = inlined_call_operand.vmem [shape: bf16[2,16,32], index: 2, kind: input, shape index: {}]
  %s3 = inlined_call_operand.vmem [shape: bf16[2,8,32], index: 3, kind: output, shape index: {}]
  %s4 = sld [smem:[#allocation0]]
  $region53: #{transformer_decoder.22} parent=0
    _
  %s6 = ssub.s32 1, %s4
  %s7 = scalar_select 0, %s6, %s4
  loop: start=0, step=1, limit=4
  $region2: #{transformer_decoder.22} parent=0 // loop_pre_header
    _
  $region3: #{transformer_decoder.22} parent=0 // loop_header
    %s9 = sphi 0, %s13
    %p10 = scmp.ge.s32.totalorder %s9, 4
    %s16 = sphi 0, %s35
    %s17 = sphi 0, %s31
    %s18 = sphi 0, %s27
    %s19 = sphi 0, %s16
    %s20 = sphi 0, %s17
    %s21 = sphi 0, %s18
    %s22 = sphi 0, %s19
    %s23 = sphi 0, %s20
    %s24 = sphi 0, %s21
    %s40 = sphi 0, %s42
    %s43 = sphi 0, %s40
    %s44 = sphi 0, %s43
    %s60 = sphi 0, %s44
    %s68 = sphi 0, %s70
    %s71 = sphi 0, %s68
    %s72 = sphi 0, %s71
    %s88 = sphi 0, %s72
    %s96 = sphi 0, %s98
    %s99 = sphi 0, %s96
    %s100 = sphi 0, %s99
    %s116 = sphi 0, %s100
    %s124 = sphi 0, %s126
    %s127 = sphi 0, %s124
    %s128 = sphi 0, %s127
    %s144 = sphi 0, %s128
  $region4: #{transformer_decoder.22} parent=0 // loop_header_branch
    %12 = sbr.rel (%p10) target = $region8
  $region5: #{transformer_decoder.22} parent=0 // loop_body
    %s14 = ssub.s32 %s9, 1
    %s15 = ssub.s32 %s9, 2
    %s25 = sadd.s32 1, %s18
    %p26 = scmp.ge.s32.totalorder %s25, 1
    %s27 = scalar_select %p26, 0, %s25
    %s28 = sadd.s32 1, %s17
    %s29 = scalar_select %p26, %s28, %s17
    %p30 = scmp.ge.s32.totalorder %s29, 1
    %s31 = scalar_select %p30, 0, %s29
    %s32 = sadd.s32 1, %s16
    %s33 = scalar_select %p30, %s32, %s16
    %p34 = scmp.ge.s32.totalorder %s33, 2
    %s35 = scalar_select %p34, 0, %s33
    %s36 = ssub.s32 %s16, %s35
    %s37 = ssub.s32 %s17, %s31
    %s38 = sor.u32 %s36, %s37
    %p39 = scmp.eq.s32.totalorder %s38, 0
    %s41 = sadd.s32 %s40, 1
    %s42 = scalar_select %p39, %s40, %s41
    %p45 = pneg %p39
    %p46 = scmp.eq.s32.totalorder %s9, 1
    %p47 = por %p45, %p46
    %p48 = scmp.ne.s32.totalorder %s40, %s43
    %p49 = scmp.eq.s32.totalorder %s9, 0
    %p50 = por %p48, %p49
    %p51 = scmp.ne.s32.totalorder %s40, %s43
    %p52 = scmp.eq.s32.totalorder %s14, 1
    %p53 = por %p51, %p52
    %p54 = scmp.ne.s32.totalorder %s43, %s44
    %p55 = scmp.eq.s32.totalorder %s14, 0
    %p56 = por %p54, %p55
    %p57 = scmp.ne.s32.totalorder %s43, %s44
    %p58 = scmp.eq.s32.totalorder %s15, 1
    %p59 = por %p57, %p58
    %p61 = scmp.ne.s32.totalorder %s44, %s60
    %p62 = scmp.eq.s32.totalorder %s15, 0
    %p63 = por %p61, %p62
    %s64 = ssub.s32 %s16, %s35
    %s65 = ssub.s32 %s18, %s27
    %s66 = sor.u32 %s64, %s65
    %p67 = scmp.eq.s32.totalorder %s66, 0
    %s69 = sadd.s32 %s68, 1
    %s70 = scalar_select %p67, %s68, %s69
    %p73 = pneg %p67
    %p74 = scmp.eq.s32.totalorder %s9, 1
    %p75 = por %p73, %p74
    %p76 = scmp.ne.s32.totalorder %s68, %s71
    %p77 = scmp.eq.s32.totalorder %s9, 0
    %p78 = por %p76, %p77
    %p79 = scmp.ne.s32.totalorder %s68, %s71
    %p80 = scmp.eq.s32.totalorder %s14, 1
    %p81 = por %p79, %p80
    %p82 = scmp.ne.s32.totalorder %s71, %s72
    %p83 = scmp.eq.s32.totalorder %s14, 0
    %p84 = por %p82, %p83
    %p85 = scmp.ne.s32.totalorder %s71, %s72
    %p86 = scmp.eq.s32.totalorder %s15, 1
    %p87 = por %p85, %p86
    %p89 = scmp.ne.s32.totalorder %s72, %s88
    %p90 = scmp.eq.s32.totalorder %s15, 0
    %p91 = por %p89, %p90
    %s92 = ssub.s32 %s16, %s35
    %s93 = ssub.s32 %s18, %s27
    %s94 = sor.u32 %s92, %s93
    %p95 = scmp.eq.s32.totalorder %s94, 0
    %s97 = sadd.s32 %s96, 1
    %s98 = scalar_select %p95, %s96, %s97
    %p101 = pneg %p95
    %p102 = scmp.eq.s32.totalorder %s9, 1
    %p103 = por %p101, %p102
    %p104 = scmp.ne.s32.totalorder %s96, %s99
    %p105 = scmp.eq.s32.totalorder %s9, 0
    %p106 = por %p104, %p105
    %p107 = scmp.ne.s32.totalorder %s96, %s99
    %p108 = scmp.eq.s32.totalorder %s14, 1
    %p109 = por %p107, %p108
    %p110 = scmp.ne.s32.totalorder %s99, %s100
    %p111 = scmp.eq.s32.totalorder %s14, 0
    %p112 = por %p110, %p111
    %p113 = scmp.ne.s32.totalorder %s99, %s100
    %p114 = scmp.eq.s32.totalorder %s15, 1
    %p115 = por %p113, %p114
    %p117 = scmp.ne.s32.totalorder %s100, %s116
    %p118 = scmp.eq.s32.totalorder %s15, 0
    %p119 = por %p117, %p118
    %s120 = ssub.s32 %s16, %s35
    %s121 = ssub.s32 %s17, %s31
    %s122 = sor.u32 %s120, %s121
    %p123 = scmp.eq.s32.totalorder %s122, 0
    %s125 = sadd.s32 %s124, 1
    %s126 = scalar_select %p123, %s124, %s125
    %p129 = pneg %p123
    %p130 = scmp.eq.s32.totalorder %s9, 1
    %p131 = por %p129, %p130
    %p132 = scmp.ne.s32.totalorder %s124, %s127
    %p133 = scmp.eq.s32.totalorder %s9, 0
    %p134 = por %p132, %p133
    %p135 = scmp.ne.s32.totalorder %s124, %s127
    %p136 = scmp.eq.s32.totalorder %s14, 1
    %p137 = por %p135, %p136
    %p138 = scmp.ne.s32.totalorder %s127, %s128
    %p139 = scmp.eq.s32.totalorder %s14, 0
    %p140 = por %p138, %p139
    %p141 = scmp.ne.s32.totalorder %s127, %s128
    %p142 = scmp.eq.s32.totalorder %s15, 1
    %p143 = por %p141, %p142
    %p145 = scmp.ne.s32.totalorder %s128, %s144
    %p146 = scmp.eq.s32.totalorder %s15, 0
    %p147 = por %p145, %p146
    %p148 = scmp.le.s32.totalorder 1, %s9
    %p149 = scmp.lt.s32.totalorder %s9, 3
    %p150 = pnand %p148, %p149
    %p151 = pneg %p150
    // Predicated region
    $region9: #{transformer_decoder.22} parent=5 // pred_check
      _
    $region10: #{transformer_decoder.22} parent=5 // pred_check_branch
      %153 = sbr.rel (%p150) target = $region12
    $region11: #{transformer_decoder.22} parent=5 // pred_region
      %s154 = ssub.s32 %s9, 1
    $region12: #{transformer_decoder.22} parent=5 // pred_fallthru
      _
    %p155 = scmp.lt.s32.totalorder %s9, 2
    // Predicated region
    $region13: #{transformer_decoder.22} parent=5 // pred_check
      %p156 = pneg %p155
    $region14: #{transformer_decoder.22} parent=5 // pred_check_branch
      %158 = sbr.rel (%p156) target = $region16
    $region15: #{transformer_decoder.22} parent=5 // pred_region
      // Predicated region
      $region17: #{transformer_decoder.22} parent=15 // pred_check
        %p159 = pneg %p50
      $region18: #{transformer_decoder.22} parent=15 // pred_check_branch
        %161 = sbr.rel (%p159) target = $region20
      $region19: #{transformer_decoder.22} parent=15 // pred_region
        %p162 = scmp.lt.s32.totalorder %s16, 1
        %s163 = scalar_select %p162, %s16, 1
        %p164 = scmp.lt.s32.totalorder %s17, 0
        %s165 = scalar_select %p164, %s17, 0
        %s166 = sadd.s32 %s165, %s163
        %s167 = smul.addr %s166, 4
        %s168 = scalar_lea.vmem %s0, %s167
      $region20: #{transformer_decoder.22} parent=15 // pred_fallthru
        _
      // Predicated region
      $region21: #{transformer_decoder.22} parent=15 // pred_check
        %p169 = pneg %p78
      $region22: #{transformer_decoder.22} parent=15 // pred_check_branch
        %171 = sbr.rel (%p169) target = $region24
      $region23: #{transformer_decoder.22} parent=15 // pred_region
        %s172 = smul.u32 2, %s18
        %p173 = scmp.lt.s32.totalorder %s16, 1
        %s174 = scalar_select %p173, %s16, 1
        %p175 = scmp.lt.s32.totalorder %s172, 1
        %s176 = scalar_select %p175, %s172, 1
        %s177 = smul.addr %s174, 2
        %s178 = sadd.s32 %s176, %s177
        %s179 = smul.addr %s178, 4
        %s180 = scalar_lea.vmem %s1, %s179
        %s181 = smul.u32 2, %s18
      $region24: #{transformer_decoder.22} parent=15 // pred_fallthru
        _
      // Predicated region
      $region25: #{transformer_decoder.22} parent=15 // pred_check
        %p182 = pneg %p106
      $region26: #{transformer_decoder.22} parent=15 // pred_check_branch
        %184 = sbr.rel (%p182) target = $region28
      $region27: #{transformer_decoder.22} parent=15 // pred_region
        %s185 = smul.u32 2, %s18
        %p186 = scmp.lt.s32.totalorder %s16, 1
        %s187 = scalar_select %p186, %s16, 1
        %p188 = scmp.lt.s32.totalorder %s185, 1
        %s189 = scalar_select %p188, %s185, 1
        %s190 = smul.addr %s187, 2
        %s191 = sadd.s32 %s189, %s190
        %s192 = smul.addr %s191, 4
        %s193 = scalar_lea.vmem %s2, %s192
        %s194 = smul.u32 2, %s18
      $region28: #{transformer_decoder.22} parent=15 // pred_fallthru
        _
    $region16: #{transformer_decoder.22} parent=5 // pred_fallthru
      _
    %p195 = scmp.le.s32.totalorder 1, %s9
    %p196 = scmp.lt.s32.totalorder %s9, 3
    %p197 = pnand %p195, %p196
    %p198 = pneg %p197
    // Predicated region
    $region29: #{transformer_decoder.22} parent=5 // pred_check
      _
    $region30: #{transformer_decoder.22} parent=5 // pred_check_branch
      %200 = sbr.rel (%p197) target = $region32
    $region31: #{transformer_decoder.22} parent=5 // pred_region
      %s201 = ssub.s32 %s9, 1
      %p202 = scmp.lt.s32.totalorder %s19, 1
      %s203 = scalar_select %p202, %s19, 1
      %p204 = scmp.lt.s32.totalorder %s20, 0
      %s205 = scalar_select %p204, %s20, 0
      %s206 = sadd.s32 %s205, %s203
      %s207 = smul.addr %s206, 4
      %s208 = scalar_lea.vmem %s0, %s207
      %p209 = pneg %p56
      %p210 = pneg %p53
      %s211 = smul.u32 2, %s21
      %p212 = scmp.lt.s32.totalorder %s19, 1
      %s213 = scalar_select %p212, %s19, 1
      %p214 = scmp.lt.s32.totalorder %s211, 1
      %s215 = scalar_select %p214, %s211, 1
      %s216 = smul.addr %s213, 2
      %s217 = sadd.s32 %s215, %s216
      %s218 = smul.addr %s217, 4
      %s219 = scalar_lea.vmem %s1, %s218
      %p220 = pneg %p84
      %p221 = pneg %p81
      %s222 = smul.u32 2, %s21
      %p223 = scmp.lt.s32.totalorder %s19, 1
      %s224 = scalar_select %p223, %s19, 1
      %p225 = scmp.lt.s32.totalorder %s222, 1
      %s226 = scalar_select %p225, %s222, 1
      %s227 = smul.addr %s224, 2
      %s228 = sadd.s32 %s226, %s227
      %s229 = smul.addr %s228, 4
      %s230 = scalar_lea.vmem %s2, %s229
      %p231 = pneg %p112
      %p232 = pneg %p109
      %p233 = pneg %p140
      %p234 = pneg %p137
      %p235 = scmp.lt.s32.totalorder %s19, 1
      %s236 = scalar_select %p235, %s19, 1
      %p237 = scmp.lt.s32.totalorder %s20, 0
      %s238 = scalar_select %p237, %s20, 0
      %s239 = sadd.s32 %s238, %s236
      %s240 = smul.addr %s239, 4
      %s241 = scalar_lea.vmem %s3, %s240
      %p242 = scmp.lt.s32.totalorder %s19, 1
      %s243 = scalar_select %p242, %s19, 1
      %p244 = scmp.lt.s32.totalorder %s20, 0
      %s245 = scalar_select %p244, %s20, 0
      %s246 = sadd.s32 %s245, %s243
      %s247 = smul.addr %s246, 4
      %s248 = scalar_lea.vmem %s0, %s247
      %s249 = smul.u32 2, %s21
      %p250 = scmp.lt.s32.totalorder %s19, 1
      %s251 = scalar_select %p250, %s19, 1
      %p252 = scmp.lt.s32.totalorder %s249, 1
      %s253 = scalar_select %p252, %s249, 1
      %s254 = smul.addr %s251, 2
      %s255 = sadd.s32 %s253, %s254
      %s256 = smul.addr %s255, 4
      %s257 = scalar_lea.vmem %s1, %s256
      %s258 = smul.u32 2, %s21
      %s259 = smul.u32 2, %s21
      %p260 = scmp.lt.s32.totalorder %s19, 1
      %s261 = scalar_select %p260, %s19, 1
      %p262 = scmp.lt.s32.totalorder %s259, 1
      %s263 = scalar_select %p262, %s259, 1
      %s264 = smul.addr %s261, 2
      %s265 = sadd.s32 %s263, %s264
      %s266 = smul.addr %s265, 4
      %s267 = scalar_lea.vmem %s2, %s266
      %s268 = smul.u32 2, %s21
      %p269 = scmp.lt.s32.totalorder %s19, 1
      %s270 = scalar_select %p269, %s19, 1
      %p271 = scmp.lt.s32.totalorder %s20, 0
      %s272 = scalar_select %p271, %s20, 0
      %s273 = sadd.s32 %s272, %s270
      %s274 = smul.addr %s273, 4
      %s275 = scalar_lea.vmem %s3, %s274
      %p278 = scmp.eq.s32.totalorder %s21, 0
      // Predicated region
      $region33: #{transformer_decoder.22} parent=31 // pred_check
        %p279 = pneg %p278
      $region34: #{transformer_decoder.22} parent=31 // pred_check_branch
        %281 = sbr.rel (%p279) target = $region36
      $region35: #{transformer_decoder.22} parent=31 // pred_region
        %vm282 = vcmask 7168
        %283 = vst.msk [vmem:[#allocation2] sm:$0xff] %vm282, -1e+30
        %284 = vst.msk [vmem:[#allocation2 + $0x8] sm:$0xff] %vm282, -1e+30
        %285 = vst.msk [vmem:[#allocation2 + $0x10] sm:$0xff] %vm282, -1e+30
        %286 = vst.msk [vmem:[#allocation2 + $0x18] sm:$0xff] %vm282, -1e+30
        %287 = vst.msk [vmem:[#allocation3] sm:$0xff] %vm282, 0.0
        %288 = vst.msk [vmem:[#allocation3 + $0x8] sm:$0xff] %vm282, 0.0
        %289 = vst.msk [vmem:[#allocation3 + $0x10] sm:$0xff] %vm282, 0.0
        %290 = vst.msk [vmem:[#allocation3 + $0x18] sm:$0xff] %vm282, 0.0
        %vm291 = vcmask 64512
        %292 = vst.msk [vmem:[#allocation4] sm:$0xff] %vm291, 0.0
        %293 = vst.msk [vmem:[#allocation4 + $0x8] sm:$0xff] %vm291, 0.0
        %294 = vst.msk [vmem:[#allocation4 + $0x10] sm:$0xff] %vm291, 0.0
        %295 = vst.msk [vmem:[#allocation4 + $0x18] sm:$0xff] %vm291, 0.0
      $region36: #{transformer_decoder.22} parent=31 // pred_fallthru
        _
      %v296 = vld [vmem:[%s248] sm:$0xf]
      %v297 = vmul.bf16 %v296, 1052065461
      %299 = vrot.lane.b32.xlu0 %v297, 120
      %v300 = vpop.permute.xlu0 %299
      %301 = vrot.lane.b32.xlu0 %v297, 112
      %v302 = vpop.permute.xlu0 %301
      %303 = vrot.lane.b32.xlu0 %v297, 104
      %v304 = vpop.permute.xlu0 %303
      %v307 = vpack.i.b16 %v300, %v297
      %v308 = vshrl.u32 %v297, 16
      %v309 = vshrl.u32 %v300, 16
      %v310 = vpack.i.b16 %v309, %v308
      %v313 = vpack.i.b16 %v304, %v302
      %v314 = vshrl.u32 %v302, 16
      %v315 = vshrl.u32 %v304, 16
      %v316 = vpack.i.b16 %v315, %v314
      %v319 = vunpack.c.l.s4 1983009808
      %v320 = vunpack.c.0.s8 %v319
      %v321 = vlaneseq
      %v322 = vshrl.u32 %v321, 7
      %v323 = vsub.s32 %v320, %v322
      %v324 = vrot.slane %v307, %v323
      %v327 = vunpack.c.l.s4 1983009808
      %v328 = vunpack.c.0.s8 %v327
      %v329 = vlaneseq
      %v330 = vshrl.u32 %v329, 7
      %v331 = vsub.s32 %v328, %v330
      %v332 = vrot.slane %v313, %v331
      %v333 = vcombine.low %v324, %v332
      %v334 = vcombine.high %v324, %v332
      %v336 = vunpack.c.l.s4 1934713408
      %v337 = vunpack.c.0.s8 %v336
      %v338 = vlaneseq
      %v339 = vshrl.u32 %v338, 7
      %v340 = vsub.s32 %v337, %v339
      %v341 = vrot.slane %v333, %v340
      %v343 = vunpack.c.l.s4 1934713408
      %v344 = vunpack.c.0.s8 %v343
      %v345 = vlaneseq
      %v346 = vshrl.u32 %v345, 7
      %v347 = vsub.s32 %v344, %v346
      %v348 = vrot.slane %v334, %v347
      %v349 = vcombine.high %v341, 0
      %v350 = vcombine.high %v348, 0
      %v353 = vunpack.c.l.s4 1983009808
      %v354 = vunpack.c.0.s8 %v353
      %v355 = vlaneseq
      %v356 = vshrl.u32 %v355, 7
      %v357 = vsub.s32 %v354, %v356
      %v358 = vrot.slane %v310, %v357
      %v361 = vunpack.c.l.s4 1983009808
      %v362 = vunpack.c.0.s8 %v361
      %v363 = vlaneseq
      %v364 = vshrl.u32 %v363, 7
      %v365 = vsub.s32 %v362, %v364
      %v366 = vrot.slane %v316, %v365
      %v367 = vcombine.low %v358, %v366
      %v368 = vcombine.high %v358, %v366
      %v370 = vunpack.c.l.s4 1934713408
      %v371 = vunpack.c.0.s8 %v370
      %v372 = vlaneseq
      %v373 = vshrl.u32 %v372, 7
      %v374 = vsub.s32 %v371, %v373
      %v375 = vrot.slane %v367, %v374
      %v377 = vunpack.c.l.s4 1934713408
      %v378 = vunpack.c.0.s8 %v377
      %v379 = vlaneseq
      %v380 = vshrl.u32 %v379, 7
      %v381 = vsub.s32 %v378, %v380
      %v382 = vrot.slane %v368, %v381
      %v383 = vcombine.high %v375, 0
      %v384 = vcombine.high %v382, 0
      %v385 = vcombine.low %v341, %v348
      %v387 = vunpack.c.l.s4 1983009808
      %v388 = vunpack.c.0.s8 %v387
      %v389 = vlaneseq
      %v390 = vshrl.u32 %v389, 7
      %v391 = vsub.s32 %v388, %v390
      %v392 = vrot.slane %v385, %v391
      %v393 = vcombine.low %v349, %v350
      %v395 = vunpack.c.l.s4 1983009808
      %v396 = vunpack.c.0.s8 %v395
      %v397 = vlaneseq
      %v398 = vshrl.u32 %v397, 7
      %v399 = vsub.s32 %v396, %v398
      %v400 = vrot.slane %v393, %v399
      %v401 = vcombine.low %v392, %v400
      %v403 = vunpack.c.l.s4 1934713408
      %v404 = vunpack.c.0.s8 %v403
      %v405 = vlaneseq
      %v406 = vshrl.u32 %v405, 7
      %v407 = vsub.s32 %v404, %v406
      %v408 = vrot.slane %v401, %v407
      %v409 = vcombine.high %v408, 0
      %v410 = vcombine.low %v375, %v382
      %v412 = vunpack.c.l.s4 1983009808
      %v413 = vunpack.c.0.s8 %v412
      %v414 = vlaneseq
      %v415 = vshrl.u32 %v414, 7
      %v416 = vsub.s32 %v413, %v415
      %v417 = vrot.slane %v410, %v416
      %v418 = vcombine.low %v383, %v384
      %v420 = vunpack.c.l.s4 1983009808
      %v421 = vunpack.c.0.s8 %v420
      %v422 = vlaneseq
      %v423 = vshrl.u32 %v422, 7
      %v424 = vsub.s32 %v421, %v423
      %v425 = vrot.slane %v418, %v424
      %v426 = vcombine.low %v417, %v425
      %v428 = vunpack.c.l.s4 1934713408
      %v429 = vunpack.c.0.s8 %v428
      %v430 = vlaneseq
      %v431 = vshrl.u32 %v430, 7
      %v432 = vsub.s32 %v429, %v431
      %v433 = vrot.slane %v426, %v432
      %v434 = vcombine.high %v433, 0
      %v437 = vpack.i.b16 %v433, %v408
      %v438 = vshrl.u32 %v408, 16
      %v439 = vshrl.u32 %v433, 16
      %v440 = vpack.i.b16 %v439, %v438
      %v443 = vpack.i.b16 %v434, %v409
      %v444 = vshrl.u32 %v409, 16
      %v445 = vshrl.u32 %v434, 16
      %v446 = vpack.i.b16 %v445, %v444
      %v447 = vld [vmem:[%s257] sm:$0xf]
      %v448 = vld [vmem:[%s257 + $0x4] sm:$0xf]
      %451 = vrot.lane.b32.xlu0 %v447, 120
      %v452 = vpop.permute.xlu0 %451
      %453 = vrot.lane.b32.xlu0 %v448, 120
      %v454 = vpop.permute.xlu0 %453
      %455 = vrot.lane.b32.xlu0 %v447, 112
      %v456 = vpop.permute.xlu0 %455
      %457 = vrot.lane.b32.xlu0 %v448, 112
      %v458 = vpop.permute.xlu0 %457
      %459 = vrot.lane.b32.xlu0 %v447, 104
      %v460 = vpop.permute.xlu0 %459
      %461 = vrot.lane.b32.xlu0 %v448, 104
      %v462 = vpop.permute.xlu0 %461
      %v465 = vpack.i.b16 %v452, %v447
      %v466 = vshrl.u32 %v447, 16
      %v467 = vshrl.u32 %v452, 16
      %v468 = vpack.i.b16 %v467, %v466
      %v471 = vpack.i.b16 %v460, %v456
      %v472 = vshrl.u32 %v456, 16
      %v473 = vshrl.u32 %v460, 16
      %v474 = vpack.i.b16 %v473, %v472
      %v477 = vpack.i.b16 %v454, %v448
      %v478 = vshrl.u32 %v448, 16
      %v479 = vshrl.u32 %v454, 16
      %v480 = vpack.i.b16 %v479, %v478
      %v483 = vpack.i.b16 %v462, %v458
      %v484 = vshrl.u32 %v458, 16
      %v485 = vshrl.u32 %v462, 16
      %v486 = vpack.i.b16 %v485, %v484
      %v489 = vunpack.c.l.s4 1983009808
      %v490 = vunpack.c.0.s8 %v489
      %v491 = vlaneseq
      %v492 = vshrl.u32 %v491, 7
      %v493 = vsub.s32 %v490, %v492
      %v494 = vrot.slane %v465, %v493
      %v497 = vunpack.c.l.s4 1983009808
      %v498 = vunpack.c.0.s8 %v497
      %v499 = vlaneseq
      %v500 = vshrl.u32 %v499, 7
      %v501 = vsub.s32 %v498, %v500
      %v502 = vrot.slane %v471, %v501
      %v503 = vcombine.low %v494, %v502
      %v504 = vcombine.high %v494, %v502
      %v506 = vunpack.c.l.s4 1934713408
      %v507 = vunpack.c.0.s8 %v506
      %v508 = vlaneseq
      %v509 = vshrl.u32 %v508, 7
      %v510 = vsub.s32 %v507, %v509
      %v511 = vrot.slane %v503, %v510
      %v513 = vunpack.c.l.s4 1934713408
      %v514 = vunpack.c.0.s8 %v513
      %v515 = vlaneseq
      %v516 = vshrl.u32 %v515, 7
      %v517 = vsub.s32 %v514, %v516
      %v518 = vrot.slane %v504, %v517
      %v519 = vcombine.high %v511, 0
      %v520 = vcombine.high %v518, 0
      %v523 = vunpack.c.l.s4 1983009808
      %v524 = vunpack.c.0.s8 %v523
      %v525 = vlaneseq
      %v526 = vshrl.u32 %v525, 7
      %v527 = vsub.s32 %v524, %v526
      %v528 = vrot.slane %v468, %v527
      %v531 = vunpack.c.l.s4 1983009808
      %v532 = vunpack.c.0.s8 %v531
      %v533 = vlaneseq
      %v534 = vshrl.u32 %v533, 7
      %v535 = vsub.s32 %v532, %v534
      %v536 = vrot.slane %v474, %v535
      %v537 = vcombine.low %v528, %v536
      %v538 = vcombine.high %v528, %v536
      %v540 = vunpack.c.l.s4 1934713408
      %v541 = vunpack.c.0.s8 %v540
      %v542 = vlaneseq
      %v543 = vshrl.u32 %v542, 7
      %v544 = vsub.s32 %v541, %v543
      %v545 = vrot.slane %v537, %v544
      %v547 = vunpack.c.l.s4 1934713408
      %v548 = vunpack.c.0.s8 %v547
      %v549 = vlaneseq
      %v550 = vshrl.u32 %v549, 7
      %v551 = vsub.s32 %v548, %v550
      %v552 = vrot.slane %v538, %v551
      %v553 = vcombine.high %v545, 0
      %v554 = vcombine.high %v552, 0
      %v557 = vunpack.c.l.s4 1983009808
      %v558 = vunpack.c.0.s8 %v557
      %v559 = vlaneseq
      %v560 = vshrl.u32 %v559, 7
      %v561 = vsub.s32 %v558, %v560
      %v562 = vrot.slane %v477, %v561
      %v565 = vunpack.c.l.s4 1983009808
      %v566 = vunpack.c.0.s8 %v565
      %v567 = vlaneseq
      %v568 = vshrl.u32 %v567, 7
      %v569 = vsub.s32 %v566, %v568
      %v570 = vrot.slane %v483, %v569
      %v571 = vcombine.low %v562, %v570
      %v572 = vcombine.high %v562, %v570
      %v574 = vunpack.c.l.s4 1934713408
      %v575 = vunpack.c.0.s8 %v574
      %v576 = vlaneseq
      %v577 = vshrl.u32 %v576, 7
      %v578 = vsub.s32 %v575, %v577
      %v579 = vrot.slane %v571, %v578
      %v581 = vunpack.c.l.s4 1934713408
      %v582 = vunpack.c.0.s8 %v581
      %v583 = vlaneseq
      %v584 = vshrl.u32 %v583, 7
      %v585 = vsub.s32 %v582, %v584
      %v586 = vrot.slane %v572, %v585
      %v587 = vcombine.high %v579, 0
      %v588 = vcombine.high %v586, 0
      %v591 = vunpack.c.l.s4 1983009808
      %v592 = vunpack.c.0.s8 %v591
      %v593 = vlaneseq
      %v594 = vshrl.u32 %v593, 7
      %v595 = vsub.s32 %v592, %v594
      %v596 = vrot.slane %v480, %v595
      %v599 = vunpack.c.l.s4 1983009808
      %v600 = vunpack.c.0.s8 %v599
      %v601 = vlaneseq
      %v602 = vshrl.u32 %v601, 7
      %v603 = vsub.s32 %v600, %v602
      %v604 = vrot.slane %v486, %v603
      %v605 = vcombine.low %v596, %v604
      %v606 = vcombine.high %v596, %v604
      %v608 = vunpack.c.l.s4 1934713408
      %v609 = vunpack.c.0.s8 %v608
      %v610 = vlaneseq
      %v611 = vshrl.u32 %v610, 7
      %v612 = vsub.s32 %v609, %v611
      %v613 = vrot.slane %v605, %v612
      %v615 = vunpack.c.l.s4 1934713408
      %v616 = vunpack.c.0.s8 %v615
      %v617 = vlaneseq
      %v618 = vshrl.u32 %v617, 7
      %v619 = vsub.s32 %v616, %v618
      %v620 = vrot.slane %v606, %v619
      %v621 = vcombine.high %v613, 0
      %v622 = vcombine.high %v620, 0
      %v623 = vcombine.low %v511, %v518
      %v625 = vunpack.c.l.s4 1983009808
      %v626 = vunpack.c.0.s8 %v625
      %v627 = vlaneseq
      %v628 = vshrl.u32 %v627, 7
      %v629 = vsub.s32 %v626, %v628
      %v630 = vrot.slane %v623, %v629
      %v631 = vcombine.low %v519, %v520
      %v633 = vunpack.c.l.s4 1983009808
      %v634 = vunpack.c.0.s8 %v633
      %v635 = vlaneseq
      %v636 = vshrl.u32 %v635, 7
      %v637 = vsub.s32 %v634, %v636
      %v638 = vrot.slane %v631, %v637
      %v639 = vcombine.low %v630, %v638
      %v641 = vunpack.c.l.s4 1934713408
      %v642 = vunpack.c.0.s8 %v641
      %v643 = vlaneseq
      %v644 = vshrl.u32 %v643, 7
      %v645 = vsub.s32 %v642, %v644
      %v646 = vrot.slane %v639, %v645
      %v647 = vcombine.high %v646, 0
      %v648 = vcombine.low %v545, %v552
      %v650 = vunpack.c.l.s4 1983009808
      %v651 = vunpack.c.0.s8 %v650
      %v652 = vlaneseq
      %v653 = vshrl.u32 %v652, 7
      %v654 = vsub.s32 %v651, %v653
      %v655 = vrot.slane %v648, %v654
      %v656 = vcombine.low %v553, %v554
      %v658 = vunpack.c.l.s4 1983009808
      %v659 = vunpack.c.0.s8 %v658
      %v660 = vlaneseq
      %v661 = vshrl.u32 %v660, 7
      %v662 = vsub.s32 %v659, %v661
      %v663 = vrot.slane %v656, %v662
      %v664 = vcombine.low %v655, %v663
      %v666 = vunpack.c.l.s4 1934713408
      %v667 = vunpack.c.0.s8 %v666
      %v668 = vlaneseq
      %v669 = vshrl.u32 %v668, 7
      %v670 = vsub.s32 %v667, %v669
      %v671 = vrot.slane %v664, %v670
      %v672 = vcombine.high %v671, 0
      %v673 = vcombine.low %v579, %v586
      %v675 = vunpack.c.l.s4 1983009808
      %v676 = vunpack.c.0.s8 %v675
      %v677 = vlaneseq
      %v678 = vshrl.u32 %v677, 7
      %v679 = vsub.s32 %v676, %v678
      %v680 = vrot.slane %v673, %v679
      %v681 = vcombine.low %v587, %v588
      %v683 = vunpack.c.l.s4 1983009808
      %v684 = vunpack.c.0.s8 %v683
      %v685 = vlaneseq
      %v686 = vshrl.u32 %v685, 7
      %v687 = vsub.s32 %v684, %v686
      %v688 = vrot.slane %v681, %v687
      %v689 = vcombine.low %v680, %v688
      %v691 = vunpack.c.l.s4 1934713408
      %v692 = vunpack.c.0.s8 %v691
      %v693 = vlaneseq
      %v694 = vshrl.u32 %v693, 7
      %v695 = vsub.s32 %v692, %v694
      %v696 = vrot.slane %v689, %v695
      %v697 = vcombine.high %v696, 0
      %v698 = vcombine.low %v613, %v620
      %v700 = vunpack.c.l.s4 1983009808
      %v701 = vunpack.c.0.s8 %v700
      %v702 = vlaneseq
      %v703 = vshrl.u32 %v702, 7
      %v704 = vsub.s32 %v701, %v703
      %v705 = vrot.slane %v698, %v704
      %v706 = vcombine.low %v621, %v622
      %v708 = vunpack.c.l.s4 1983009808
      %v709 = vunpack.c.0.s8 %v708
      %v710 = vlaneseq
      %v711 = vshrl.u32 %v710, 7
      %v712 = vsub.s32 %v709, %v711
      %v713 = vrot.slane %v706, %v712
      %v714 = vcombine.low %v705, %v713
      %v716 = vunpack.c.l.s4 1934713408
      %v717 = vunpack.c.0.s8 %v716
      %v718 = vlaneseq
      %v719 = vshrl.u32 %v718, 7
      %v720 = vsub.s32 %v717, %v719
      %v721 = vrot.slane %v714, %v720
      %v722 = vcombine.high %v721, 0
      %v725 = vpack.i.b16 %v671, %v646
      %v726 = vshrl.u32 %v646, 16
      %v727 = vshrl.u32 %v671, 16
      %v728 = vpack.i.b16 %v727, %v726
      %v731 = vpack.i.b16 %v672, %v647
      %v732 = vshrl.u32 %v647, 16
      %v733 = vshrl.u32 %v672, 16
      %v734 = vpack.i.b16 %v733, %v732
      %v737 = vpack.i.b16 %v721, %v696
      %v738 = vshrl.u32 %v696, 16
      %v739 = vshrl.u32 %v721, 16
      %v740 = vpack.i.b16 %v739, %v738
      %v743 = vpack.i.b16 %v722, %v697
      %v744 = vshrl.u32 %v697, 16
      %v745 = vshrl.u32 %v722, 16
      %v746 = vpack.i.b16 %v745, %v744
      %v747 = vld [vmem:[%s267] sm:$0xf]
      %v748 = vld [vmem:[%s267 + $0x4] sm:$0xf]
      %751 = vrot.lane.b32.xlu0 %v747, 120
      %v752 = vpop.permute.xlu0 %751
      %753 = vrot.lane.b32.xlu0 %v748, 120
      %v754 = vpop.permute.xlu0 %753
      %755 = vrot.lane.b32.xlu0 %v747, 112
      %v756 = vpop.permute.xlu0 %755
      %757 = vrot.lane.b32.xlu0 %v748, 112
      %v758 = vpop.permute.xlu0 %757
      %759 = vrot.lane.b32.xlu0 %v747, 104
      %v760 = vpop.permute.xlu0 %759
      %761 = vrot.lane.b32.xlu0 %v748, 104
      %v762 = vpop.permute.xlu0 %761
      %v765 = vpack.i.b16 %v752, %v747
      %v766 = vshrl.u32 %v747, 16
      %v767 = vshrl.u32 %v752, 16
      %v768 = vpack.i.b16 %v767, %v766
      %v771 = vpack.i.b16 %v760, %v756
      %v772 = vshrl.u32 %v756, 16
      %v773 = vshrl.u32 %v760, 16
      %v774 = vpack.i.b16 %v773, %v772
      %v777 = vpack.i.b16 %v754, %v748
      %v778 = vshrl.u32 %v748, 16
      %v779 = vshrl.u32 %v754, 16
      %v780 = vpack.i.b16 %v779, %v778
      %v783 = vpack.i.b16 %v762, %v758
      %v784 = vshrl.u32 %v758, 16
      %v785 = vshrl.u32 %v762, 16
      %v786 = vpack.i.b16 %v785, %v784
      %v789 = vunpack.c.l.s4 1983009808
      %v790 = vunpack.c.0.s8 %v789
      %v791 = vlaneseq
      %v792 = vshrl.u32 %v791, 7
      %v793 = vsub.s32 %v790, %v792
      %v794 = vrot.slane %v765, %v793
      %v797 = vunpack.c.l.s4 1983009808
      %v798 = vunpack.c.0.s8 %v797
      %v799 = vlaneseq
      %v800 = vshrl.u32 %v799, 7
      %v801 = vsub.s32 %v798, %v800
      %v802 = vrot.slane %v771, %v801
      %v803 = vcombine.low %v794, %v802
      %v804 = vcombine.high %v794, %v802
      %v806 = vunpack.c.l.s4 1934713408
      %v807 = vunpack.c.0.s8 %v806
      %v808 = vlaneseq
      %v809 = vshrl.u32 %v808, 7
      %v810 = vsub.s32 %v807, %v809
      %v811 = vrot.slane %v803, %v810
      %v813 = vunpack.c.l.s4 1934713408
      %v814 = vunpack.c.0.s8 %v813
      %v815 = vlaneseq
      %v816 = vshrl.u32 %v815, 7
      %v817 = vsub.s32 %v814, %v816
      %v818 = vrot.slane %v804, %v817
      %v819 = vcombine.high %v811, 0
      %v820 = vcombine.high %v818, 0
      %v823 = vunpack.c.l.s4 1983009808
      %v824 = vunpack.c.0.s8 %v823
      %v825 = vlaneseq
      %v826 = vshrl.u32 %v825, 7
      %v827 = vsub.s32 %v824, %v826
      %v828 = vrot.slane %v768, %v827
      %v831 = vunpack.c.l.s4 1983009808
      %v832 = vunpack.c.0.s8 %v831
      %v833 = vlaneseq
      %v834 = vshrl.u32 %v833, 7
      %v835 = vsub.s32 %v832, %v834
      %v836 = vrot.slane %v774, %v835
      %v837 = vcombine.low %v828, %v836
      %v838 = vcombine.high %v828, %v836
      %v840 = vunpack.c.l.s4 1934713408
      %v841 = vunpack.c.0.s8 %v840
      %v842 = vlaneseq
      %v843 = vshrl.u32 %v842, 7
      %v844 = vsub.s32 %v841, %v843
      %v845 = vrot.slane %v837, %v844
      %v847 = vunpack.c.l.s4 1934713408
      %v848 = vunpack.c.0.s8 %v847
      %v849 = vlaneseq
      %v850 = vshrl.u32 %v849, 7
      %v851 = vsub.s32 %v848, %v850
      %v852 = vrot.slane %v838, %v851
      %v853 = vcombine.high %v845, 0
      %v854 = vcombine.high %v852, 0
      %v857 = vunpack.c.l.s4 1983009808
      %v858 = vunpack.c.0.s8 %v857
      %v859 = vlaneseq
      %v860 = vshrl.u32 %v859, 7
      %v861 = vsub.s32 %v858, %v860
      %v862 = vrot.slane %v777, %v861
      %v865 = vunpack.c.l.s4 1983009808
      %v866 = vunpack.c.0.s8 %v865
      %v867 = vlaneseq
      %v868 = vshrl.u32 %v867, 7
      %v869 = vsub.s32 %v866, %v868
      %v870 = vrot.slane %v783, %v869
      %v871 = vcombine.low %v862, %v870
      %v872 = vcombine.high %v862, %v870
      %v874 = vunpack.c.l.s4 1934713408
      %v875 = vunpack.c.0.s8 %v874
      %v876 = vlaneseq
      %v877 = vshrl.u32 %v876, 7
      %v878 = vsub.s32 %v875, %v877
      %v879 = vrot.slane %v871, %v878
      %v881 = vunpack.c.l.s4 1934713408
      %v882 = vunpack.c.0.s8 %v881
      %v883 = vlaneseq
      %v884 = vshrl.u32 %v883, 7
      %v885 = vsub.s32 %v882, %v884
      %v886 = vrot.slane %v872, %v885
      %v887 = vcombine.high %v879, 0
      %v888 = vcombine.high %v886, 0
      %v891 = vunpack.c.l.s4 1983009808
      %v892 = vunpack.c.0.s8 %v891
      %v893 = vlaneseq
      %v894 = vshrl.u32 %v893, 7
      %v895 = vsub.s32 %v892, %v894
      %v896 = vrot.slane %v780, %v895
      %v899 = vunpack.c.l.s4 1983009808
      %v900 = vunpack.c.0.s8 %v899
      %v901 = vlaneseq
      %v902 = vshrl.u32 %v901, 7
      %v903 = vsub.s32 %v900, %v902
      %v904 = vrot.slane %v786, %v903
      %v905 = vcombine.low %v896, %v904
      %v906 = vcombine.high %v896, %v904
      %v908 = vunpack.c.l.s4 1934713408
      %v909 = vunpack.c.0.s8 %v908
      %v910 = vlaneseq
      %v911 = vshrl.u32 %v910, 7
      %v912 = vsub.s32 %v909, %v911
      %v913 = vrot.slane %v905, %v912
      %v915 = vunpack.c.l.s4 1934713408
      %v916 = vunpack.c.0.s8 %v915
      %v917 = vlaneseq
      %v918 = vshrl.u32 %v917, 7
      %v919 = vsub.s32 %v916, %v918
      %v920 = vrot.slane %v906, %v919
      %v921 = vcombine.high %v913, 0
      %v922 = vcombine.high %v920, 0
      %v923 = vcombine.low %v811, %v818
      %v925 = vunpack.c.l.s4 1983009808
      %v926 = vunpack.c.0.s8 %v925
      %v927 = vlaneseq
      %v928 = vshrl.u32 %v927, 7
      %v929 = vsub.s32 %v926, %v928
      %v930 = vrot.slane %v923, %v929
      %v931 = vcombine.low %v819, %v820
      %v933 = vunpack.c.l.s4 1983009808
      %v934 = vunpack.c.0.s8 %v933
      %v935 = vlaneseq
      %v936 = vshrl.u32 %v935, 7
      %v937 = vsub.s32 %v934, %v936
      %v938 = vrot.slane %v931, %v937
      %v939 = vcombine.low %v930, %v938
      %v941 = vunpack.c.l.s4 1934713408
      %v942 = vunpack.c.0.s8 %v941
      %v943 = vlaneseq
      %v944 = vshrl.u32 %v943, 7
      %v945 = vsub.s32 %v942, %v944
      %v946 = vrot.slane %v939, %v945
      %v947 = vcombine.high %v946, 0
      %v948 = vcombine.low %v845, %v852
      %v950 = vunpack.c.l.s4 1983009808
      %v951 = vunpack.c.0.s8 %v950
      %v952 = vlaneseq
      %v953 = vshrl.u32 %v952, 7
      %v954 = vsub.s32 %v951, %v953
      %v955 = vrot.slane %v948, %v954
      %v956 = vcombine.low %v853, %v854
      %v958 = vunpack.c.l.s4 1983009808
      %v959 = vunpack.c.0.s8 %v958
      %v960 = vlaneseq
      %v961 = vshrl.u32 %v960, 7
      %v962 = vsub.s32 %v959, %v961
      %v963 = vrot.slane %v956, %v962
      %v964 = vcombine.low %v955, %v963
      %v966 = vunpack.c.l.s4 1934713408
      %v967 = vunpack.c.0.s8 %v966
      %v968 = vlaneseq
      %v969 = vshrl.u32 %v968, 7
      %v970 = vsub.s32 %v967, %v969
      %v971 = vrot.slane %v964, %v970
      %v972 = vcombine.high %v971, 0
      %v973 = vcombine.low %v879, %v886
      %v975 = vunpack.c.l.s4 1983009808
      %v976 = vunpack.c.0.s8 %v975
      %v977 = vlaneseq
      %v978 = vshrl.u32 %v977, 7
      %v979 = vsub.s32 %v976, %v978
      %v980 = vrot.slane %v973, %v979
      %v981 = vcombine.low %v887, %v888
      %v983 = vunpack.c.l.s4 1983009808
      %v984 = vunpack.c.0.s8 %v983
      %v985 = vlaneseq
      %v986 = vshrl.u32 %v985, 7
      %v987 = vsub.s32 %v984, %v986
      %v988 = vrot.slane %v981, %v987
      %v989 = vcombine.low %v980, %v988
      %v991 = vunpack.c.l.s4 1934713408
      %v992 = vunpack.c.0.s8 %v991
      %v993 = vlaneseq
      %v994 = vshrl.u32 %v993, 7
      %v995 = vsub.s32 %v992, %v994
      %v996 = vrot.slane %v989, %v995
      %v997 = vcombine.high %v996, 0
      %v998 = vcombine.low %v913, %v920
      %v1000 = vunpack.c.l.s4 1983009808
      %v1001 = vunpack.c.0.s8 %v1000
      %v1002 = vlaneseq
      %v1003 = vshrl.u32 %v1002, 7
      %v1004 = vsub.s32 %v1001, %v1003
      %v1005 = vrot.slane %v998, %v1004
      %v1006 = vcombine.low %v921, %v922
      %v1008 = vunpack.c.l.s4 1983009808
      %v1009 = vunpack.c.0.s8 %v1008
      %v1010 = vlaneseq
      %v1011 = vshrl.u32 %v1010, 7
      %v1012 = vsub.s32 %v1009, %v1011
      %v1013 = vrot.slane %v1006, %v1012
      %v1014 = vcombine.low %v1005, %v1013
      %v1016 = vunpack.c.l.s4 1934713408
      %v1017 = vunpack.c.0.s8 %v1016
      %v1018 = vlaneseq
      %v1019 = vshrl.u32 %v1018, 7
      %v1020 = vsub.s32 %v1017, %v1019
      %v1021 = vrot.slane %v1014, %v1020
      %v1022 = vcombine.high %v1021, 0
      %v1025 = vpack.i.b16 %v971, %v946
      %v1026 = vshrl.u32 %v946, 16
      %v1027 = vshrl.u32 %v971, 16
      %v1028 = vpack.i.b16 %v1027, %v1026
      %v1031 = vpack.i.b16 %v972, %v947
      %v1032 = vshrl.u32 %v947, 16
      %v1033 = vshrl.u32 %v972, 16
      %v1034 = vpack.i.b16 %v1033, %v1032
      %v1037 = vpack.i.b16 %v1021, %v996
      %v1038 = vshrl.u32 %v996, 16
      %v1039 = vshrl.u32 %v1021, 16
      %v1040 = vpack.i.b16 %v1039, %v1038
      %v1043 = vpack.i.b16 %v1022, %v997
      %v1044 = vshrl.u32 %v997, 16
      %v1045 = vshrl.u32 %v1022, 16
      %v1046 = vpack.i.b16 %v1045, %v1044
      %v1047 = vunpack.c.l.b16 %v725
      %v1048 = vunpack.c.l.b16 %v737
      %v1049 = vpack.c.b16 %v1048, %v1047
      %vm1050 = vcmask 64512
      %v1052 = vsel %vm1050, %v437, 0
      %v1055 = vsel %vm1050, %v1049, 0
      %1057 = vmatprep.subr.bf16.mxu0 0
      %1058 = vmatpush1.bf16.xpose.msra.mxu0 %v1055
      %1059 = vmatprep.subr.bf16.mxu0 0
      %1060 = vmatpush1.bf16.xpose.msra.mxu0 0
      %1061 = vmatprep.subr.bf16.mxu0 0
      %1062 = vmatpush1.bf16.xpose.msra.mxu0 0
      %1063 = vmatprep.subr.bf16.mxu0 0
      %1064 = vmatpush1.bf16.xpose.msra.mxu0 0
      %1065 = vmatprep.subr.bf16.mxu0 0
      %1066 = vmatpush1.bf16.xpose.msra.mxu0 0
      %1067 = vmatprep.subr.bf16.mxu0 0
      %1068 = vmatpush1.bf16.xpose.msra.mxu0 0
      %1069 = vmatprep.subr.bf16.mxu0 0
      %1070 = vmatpush1.bf16.xpose.msra.mxu0 0
      %1071 = vmatprep.subr.bf16.mxu0 0
      %1072 = vmatpush1.bf16.xpose.msra.mxu0 0
      %1073 = vmatprep.subr.bf16.mxu0 0
      %1074 = vmatpush1.bf16.xpose.msra.mxu0 0
      %1075 = vmatprep.subr.bf16.mxu0 0
      %1076 = vmatpush1.bf16.xpose.msra.mxu0 0
      %1077 = vmatprep.subr.bf16.mxu0 0
      %1078 = vmatpush1.bf16.xpose.msra.mxu0 0
      %1079 = vmatprep.subr.bf16.mxu0 0
      %1080 = vmatpush1.bf16.xpose.msra.mxu0 0
      %1081 = vmatprep.subr.bf16.mxu0 0
      %1082 = vmatpush1.bf16.xpose.msra.mxu0 0
      %1083 = vmatprep.subr.bf16.mxu0 0
      %1084 = vmatpush1.bf16.xpose.msra.mxu0 0
      %1085 = vmatprep.subr.bf16.mxu0 0
      %1086 = vmatpush1.bf16.xpose.msra.mxu0 0
      %1087 = vmatprep.subr.bf16.mxu0 0
      %1088 = vmatpush1.bf16.xpose.msra.mxu0 0
      %1089 = vmatprep.mubr.bf16.mxu0 0
      %1090 = vmatmul.mubr.bf16.gmra.mrb[0].mxu0 %v1052
      %v1091 = vpop.f32.mrb[0].mxu0
      %v1092 = vadd.f32 0.0, %v1091
      %v1093 = vpop.f32.mrb[0].mxu0
      %v1094 = vpop.f32.mrb[0].mxu0
      %v1095 = vpop.f32.mrb[0].mxu0
      %1096 = vdwg.mxu0
      %v1097 = vunpack.c.l.b16 %v728
      %v1098 = vunpack.c.l.b16 %v740
      %v1099 = vpack.c.b16 %v1098, %v1097
      %v1101 = vsel %vm1050, %v440, 0
      %v1104 = vsel %vm1050, %v1099, 0
      %1106 = vmatprep.subr.bf16.mxu0 0
      %1107 = vmatpush1.bf16.xpose.msra.mxu0 %v1104
      %1108 = vmatprep.subr.bf16.mxu0 0
      %1109 = vmatpush1.bf16.xpose.msra.mxu0 0
      %1110 = vmatprep.subr.bf16.mxu0 0
      %1111 = vmatpush1.bf16.xpose.msra.mxu0 0
      %1112 = vmatprep.subr.bf16.mxu0 0
      %1113 = vmatpush1.bf16.xpose.msra.mxu0 0
      %1114 = vmatprep.subr.bf16.mxu0 0
      %1115 = vmatpush1.bf16.xpose.msra.mxu0 0
      %1116 = vmatprep.subr.bf16.mxu0 0
      %1117 = vmatpush1.bf16.xpose.msra.mxu0 0
      %1118 = vmatprep.subr.bf16.mxu0 0
      %1119 = vmatpush1.bf16.xpose.msra.mxu0 0
      %1120 = vmatprep.subr.bf16.mxu0 0
      %1121 = vmatpush1.bf16.xpose.msra.mxu0 0
      %1122 = vmatprep.subr.bf16.mxu0 0
      %1123 = vmatpush1.bf16.xpose.msra.mxu0 0
      %1124 = vmatprep.subr.bf16.mxu0 0
      %1125 = vmatpush1.bf16.xpose.msra.mxu0 0
      %1126 = vmatprep.subr.bf16.mxu0 0
      %1127 = vmatpush1.bf16.xpose.msra.mxu0 0
      %1128 = vmatprep.subr.bf16.mxu0 0
      %1129 = vmatpush1.bf16.xpose.msra.mxu0 0
      %1130 = vmatprep.subr.bf16.mxu0 0
      %1131 = vmatpush1.bf16.xpose.msra.mxu0 0
      %1132 = vmatprep.subr.bf16.mxu0 0
      %1133 = vmatpush1.bf16.xpose.msra.mxu0 0
      %1134 = vmatprep.subr.bf16.mxu0 0
      %1135 = vmatpush1.bf16.xpose.msra.mxu0 0
      %1136 = vmatprep.subr.bf16.mxu0 0
      %1137 = vmatpush1.bf16.xpose.msra.mxu0 0
      %1138 = vmatprep.mubr.bf16.mxu0 0
      %1139 = vmatmul.mubr.bf16.gmra.mrb[0].mxu0 %v1101
      %v1140 = vpop.f32.mrb[0].mxu0
      %v1141 = vadd.f32 0.0, %v1140
      %v1142 = vpop.f32.mrb[0].mxu0
      %v1143 = vpop.f32.mrb[0].mxu0
      %v1144 = vpop.f32.mrb[0].mxu0
      %1145 = vdwg.mxu0
      %v1146 = vunpack.c.l.b16 %v731
      %v1147 = vunpack.c.l.b16 %v743
      %v1148 = vpack.c.b16 %v1147, %v1146
      %v1150 = vsel %vm1050, %v443, 0
      %v1153 = vsel %vm1050, %v1148, 0
      %1155 = vmatprep.subr.bf16.mxu0 0
      %1156 = vmatpush1.bf16.xpose.msra.mxu0 %v1153
      %1157 = vmatprep.subr.bf16.mxu0 0
      %1158 = vmatpush1.bf16.xpose.msra.mxu0 0
      %1159 = vmatprep.subr.bf16.mxu0 0
      %1160 = vmatpush1.bf16.xpose.msra.mxu0 0
      %1161 = vmatprep.subr.bf16.mxu0 0
      %1162 = vmatpush1.bf16.xpose.msra.mxu0 0
      %1163 = vmatprep.subr.bf16.mxu0 0
      %1164 = vmatpush1.bf16.xpose.msra.mxu0 0
      %1165 = vmatprep.subr.bf16.mxu0 0
      %1166 = vmatpush1.bf16.xpose.msra.mxu0 0
      %1167 = vmatprep.subr.bf16.mxu0 0
      %1168 = vmatpush1.bf16.xpose.msra.mxu0 0
      %1169 = vmatprep.subr.bf16.mxu0 0
      %1170 = vmatpush1.bf16.xpose.msra.mxu0 0
      %1171 = vmatprep.subr.bf16.mxu0 0
      %1172 = vmatpush1.bf16.xpose.msra.mxu0 0
      %1173 = vmatprep.subr.bf16.mxu0 0
      %1174 = vmatpush1.bf16.xpose.msra.mxu0 0
      %1175 = vmatprep.subr.bf16.mxu0 0
      %1176 = vmatpush1.bf16.xpose.msra.mxu0 0
      %1177 = vmatprep.subr.bf16.mxu0 0
      %1178 = vmatpush1.bf16.xpose.msra.mxu0 0
      %1179 = vmatprep.subr.bf16.mxu0 0
      %1180 = vmatpush1.bf16.xpose.msra.mxu0 0
      %1181 = vmatprep.subr.bf16.mxu0 0
      %1182 = vmatpush1.bf16.xpose.msra.mxu0 0
      %1183 = vmatprep.subr.bf16.mxu0 0
      %1184 = vmatpush1.bf16.xpose.msra.mxu0 0
      %1185 = vmatprep.subr.bf16.mxu0 0
      %1186 = vmatpush1.bf16.xpose.msra.mxu0 0
      %1187 = vmatprep.mubr.bf16.mxu0 0
      %1188 = vmatmul.mubr.bf16.gmra.mrb[0].mxu0 %v1150
      %v1189 = vpop.f32.mrb[0].mxu0
      %v1190 = vadd.f32 0.0, %v1189
      %v1191 = vpop.f32.mrb[0].mxu0
      %v1192 = vpop.f32.mrb[0].mxu0
      %v1193 = vpop.f32.mrb[0].mxu0
      %1194 = vdwg.mxu0
      %v1195 = vunpack.c.l.b16 %v734
      %v1196 = vunpack.c.l.b16 %v746
      %v1197 = vpack.c.b16 %v1196, %v1195
      %v1199 = vsel %vm1050, %v446, 0
      %v1202 = vsel %vm1050, %v1197, 0
      %1204 = vmatprep.subr.bf16.mxu0 0
      %1205 = vmatpush1.bf16.xpose.msra.mxu0 %v1202
      %1206 = vmatprep.subr.bf16.mxu0 0
      %1207 = vmatpush1.bf16.xpose.msra.mxu0 0
      %1208 = vmatprep.subr.bf16.mxu0 0
      %1209 = vmatpush1.bf16.xpose.msra.mxu0 0
      %1210 = vmatprep.subr.bf16.mxu0 0
      %1211 = vmatpush1.bf16.xpose.msra.mxu0 0
      %1212 = vmatprep.subr.bf16.mxu0 0
      %1213 = vmatpush1.bf16.xpose.msra.mxu0 0
      %1214 = vmatprep.subr.bf16.mxu0 0
      %1215 = vmatpush1.bf16.xpose.msra.mxu0 0
      %1216 = vmatprep.subr.bf16.mxu0 0
      %1217 = vmatpush1.bf16.xpose.msra.mxu0 0
      %1218 = vmatprep.subr.bf16.mxu0 0
      %1219 = vmatpush1.bf16.xpose.msra.mxu0 0
      %1220 = vmatprep.subr.bf16.mxu0 0
      %1221 = vmatpush1.bf16.xpose.msra.mxu0 0
      %1222 = vmatprep.subr.bf16.mxu0 0
      %1223 = vmatpush1.bf16.xpose.msra.mxu0 0
      %1224 = vmatprep.subr.bf16.mxu0 0
      %1225 = vmatpush1.bf16.xpose.msra.mxu0 0
      %1226 = vmatprep.subr.bf16.mxu0 0
      %1227 = vmatpush1.bf16.xpose.msra.mxu0 0
      %1228 = vmatprep.subr.bf16.mxu0 0
      %1229 = vmatpush1.bf16.xpose.msra.mxu0 0
      %1230 = vmatprep.subr.bf16.mxu0 0
      %1231 = vmatpush1.bf16.xpose.msra.mxu0 0
      %1232 = vmatprep.subr.bf16.mxu0 0
      %1233 = vmatpush1.bf16.xpose.msra.mxu0 0
      %1234 = vmatprep.subr.bf16.mxu0 0
      %1235 = vmatpush1.bf16.xpose.msra.mxu0 0
      %1236 = vmatprep.mubr.bf16.mxu0 0
      %1237 = vmatmul.mubr.bf16.gmra.mrb[0].mxu0 %v1199
      %v1238 = vpop.f32.mrb[0].mxu0
      %v1239 = vadd.f32 0.0, %v1238
      %v1240 = vpop.f32.mrb[0].mxu0
      %v1241 = vpop.f32.mrb[0].mxu0
      %v1242 = vpop.f32.mrb[0].mxu0
      %1243 = vdwg.mxu0
      %v1244 = vld [vmem:[#allocation2] sm:$0xff]
      %v1245 = vld [vmem:[#allocation2 + $0x8] sm:$0xff]
      %v1246 = vld [vmem:[#allocation2 + $0x10] sm:$0xff]
      %v1247 = vld [vmem:[#allocation2 + $0x18] sm:$0xff]
      %vm1248 = vcmask 130048
      %v1249 = vsel %vm1248, %v1092, -inf
      %1250 = vmax.xlane.f32.xlu0 %v1249
      %v1251 = vpop.xlane.xlu0 %1250
      %v1252 = vsel %vm1248, %v1141, -inf
      %1253 = vmax.xlane.f32.xlu0 %v1252
      %v1254 = vpop.xlane.xlu0 %1253
      %v1255 = vsel %vm1248, %v1190, -inf
      %1256 = vmax.xlane.f32.xlu0 %v1255
      %v1257 = vpop.xlane.xlu0 %1256
      %v1258 = vsel %vm1248, %v1239, -inf
      %1259 = vmax.xlane.f32.xlu0 %v1258
      %v1260 = vpop.xlane.xlu0 %1259
      %v1261 = vmax.f32 %v1244, %v1251
      %v1262 = vmax.f32 %v1245, %v1254
      %v1263 = vmax.f32 %v1246, %v1257
      %v1264 = vmax.f32 %v1247, %v1260
      %v1265 = vsub.f32 %v1244, %v1261
      %v1266 = vsub.f32 %v1245, %v1262
      %v1267 = vsub.f32 %v1246, %v1263
      %v1268 = vsub.f32 %v1247, %v1264
      %v1269 = vmul.f32 %v1265, 1.442695
      %v1270 = vpow.pop %v1269
      %v1271 = vmul.f32 %v1266, 1.442695
      %v1272 = vpow.pop %v1271
      %v1273 = vmul.f32 %v1267, 1.442695
      %v1274 = vpow.pop %v1273
      %v1275 = vmul.f32 %v1268, 1.442695
      %v1276 = vpow.pop %v1275
      %1278 = vset.pattern.permute.xlu0 0
      %1279 = vperm.xlu0 %1278, %v1261
      %v1280 = vpop.permute.xlu0 %1279
      %1283 = vset.pattern.permute.xlu0 0
      %1284 = vperm.xlu0 %1283, %v1262
      %v1285 = vpop.permute.xlu0 %1284
      %1288 = vset.pattern.permute.xlu0 0
      %1289 = vperm.xlu0 %1288, %v1263
      %v1290 = vpop.permute.xlu0 %1289
      %1293 = vset.pattern.permute.xlu0 0
      %1294 = vperm.xlu0 %1293, %v1264
      %v1295 = vpop.permute.xlu0 %1294
      %v1297 = vsub.f32 %v1092, %v1280
      %v1298 = vsub.f32 %v1141, %v1285
      %v1299 = vsub.f32 %v1190, %v1290
      %v1300 = vsub.f32 %v1239, %v1295
      %v1301 = vmul.f32 %v1297, 1.442695
      %v1302 = vpow.pop %v1301
      %v1303 = vmul.f32 %v1298, 1.442695
      %v1304 = vpow.pop %v1303
      %v1305 = vmul.f32 %v1299, 1.442695
      %v1306 = vpow.pop %v1305
      %v1307 = vmul.f32 %v1300, 1.442695
      %v1308 = vpow.pop %v1307
      %v1309 = vld [vmem:[#allocation3] sm:$0xff]
      %v1310 = vld [vmem:[#allocation3 + $0x8] sm:$0xff]
      %v1311 = vld [vmem:[#allocation3 + $0x10] sm:$0xff]
      %v1312 = vld [vmem:[#allocation3 + $0x18] sm:$0xff]
      %v1313 = vmul.f32 %v1270, %v1309
      %v1314 = vmul.f32 %v1272, %v1310
      %v1315 = vmul.f32 %v1274, %v1311
      %v1316 = vmul.f32 %v1276, %v1312
      %v1317 = vsel %vm1248, %v1302, 0.0
      %1318 = vadd.xlane.f32.xlu0 %v1317
      %v1319 = vpop.xlane.xlu0 %1318
      %v1320 = vsel %vm1248, %v1304, 0.0
      %1321 = vadd.xlane.f32.xlu0 %v1320
      %v1322 = vpop.xlane.xlu0 %1321
      %v1323 = vsel %vm1248, %v1306, 0.0
      %1324 = vadd.xlane.f32.xlu0 %v1323
      %v1325 = vpop.xlane.xlu0 %1324
      %v1326 = vsel %vm1248, %v1308, 0.0
      %1327 = vadd.xlane.f32.xlu0 %v1326
      %v1328 = vpop.xlane.xlu0 %1327
      %v1329 = vadd.f32 %v1313, %v1319
      %v1330 = vadd.f32 %v1314, %v1322
      %v1331 = vadd.f32 %v1315, %v1325
      %v1332 = vadd.f32 %v1316, %v1328
      %vm1333 = vcmask 7168
      %1334 = vst.msk [vmem:[#allocation3] sm:$0xff] %vm1333, %v1329
      %1335 = vst.msk [vmem:[#allocation3 + $0x8] sm:$0xff] %vm1333, %v1330
      %1336 = vst.msk [vmem:[#allocation3 + $0x10] sm:$0xff] %vm1333, %v1331
      %1337 = vst.msk [vmem:[#allocation3 + $0x18] sm:$0xff] %vm1333, %v1332
      %v1338 = vld [vmem:[#allocation4] sm:$0xff]
      %v1339 = vld [vmem:[#allocation4 + $0x8] sm:$0xff]
      %v1340 = vld [vmem:[#allocation4 + $0x10] sm:$0xff]
      %v1341 = vld [vmem:[#allocation4 + $0x18] sm:$0xff]
      %1343 = vset.pattern.permute.xlu0 0
      %1344 = vperm.xlu0 %1343, %v1270
      %v1345 = vpop.permute.xlu0 %1344
      %1348 = vset.pattern.permute.xlu0 0
      %1349 = vperm.xlu0 %1348, %v1272
      %v1350 = vpop.permute.xlu0 %1349
      %1353 = vset.pattern.permute.xlu0 0
      %1354 = vperm.xlu0 %1353, %v1274
      %v1355 = vpop.permute.xlu0 %1354
      %1358 = vset.pattern.permute.xlu0 0
      %1359 = vperm.xlu0 %1358, %v1276
      %v1360 = vpop.permute.xlu0 %1359
      %v1362 = vmul.f32 %v1345, %v1338
      %v1363 = vmul.f32 %v1350, %v1339
      %v1364 = vmul.f32 %v1355, %v1340
      %v1365 = vmul.f32 %v1360, %v1341
      %v1366 = vpack.c.bf16 %v1302, %v1302
      %v1367 = vpack.c.bf16 %v1304, %v1304
      %v1368 = vpack.c.bf16 %v1306, %v1306
      %v1369 = vpack.c.bf16 %v1308, %v1308
      %v1370 = vunpack.c.l.b16 %v1025
      %v1371 = vunpack.c.l.b16 %v1037
      %v1372 = vpack.c.b16 %v1371, %v1370
      %v1375 = vsel %vm1248, %v1366, 0
      %1377 = vmatprep.subr.bf16.mxu0 0
      %1378 = vmatpush1.bf16.msra.mxu0 %v1372
      %1379 = vmatprep.subr.bf16.mxu0 0
      %1380 = vmatpush1.bf16.msra.mxu0 0
      %1381 = vmatprep.subr.bf16.mxu0 0
      %1382 = vmatpush1.bf16.msra.mxu0 0
      %1383 = vmatprep.subr.bf16.mxu0 0
      %1384 = vmatpush1.bf16.msra.mxu0 0
      %1385 = vmatprep.subr.bf16.mxu0 0
      %1386 = vmatpush1.bf16.msra.mxu0 0
      %1387 = vmatprep.subr.bf16.mxu0 0
      %1388 = vmatpush1.bf16.msra.mxu0 0
      %1389 = vmatprep.subr.bf16.mxu0 0
      %1390 = vmatpush1.bf16.msra.mxu0 0
      %1391 = vmatprep.subr.bf16.mxu0 0
      %1392 = vmatpush1.bf16.msra.mxu0 0
      %1393 = vmatprep.subr.bf16.mxu0 0
      %1394 = vmatpush1.bf16.msra.mxu0 0
      %1395 = vmatprep.subr.bf16.mxu0 0
      %1396 = vmatpush1.bf16.msra.mxu0 0
      %1397 = vmatprep.subr.bf16.mxu0 0
      %1398 = vmatpush1.bf16.msra.mxu0 0
      %1399 = vmatprep.subr.bf16.mxu0 0
      %1400 = vmatpush1.bf16.msra.mxu0 0
      %1401 = vmatprep.subr.bf16.mxu0 0
      %1402 = vmatpush1.bf16.msra.mxu0 0
      %1403 = vmatprep.subr.bf16.mxu0 0
      %1404 = vmatpush1.bf16.msra.mxu0 0
      %1405 = vmatprep.subr.bf16.mxu0 0
      %1406 = vmatpush1.bf16.msra.mxu0 0
      %1407 = vmatprep.subr.bf16.mxu0 0
      %1408 = vmatpush1.bf16.msra.mxu0 0
      %1409 = vmatprep.mubr.bf16.mxu0 0
      %1410 = vmatmul.mubr.bf16.gmra.mrb[0].mxu0 %v1375
      %v1411 = vpop.f32.mrb[0].mxu0
      %v1412 = vadd.f32 0.0, %v1411
      %v1413 = vpop.f32.mrb[0].mxu0
      %v1414 = vpop.f32.mrb[0].mxu0
      %v1415 = vpop.f32.mrb[0].mxu0
      %1416 = vdwg.mxu0
      %v1417 = vunpack.c.l.b16 %v1028
      %v1418 = vunpack.c.l.b16 %v1040
      %v1419 = vpack.c.b16 %v1418, %v1417
      %v1422 = vsel %vm1248, %v1367, 0
      %1424 = vmatprep.subr.bf16.mxu0 0
      %1425 = vmatpush1.bf16.msra.mxu0 %v1419
      %1426 = vmatprep.subr.bf16.mxu0 0
      %1427 = vmatpush1.bf16.msra.mxu0 0
      %1428 = vmatprep.subr.bf16.mxu0 0
      %1429 = vmatpush1.bf16.msra.mxu0 0
      %1430 = vmatprep.subr.bf16.mxu0 0
      %1431 = vmatpush1.bf16.msra.mxu0 0
      %1432 = vmatprep.subr.bf16.mxu0 0
      %1433 = vmatpush1.bf16.msra.mxu0 0
      %1434 = vmatprep.subr.bf16.mxu0 0
      %1435 = vmatpush1.bf16.msra.mxu0 0
      %1436 = vmatprep.subr.bf16.mxu0 0
      %1437 = vmatpush1.bf16.msra.mxu0 0
      %1438 = vmatprep.subr.bf16.mxu0 0
      %1439 = vmatpush1.bf16.msra.mxu0 0
      %1440 = vmatprep.subr.bf16.mxu0 0
      %1441 = vmatpush1.bf16.msra.mxu0 0
      %1442 = vmatprep.subr.bf16.mxu0 0
      %1443 = vmatpush1.bf16.msra.mxu0 0
      %1444 = vmatprep.subr.bf16.mxu0 0
      %1445 = vmatpush1.bf16.msra.mxu0 0
      %1446 = vmatprep.subr.bf16.mxu0 0
      %1447 = vmatpush1.bf16.msra.mxu0 0
      %1448 = vmatprep.subr.bf16.mxu0 0
      %1449 = vmatpush1.bf16.msra.mxu0 0
      %1450 = vmatprep.subr.bf16.mxu0 0
      %1451 = vmatpush1.bf16.msra.mxu0 0
      %1452 = vmatprep.subr.bf16.mxu0 0
      %1453 = vmatpush1.bf16.msra.mxu0 0
      %1454 = vmatprep.subr.bf16.mxu0 0
      %1455 = vmatpush1.bf16.msra.mxu0 0
      %1456 = vmatprep.mubr.bf16.mxu0 0
      %1457 = vmatmul.mubr.bf16.gmra.mrb[0].mxu0 %v1422
      %v1458 = vpop.f32.mrb[0].mxu0
      %v1459 = vadd.f32 0.0, %v1458
      %v1460 = vpop.f32.mrb[0].mxu0
      %v1461 = vpop.f32.mrb[0].mxu0
      %v1462 = vpop.f32.mrb[0].mxu0
      %1463 = vdwg.mxu0
      %v1464 = vunpack.c.l.b16 %v1031
      %v1465 = vunpack.c.l.b16 %v1043
      %v1466 = vpack.c.b16 %v1465, %v1464
      %v1469 = vsel %vm1248, %v1368, 0
      %1471 = vmatprep.subr.bf16.mxu0 0
      %1472 = vmatpush1.bf16.msra.mxu0 %v1466
      %1473 = vmatprep.subr.bf16.mxu0 0
      %1474 = vmatpush1.bf16.msra.mxu0 0
      %1475 = vmatprep.subr.bf16.mxu0 0
      %1476 = vmatpush1.bf16.msra.mxu0 0
      %1477 = vmatprep.subr.bf16.mxu0 0
      %1478 = vmatpush1.bf16.msra.mxu0 0
      %1479 = vmatprep.subr.bf16.mxu0 0
      %1480 = vmatpush1.bf16.msra.mxu0 0
      %1481 = vmatprep.subr.bf16.mxu0 0
      %1482 = vmatpush1.bf16.msra.mxu0 0
      %1483 = vmatprep.subr.bf16.mxu0 0
      %1484 = vmatpush1.bf16.msra.mxu0 0
      %1485 = vmatprep.subr.bf16.mxu0 0
      %1486 = vmatpush1.bf16.msra.mxu0 0
      %1487 = vmatprep.subr.bf16.mxu0 0
      %1488 = vmatpush1.bf16.msra.mxu0 0
      %1489 = vmatprep.subr.bf16.mxu0 0
      %1490 = vmatpush1.bf16.msra.mxu0 0
      %1491 = vmatprep.subr.bf16.mxu0 0
      %1492 = vmatpush1.bf16.msra.mxu0 0
      %1493 = vmatprep.subr.bf16.mxu0 0
      %1494 = vmatpush1.bf16.msra.mxu0 0
      %1495 = vmatprep.subr.bf16.mxu0 0
      %1496 = vmatpush1.bf16.msra.mxu0 0
      %1497 = vmatprep.subr.bf16.mxu0 0
      %1498 = vmatpush1.bf16.msra.mxu0 0
      %1499 = vmatprep.subr.bf16.mxu0 0
      %1500 = vmatpush1.bf16.msra.mxu0 0
      %1501 = vmatprep.subr.bf16.mxu0 0
      %1502 = vmatpush1.bf16.msra.mxu0 0
      %1503 = vmatprep.mubr.bf16.mxu0 0
      %1504 = vmatmul.mubr.bf16.gmra.mrb[0].mxu0 %v1469
      %v1505 = vpop.f32.mrb[0].mxu0
      %v1506 = vadd.f32 0.0, %v1505
      %v1507 = vpop.f32.mrb[0].mxu0
      %v1508 = vpop.f32.mrb[0].mxu0
      %v1509 = vpop.f32.mrb[0].mxu0
      %1510 = vdwg.mxu0
      %v1511 = vunpack.c.l.b16 %v1034
      %v1512 = vunpack.c.l.b16 %v1046
      %v1513 = vpack.c.b16 %v1512, %v1511
      %v1516 = vsel %vm1248, %v1369, 0
      %1518 = vmatprep.subr.bf16.mxu0 0
      %1519 = vmatpush1.bf16.msra.mxu0 %v1513
      %1520 = vmatprep.subr.bf16.mxu0 0
      %1521 = vmatpush1.bf16.msra.mxu0 0
      %1522 = vmatprep.subr.bf16.mxu0 0
      %1523 = vmatpush1.bf16.msra.mxu0 0
      %1524 = vmatprep.subr.bf16.mxu0 0
      %1525 = vmatpush1.bf16.msra.mxu0 0
      %1526 = vmatprep.subr.bf16.mxu0 0
      %1527 = vmatpush1.bf16.msra.mxu0 0
      %1528 = vmatprep.subr.bf16.mxu0 0
      %1529 = vmatpush1.bf16.msra.mxu0 0
      %1530 = vmatprep.subr.bf16.mxu0 0
      %1531 = vmatpush1.bf16.msra.mxu0 0
      %1532 = vmatprep.subr.bf16.mxu0 0
      %1533 = vmatpush1.bf16.msra.mxu0 0
      %1534 = vmatprep.subr.bf16.mxu0 0
      %1535 = vmatpush1.bf16.msra.mxu0 0
      %1536 = vmatprep.subr.bf16.mxu0 0
      %1537 = vmatpush1.bf16.msra.mxu0 0
      %1538 = vmatprep.subr.bf16.mxu0 0
      %1539 = vmatpush1.bf16.msra.mxu0 0
      %1540 = vmatprep.subr.bf16.mxu0 0
      %1541 = vmatpush1.bf16.msra.mxu0 0
      %1542 = vmatprep.subr.bf16.mxu0 0
      %1543 = vmatpush1.bf16.msra.mxu0 0
      %1544 = vmatprep.subr.bf16.mxu0 0
      %1545 = vmatpush1.bf16.msra.mxu0 0
      %1546 = vmatprep.subr.bf16.mxu0 0
      %1547 = vmatpush1.bf16.msra.mxu0 0
      %1548 = vmatprep.subr.bf16.mxu0 0
      %1549 = vmatpush1.bf16.msra.mxu0 0
      %1550 = vmatprep.mubr.bf16.mxu0 0
      %1551 = vmatmul.mubr.bf16.gmra.mrb[0].mxu0 %v1516
      %v1552 = vpop.f32.mrb[0].mxu0
      %v1553 = vadd.f32 0.0, %v1552
      %v1554 = vpop.f32.mrb[0].mxu0
      %v1555 = vpop.f32.mrb[0].mxu0
      %v1556 = vpop.f32.mrb[0].mxu0
      %1557 = vdwg.mxu0
      %v1558 = vadd.f32 %v1362, %v1412
      %v1559 = vadd.f32 %v1363, %v1459
      %v1560 = vadd.f32 %v1364, %v1506
      %v1561 = vadd.f32 %v1365, %v1553
      %1562 = vst.msk [vmem:[#allocation4] sm:$0xff] %vm1050, %v1558
      %1563 = vst.msk [vmem:[#allocation4 + $0x8] sm:$0xff] %vm1050, %v1559
      %1564 = vst.msk [vmem:[#allocation4 + $0x10] sm:$0xff] %vm1050, %v1560
      %1565 = vst.msk [vmem:[#allocation4 + $0x18] sm:$0xff] %vm1050, %v1561
      %1566 = vst.msk [vmem:[#allocation2] sm:$0xff] %vm1333, %v1261
      %1567 = vst.msk [vmem:[#allocation2 + $0x8] sm:$0xff] %vm1333, %v1262
      %1568 = vst.msk [vmem:[#allocation2 + $0x10] sm:$0xff] %vm1333, %v1263
      %1569 = vst.msk [vmem:[#allocation2 + $0x18] sm:$0xff] %vm1333, %v1264
      // Predicated region
      $region37: #{transformer_decoder.22} parent=31 // pred_check
        %p1570 = pneg %p278
      $region38: #{transformer_decoder.22} parent=31 // pred_check_branch
        %1572 = sbr.rel (%p1570) target = $region40
      $region39: #{transformer_decoder.22} parent=31 // pred_region
        %v1573 = vld [vmem:[#allocation4] sm:$0xff]
        %v1574 = vld [vmem:[#allocation4 + $0x8] sm:$0xff]
        %v1575 = vld [vmem:[#allocation4 + $0x10] sm:$0xff]
        %v1576 = vld [vmem:[#allocation4 + $0x18] sm:$0xff]
        %v1577 = vld [vmem:[#allocation3] sm:$0xff]
        %v1578 = vld [vmem:[#allocation3 + $0x8] sm:$0xff]
        %v1579 = vld [vmem:[#allocation3 + $0x10] sm:$0xff]
        %v1580 = vld [vmem:[#allocation3 + $0x18] sm:$0xff]
        %v1581 = vrcp.pop %v1577
        %v1582 = vrcp.pop %v1578
        %v1583 = vrcp.pop %v1579
        %v1584 = vrcp.pop %v1580
        %1586 = vset.pattern.permute.xlu0 0
        %1587 = vperm.xlu0 %1586, %v1581
        %v1588 = vpop.permute.xlu0 %1587
        %1591 = vset.pattern.permute.xlu0 0
        %1592 = vperm.xlu0 %1591, %v1582
        %v1593 = vpop.permute.xlu0 %1592
        %1596 = vset.pattern.permute.xlu0 0
        %1597 = vperm.xlu0 %1596, %v1583
        %v1598 = vpop.permute.xlu0 %1597
        %1601 = vset.pattern.permute.xlu0 0
        %1602 = vperm.xlu0 %1601, %v1584
        %v1603 = vpop.permute.xlu0 %1602
        %v1605 = vmul.f32 %v1573, %v1588
        %v1606 = vmul.f32 %v1574, %v1593
        %v1607 = vmul.f32 %v1575, %v1598
        %v1608 = vmul.f32 %v1576, %v1603
        %v1609 = vcombine.low %v1605, %v1607
        %v1610 = vcombine.high %v1605, %v1607
        %v1612 = vunpack.c.l.s4 1983009808
        %v1613 = vunpack.c.0.s8 %v1612
        %v1614 = vlaneseq
        %v1615 = vshrl.u32 %v1614, 7
        %v1616 = vsub.s32 %v1613, %v1615
        %v1617 = vrot.slane %v1609, %v1616
        %v1619 = vunpack.c.l.s4 1983009808
        %v1620 = vunpack.c.0.s8 %v1619
        %v1621 = vlaneseq
        %v1622 = vshrl.u32 %v1621, 7
        %v1623 = vsub.s32 %v1620, %v1622
        %v1624 = vrot.slane %v1610, %v1623
        %v1625 = vcombine.low %v1606, %v1608
        %v1626 = vcombine.high %v1606, %v1608
        %v1628 = vunpack.c.l.s4 1983009808
        %v1629 = vunpack.c.0.s8 %v1628
        %v1630 = vlaneseq
        %v1631 = vshrl.u32 %v1630, 7
        %v1632 = vsub.s32 %v1629, %v1631
        %v1633 = vrot.slane %v1625, %v1632
        %v1635 = vunpack.c.l.s4 1983009808
        %v1636 = vunpack.c.0.s8 %v1635
        %v1637 = vlaneseq
        %v1638 = vshrl.u32 %v1637, 7
        %v1639 = vsub.s32 %v1636, %v1638
        %v1640 = vrot.slane %v1626, %v1639
        %v1641 = vcombine.low %v1617, %v1633
        %v1642 = vcombine.high %v1617, %v1633
        %v1644 = vunpack.c.l.s4 1934713408
        %v1645 = vunpack.c.0.s8 %v1644
        %v1646 = vlaneseq
        %v1647 = vshrl.u32 %v1646, 7
        %v1648 = vsub.s32 %v1645, %v1647
        %v1649 = vrot.slane %v1641, %v1648
        %v1651 = vunpack.c.l.s4 1934713408
        %v1652 = vunpack.c.0.s8 %v1651
        %v1653 = vlaneseq
        %v1654 = vshrl.u32 %v1653, 7
        %v1655 = vsub.s32 %v1652, %v1654
        %v1656 = vrot.slane %v1642, %v1655
        %v1657 = vcombine.low %v1624, %v1640
        %v1658 = vcombine.high %v1624, %v1640
        %v1660 = vunpack.c.l.s4 1934713408
        %v1661 = vunpack.c.0.s8 %v1660
        %v1662 = vlaneseq
        %v1663 = vshrl.u32 %v1662, 7
        %v1664 = vsub.s32 %v1661, %v1663
        %v1665 = vrot.slane %v1657, %v1664
        %v1667 = vunpack.c.l.s4 1934713408
        %v1668 = vunpack.c.0.s8 %v1667
        %v1669 = vlaneseq
        %v1670 = vshrl.u32 %v1669, 7
        %v1671 = vsub.s32 %v1668, %v1670
        %v1672 = vrot.slane %v1658, %v1671
        %v1673 = vcombine.high %v1649, 0.0
        %v1674 = vcombine.high %v1656, 0.0
        %v1675 = vcombine.high %v1665, 0.0
        %v1676 = vcombine.high %v1672, 0.0
        %v1677 = vcombine.low %v1649, %v1656
        %v1679 = vunpack.c.l.s4 1983009808
        %v1680 = vunpack.c.0.s8 %v1679
        %v1681 = vlaneseq
        %v1682 = vshrl.u32 %v1681, 7
        %v1683 = vsub.s32 %v1680, %v1682
        %v1684 = vrot.slane %v1677, %v1683
        %v1685 = vcombine.low %v1673, %v1674
        %v1687 = vunpack.c.l.s4 1983009808
        %v1688 = vunpack.c.0.s8 %v1687
        %v1689 = vlaneseq
        %v1690 = vshrl.u32 %v1689, 7
        %v1691 = vsub.s32 %v1688, %v1690
        %v1692 = vrot.slane %v1685, %v1691
        %v1693 = vcombine.low %v1665, %v1672
        %v1695 = vunpack.c.l.s4 1983009808
        %v1696 = vunpack.c.0.s8 %v1695
        %v1697 = vlaneseq
        %v1698 = vshrl.u32 %v1697, 7
        %v1699 = vsub.s32 %v1696, %v1698
        %v1700 = vrot.slane %v1693, %v1699
        %v1701 = vcombine.low %v1675, %v1676
        %v1703 = vunpack.c.l.s4 1983009808
        %v1704 = vunpack.c.0.s8 %v1703
        %v1705 = vlaneseq
        %v1706 = vshrl.u32 %v1705, 7
        %v1707 = vsub.s32 %v1704, %v1706
        %v1708 = vrot.slane %v1701, %v1707
        %v1709 = vcombine.low %v1684, %v1692
        %v1710 = vcombine.high %v1684, %v1692
        %v1712 = vunpack.c.l.s4 1934713408
        %v1713 = vunpack.c.0.s8 %v1712
        %v1714 = vlaneseq
        %v1715 = vshrl.u32 %v1714, 7
        %v1716 = vsub.s32 %v1713, %v1715
        %v1717 = vrot.slane %v1709, %v1716
        %v1719 = vunpack.c.l.s4 1934713408
        %v1720 = vunpack.c.0.s8 %v1719
        %v1721 = vlaneseq
        %v1722 = vshrl.u32 %v1721, 7
        %v1723 = vsub.s32 %v1720, %v1722
        %v1724 = vrot.slane %v1710, %v1723
        %v1725 = vcombine.low %v1700, %v1708
        %v1726 = vcombine.high %v1700, %v1708
        %v1728 = vunpack.c.l.s4 1934713408
        %v1729 = vunpack.c.0.s8 %v1728
        %v1730 = vlaneseq
        %v1731 = vshrl.u32 %v1730, 7
        %v1732 = vsub.s32 %v1729, %v1731
        %v1733 = vrot.slane %v1725, %v1732
        %v1735 = vunpack.c.l.s4 1934713408
        %v1736 = vunpack.c.0.s8 %v1735
        %v1737 = vlaneseq
        %v1738 = vshrl.u32 %v1737, 7
        %v1739 = vsub.s32 %v1736, %v1738
        %v1740 = vrot.slane %v1726, %v1739
        %v1741 = vcombine.low %v1717, %v1733
        %v1742 = vcombine.high %v1717, %v1733
        %v1743 = vcombine.low %v1724, %v1740
        %v1744 = vcombine.high %v1724, %v1740
        %1746 = vrot.lane.b32.xlu0 %v1742, 8
        %v1747 = vpop.permute.xlu0 %1746
        %1750 = vrot.lane.b32.xlu0 %v1743, 16
        %v1751 = vpop.permute.xlu0 %1750
        %1754 = vrot.lane.b32.xlu0 %v1744, 24
        %v1755 = vpop.permute.xlu0 %1754
        %v1757 = vsel %vm1050, %v1741, %v1747
        %v1758 = vsel %vm1248, %v1757, %v1751
        %vm1759 = vcmask 195584
        %v1760 = vsel %vm1759, %v1758, %v1755
        %v1761 = vpack.c.bf16 %v1760, %v1760
        %vm1762 = vcmask 257024
        %1763 = vst.msk [vmem:[%s275] sm:$0xf] %vm1762, %v1761
      $region40: #{transformer_decoder.22} parent=31 // pred_fallthru
        _
      %p1764 = scmp.lt.s32.totalorder %s19, 1
      %s1765 = scalar_select %p1764, %s19, 1
      %p1766 = scmp.lt.s32.totalorder %s20, 0
      %s1767 = scalar_select %p1766, %s20, 0
      %s1768 = sadd.s32 %s1767, %s1765
      %s1769 = smul.addr %s1768, 4
      %s1770 = scalar_lea.vmem %s3, %s1769
      // Predicated region
      $region41: #{transformer_decoder.22} parent=31 // pred_check
        %p1771 = pneg %p137
      $region42: #{transformer_decoder.22} parent=31 // pred_check_branch
        %1773 = sbr.rel (%p1771) target = $region44
      $region43: #{transformer_decoder.22} parent=31 // pred_region
        _
      $region44: #{transformer_decoder.22} parent=31 // pred_fallthru
        _
    $region32: #{transformer_decoder.22} parent=5 // pred_fallthru
      _
    %p1774 = scmp.le.s32.totalorder 2, %s9
    // Predicated region
    $region45: #{transformer_decoder.22} parent=5 // pred_check
      %p1775 = pneg %p1774
    $region46: #{transformer_decoder.22} parent=5 // pred_check_branch
      %1777 = sbr.rel (%p1775) target = $region48
    $region47: #{transformer_decoder.22} parent=5 // pred_region
      %s1778 = ssub.s32 %s9, 2
      // Predicated region
      $region49: #{transformer_decoder.22} parent=47 // pred_check
        %p1779 = pneg %p143
      $region50: #{transformer_decoder.22} parent=47 // pred_check_branch
        %1781 = sbr.rel (%p1779) target = $region52
      $region51: #{transformer_decoder.22} parent=47 // pred_region
        %p1782 = scmp.lt.s32.totalorder %s22, 1
        %s1783 = scalar_select %p1782, %s22, 1
        %p1784 = scmp.lt.s32.totalorder %s23, 0
        %s1785 = scalar_select %p1784, %s23, 0
        %s1786 = sadd.s32 %s1785, %s1783
        %s1787 = smul.addr %s1786, 4
        %s1788 = scalar_lea.vmem %s3, %s1787
      $region52: #{transformer_decoder.22} parent=47 // pred_fallthru
        _
    $region48: #{transformer_decoder.22} parent=5 // pred_fallthru
      _
  $region6: #{transformer_decoder.22} parent=0 // loop_footer
    %s13 = sadd.s32 1, %s9
  $region7: #{transformer_decoder.22} parent=0 // loop_footer_branch
    %8 = sbr.rel target = $region3
  $region8: #{transformer_decoder.22} parent=0 // loop_exit
    _

</llo_original>
